<compile_context>
chip_gen: v5e
topology: v5e:2x2
jax: 0.10.0
libtpu: 0.0.40
codegen_flags: <defaults>
</compile_context>

<pallas_src>
import functools

import jax
import jax.numpy as jnp
from jax import lax
from jax.experimental import pallas as pl
from jax.experimental.pallas import tpu as pltpu


# --------------------------------------------------------------------------- #
# Kernel
# --------------------------------------------------------------------------- #
def bottleneck_kernel(xt_ref, xm_ref, xb_ref,          # activations (bf16)
                      w1_ref, w2_ref, w3_ref,          # weights (bf16)
                      s1_ref, b1_ref, s2_ref, b2_ref,  # folded BN (f32)
                      s3_ref, b3_ref,
                      out_ref, *, dilation, img_h):
    d = dilation
    TH, W, Cin = xm_ref.shape          # H-tile rows, width, input channels
    P = w1_ref.shape[1]                # planes
    Cout = w3_ref.shape[1]             # planes * 4
    t = pl.program_id(1)               # H-tile index

    # ---- conv1 (1x1) + bn1 + relu over the H-halo'd window (halo recomputed) --
    window = jnp.concatenate([xt_ref[...], xm_ref[...], xb_ref[...]], axis=0)
    h1 = jnp.dot(window.reshape((TH + 2 * d) * W, Cin), w1_ref[...],
                 preferred_element_type=jnp.float32)
    h1 = jnp.maximum(h1 * s1_ref[...] + b1_ref[...], 0.0)
    h1 = h1.reshape(TH + 2 * d, W, P)

    # Zero rows that fall outside the real image: conv2's zero padding lives in
    # h1-space (post conv1+bn1+relu), not in x-space.
    row = lax.broadcasted_iota(jnp.int32, (TH + 2 * d, W, P), 0)
    r_img = t * TH + row - d
    h1 = jnp.where(jnp.logical_and(r_img >= 0, r_img < img_h), h1, 0.0)
    h1 = h1.astype(jnp.bfloat16)

    # ---- conv2 (3x3, dilation d, stride 1): 9 accumulated MXU matmuls --------
    # Horizontal taps: static rolls of h1 along W, boundary columns masked to 0
    # (no materialized padded buffer, no big im2col concat).
    col = lax.broadcasted_iota(jnp.int32, (TH + 2 * d, W, P), 1)
    zero = jnp.zeros_like(h1)
    h1_l = jnp.where(col >= d,      jnp.roll(h1,  d, axis=1), zero)   # src col w-d
    h1_r = jnp.where(col < (W - d), jnp.roll(h1, -d, axis=1), zero)   # src col w+d
    taps_by_kw = (h1_l, h1, h1_r)

    acc = jnp.zeros((TH * W, P), jnp.float32)
    for kh in range(3):                       # vertical taps are leading-dim slices (cheap)
        for kw in range(3):
            lhs = taps_by_kw[kw][kh * d:kh * d + TH].reshape(TH * W, P)
            acc += jnp.dot(lhs, w2_ref[kh * 3 + kw],
                           preferred_element_type=jnp.float32)
    h2 = jnp.maximum(acc * s2_ref[...] + b2_ref[...], 0.0)

    # ---- conv3 (1x1) + bn3 ----------------------------------------------------
    h3 = jnp.dot(h2.astype(jnp.bfloat16), w3_ref[...],
                 preferred_element_type=jnp.float32)
    h3 = h3 * s3_ref[...] + b3_ref[...]

    # ---- residual add (downsample=None -> identity) + relu --------------------
    res = xm_ref[...].astype(jnp.float32).reshape(TH * W, Cin)
    out = jnp.maximum(h3 + res, 0.0)
    out_ref[...] = out.reshape(TH, W, Cout).astype(out_ref.dtype)


# --------------------------------------------------------------------------- #
# Generation-aware sizing
# --------------------------------------------------------------------------- #
def _vmem_capacity_bytes():
    try:
        return int(pltpu.get_tpu_info().vmem_capacity_bytes)
    except Exception:
        return 64 * 1024 * 1024          # conservative (v7x) fallback


def _vmem_need_bytes(TH, W, Cin, P, Cout, d):
    bf, f4 = 2, 4
    x_tiles = 2 * TH * W * Cin * bf + 4 * d * W * Cin * bf     # main (x2) + 2 halos (x2)
    out_tile = 2 * TH * W * Cout * bf                          # bf16 out, double-buffered
    resident = (Cin * P + 9 * P * P + P * Cout) * bf + (4 * P + 2 * Cout) * f4
    scratch = ((TH + 2 * d) * W * P * (f4 + bf)                # h1 f32 + bf16
               + 2 * (TH + 2 * d) * W * P * bf                 # rolled/masked taps
               + 2 * TH * W * P * f4                           # conv2 acc + h2
               + TH * W * Cout * f4                            # h3
               + TH * W * Cin * f4)                            # f32 residual
    return x_tiles + out_tile + resident + 2 * scratch         # 2x margin for relayouts


def _pick_tile_h(H, W, Cin, P, Cout, d, vmem_limit):
    budget = int(vmem_limit * 0.6)       # headroom for Mosaic internal scratch
    cands = [th for th in range(H, 0, -1) if H % th == 0 and th % d == 0 and th >= d]
    for th in cands:
        if _vmem_need_bytes(th, W, Cin, P, Cout, d) <= budget:
            return th
    return cands[-1]


# --------------------------------------------------------------------------- #
# Wrapper
# --------------------------------------------------------------------------- #
def bottleneck_forward(x_nhwc, params, *, dilation=1, tile_h=None):
    """x_nhwc: (N, H, W, Cin), bf16 preferred (no wrapper relayout). Returns NHWC bf16."""
    w1, w2, w3, s1, b1, s2, b2, s3, b3 = params
    x = x_nhwc if x_nhwc.dtype == jnp.bfloat16 else x_nhwc.astype(jnp.bfloat16)
    N, H, W, Cin = x.shape
    P = w1.shape[1]
    Cout = w3.shape[1]
    d = dilation
    assert Cin == Cout, "downsample is None, so inplanes must equal planes*4"
    assert Cin % 128 == 0 and Cout % 128 == 0, \
        "pad channels to a multiple of 128 upstream: lane-sparse stores/MXU otherwise"
    assert P % 8 == 0
    assert H % d == 0

    vmem_cap = _vmem_capacity_bytes()
    vmem_limit = min(int(vmem_cap * 0.75), vmem_cap - (8 << 20))  # ~48MiB v7x, ~96MiB v5e/v6e

    if tile_h is None:
        tile_h = _pick_tile_h(H, W, Cin, P, Cout, d, vmem_limit)
    TH = tile_h
    assert H % TH == 0 and TH % d == 0 and d <= TH
    T = H // TH
    stride_blocks = TH // d

    w1b = w1.astype(jnp.bfloat16)                               # (Cin, P)
    w2b = w2.reshape(9, P, P).astype(jnp.bfloat16)              # (kh,kw,Pin,Pout)->(9,Pin,Pout)
    w3b = w3.astype(jnp.bfloat16)                               # (P, Cout)
    f32 = jnp.float32

    kern = functools.partial(bottleneck_kernel, dilation=d, img_h=H)

    def run(single_buffer_weights):
        def resident(shape):
            idx = lambda n, t, _nd=len(shape): (0,) * _nd
            if single_buffer_weights:
                try:
                    return pl.BlockSpec(shape, idx, pipeline_mode=pl.Buffered(1))
                except Exception:
                    return pl.BlockSpec(shape, idx)
            return pl.BlockSpec(shape, idx)

        grid_spec = pltpu.PrefetchScalarGridSpec(
            num_scalar_prefetch=0,
            grid=(N, T),
            in_specs=[
                # top halo: d rows above the tile (clamped at the top, masked in-kernel)
                pl.BlockSpec((None, d, W, Cin),
                             lambda n, t: (n, jnp.maximum(t * stride_blocks - 1, 0), 0, 0)),
                # main tile rows
                pl.BlockSpec((None, TH, W, Cin), lambda n, t: (n, t, 0, 0)),
                # bottom halo: d rows below the tile (clamped at the bottom, masked)
                pl.BlockSpec((None, d, W, Cin),
                             lambda n, t: (n, jnp.minimum((t + 1) * stride_blocks,
                                                          H // d - 1), 0, 0)),
                resident((Cin, P)), resident((9, P, P)), resident((P, Cout)),
                resident((1, P)), resident((1, P)),
                resident((1, P)), resident((1, P)),
                resident((1, Cout)), resident((1, Cout)),
            ],
            out_specs=pl.BlockSpec((None, TH, W, Cout), lambda n, t: (n, t, 0, 0)),
        )
        return pl.pallas_call(
            kern,
            out_shape=jax.ShapeDtypeStruct((N, H, W, Cout), jnp.bfloat16),
            grid_spec=grid_spec,
            compiler_params=pltpu.CompilerParams(
                dimension_semantics=("parallel", "parallel"),
                vmem_limit_bytes=int(vmem_limit),
            ),
        )(x, x, x, w1b, w2b, w3b,
          s1.reshape(1, P).astype(f32), b1.reshape(1, P).astype(f32),
          s2.reshape(1, P).astype(f32), b2.reshape(1, P).astype(f32),
          s3.reshape(1, Cout).astype(f32), b3.reshape(1, Cout).astype(f32))

    try:
        return run(True)          # single-buffered resident weights (VMEM headroom)
    except Exception:
        return run(False)         # fall back to default double-buffered weight specs


# --------------------------------------------------------------------------- #
# Parameters + pure-JAX reference
# --------------------------------------------------------------------------- #
def fold_bn(gamma, beta, mean, var, eps=1e-5):
    scale = gamma / jnp.sqrt(var + eps)
    bias = beta - mean * scale
    return scale, bias


def make_params(inplanes, planes, key):
    """Deterministic synthetic weights matching the nn.Module shapes (eval-mode BN)."""
    cout = planes * 4
    k1, k2, k3 = jax.random.split(key, 3)
    w1 = jax.random.normal(k1, (inplanes, planes), jnp.float32) * (inplanes ** -0.5)
    w2 = jax.random.normal(k2, (3, 3, planes, planes), jnp.float32) * ((9 * planes) ** -0.5)
    w3 = jax.random.normal(k3, (planes, cout), jnp.float32) * (planes ** -0.5)

    def bn_stats(c):
        r = jnp.arange(c, dtype=jnp.float32) / c
        gamma = 1.0 + 0.5 * r
        beta = 0.1 * (r - 0.5)
        mean = 0.2 * r
        var = 1.0 + r
        return fold_bn(gamma, beta, mean, var)

    s1, b1 = bn_stats(planes)
    s2, b2 = bn_stats(planes)
    s3, b3 = bn_stats(cout)
    return (w1, w2, w3, s1, b1, s2, b2, s3, b3)


def reference_forward_nhwc(x_nhwc, params, *, dilation=1):
    """Independent pure-JAX f32 NHWC reference mirroring the PyTorch Bottleneck."""
    w1, w2, w3, s1, b1, s2, b2, s3, b3 = params
    x = x_nhwc.astype(jnp.float32)
    dn = ("NHWC", "HWIO", "NHWC")
    hi = lax.Precision.HIGHEST

    def bn(y, s, b):
        return y * s.reshape(1, 1, 1, -1) + b.reshape(1, 1, 1, -1)

    out = lax.conv_general_dilated(x, w1[None, None], (1, 1), "VALID",
                                   dimension_numbers=dn, precision=hi)
    out = jnp.maximum(bn(out, s1, b1), 0.0)
    out = lax.conv_general_dilated(out, w2, (1, 1),
                                   [(dilation, dilation), (dilation, dilation)],
                                   rhs_dilation=(dilation, dilation),
                                   dimension_numbers=dn, precision=hi)
    out = jnp.maximum(bn(out, s2, b2), 0.0)
    out = lax.conv_general_dilated(out, w3[None, None], (1, 1), "VALID",
                                   dimension_numbers=dn, precision=hi)
    out = bn(out, s3, b3)
    return jnp.maximum(out + x, 0.0)


# --------------------------------------------------------------------------- #
# Test
# --------------------------------------------------------------------------- #
if __name__ == "__main__":
    # Real ResNet-50 layer1 bottleneck widths (lane-dense Cin=Cout=256, P=64),
    # small spatial extent; batch=2 so the parallel grid feeds both v7x cores.
    N, inplanes, planes, H, W = 2, 256, 64, 16, 16

    key = jax.random.PRNGKey(0)
    kx, kp = jax.random.split(key)
    # The surrounding model stays NHWC / bf16 -> no wrapper transpose/cast passes.
    x = jax.random.normal(kx, (N, H, W, inplanes), jnp.float32).astype(jnp.bfloat16)
    params = make_params(inplanes, planes, kp)

    # 1) auto (generation-aware) tile, dilation=1
    out = jax.block_until_ready(bottleneck_forward(x, params, dilation=1))
    ref = jax.block_until_ready(reference_forward_nhwc(x, params, dilation=1))
    assert out.shape == (N, H, W, planes * 4) and out.dtype == jnp.bfloat16, (out.shape, out.dtype)
    err = float(jnp.max(jnp.abs(out.astype(jnp.float32) - ref)))
    assert jnp.allclose(out.astype(jnp.float32), ref, rtol=5e-2, atol=1e-1), err

    # 2) multi-tile halo path (tile_h=8 -> 2 H-tiles) with dilation=2
    out2 = jax.block_until_ready(bottleneck_forward(x, params, dilation=2, tile_h=8))
    ref2 = jax.block_until_ready(reference_forward_nhwc(x, params, dilation=2))
    err2 = float(jnp.max(jnp.abs(out2.astype(jnp.float32) - ref2)))
    assert jnp.allclose(out2.astype(jnp.float32), ref2, rtol=5e-2, atol=1e-1), err2

    print("KERNEL_OK")
</pallas_src>

<mosaic_0001>
module attributes {stable_mosaic.version = 11 : i64} {
  func.func @bottleneck_kernel(%arg0: i32, %arg1: i32, %arg2: memref<1x1x16x256xbf16, #tpu.memory_space<vmem>>, %arg3: memref<1x16x16x256xbf16, #tpu.memory_space<vmem>>, %arg4: memref<1x1x16x256xbf16, #tpu.memory_space<vmem>>, %arg5: memref<256x64xbf16, #tpu.memory_space<vmem>>, %arg6: memref<9x64x64xbf16, #tpu.memory_space<vmem>>, %arg7: memref<64x256xbf16, #tpu.memory_space<vmem>>, %arg8: memref<1x64xf32, #tpu.memory_space<vmem>>, %arg9: memref<1x64xf32, #tpu.memory_space<vmem>>, %arg10: memref<1x64xf32, #tpu.memory_space<vmem>>, %arg11: memref<1x64xf32, #tpu.memory_space<vmem>>, %arg12: memref<1x256xf32, #tpu.memory_space<vmem>>, %arg13: memref<1x256xf32, #tpu.memory_space<vmem>>, %arg14: memref<1x16x16x256xbf16, #tpu.memory_space<vmem>>) attributes {dimension_semantics = [#tpu.dimension_semantics<parallel>, #tpu.dimension_semantics<parallel>], iteration_bounds = array<i64: 2, 1>, scalar_prefetch = 0 : i64, scratch_operands = 0 : i64, tpu.core_type = #tpu.core_type<tc>, window_params = [{transform_indices = @transform_0, window_bounds = array<i64: 1, 1, 16, 256>}, {transform_indices = @transform_1, window_bounds = array<i64: 1, 16, 16, 256>}, {transform_indices = @transform_2, window_bounds = array<i64: 1, 1, 16, 256>}, {pipeline_mode = #tpu.pipeline_mode<synchronous>, transform_indices = @transform_3, window_bounds = array<i64: 256, 64>}, {pipeline_mode = #tpu.pipeline_mode<synchronous>, transform_indices = @transform_4, window_bounds = array<i64: 9, 64, 64>}, {pipeline_mode = #tpu.pipeline_mode<synchronous>, transform_indices = @transform_5, window_bounds = array<i64: 64, 256>}, {pipeline_mode = #tpu.pipeline_mode<synchronous>, transform_indices = @transform_6, window_bounds = array<i64: 1, 64>}, {pipeline_mode = #tpu.pipeline_mode<synchronous>, transform_indices = @transform_7, window_bounds = array<i64: 1, 64>}, {pipeline_mode = #tpu.pipeline_mode<synchronous>, transform_indices = @transform_8, window_bounds = array<i64: 1, 64>}, {pipeline_mode = #tpu.pipeline_mode<synchronous>, transform_indices = @transform_9, window_bounds = array<i64: 1, 64>}, {pipeline_mode = #tpu.pipeline_mode<synchronous>, transform_indices = @transform_10, window_bounds = array<i64: 1, 256>}, {pipeline_mode = #tpu.pipeline_mode<synchronous>, transform_indices = @transform_11, window_bounds = array<i64: 1, 256>}, {transform_indices = @transform_12, window_bounds = array<i64: 1, 16, 16, 256>}]} {
    %c0 = arith.constant 0 : index
    %c0_0 = arith.constant 0 : index
    %c0_1 = arith.constant 0 : index
    %c0_2 = arith.constant 0 : index
    %0 = vector.load %arg2[%c0, %c0_0, %c0_1, %c0_2] : memref<1x1x16x256xbf16, #tpu.memory_space<vmem>>, vector<1x1x16x256xbf16>
    %1 = vector.shape_cast %0 : vector<1x1x16x256xbf16> to vector<1x16x256xbf16>
    %c0_3 = arith.constant 0 : index
    %c0_4 = arith.constant 0 : index
    %c0_5 = arith.constant 0 : index
    %c0_6 = arith.constant 0 : index
    %2 = vector.load %arg3[%c0_3, %c0_4, %c0_5, %c0_6] : memref<1x16x16x256xbf16, #tpu.memory_space<vmem>>, vector<1x16x16x256xbf16>
    %3 = vector.shape_cast %2 : vector<1x16x16x256xbf16> to vector<16x16x256xbf16>
    %c0_7 = arith.constant 0 : index
    %c0_8 = arith.constant 0 : index
    %c0_9 = arith.constant 0 : index
    %c0_10 = arith.constant 0 : index
    %4 = vector.load %arg4[%c0_7, %c0_8, %c0_9, %c0_10] : memref<1x1x16x256xbf16, #tpu.memory_space<vmem>>, vector<1x1x16x256xbf16>
    %5 = vector.shape_cast %4 : vector<1x1x16x256xbf16> to vector<1x16x256xbf16>
    %6 = tpu.concatenate %1, %3, %5 in 0 : vector<1x16x256xbf16>, vector<16x16x256xbf16>, vector<1x16x256xbf16> -> vector<18x16x256xbf16>
    %7 = vector.shape_cast %6 : vector<18x16x256xbf16> to vector<288x256xbf16>
    %c0_11 = arith.constant 0 : index
    %c0_12 = arith.constant 0 : index
    %8 = vector.load %arg5[%c0_11, %c0_12] : memref<256x64xbf16, #tpu.memory_space<vmem>>, vector<256x64xbf16>
    %cst = arith.constant dense<0.000000e+00> : vector<288x64xf32>
    %9 = tpu.matmul %7, %8, %cst {dimension_numbers = #tpu.dot_dimension_numbers<[1], [0], [0], [1], [0, 0, 1, 1], [], []>} : vector<288x256xbf16>, vector<256x64xbf16>, vector<288x64xf32> -> vector<288x64xf32>
    %c0_13 = arith.constant 0 : index
    %c0_14 = arith.constant 0 : index
    %10 = vector.load %arg8[%c0_13, %c0_14] : memref<1x64xf32, #tpu.memory_space<vmem>>, vector<1x64xf32>
    %11 = vector.broadcast %10 : vector<1x64xf32> to vector<288x64xf32>
    %12 = arith.mulf %9, %11 : vector<288x64xf32>
    %c0_15 = arith.constant 0 : index
    %c0_16 = arith.constant 0 : index
    %13 = vector.load %arg9[%c0_15, %c0_16] : memref<1x64xf32, #tpu.memory_space<vmem>>, vector<1x64xf32>
    %14 = vector.broadcast %13 : vector<1x64xf32> to vector<288x64xf32>
    %15 = arith.addf %12, %14 : vector<288x64xf32>
    %cst_17 = arith.constant 0.000000e+00 : f32
    %16 = vector.broadcast %cst_17 : f32 to vector<288x64xf32>
    %17 = arith.maximumf %15, %16 : vector<288x64xf32>
    %18 = vector.shape_cast %17 : vector<288x64xf32> to vector<18x16x64xf32>
    %19 = tpu.iota {dimensions = array<i32: 0>} : vector<18x16x64xi32>
    %c16_i32 = arith.constant 16 : i32
    %20 = arith.muli %arg1, %c16_i32 : i32
    %21 = vector.broadcast %20 : i32 to vector<18x16x64xi32>
    %22 = arith.addi %21, %19 : vector<18x16x64xi32>
    %c1_i32 = arith.constant 1 : i32
    %23 = vector.broadcast %c1_i32 : i32 to vector<18x16x64xi32>
    %24 = arith.subi %22, %23 : vector<18x16x64xi32>
    %c0_i32 = arith.constant 0 : i32
    %25 = vector.broadcast %c0_i32 : i32 to vector<18x16x64xi32>
    %26 = arith.cmpi sge, %24, %25 : vector<18x16x64xi32>
    %c16_i32_18 = arith.constant 16 : i32
    %27 = vector.broadcast %c16_i32_18 : i32 to vector<18x16x64xi32>
    %28 = arith.cmpi slt, %24, %27 : vector<18x16x64xi32>
    %29 = arith.andi %26, %28 : vector<18x16x64xi1>
    %cst_19 = arith.constant 0.000000e+00 : f32
    %30 = vector.broadcast %cst_19 : f32 to vector<18x16x64xf32>
    %31 = arith.select %29, %18, %30 : vector<18x16x64xi1>, vector<18x16x64xf32>
    %32 = arith.truncf %31 : vector<18x16x64xf32> to vector<18x16x64xbf16>
    %33 = tpu.iota {dimensions = array<i32: 1>} : vector<18x16x64xi32>
    %cst_20 = arith.constant 0.000000e+00 : bf16
    %34 = vector.broadcast %cst_20 : bf16 to vector<18x16x64xbf16>
    %c1_i32_21 = arith.constant 1 : i32
    %35 = vector.broadcast %c1_i32_21 : i32 to vector<18x16x64xi32>
    %36 = arith.cmpi sge, %33, %35 : vector<18x16x64xi32>
    %37 = vector.extract_strided_slice %32 {offsets = [0, 15, 0], sizes = [18, 1, 64], strides = [1, 1, 1]} : vector<18x16x64xbf16> to vector<18x1x64xbf16>
    %38 = vector.extract_strided_slice %32 {offsets = [0, 0, 0], sizes = [18, 15, 64], strides = [1, 1, 1]} : vector<18x16x64xbf16> to vector<18x15x64xbf16>
    %39 = tpu.concatenate %37, %38 in 1 : vector<18x1x64xbf16>, vector<18x15x64xbf16> -> vector<18x16x64xbf16>
    %40 = arith.select %36, %39, %34 : vector<18x16x64xi1>, vector<18x16x64xbf16>
    %c15_i32 = arith.constant 15 : i32
    %41 = vector.broadcast %c15_i32 : i32 to vector<18x16x64xi32>
    %42 = arith.cmpi slt, %33, %41 : vector<18x16x64xi32>
    %43 = vector.extract_strided_slice %32 {offsets = [0, 1, 0], sizes = [18, 15, 64], strides = [1, 1, 1]} : vector<18x16x64xbf16> to vector<18x15x64xbf16>
    %44 = vector.extract_strided_slice %32 {offsets = [0, 0, 0], sizes = [18, 1, 64], strides = [1, 1, 1]} : vector<18x16x64xbf16> to vector<18x1x64xbf16>
    %45 = tpu.concatenate %43, %44 in 1 : vector<18x15x64xbf16>, vector<18x1x64xbf16> -> vector<18x16x64xbf16>
    %46 = arith.select %42, %45, %34 : vector<18x16x64xi1>, vector<18x16x64xbf16>
    %cst_22 = arith.constant 0.000000e+00 : f32
    %47 = vector.broadcast %cst_22 : f32 to vector<256x64xf32>
    %48 = vector.extract_strided_slice %40 {offsets = [0, 0, 0], sizes = [16, 16, 64], strides = [1, 1, 1]} : vector<18x16x64xbf16> to vector<16x16x64xbf16>
    %49 = vector.shape_cast %48 : vector<16x16x64xbf16> to vector<256x64xbf16>
    %c0_23 = arith.constant 0 : index
    %c0_24 = arith.constant 0 : index
    %c0_25 = arith.constant 0 : index
    %50 = vector.load %arg6[%c0_23, %c0_24, %c0_25] : memref<9x64x64xbf16, #tpu.memory_space<vmem>>, vector<1x64x64xbf16>
    %51 = vector.shape_cast %50 : vector<1x64x64xbf16> to vector<64x64xbf16>
    %cst_26 = arith.constant dense<0.000000e+00> : vector<256x64xf32>
    %52 = tpu.matmul %49, %51, %cst_26 {dimension_numbers = #tpu.dot_dimension_numbers<[1], [0], [0], [1], [0, 0, 1, 1], [], []>} : vector<256x64xbf16>, vector<64x64xbf16>, vector<256x64xf32> -> vector<256x64xf32>
    %53 = arith.addf %47, %52 : vector<256x64xf32>
    %54 = vector.extract_strided_slice %32 {offsets = [0, 0, 0], sizes = [16, 16, 64], strides = [1, 1, 1]} : vector<18x16x64xbf16> to vector<16x16x64xbf16>
    %55 = vector.shape_cast %54 : vector<16x16x64xbf16> to vector<256x64xbf16>
    %c1 = arith.constant 1 : index
    %c0_27 = arith.constant 0 : index
    %c0_28 = arith.constant 0 : index
    %56 = vector.load %arg6[%c1, %c0_27, %c0_28] : memref<9x64x64xbf16, #tpu.memory_space<vmem>>, vector<1x64x64xbf16>
    %57 = vector.shape_cast %56 : vector<1x64x64xbf16> to vector<64x64xbf16>
    %cst_29 = arith.constant dense<0.000000e+00> : vector<256x64xf32>
    %58 = tpu.matmul %55, %57, %cst_29 {dimension_numbers = #tpu.dot_dimension_numbers<[1], [0], [0], [1], [0, 0, 1, 1], [], []>} : vector<256x64xbf16>, vector<64x64xbf16>, vector<256x64xf32> -> vector<256x64xf32>
    %59 = arith.addf %53, %58 : vector<256x64xf32>
    %60 = vector.extract_strided_slice %46 {offsets = [0, 0, 0], sizes = [16, 16, 64], strides = [1, 1, 1]} : vector<18x16x64xbf16> to vector<16x16x64xbf16>
    %61 = vector.shape_cast %60 : vector<16x16x64xbf16> to vector<256x64xbf16>
    %c2 = arith.constant 2 : index
    %c0_30 = arith.constant 0 : index
    %c0_31 = arith.constant 0 : index
    %62 = vector.load %arg6[%c2, %c0_30, %c0_31] : memref<9x64x64xbf16, #tpu.memory_space<vmem>>, vector<1x64x64xbf16>
    %63 = vector.shape_cast %62 : vector<1x64x64xbf16> to vector<64x64xbf16>
    %cst_32 = arith.constant dense<0.000000e+00> : vector<256x64xf32>
    %64 = tpu.matmul %61, %63, %cst_32 {dimension_numbers = #tpu.dot_dimension_numbers<[1], [0], [0], [1], [0, 0, 1, 1], [], []>} : vector<256x64xbf16>, vector<64x64xbf16>, vector<256x64xf32> -> vector<256x64xf32>
    %65 = arith.addf %59, %64 : vector<256x64xf32>
    %66 = vector.extract_strided_slice %40 {offsets = [1, 0, 0], sizes = [16, 16, 64], strides = [1, 1, 1]} : vector<18x16x64xbf16> to vector<16x16x64xbf16>
    %67 = vector.shape_cast %66 : vector<16x16x64xbf16> to vector<256x64xbf16>
    %c3 = arith.constant 3 : index
    %c0_33 = arith.constant 0 : index
    %c0_34 = arith.constant 0 : index
    %68 = vector.load %arg6[%c3, %c0_33, %c0_34] : memref<9x64x64xbf16, #tpu.memory_space<vmem>>, vector<1x64x64xbf16>
    %69 = vector.shape_cast %68 : vector<1x64x64xbf16> to vector<64x64xbf16>
    %cst_35 = arith.constant dense<0.000000e+00> : vector<256x64xf32>
    %70 = tpu.matmul %67, %69, %cst_35 {dimension_numbers = #tpu.dot_dimension_numbers<[1], [0], [0], [1], [0, 0, 1, 1], [], []>} : vector<256x64xbf16>, vector<64x64xbf16>, vector<256x64xf32> -> vector<256x64xf32>
    %71 = arith.addf %65, %70 : vector<256x64xf32>
    %72 = vector.extract_strided_slice %32 {offsets = [1, 0, 0], sizes = [16, 16, 64], strides = [1, 1, 1]} : vector<18x16x64xbf16> to vector<16x16x64xbf16>
    %73 = vector.shape_cast %72 : vector<16x16x64xbf16> to vector<256x64xbf16>
    %c4 = arith.constant 4 : index
    %c0_36 = arith.constant 0 : index
    %c0_37 = arith.constant 0 : index
    %74 = vector.load %arg6[%c4, %c0_36, %c0_37] : memref<9x64x64xbf16, #tpu.memory_space<vmem>>, vector<1x64x64xbf16>
    %75 = vector.shape_cast %74 : vector<1x64x64xbf16> to vector<64x64xbf16>
    %cst_38 = arith.constant dense<0.000000e+00> : vector<256x64xf32>
    %76 = tpu.matmul %73, %75, %cst_38 {dimension_numbers = #tpu.dot_dimension_numbers<[1], [0], [0], [1], [0, 0, 1, 1], [], []>} : vector<256x64xbf16>, vector<64x64xbf16>, vector<256x64xf32> -> vector<256x64xf32>
    %77 = arith.addf %71, %76 : vector<256x64xf32>
    %78 = vector.extract_strided_slice %46 {offsets = [1, 0, 0], sizes = [16, 16, 64], strides = [1, 1, 1]} : vector<18x16x64xbf16> to vector<16x16x64xbf16>
    %79 = vector.shape_cast %78 : vector<16x16x64xbf16> to vector<256x64xbf16>
    %c5 = arith.constant 5 : index
    %c0_39 = arith.constant 0 : index
    %c0_40 = arith.constant 0 : index
    %80 = vector.load %arg6[%c5, %c0_39, %c0_40] : memref<9x64x64xbf16, #tpu.memory_space<vmem>>, vector<1x64x64xbf16>
    %81 = vector.shape_cast %80 : vector<1x64x64xbf16> to vector<64x64xbf16>
    %cst_41 = arith.constant dense<0.000000e+00> : vector<256x64xf32>
    %82 = tpu.matmul %79, %81, %cst_41 {dimension_numbers = #tpu.dot_dimension_numbers<[1], [0], [0], [1], [0, 0, 1, 1], [], []>} : vector<256x64xbf16>, vector<64x64xbf16>, vector<256x64xf32> -> vector<256x64xf32>
    %83 = arith.addf %77, %82 : vector<256x64xf32>
    %84 = vector.extract_strided_slice %40 {offsets = [2, 0, 0], sizes = [16, 16, 64], strides = [1, 1, 1]} : vector<18x16x64xbf16> to vector<16x16x64xbf16>
    %85 = vector.shape_cast %84 : vector<16x16x64xbf16> to vector<256x64xbf16>
    %c6 = arith.constant 6 : index
    %c0_42 = arith.constant 0 : index
    %c0_43 = arith.constant 0 : index
    %86 = vector.load %arg6[%c6, %c0_42, %c0_43] : memref<9x64x64xbf16, #tpu.memory_space<vmem>>, vector<1x64x64xbf16>
    %87 = vector.shape_cast %86 : vector<1x64x64xbf16> to vector<64x64xbf16>
    %cst_44 = arith.constant dense<0.000000e+00> : vector<256x64xf32>
    %88 = tpu.matmul %85, %87, %cst_44 {dimension_numbers = #tpu.dot_dimension_numbers<[1], [0], [0], [1], [0, 0, 1, 1], [], []>} : vector<256x64xbf16>, vector<64x64xbf16>, vector<256x64xf32> -> vector<256x64xf32>
    %89 = arith.addf %83, %88 : vector<256x64xf32>
    %90 = vector.extract_strided_slice %32 {offsets = [2, 0, 0], sizes = [16, 16, 64], strides = [1, 1, 1]} : vector<18x16x64xbf16> to vector<16x16x64xbf16>
    %91 = vector.shape_cast %90 : vector<16x16x64xbf16> to vector<256x64xbf16>
    %c7 = arith.constant 7 : index
    %c0_45 = arith.constant 0 : index
    %c0_46 = arith.constant 0 : index
    %92 = vector.load %arg6[%c7, %c0_45, %c0_46] : memref<9x64x64xbf16, #tpu.memory_space<vmem>>, vector<1x64x64xbf16>
    %93 = vector.shape_cast %92 : vector<1x64x64xbf16> to vector<64x64xbf16>
    %cst_47 = arith.constant dense<0.000000e+00> : vector<256x64xf32>
    %94 = tpu.matmul %91, %93, %cst_47 {dimension_numbers = #tpu.dot_dimension_numbers<[1], [0], [0], [1], [0, 0, 1, 1], [], []>} : vector<256x64xbf16>, vector<64x64xbf16>, vector<256x64xf32> -> vector<256x64xf32>
    %95 = arith.addf %89, %94 : vector<256x64xf32>
    %96 = vector.extract_strided_slice %46 {offsets = [2, 0, 0], sizes = [16, 16, 64], strides = [1, 1, 1]} : vector<18x16x64xbf16> to vector<16x16x64xbf16>
    %97 = vector.shape_cast %96 : vector<16x16x64xbf16> to vector<256x64xbf16>
    %c8 = arith.constant 8 : index
    %c0_48 = arith.constant 0 : index
    %c0_49 = arith.constant 0 : index
    %98 = vector.load %arg6[%c8, %c0_48, %c0_49] : memref<9x64x64xbf16, #tpu.memory_space<vmem>>, vector<1x64x64xbf16>
    %99 = vector.shape_cast %98 : vector<1x64x64xbf16> to vector<64x64xbf16>
    %cst_50 = arith.constant dense<0.000000e+00> : vector<256x64xf32>
    %100 = tpu.matmul %97, %99, %cst_50 {dimension_numbers = #tpu.dot_dimension_numbers<[1], [0], [0], [1], [0, 0, 1, 1], [], []>} : vector<256x64xbf16>, vector<64x64xbf16>, vector<256x64xf32> -> vector<256x64xf32>
    %101 = arith.addf %95, %100 : vector<256x64xf32>
    %c0_51 = arith.constant 0 : index
    %c0_52 = arith.constant 0 : index
    %102 = vector.load %arg10[%c0_51, %c0_52] : memref<1x64xf32, #tpu.memory_space<vmem>>, vector<1x64xf32>
    %103 = vector.broadcast %102 : vector<1x64xf32> to vector<256x64xf32>
    %104 = arith.mulf %101, %103 : vector<256x64xf32>
    %c0_53 = arith.constant 0 : index
    %c0_54 = arith.constant 0 : index
    %105 = vector.load %arg11[%c0_53, %c0_54] : memref<1x64xf32, #tpu.memory_space<vmem>>, vector<1x64xf32>
    %106 = vector.broadcast %105 : vector<1x64xf32> to vector<256x64xf32>
    %107 = arith.addf %104, %106 : vector<256x64xf32>
    %cst_55 = arith.constant 0.000000e+00 : f32
    %108 = vector.broadcast %cst_55 : f32 to vector<256x64xf32>
    %109 = arith.maximumf %107, %108 : vector<256x64xf32>
    %110 = arith.truncf %109 : vector<256x64xf32> to vector<256x64xbf16>
    %c0_56 = arith.constant 0 : index
    %c0_57 = arith.constant 0 : index
    %111 = vector.load %arg7[%c0_56, %c0_57] : memref<64x256xbf16, #tpu.memory_space<vmem>>, vector<64x256xbf16>
    %cst_58 = arith.constant dense<0.000000e+00> : vector<256x256xf32>
    %112 = tpu.matmul %110, %111, %cst_58 {dimension_numbers = #tpu.dot_dimension_numbers<[1], [0], [0], [1], [0, 0, 1, 1], [], []>} : vector<256x64xbf16>, vector<64x256xbf16>, vector<256x256xf32> -> vector<256x256xf32>
    %c0_59 = arith.constant 0 : index
    %c0_60 = arith.constant 0 : index
    %113 = vector.load %arg12[%c0_59, %c0_60] : memref<1x256xf32, #tpu.memory_space<vmem>>, vector<1x256xf32>
    %114 = vector.broadcast %113 : vector<1x256xf32> to vector<256x256xf32>
    %115 = arith.mulf %112, %114 : vector<256x256xf32>
    %c0_61 = arith.constant 0 : index
    %c0_62 = arith.constant 0 : index
    %116 = vector.load %arg13[%c0_61, %c0_62] : memref<1x256xf32, #tpu.memory_space<vmem>>, vector<1x256xf32>
    %117 = vector.broadcast %116 : vector<1x256xf32> to vector<256x256xf32>
    %118 = arith.addf %115, %117 : vector<256x256xf32>
    %c0_63 = arith.constant 0 : index
    %c0_64 = arith.constant 0 : index
    %c0_65 = arith.constant 0 : index
    %c0_66 = arith.constant 0 : index
    %119 = vector.load %arg3[%c0_63, %c0_64, %c0_65, %c0_66] : memref<1x16x16x256xbf16, #tpu.memory_space<vmem>>, vector<1x16x16x256xbf16>
    %120 = vector.shape_cast %119 : vector<1x16x16x256xbf16> to vector<16x16x256xbf16>
    %121 = arith.extf %120 : vector<16x16x256xbf16> to vector<16x16x256xf32>
    %122 = vector.shape_cast %121 : vector<16x16x256xf32> to vector<256x256xf32>
    %123 = arith.addf %118, %122 : vector<256x256xf32>
    %cst_67 = arith.constant 0.000000e+00 : f32
    %124 = vector.broadcast %cst_67 : f32 to vector<256x256xf32>
    %125 = arith.maximumf %123, %124 : vector<256x256xf32>
    %126 = vector.shape_cast %125 : vector<256x256xf32> to vector<16x16x256xf32>
    %127 = arith.truncf %126 : vector<16x16x256xf32> to vector<16x16x256xbf16>
    %c0_68 = arith.constant 0 : index
    %c0_69 = arith.constant 0 : index
    %c0_70 = arith.constant 0 : index
    %c0_71 = arith.constant 0 : index
    %128 = vector.load %arg14[%c0_68, %c0_69, %c0_70, %c0_71] : memref<1x16x16x256xbf16, #tpu.memory_space<vmem>>, vector<1x16x16x256xbf16>
    %129 = vector.shape_cast %128 : vector<1x16x16x256xbf16> to vector<16x16x256xbf16>
    %130 = vector.shape_cast %127 : vector<16x16x256xbf16> to vector<1x16x16x256xbf16>
    tpu.vector_store %arg14[%c0_68, %c0_69, %c0_70, %c0_71], %130 {strides = array<i32>} : memref<1x16x16x256xbf16, #tpu.memory_space<vmem>>, vector<1x16x16x256xbf16>,
    return
  }
  func.func @transform_0(%arg0: i32, %arg1: i32) -> (i32, i32, i32, i32) {
    %c16_i32 = arith.constant 16 : i32
    %0 = arith.muli %arg1, %c16_i32 : i32
    %c1_i32 = arith.constant 1 : i32
    %1 = arith.subi %0, %c1_i32 : i32
    %c0_i32 = arith.constant 0 : i32
    %2 = arith.maxsi %1, %c0_i32 : i32
    %c0_i32_0 = arith.constant 0 : i32
    %c0_i32_1 = arith.constant 0 : i32
    %c0_i32_2 = arith.constant 0 : i32
    return %arg0, %2, %c0_i32_0, %c0_i32_1 : i32, i32, i32, i32
  }
  func.func @transform_1(%arg0: i32, %arg1: i32) -> (i32, i32, i32, i32) {
    %c0_i32 = arith.constant 0 : i32
    %c0_i32_0 = arith.constant 0 : i32
    %c0_i32_1 = arith.constant 0 : i32
    return %arg0, %arg1, %c0_i32, %c0_i32_0 : i32, i32, i32, i32
  }
  func.func @transform_2(%arg0: i32, %arg1: i32) -> (i32, i32, i32, i32) {
    %c1_i32 = arith.constant 1 : i32
    %0 = arith.addi %arg1, %c1_i32 : i32
    %c16_i32 = arith.constant 16 : i32
    %1 = arith.muli %0, %c16_i32 : i32
    %c15_i32 = arith.constant 15 : i32
    %2 = arith.minsi %1, %c15_i32 : i32
    %c0_i32 = arith.constant 0 : i32
    %c0_i32_0 = arith.constant 0 : i32
    %c0_i32_1 = arith.constant 0 : i32
    return %arg0, %2, %c0_i32, %c0_i32_0 : i32, i32, i32, i32
  }
  func.func @transform_3(%arg0: i32, %arg1: i32) -> (i32, i32) {
    %c0_i32 = arith.constant 0 : i32
    %c0_i32_0 = arith.constant 0 : i32
    %c0_i32_1 = arith.constant 0 : i32
    return %c0_i32, %c0_i32_0 : i32, i32
  }
  func.func @transform_4(%arg0: i32, %arg1: i32) -> (i32, i32, i32) {
    %c0_i32 = arith.constant 0 : i32
    %c0_i32_0 = arith.constant 0 : i32
    %c0_i32_1 = arith.constant 0 : i32
    %c0_i32_2 = arith.constant 0 : i32
    return %c0_i32, %c0_i32_0, %c0_i32_1 : i32, i32, i32
  }
  func.func @transform_5(%arg0: i32, %arg1: i32) -> (i32, i32) {
    %c0_i32 = arith.constant 0 : i32
    %c0_i32_0 = arith.constant 0 : i32
    %c0_i32_1 = arith.constant 0 : i32
    return %c0_i32, %c0_i32_0 : i32, i32
  }
  func.func @transform_6(%arg0: i32, %arg1: i32) -> (i32, i32) {
    %c0_i32 = arith.constant 0 : i32
    %c0_i32_0 = arith.constant 0 : i32
    %c0_i32_1 = arith.constant 0 : i32
    return %c0_i32, %c0_i32_0 : i32, i32
  }
  func.func @transform_7(%arg0: i32, %arg1: i32) -> (i32, i32) {
    %c0_i32 = arith.constant 0 : i32
    %c0_i32_0 = arith.constant 0 : i32
    %c0_i32_1 = arith.constant 0 : i32
    return %c0_i32, %c0_i32_0 : i32, i32
  }
  func.func @transform_8(%arg0: i32, %arg1: i32) -> (i32, i32) {
    %c0_i32 = arith.constant 0 : i32
    %c0_i32_0 = arith.constant 0 : i32
    %c0_i32_1 = arith.constant 0 : i32
    return %c0_i32, %c0_i32_0 : i32, i32
  }
  func.func @transform_9(%arg0: i32, %arg1: i32) -> (i32, i32) {
    %c0_i32 = arith.constant 0 : i32
    %c0_i32_0 = arith.constant 0 : i32
    %c0_i32_1 = arith.constant 0 : i32
    return %c0_i32, %c0_i32_0 : i32, i32
  }
  func.func @transform_10(%arg0: i32, %arg1: i32) -> (i32, i32) {
    %c0_i32 = arith.constant 0 : i32
    %c0_i32_0 = arith.constant 0 : i32
    %c0_i32_1 = arith.constant 0 : i32
    return %c0_i32, %c0_i32_0 : i32, i32
  }
  func.func @transform_11(%arg0: i32, %arg1: i32) -> (i32, i32) {
    %c0_i32 = arith.constant 0 : i32
    %c0_i32_0 = arith.constant 0 : i32
    %c0_i32_1 = arith.constant 0 : i32
    return %c0_i32, %c0_i32_0 : i32, i32
  }
  func.func @transform_12(%arg0: i32, %arg1: i32) -> (i32, i32, i32, i32) {
    %c0_i32 = arith.constant 0 : i32
    %c0_i32_0 = arith.constant 0 : i32
    %c0_i32_1 = arith.constant 0 : i32
    return %arg0, %arg1, %c0_i32, %c0_i32_0 : i32, i32, i32, i32
  }
}

module attributes {stable_mosaic.version = 11 : i64} {
  func.func @bottleneck_kernel(%arg0: i32, %arg1: i32, %arg2: memref<1x1x16x256xbf16, #tpu.memory_space<vmem>>, %arg3: memref<1x16x16x256xbf16, #tpu.memory_space<vmem>>, %arg4: memref<1x1x16x256xbf16, #tpu.memory_space<vmem>>, %arg5: memref<256x64xbf16, #tpu.memory_space<vmem>>, %arg6: memref<9x64x64xbf16, #tpu.memory_space<vmem>>, %arg7: memref<64x256xbf16, #tpu.memory_space<vmem>>, %arg8: memref<1x64xf32, #tpu.memory_space<vmem>>, %arg9: memref<1x64xf32, #tpu.memory_space<vmem>>, %arg10: memref<1x64xf32, #tpu.memory_space<vmem>>, %arg11: memref<1x64xf32, #tpu.memory_space<vmem>>, %arg12: memref<1x256xf32, #tpu.memory_space<vmem>>, %arg13: memref<1x256xf32, #tpu.memory_space<vmem>>, %arg14: memref<1x16x16x256xbf16, #tpu.memory_space<vmem>>) attributes {dimension_semantics = [#tpu.dimension_semantics<parallel>, #tpu.dimension_semantics<parallel>], iteration_bounds = array<i64: 2, 1>, scalar_prefetch = 0 : i64, scratch_operands = 0 : i64, tpu.core_type = #tpu.core_type<tc>, window_params = [{transform_indices = @transform_0, window_bounds = array<i64: 1, 1, 16, 256>}, {transform_indices = @transform_1, window_bounds = array<i64: 1, 16, 16, 256>}, {transform_indices = @transform_2, window_bounds = array<i64: 1, 1, 16, 256>}, {pipeline_mode = #tpu.pipeline_mode<synchronous>, transform_indices = @transform_3, window_bounds = array<i64: 256, 64>}, {pipeline_mode = #tpu.pipeline_mode<synchronous>, transform_indices = @transform_4, window_bounds = array<i64: 9, 64, 64>}, {pipeline_mode = #tpu.pipeline_mode<synchronous>, transform_indices = @transform_5, window_bounds = array<i64: 64, 256>}, {pipeline_mode = #tpu.pipeline_mode<synchronous>, transform_indices = @transform_6, window_bounds = array<i64: 1, 64>}, {pipeline_mode = #tpu.pipeline_mode<synchronous>, transform_indices = @transform_7, window_bounds = array<i64: 1, 64>}, {pipeline_mode = #tpu.pipeline_mode<synchronous>, transform_indices = @transform_8, window_bounds = array<i64: 1, 64>}, {pipeline_mode = #tpu.pipeline_mode<synchronous>, transform_indices = @transform_9, window_bounds = array<i64: 1, 64>}, {pipeline_mode = #tpu.pipeline_mode<synchronous>, transform_indices = @transform_10, window_bounds = array<i64: 1, 256>}, {pipeline_mode = #tpu.pipeline_mode<synchronous>, transform_indices = @transform_11, window_bounds = array<i64: 1, 256>}, {transform_indices = @transform_12, window_bounds = array<i64: 1, 16, 16, 256>}]} {
    %c0 = arith.constant 0 : index
    %c0_0 = arith.constant 0 : index
    %c0_1 = arith.constant 0 : index
    %c0_2 = arith.constant 0 : index
    %0 = vector.load %arg2[%c0, %c0_0, %c0_1, %c0_2] : memref<1x1x16x256xbf16, #tpu.memory_space<vmem>>, vector<1x1x16x256xbf16>
    %1 = vector.shape_cast %0 : vector<1x1x16x256xbf16> to vector<1x16x256xbf16>
    %c0_3 = arith.constant 0 : index
    %c0_4 = arith.constant 0 : index
    %c0_5 = arith.constant 0 : index
    %c0_6 = arith.constant 0 : index
    %2 = vector.load %arg3[%c0_3, %c0_4, %c0_5, %c0_6] : memref<1x16x16x256xbf16, #tpu.memory_space<vmem>>, vector<1x16x16x256xbf16>
    %3 = vector.shape_cast %2 : vector<1x16x16x256xbf16> to vector<16x16x256xbf16>
    %c0_7 = arith.constant 0 : index
    %c0_8 = arith.constant 0 : index
    %c0_9 = arith.constant 0 : index
    %c0_10 = arith.constant 0 : index
    %4 = vector.load %arg4[%c0_7, %c0_8, %c0_9, %c0_10] : memref<1x1x16x256xbf16, #tpu.memory_space<vmem>>, vector<1x1x16x256xbf16>
    %5 = vector.shape_cast %4 : vector<1x1x16x256xbf16> to vector<1x16x256xbf16>
    %6 = tpu.concatenate %1, %3, %5 in 0 : vector<1x16x256xbf16>, vector<16x16x256xbf16>, vector<1x16x256xbf16> -> vector<18x16x256xbf16>
    %7 = vector.shape_cast %6 : vector<18x16x256xbf16> to vector<288x256xbf16>
    %c0_11 = arith.constant 0 : index
    %c0_12 = arith.constant 0 : index
    %8 = vector.load %arg5[%c0_11, %c0_12] : memref<256x64xbf16, #tpu.memory_space<vmem>>, vector<256x64xbf16>
    %cst = arith.constant dense<0.000000e+00> : vector<288x64xf32>
    %9 = tpu.matmul %7, %8, %cst {dimension_numbers = #tpu.dot_dimension_numbers<[1], [0], [0], [1], [0, 0, 1, 1], [], []>} : vector<288x256xbf16>, vector<256x64xbf16>, vector<288x64xf32> -> vector<288x64xf32>
    %c0_13 = arith.constant 0 : index
    %c0_14 = arith.constant 0 : index
    %10 = vector.load %arg8[%c0_13, %c0_14] : memref<1x64xf32, #tpu.memory_space<vmem>>, vector<1x64xf32>
    %11 = vector.broadcast %10 : vector<1x64xf32> to vector<288x64xf32>
    %12 = arith.mulf %9, %11 : vector<288x64xf32>
    %c0_15 = arith.constant 0 : index
    %c0_16 = arith.constant 0 : index
    %13 = vector.load %arg9[%c0_15, %c0_16] : memref<1x64xf32, #tpu.memory_space<vmem>>, vector<1x64xf32>
    %14 = vector.broadcast %13 : vector<1x64xf32> to vector<288x64xf32>
    %15 = arith.addf %12, %14 : vector<288x64xf32>
    %cst_17 = arith.constant 0.000000e+00 : f32
    %16 = vector.broadcast %cst_17 : f32 to vector<288x64xf32>
    %17 = arith.maximumf %15, %16 : vector<288x64xf32>
    %18 = vector.shape_cast %17 : vector<288x64xf32> to vector<18x16x64xf32>
    %19 = tpu.iota {dimensions = array<i32: 0>} : vector<18x16x64xi32>
    %c16_i32 = arith.constant 16 : i32
    %20 = arith.muli %arg1, %c16_i32 : i32
    %21 = vector.broadcast %20 : i32 to vector<18x16x64xi32>
    %22 = arith.addi %21, %19 : vector<18x16x64xi32>
    %c1_i32 = arith.constant 1 : i32
    %23 = vector.broadcast %c1_i32 : i32 to vector<18x16x64xi32>
    %24 = arith.subi %22, %23 : vector<18x16x64xi32>
    %c0_i32 = arith.constant 0 : i32
    %25 = vector.broadcast %c0_i32 : i32 to vector<18x16x64xi32>
    %26 = arith.cmpi sge, %24, %25 : vector<18x16x64xi32>
    %c16_i32_18 = arith.constant 16 : i32
    %27 = vector.broadcast %c16_i32_18 : i32 to vector<18x16x64xi32>
    %28 = arith.cmpi slt, %24, %27 : vector<18x16x64xi32>
    %29 = arith.andi %26, %28 : vector<18x16x64xi1>
    %cst_19 = arith.constant 0.000000e+00 : f32
    %30 = vector.broadcast %cst_19 : f32 to vector<18x16x64xf32>
    %31 = arith.select %29, %18, %30 : vector<18x16x64xi1>, vector<18x16x64xf32>
    %32 = arith.truncf %31 : vector<18x16x64xf32> to vector<18x16x64xbf16>
    %33 = tpu.iota {dimensions = array<i32: 1>} : vector<18x16x64xi32>
    %cst_20 = arith.constant 0.000000e+00 : bf16
    %34 = vector.broadcast %cst_20 : bf16 to vector<18x16x64xbf16>
    %c1_i32_21 = arith.constant 1 : i32
    %35 = vector.broadcast %c1_i32_21 : i32 to vector<18x16x64xi32>
    %36 = arith.cmpi sge, %33, %35 : vector<18x16x64xi32>
    %37 = vector.extract_strided_slice %32 {offsets = [0, 15, 0], sizes = [18, 1, 64], strides = [1, 1, 1]} : vector<18x16x64xbf16> to vector<18x1x64xbf16>
    %38 = vector.extract_strided_slice %32 {offsets = [0, 0, 0], sizes = [18, 15, 64], strides = [1, 1, 1]} : vector<18x16x64xbf16> to vector<18x15x64xbf16>
    %39 = tpu.concatenate %37, %38 in 1 : vector<18x1x64xbf16>, vector<18x15x64xbf16> -> vector<18x16x64xbf16>
    %40 = arith.select %36, %39, %34 : vector<18x16x64xi1>, vector<18x16x64xbf16>
    %c15_i32 = arith.constant 15 : i32
    %41 = vector.broadcast %c15_i32 : i32 to vector<18x16x64xi32>
    %42 = arith.cmpi slt, %33, %41 : vector<18x16x64xi32>
    %43 = vector.extract_strided_slice %32 {offsets = [0, 1, 0], sizes = [18, 15, 64], strides = [1, 1, 1]} : vector<18x16x64xbf16> to vector<18x15x64xbf16>
    %44 = vector.extract_strided_slice %32 {offsets = [0, 0, 0], sizes = [18, 1, 64], strides = [1, 1, 1]} : vector<18x16x64xbf16> to vector<18x1x64xbf16>
    %45 = tpu.concatenate %43, %44 in 1 : vector<18x15x64xbf16>, vector<18x1x64xbf16> -> vector<18x16x64xbf16>
    %46 = arith.select %42, %45, %34 : vector<18x16x64xi1>, vector<18x16x64xbf16>
    %cst_22 = arith.constant 0.000000e+00 : f32
    %47 = vector.broadcast %cst_22 : f32 to vector<256x64xf32>
    %48 = vector.extract_strided_slice %40 {offsets = [0, 0, 0], sizes = [16, 16, 64], strides = [1, 1, 1]} : vector<18x16x64xbf16> to vector<16x16x64xbf16>
    %49 = vector.shape_cast %48 : vector<16x16x64xbf16> to vector<256x64xbf16>
    %c0_23 = arith.constant 0 : index
    %c0_24 = arith.constant 0 : index
    %c0_25 = arith.constant 0 : index
    %50 = vector.load %arg6[%c0_23, %c0_24, %c0_25] : memref<9x64x64xbf16, #tpu.memory_space<vmem>>, vector<1x64x64xbf16>
    %51 = vector.shape_cast %50 : vector<1x64x64xbf16> to vector<64x64xbf16>
    %cst_26 = arith.constant dense<0.000000e+00> : vector<256x64xf32>
    %52 = tpu.matmul %49, %51, %cst_26 {dimension_numbers = #tpu.dot_dimension_numbers<[1], [0], [0], [1], [0, 0, 1, 1], [], []>} : vector<256x64xbf16>, vector<64x64xbf16>, vector<256x64xf32> -> vector<256x64xf32>
    %53 = arith.addf %47, %52 : vector<256x64xf32>
    %54 = vector.extract_strided_slice %32 {offsets = [0, 0, 0], sizes = [16, 16, 64], strides = [1, 1, 1]} : vector<18x16x64xbf16> to vector<16x16x64xbf16>
    %55 = vector.shape_cast %54 : vector<16x16x64xbf16> to vector<256x64xbf16>
    %c1 = arith.constant 1 : index
    %c0_27 = arith.constant 0 : index
    %c0_28 = arith.constant 0 : index
    %56 = vector.load %arg6[%c1, %c0_27, %c0_28] : memref<9x64x64xbf16, #tpu.memory_space<vmem>>, vector<1x64x64xbf16>
    %57 = vector.shape_cast %56 : vector<1x64x64xbf16> to vector<64x64xbf16>
    %cst_29 = arith.constant dense<0.000000e+00> : vector<256x64xf32>
    %58 = tpu.matmul %55, %57, %cst_29 {dimension_numbers = #tpu.dot_dimension_numbers<[1], [0], [0], [1], [0, 0, 1, 1], [], []>} : vector<256x64xbf16>, vector<64x64xbf16>, vector<256x64xf32> -> vector<256x64xf32>
    %59 = arith.addf %53, %58 : vector<256x64xf32>
    %60 = vector.extract_strided_slice %46 {offsets = [0, 0, 0], sizes = [16, 16, 64], strides = [1, 1, 1]} : vector<18x16x64xbf16> to vector<16x16x64xbf16>
    %61 = vector.shape_cast %60 : vector<16x16x64xbf16> to vector<256x64xbf16>
    %c2 = arith.constant 2 : index
    %c0_30 = arith.constant 0 : index
    %c0_31 = arith.constant 0 : index
    %62 = vector.load %arg6[%c2, %c0_30, %c0_31] : memref<9x64x64xbf16, #tpu.memory_space<vmem>>, vector<1x64x64xbf16>
    %63 = vector.shape_cast %62 : vector<1x64x64xbf16> to vector<64x64xbf16>
    %cst_32 = arith.constant dense<0.000000e+00> : vector<256x64xf32>
    %64 = tpu.matmul %61, %63, %cst_32 {dimension_numbers = #tpu.dot_dimension_numbers<[1], [0], [0], [1], [0, 0, 1, 1], [], []>} : vector<256x64xbf16>, vector<64x64xbf16>, vector<256x64xf32> -> vector<256x64xf32>
    %65 = arith.addf %59, %64 : vector<256x64xf32>
    %66 = vector.extract_strided_slice %40 {offsets = [1, 0, 0], sizes = [16, 16, 64], strides = [1, 1, 1]} : vector<18x16x64xbf16> to vector<16x16x64xbf16>
    %67 = vector.shape_cast %66 : vector<16x16x64xbf16> to vector<256x64xbf16>
    %c3 = arith.constant 3 : index
    %c0_33 = arith.constant 0 : index
    %c0_34 = arith.constant 0 : index
    %68 = vector.load %arg6[%c3, %c0_33, %c0_34] : memref<9x64x64xbf16, #tpu.memory_space<vmem>>, vector<1x64x64xbf16>
    %69 = vector.shape_cast %68 : vector<1x64x64xbf16> to vector<64x64xbf16>
    %cst_35 = arith.constant dense<0.000000e+00> : vector<256x64xf32>
    %70 = tpu.matmul %67, %69, %cst_35 {dimension_numbers = #tpu.dot_dimension_numbers<[1], [0], [0], [1], [0, 0, 1, 1], [], []>} : vector<256x64xbf16>, vector<64x64xbf16>, vector<256x64xf32> -> vector<256x64xf32>
    %71 = arith.addf %65, %70 : vector<256x64xf32>
    %72 = vector.extract_strided_slice %32 {offsets = [1, 0, 0], sizes = [16, 16, 64], strides = [1, 1, 1]} : vector<18x16x64xbf16> to vector<16x16x64xbf16>
    %73 = vector.shape_cast %72 : vector<16x16x64xbf16> to vector<256x64xbf16>
    %c4 = arith.constant 4 : index
    %c0_36 = arith.constant 0 : index
    %c0_37 = arith.constant 0 : index
    %74 = vector.load %arg6[%c4, %c0_36, %c0_37] : memref<9x64x64xbf16, #tpu.memory_space<vmem>>, vector<1x64x64xbf16>
    %75 = vector.shape_cast %74 : vector<1x64x64xbf16> to vector<64x64xbf16>
    %cst_38 = arith.constant dense<0.000000e+00> : vector<256x64xf32>
    %76 = tpu.matmul %73, %75, %cst_38 {dimension_numbers = #tpu.dot_dimension_numbers<[1], [0], [0], [1], [0, 0, 1, 1], [], []>} : vector<256x64xbf16>, vector<64x64xbf16>, vector<256x64xf32> -> vector<256x64xf32>
    %77 = arith.addf %71, %76 : vector<256x64xf32>
    %78 = vector.extract_strided_slice %46 {offsets = [1, 0, 0], sizes = [16, 16, 64], strides = [1, 1, 1]} : vector<18x16x64xbf16> to vector<16x16x64xbf16>
    %79 = vector.shape_cast %78 : vector<16x16x64xbf16> to vector<256x64xbf16>
    %c5 = arith.constant 5 : index
    %c0_39 = arith.constant 0 : index
    %c0_40 = arith.constant 0 : index
    %80 = vector.load %arg6[%c5, %c0_39, %c0_40] : memref<9x64x64xbf16, #tpu.memory_space<vmem>>, vector<1x64x64xbf16>
    %81 = vector.shape_cast %80 : vector<1x64x64xbf16> to vector<64x64xbf16>
    %cst_41 = arith.constant dense<0.000000e+00> : vector<256x64xf32>
    %82 = tpu.matmul %79, %81, %cst_41 {dimension_numbers = #tpu.dot_dimension_numbers<[1], [0], [0], [1], [0, 0, 1, 1], [], []>} : vector<256x64xbf16>, vector<64x64xbf16>, vector<256x64xf32> -> vector<256x64xf32>
    %83 = arith.addf %77, %82 : vector<256x64xf32>
    %84 = vector.extract_strided_slice %40 {offsets = [2, 0, 0], sizes = [16, 16, 64], strides = [1, 1, 1]} : vector<18x16x64xbf16> to vector<16x16x64xbf16>
    %85 = vector.shape_cast %84 : vector<16x16x64xbf16> to vector<256x64xbf16>
    %c6 = arith.constant 6 : index
    %c0_42 = arith.constant 0 : index
    %c0_43 = arith.constant 0 : index
    %86 = vector.load %arg6[%c6, %c0_42, %c0_43] : memref<9x64x64xbf16, #tpu.memory_space<vmem>>, vector<1x64x64xbf16>
    %87 = vector.shape_cast %86 : vector<1x64x64xbf16> to vector<64x64xbf16>
    %cst_44 = arith.constant dense<0.000000e+00> : vector<256x64xf32>
    %88 = tpu.matmul %85, %87, %cst_44 {dimension_numbers = #tpu.dot_dimension_numbers<[1], [0], [0], [1], [0, 0, 1, 1], [], []>} : vector<256x64xbf16>, vector<64x64xbf16>, vector<256x64xf32> -> vector<256x64xf32>
    %89 = arith.addf %83, %88 : vector<256x64xf32>
    %90 = vector.extract_strided_slice %32 {offsets = [2, 0, 0], sizes = [16, 16, 64], strides = [1, 1, 1]} : vector<18x16x64xbf16> to vector<16x16x64xbf16>
    %91 = vector.shape_cast %90 : vector<16x16x64xbf16> to vector<256x64xbf16>
    %c7 = arith.constant 7 : index
    %c0_45 = arith.constant 0 : index
    %c0_46 = arith.constant 0 : index
    %92 = vector.load %arg6[%c7, %c0_45, %c0_46] : memref<9x64x64xbf16, #tpu.memory_space<vmem>>, vector<1x64x64xbf16>
    %93 = vector.shape_cast %92 : vector<1x64x64xbf16> to vector<64x64xbf16>
    %cst_47 = arith.constant dense<0.000000e+00> : vector<256x64xf32>
    %94 = tpu.matmul %91, %93, %cst_47 {dimension_numbers = #tpu.dot_dimension_numbers<[1], [0], [0], [1], [0, 0, 1, 1], [], []>} : vector<256x64xbf16>, vector<64x64xbf16>, vector<256x64xf32> -> vector<256x64xf32>
    %95 = arith.addf %89, %94 : vector<256x64xf32>
    %96 = vector.extract_strided_slice %46 {offsets = [2, 0, 0], sizes = [16, 16, 64], strides = [1, 1, 1]} : vector<18x16x64xbf16> to vector<16x16x64xbf16>
    %97 = vector.shape_cast %96 : vector<16x16x64xbf16> to vector<256x64xbf16>
    %c8 = arith.constant 8 : index
    %c0_48 = arith.constant 0 : index
    %c0_49 = arith.constant 0 : index
    %98 = vector.load %arg6[%c8, %c0_48, %c0_49] : memref<9x64x64xbf16, #tpu.memory_space<vmem>>, vector<1x64x64xbf16>
    %99 = vector.shape_cast %98 : vector<1x64x64xbf16> to vector<64x64xbf16>
    %cst_50 = arith.constant dense<0.000000e+00> : vector<256x64xf32>
    %100 = tpu.matmul %97, %99, %cst_50 {dimension_numbers = #tpu.dot_dimension_numbers<[1], [0], [0], [1], [0, 0, 1, 1], [], []>} : vector<256x64xbf16>, vector<64x64xbf16>, vector<256x64xf32> -> vector<256x64xf32>
    %101 = arith.addf %95, %100 : vector<256x64xf32>
    %c0_51 = arith.constant 0 : index
    %c0_52 = arith.constant 0 : index
    %102 = vector.load %arg10[%c0_51, %c0_52] : memref<1x64xf32, #tpu.memory_space<vmem>>, vector<1x64xf32>
    %103 = vector.broadcast %102 : vector<1x64xf32> to vector<256x64xf32>
    %104 = arith.mulf %101, %103 : vector<256x64xf32>
    %c0_53 = arith.constant 0 : index
    %c0_54 = arith.constant 0 : index
    %105 = vector.load %arg11[%c0_53, %c0_54] : memref<1x64xf32, #tpu.memory_space<vmem>>, vector<1x64xf32>
    %106 = vector.broadcast %105 : vector<1x64xf32> to vector<256x64xf32>
    %107 = arith.addf %104, %106 : vector<256x64xf32>
    %cst_55 = arith.constant 0.000000e+00 : f32
    %108 = vector.broadcast %cst_55 : f32 to vector<256x64xf32>
    %109 = arith.maximumf %107, %108 : vector<256x64xf32>
    %110 = arith.truncf %109 : vector<256x64xf32> to vector<256x64xbf16>
    %c0_56 = arith.constant 0 : index
    %c0_57 = arith.constant 0 : index
    %111 = vector.load %arg7[%c0_56, %c0_57] : memref<64x256xbf16, #tpu.memory_space<vmem>>, vector<64x256xbf16>
    %cst_58 = arith.constant dense<0.000000e+00> : vector<256x256xf32>
    %112 = tpu.matmul %110, %111, %cst_58 {dimension_numbers = #tpu.dot_dimension_numbers<[1], [0], [0], [1], [0, 0, 1, 1], [], []>} : vector<256x64xbf16>, vector<64x256xbf16>, vector<256x256xf32> -> vector<256x256xf32>
    %c0_59 = arith.constant 0 : index
    %c0_60 = arith.constant 0 : index
    %113 = vector.load %arg12[%c0_59, %c0_60] : memref<1x256xf32, #tpu.memory_space<vmem>>, vector<1x256xf32>
    %114 = vector.broadcast %113 : vector<1x256xf32> to vector<256x256xf32>
    %115 = arith.mulf %112, %114 : vector<256x256xf32>
    %c0_61 = arith.constant 0 : index
    %c0_62 = arith.constant 0 : index
    %116 = vector.load %arg13[%c0_61, %c0_62] : memref<1x256xf32, #tpu.memory_space<vmem>>, vector<1x256xf32>
    %117 = vector.broadcast %116 : vector<1x256xf32> to vector<256x256xf32>
    %118 = arith.addf %115, %117 : vector<256x256xf32>
    %c0_63 = arith.constant 0 : index
    %c0_64 = arith.constant 0 : index
    %c0_65 = arith.constant 0 : index
    %c0_66 = arith.constant 0 : index
    %119 = vector.load %arg3[%c0_63, %c0_64, %c0_65, %c0_66] : memref<1x16x16x256xbf16, #tpu.memory_space<vmem>>, vector<1x16x16x256xbf16>
    %120 = vector.shape_cast %119 : vector<1x16x16x256xbf16> to vector<16x16x256xbf16>
    %121 = arith.extf %120 : vector<16x16x256xbf16> to vector<16x16x256xf32>
    %122 = vector.shape_cast %121 : vector<16x16x256xf32> to vector<256x256xf32>
    %123 = arith.addf %118, %122 : vector<256x256xf32>
    %cst_67 = arith.constant 0.000000e+00 : f32
    %124 = vector.broadcast %cst_67 : f32 to vector<256x256xf32>
    %125 = arith.maximumf %123, %124 : vector<256x256xf32>
    %126 = vector.shape_cast %125 : vector<256x256xf32> to vector<16x16x256xf32>
    %127 = arith.truncf %126 : vector<16x16x256xf32> to vector<16x16x256xbf16>
    %c0_68 = arith.constant 0 : index
    %c0_69 = arith.constant 0 : index
    %c0_70 = arith.constant 0 : index
    %c0_71 = arith.constant 0 : index
    %128 = vector.load %arg14[%c0_68, %c0_69, %c0_70, %c0_71] : memref<1x16x16x256xbf16, #tpu.memory_space<vmem>>, vector<1x16x16x256xbf16>
    %129 = vector.shape_cast %128 : vector<1x16x16x256xbf16> to vector<16x16x256xbf16>
    %130 = vector.shape_cast %127 : vector<16x16x256xbf16> to vector<1x16x16x256xbf16>
    tpu.vector_store %arg14[%c0_68, %c0_69, %c0_70, %c0_71], %130 {strides = array<i32>} : memref<1x16x16x256xbf16, #tpu.memory_space<vmem>>, vector<1x16x16x256xbf16>,
    return
  }
  func.func @transform_0(%arg0: i32, %arg1: i32) -> (i32, i32, i32, i32) {
    %c16_i32 = arith.constant 16 : i32
    %0 = arith.muli %arg1, %c16_i32 : i32
    %c1_i32 = arith.constant 1 : i32
    %1 = arith.subi %0, %c1_i32 : i32
    %c0_i32 = arith.constant 0 : i32
    %2 = arith.maxsi %1, %c0_i32 : i32
    %c0_i32_0 = arith.constant 0 : i32
    %c0_i32_1 = arith.constant 0 : i32
    %c0_i32_2 = arith.constant 0 : i32
    return %arg0, %2, %c0_i32_0, %c0_i32_1 : i32, i32, i32, i32
  }
  func.func @transform_1(%arg0: i32, %arg1: i32) -> (i32, i32, i32, i32) {
    %c0_i32 = arith.constant 0 : i32
    %c0_i32_0 = arith.constant 0 : i32
    %c0_i32_1 = arith.constant 0 : i32
    return %arg0, %arg1, %c0_i32, %c0_i32_0 : i32, i32, i32, i32
  }
  func.func @transform_2(%arg0: i32, %arg1: i32) -> (i32, i32, i32, i32) {
    %c1_i32 = arith.constant 1 : i32
    %0 = arith.addi %arg1, %c1_i32 : i32
    %c16_i32 = arith.constant 16 : i32
    %1 = arith.muli %0, %c16_i32 : i32
    %c15_i32 = arith.constant 15 : i32
    %2 = arith.minsi %1, %c15_i32 : i32
    %c0_i32 = arith.constant 0 : i32
    %c0_i32_0 = arith.constant 0 : i32
    %c0_i32_1 = arith.constant 0 : i32
    return %arg0, %2, %c0_i32, %c0_i32_0 : i32, i32, i32, i32
  }
  func.func @transform_3(%arg0: i32, %arg1: i32) -> (i32, i32) {
    %c0_i32 = arith.constant 0 : i32
    %c0_i32_0 = arith.constant 0 : i32
    %c0_i32_1 = arith.constant 0 : i32
    return %c0_i32, %c0_i32_0 : i32, i32
  }
  func.func @transform_4(%arg0: i32, %arg1: i32) -> (i32, i32, i32) {
    %c0_i32 = arith.constant 0 : i32
    %c0_i32_0 = arith.constant 0 : i32
    %c0_i32_1 = arith.constant 0 : i32
    %c0_i32_2 = arith.constant 0 : i32
    return %c0_i32, %c0_i32_0, %c0_i32_1 : i32, i32, i32
  }
  func.func @transform_5(%arg0: i32, %arg1: i32) -> (i32, i32) {
    %c0_i32 = arith.constant 0 : i32
    %c0_i32_0 = arith.constant 0 : i32
    %c0_i32_1 = arith.constant 0 : i32
    return %c0_i32, %c0_i32_0 : i32, i32
  }
  func.func @transform_6(%arg0: i32, %arg1: i32) -> (i32, i32) {
    %c0_i32 = arith.constant 0 : i32
    %c0_i32_0 = arith.constant 0 : i32
    %c0_i32_1 = arith.constant 0 : i32
    return %c0_i32, %c0_i32_0 : i32, i32
  }
  func.func @transform_7(%arg0: i32, %arg1: i32) -> (i32, i32) {
    %c0_i32 = arith.constant 0 : i32
    %c0_i32_0 = arith.constant 0 : i32
    %c0_i32_1 = arith.constant 0 : i32
    return %c0_i32, %c0_i32_0 : i32, i32
  }
  func.func @transform_8(%arg0: i32, %arg1: i32) -> (i32, i32) {
    %c0_i32 = arith.constant 0 : i32
    %c0_i32_0 = arith.constant 0 : i32
    %c0_i32_1 = arith.constant 0 : i32
    return %c0_i32, %c0_i32_0 : i32, i32
  }
  func.func @transform_9(%arg0: i32, %arg1: i32) -> (i32, i32) {
    %c0_i32 = arith.constant 0 : i32
    %c0_i32_0 = arith.constant 0 : i32
    %c0_i32_1 = arith.constant 0 : i32
    return %c0_i32, %c0_i32_0 : i32, i32
  }
  func.func @transform_10(%arg0: i32, %arg1: i32) -> (i32, i32) {
    %c0_i32 = arith.constant 0 : i32
    %c0_i32_0 = arith.constant 0 : i32
    %c0_i32_1 = arith.constant 0 : i32
    return %c0_i32, %c0_i32_0 : i32, i32
  }
  func.func @transform_11(%arg0: i32, %arg1: i32) -> (i32, i32) {
    %c0_i32 = arith.constant 0 : i32
    %c0_i32_0 = arith.constant 0 : i32
    %c0_i32_1 = arith.constant 0 : i32
    return %c0_i32, %c0_i32_0 : i32, i32
  }
  func.func @transform_12(%arg0: i32, %arg1: i32) -> (i32, i32, i32, i32) {
    %c0_i32 = arith.constant 0 : i32
    %c0_i32_0 = arith.constant 0 : i32
    %c0_i32_1 = arith.constant 0 : i32
    return %arg0, %arg1, %c0_i32, %c0_i32_0 : i32, i32, i32, i32
  }
}

</mosaic_0001>

<llo_original>
// kernel: tpu_custom_call.1
$region0: #{tpu_custom_call.1}
  #allocation0 [shape = 'u32[]', space=smem, size = 0x4, offset = 0x4, fixed_abs, tag = 'smem constant byte address 0x4 - core index']
  #allocation1 [shape = 'u32[72,128]{1,0:T(1,128)}', space=vmem, size = 0x9000, scoped, tag = 'internal scratch']
  %s0 = inlined_call_operand.hbm [shape: bf16[2,16,16,256], index: 0, kind: input, shape index: {}]
  %s1 = inlined_call_operand.hbm [shape: bf16[2,16,16,256], index: 1, kind: input, shape index: {}]
  %s2 = inlined_call_operand.hbm [shape: bf16[2,16,16,256], index: 2, kind: input, shape index: {}]
  %s3 = inlined_call_operand.vmem [shape: bf16[256,64], index: 3, kind: input, shape index: {}]
  %s4 = inlined_call_operand.hbm [shape: bf16[9,64,64], index: 4, kind: input, shape index: {}]
  %s5 = inlined_call_operand.vmem [shape: bf16[64,256], index: 5, kind: input, shape index: {}]
  %s6 = inlined_call_operand.vmem [shape: f32[1,64], index: 6, kind: input, shape index: {}]
  %s7 = inlined_call_operand.vmem [shape: f32[1,64], index: 7, kind: input, shape index: {}]
  %s8 = inlined_call_operand.vmem [shape: f32[1,64], index: 8, kind: input, shape index: {}]
  %s9 = inlined_call_operand.vmem [shape: f32[1,64], index: 9, kind: input, shape index: {}]
  %s10 = inlined_call_operand.vmem [shape: f32[1,256], index: 10, kind: input, shape index: {}]
  %s11 = inlined_call_operand.vmem [shape: f32[1,256], index: 11, kind: input, shape index: {}]
  %s12 = inlined_call_operand.hbm [shape: bf16[2,16,16,256], index: 12, kind: output, shape index: {}]
  %s13 = sld [smem:[#allocation0]]
  $region97: #{tpu_custom_call.1} parent=0
    _
  %s15 = ssub.s32 1, %s13
  %s16 = scalar_select 0, %s15, %s13
  $region1: #{tpu_custom_call.1} parent=0
    #allocation2 [shape = 'u8[16384]{0}', space=vmem, size = 0x4000, scoped, tag = 'input window, operand 0']
    #allocation3 [shape = 's32[2]{0}', space=sflag, size = 0x8, scoped, tag = 'scoped memory for tpu_custom_call.1']
    #allocation4 [shape = 's32[2]{0}', space=sflag, size = 0x8, scoped, tag = 'scoped memory for tpu_custom_call.1']
    #allocation5 [shape = 'u8[262144]{0}', space=vmem, size = 0x40000, scoped, tag = 'input window, operand 1']
    #allocation6 [shape = 's32[2]{0}', space=sflag, size = 0x8, scoped, tag = 'scoped memory for tpu_custom_call.1']
    #allocation7 [shape = 'u8[16384]{0}', space=vmem, size = 0x4000, scoped, tag = 'input window, operand 2']
    #allocation8 [shape = 'u8[147456]{0}', space=vmem, size = 0x24000, scoped, tag = 'input window, operand 4, single buffered']
    #allocation9 [shape = 's32[1]{0}', space=sflag, size = 0x4, scoped, tag = 'scoped memory for tpu_custom_call.1']
    #allocation10 [shape = 'u8[262144]{0}', space=vmem, size = 0x40000, scoped, tag = 'output window, operand 0']
    %17 = vsyncpa [#allocation3], 0
    %s18 = scalar_lea.sflag [#allocation3], 1
    %19 = vsyncpa %s18, 0
    %20 = vsyncpa [#allocation6], 0
    %s21 = scalar_lea.sflag [#allocation6], 1
    %22 = vsyncpa %s21, 0
    %23 = vsyncpa [#allocation9], 0
    %24 = vsyncpa [#allocation4], 0
    %s25 = scalar_lea.sflag [#allocation4], 1
    %26 = vsyncpa %s25, 0
    loop: start=0, step=1, limit=4
    $region2: #{tpu_custom_call.1} parent=1 // loop_pre_header
      _
    $region3: #{tpu_custom_call.1} parent=1 // loop_header
      %s28 = sphi 0, %s32
      %p29 = scmp.ge.s32.totalorder %s28, 4
      %s35 = sphi 0, %s47
      %s36 = sphi 0, %s43
      %s37 = sphi 0, %s35
      %s38 = sphi 0, %s36
      %s39 = sphi 0, %s37
      %s40 = sphi 0, %s38
      %s60 = sphi 0, %s62
      %s63 = sphi 0, %s60
      %s64 = sphi 0, %s63
      %s80 = sphi 0, %s64
      %s88 = sphi 0, %s90
      %s91 = sphi 0, %s88
      %s92 = sphi 0, %s91
      %s108 = sphi 0, %s92
      %s124 = sphi 0, %s126
      %s127 = sphi 0, %s124
      %s128 = sphi 0, %s127
      %s144 = sphi 0, %s128
      %s148 = sphi 0, %s148
      %s150 = sphi 0, %s148
      %s151 = sphi 0, %s150
      %s165 = sphi 0, %s151
      %s169 = sphi 0, %s169
      %s171 = sphi 0, %s169
      %s172 = sphi 0, %s171
      %s186 = sphi 0, %s172
      %s190 = sphi 0, %s190
      %s192 = sphi 0, %s190
      %s193 = sphi 0, %s192
      %s207 = sphi 0, %s193
      %s211 = sphi 0, %s211
      %s213 = sphi 0, %s211
      %s214 = sphi 0, %s213
      %s228 = sphi 0, %s214
      %s232 = sphi 0, %s232
      %s234 = sphi 0, %s232
      %s235 = sphi 0, %s234
      %s249 = sphi 0, %s235
      %s253 = sphi 0, %s253
      %s255 = sphi 0, %s253
      %s256 = sphi 0, %s255
      %s270 = sphi 0, %s256
      %s274 = sphi 0, %s274
      %s276 = sphi 0, %s274
      %s277 = sphi 0, %s276
      %s291 = sphi 0, %s277
      %s295 = sphi 0, %s295
      %s297 = sphi 0, %s295
      %s298 = sphi 0, %s297
      %s312 = sphi 0, %s298
      %s316 = sphi 0, %s316
      %s318 = sphi 0, %s316
      %s319 = sphi 0, %s318
      %s333 = sphi 0, %s319
      %s341 = sphi 0, %s343
      %s344 = sphi 0, %s341
      %s345 = sphi 0, %s344
      %s361 = sphi 0, %s345
    $region4: #{tpu_custom_call.1} parent=1 // loop_header_branch
      %31 = sbr.rel (%p29) target = $region8
    $region5: #{tpu_custom_call.1} parent=1 // loop_body
      %s33 = ssub.s32 %s28, 1
      %s34 = ssub.s32 %s28, 2
      %s41 = sadd.s32 1, %s36
      %p42 = scmp.ge.s32.totalorder %s41, 1
      %s43 = scalar_select %p42, 0, %s41
      %s44 = sadd.s32 1, %s35
      %s45 = scalar_select %p42, %s44, %s35
      %p46 = scmp.ge.s32.totalorder %s45, 2
      %s47 = scalar_select %p46, 0, %s45
      %s48 = smul.u32 %s36, 16
      %s49 = ssub.s32 %s48, 1
      %p50 = scmp.gt.s32.totalorder %s49, 0
      %s51 = scalar_select %p50, %s49, 0
      %s52 = smul.u32 %s43, 16
      %s53 = ssub.s32 %s52, 1
      %p54 = scmp.gt.s32.totalorder %s53, 0
      %s55 = scalar_select %p54, %s53, 0
      %s56 = ssub.s32 %s35, %s47
      %s57 = ssub.s32 %s51, %s55
      %s58 = sor.u32 %s56, %s57
      %p59 = scmp.eq.s32.totalorder %s58, 0
      %s61 = sadd.s32 %s60, 1
      %s62 = scalar_select %p59, %s60, %s61
      %p65 = pneg %p59
      %p66 = scmp.eq.s32.totalorder %s28, 1
      %p67 = por %p65, %p66
      %p68 = scmp.ne.s32.totalorder %s60, %s63
      %p69 = scmp.eq.s32.totalorder %s28, 0
      %p70 = por %p68, %p69
      %p71 = scmp.ne.s32.totalorder %s60, %s63
      %p72 = scmp.eq.s32.totalorder %s33, 1
      %p73 = por %p71, %p72
      %p74 = scmp.ne.s32.totalorder %s63, %s64
      %p75 = scmp.eq.s32.totalorder %s33, 0
      %p76 = por %p74, %p75
      %p77 = scmp.ne.s32.totalorder %s63, %s64
      %p78 = scmp.eq.s32.totalorder %s34, 1
      %p79 = por %p77, %p78
      %p81 = scmp.ne.s32.totalorder %s64, %s80
      %p82 = scmp.eq.s32.totalorder %s34, 0
      %p83 = por %p81, %p82
      %s84 = ssub.s32 %s35, %s47
      %s85 = ssub.s32 %s36, %s43
      %s86 = sor.u32 %s84, %s85
      %p87 = scmp.eq.s32.totalorder %s86, 0
      %s89 = sadd.s32 %s88, 1
      %s90 = scalar_select %p87, %s88, %s89
      %p93 = pneg %p87
      %p94 = scmp.eq.s32.totalorder %s28, 1
      %p95 = por %p93, %p94
      %p96 = scmp.ne.s32.totalorder %s88, %s91
      %p97 = scmp.eq.s32.totalorder %s28, 0
      %p98 = por %p96, %p97
      %p99 = scmp.ne.s32.totalorder %s88, %s91
      %p100 = scmp.eq.s32.totalorder %s33, 1
      %p101 = por %p99, %p100
      %p102 = scmp.ne.s32.totalorder %s91, %s92
      %p103 = scmp.eq.s32.totalorder %s33, 0
      %p104 = por %p102, %p103
      %p105 = scmp.ne.s32.totalorder %s91, %s92
      %p106 = scmp.eq.s32.totalorder %s34, 1
      %p107 = por %p105, %p106
      %p109 = scmp.ne.s32.totalorder %s92, %s108
      %p110 = scmp.eq.s32.totalorder %s34, 0
      %p111 = por %p109, %p110
      %s112 = sadd.s32 %s36, 1
      %s113 = smul.u32 %s112, 16
      %p114 = scmp.lt.s32.totalorder %s113, 15
      %s115 = scalar_select %p114, %s113, 15
      %s116 = sadd.s32 %s43, 1
      %s117 = smul.u32 %s116, 16
      %p118 = scmp.lt.s32.totalorder %s117, 15
      %s119 = scalar_select %p118, %s117, 15
      %s120 = ssub.s32 %s35, %s47
      %s121 = ssub.s32 %s115, %s119
      %s122 = sor.u32 %s120, %s121
      %p123 = scmp.eq.s32.totalorder %s122, 0
      %s125 = sadd.s32 %s124, 1
      %s126 = scalar_select %p123, %s124, %s125
      %p129 = pneg %p123
      %p130 = scmp.eq.s32.totalorder %s28, 1
      %p131 = por %p129, %p130
      %p132 = scmp.ne.s32.totalorder %s124, %s127
      %p133 = scmp.eq.s32.totalorder %s28, 0
      %p134 = por %p132, %p133
      %p135 = scmp.ne.s32.totalorder %s124, %s127
      %p136 = scmp.eq.s32.totalorder %s33, 1
      %p137 = por %p135, %p136
      %p138 = scmp.ne.s32.totalorder %s127, %s128
      %p139 = scmp.eq.s32.totalorder %s33, 0
      %p140 = por %p138, %p139
      %p141 = scmp.ne.s32.totalorder %s127, %s128
      %p142 = scmp.eq.s32.totalorder %s34, 1
      %p143 = por %p141, %p142
      %p145 = scmp.ne.s32.totalorder %s128, %s144
      %p146 = scmp.eq.s32.totalorder %s34, 0
      %p147 = por %p145, %p146
      %s149 = sadd.s32 %s148, 1
      %p152 = scmp.eq.s32.totalorder %s28, 1
      %p153 = scmp.ne.s32.totalorder %s148, %s150
      %p154 = scmp.eq.s32.totalorder %s28, 0
      %p155 = por %p153, %p154
      %p156 = scmp.ne.s32.totalorder %s148, %s150
      %p157 = scmp.eq.s32.totalorder %s33, 1
      %p158 = por %p156, %p157
      %p159 = scmp.ne.s32.totalorder %s150, %s151
      %p160 = scmp.eq.s32.totalorder %s33, 0
      %p161 = por %p159, %p160
      %p162 = scmp.ne.s32.totalorder %s150, %s151
      %p163 = scmp.eq.s32.totalorder %s34, 1
      %p164 = por %p162, %p163
      %p166 = scmp.ne.s32.totalorder %s151, %s165
      %p167 = scmp.eq.s32.totalorder %s34, 0
      %p168 = por %p166, %p167
      %s170 = sadd.s32 %s169, 1
      %p173 = scmp.eq.s32.totalorder %s28, 1
      %p174 = scmp.ne.s32.totalorder %s169, %s171
      %p175 = scmp.eq.s32.totalorder %s28, 0
      %p176 = por %p174, %p175
      %p177 = scmp.ne.s32.totalorder %s169, %s171
      %p178 = scmp.eq.s32.totalorder %s33, 1
      %p179 = por %p177, %p178
      %p180 = scmp.ne.s32.totalorder %s171, %s172
      %p181 = scmp.eq.s32.totalorder %s33, 0
      %p182 = por %p180, %p181
      %p183 = scmp.ne.s32.totalorder %s171, %s172
      %p184 = scmp.eq.s32.totalorder %s34, 1
      %p185 = por %p183, %p184
      %p187 = scmp.ne.s32.totalorder %s172, %s186
      %p188 = scmp.eq.s32.totalorder %s34, 0
      %p189 = por %p187, %p188
      %s191 = sadd.s32 %s190, 1
      %p194 = scmp.eq.s32.totalorder %s28, 1
      %p195 = scmp.ne.s32.totalorder %s190, %s192
      %p196 = scmp.eq.s32.totalorder %s28, 0
      %p197 = por %p195, %p196
      %p198 = scmp.ne.s32.totalorder %s190, %s192
      %p199 = scmp.eq.s32.totalorder %s33, 1
      %p200 = por %p198, %p199
      %p201 = scmp.ne.s32.totalorder %s192, %s193
      %p202 = scmp.eq.s32.totalorder %s33, 0
      %p203 = por %p201, %p202
      %p204 = scmp.ne.s32.totalorder %s192, %s193
      %p205 = scmp.eq.s32.totalorder %s34, 1
      %p206 = por %p204, %p205
      %p208 = scmp.ne.s32.totalorder %s193, %s207
      %p209 = scmp.eq.s32.totalorder %s34, 0
      %p210 = por %p208, %p209
      %s212 = sadd.s32 %s211, 1
      %p215 = scmp.eq.s32.totalorder %s28, 1
      %p216 = scmp.ne.s32.totalorder %s211, %s213
      %p217 = scmp.eq.s32.totalorder %s28, 0
      %p218 = por %p216, %p217
      %p219 = scmp.ne.s32.totalorder %s211, %s213
      %p220 = scmp.eq.s32.totalorder %s33, 1
      %p221 = por %p219, %p220
      %p222 = scmp.ne.s32.totalorder %s213, %s214
      %p223 = scmp.eq.s32.totalorder %s33, 0
      %p224 = por %p222, %p223
      %p225 = scmp.ne.s32.totalorder %s213, %s214
      %p226 = scmp.eq.s32.totalorder %s34, 1
      %p227 = por %p225, %p226
      %p229 = scmp.ne.s32.totalorder %s214, %s228
      %p230 = scmp.eq.s32.totalorder %s34, 0
      %p231 = por %p229, %p230
      %s233 = sadd.s32 %s232, 1
      %p236 = scmp.eq.s32.totalorder %s28, 1
      %p237 = scmp.ne.s32.totalorder %s232, %s234
      %p238 = scmp.eq.s32.totalorder %s28, 0
      %p239 = por %p237, %p238
      %p240 = scmp.ne.s32.totalorder %s232, %s234
      %p241 = scmp.eq.s32.totalorder %s33, 1
      %p242 = por %p240, %p241
      %p243 = scmp.ne.s32.totalorder %s234, %s235
      %p244 = scmp.eq.s32.totalorder %s33, 0
      %p245 = por %p243, %p244
      %p246 = scmp.ne.s32.totalorder %s234, %s235
      %p247 = scmp.eq.s32.totalorder %s34, 1
      %p248 = por %p246, %p247
      %p250 = scmp.ne.s32.totalorder %s235, %s249
      %p251 = scmp.eq.s32.totalorder %s34, 0
      %p252 = por %p250, %p251
      %s254 = sadd.s32 %s253, 1
      %p257 = scmp.eq.s32.totalorder %s28, 1
      %p258 = scmp.ne.s32.totalorder %s253, %s255
      %p259 = scmp.eq.s32.totalorder %s28, 0
      %p260 = por %p258, %p259
      %p261 = scmp.ne.s32.totalorder %s253, %s255
      %p262 = scmp.eq.s32.totalorder %s33, 1
      %p263 = por %p261, %p262
      %p264 = scmp.ne.s32.totalorder %s255, %s256
      %p265 = scmp.eq.s32.totalorder %s33, 0
      %p266 = por %p264, %p265
      %p267 = scmp.ne.s32.totalorder %s255, %s256
      %p268 = scmp.eq.s32.totalorder %s34, 1
      %p269 = por %p267, %p268
      %p271 = scmp.ne.s32.totalorder %s256, %s270
      %p272 = scmp.eq.s32.totalorder %s34, 0
      %p273 = por %p271, %p272
      %s275 = sadd.s32 %s274, 1
      %p278 = scmp.eq.s32.totalorder %s28, 1
      %p279 = scmp.ne.s32.totalorder %s274, %s276
      %p280 = scmp.eq.s32.totalorder %s28, 0
      %p281 = por %p279, %p280
      %p282 = scmp.ne.s32.totalorder %s274, %s276
      %p283 = scmp.eq.s32.totalorder %s33, 1
      %p284 = por %p282, %p283
      %p285 = scmp.ne.s32.totalorder %s276, %s277
      %p286 = scmp.eq.s32.totalorder %s33, 0
      %p287 = por %p285, %p286
      %p288 = scmp.ne.s32.totalorder %s276, %s277
      %p289 = scmp.eq.s32.totalorder %s34, 1
      %p290 = por %p288, %p289
      %p292 = scmp.ne.s32.totalorder %s277, %s291
      %p293 = scmp.eq.s32.totalorder %s34, 0
      %p294 = por %p292, %p293
      %s296 = sadd.s32 %s295, 1
      %p299 = scmp.eq.s32.totalorder %s28, 1
      %p300 = scmp.ne.s32.totalorder %s295, %s297
      %p301 = scmp.eq.s32.totalorder %s28, 0
      %p302 = por %p300, %p301
      %p303 = scmp.ne.s32.totalorder %s295, %s297
      %p304 = scmp.eq.s32.totalorder %s33, 1
      %p305 = por %p303, %p304
      %p306 = scmp.ne.s32.totalorder %s297, %s298
      %p307 = scmp.eq.s32.totalorder %s33, 0
      %p308 = por %p306, %p307
      %p309 = scmp.ne.s32.totalorder %s297, %s298
      %p310 = scmp.eq.s32.totalorder %s34, 1
      %p311 = por %p309, %p310
      %p313 = scmp.ne.s32.totalorder %s298, %s312
      %p314 = scmp.eq.s32.totalorder %s34, 0
      %p315 = por %p313, %p314
      %s317 = sadd.s32 %s316, 1
      %p320 = scmp.eq.s32.totalorder %s28, 1
      %p321 = scmp.ne.s32.totalorder %s316, %s318
      %p322 = scmp.eq.s32.totalorder %s28, 0
      %p323 = por %p321, %p322
      %p324 = scmp.ne.s32.totalorder %s316, %s318
      %p325 = scmp.eq.s32.totalorder %s33, 1
      %p326 = por %p324, %p325
      %p327 = scmp.ne.s32.totalorder %s318, %s319
      %p328 = scmp.eq.s32.totalorder %s33, 0
      %p329 = por %p327, %p328
      %p330 = scmp.ne.s32.totalorder %s318, %s319
      %p331 = scmp.eq.s32.totalorder %s34, 1
      %p332 = por %p330, %p331
      %p334 = scmp.ne.s32.totalorder %s319, %s333
      %p335 = scmp.eq.s32.totalorder %s34, 0
      %p336 = por %p334, %p335
      %s337 = ssub.s32 %s35, %s47
      %s338 = ssub.s32 %s36, %s43
      %s339 = sor.u32 %s337, %s338
      %p340 = scmp.eq.s32.totalorder %s339, 0
      %s342 = sadd.s32 %s341, 1
      %s343 = scalar_select %p340, %s341, %s342
      %p346 = pneg %p340
      %p347 = scmp.eq.s32.totalorder %s28, 1
      %p348 = por %p346, %p347
      %p349 = scmp.ne.s32.totalorder %s341, %s344
      %p350 = scmp.eq.s32.totalorder %s28, 0
      %p351 = por %p349, %p350
      %p352 = scmp.ne.s32.totalorder %s341, %s344
      %p353 = scmp.eq.s32.totalorder %s33, 1
      %p354 = por %p352, %p353
      %p355 = scmp.ne.s32.totalorder %s344, %s345
      %p356 = scmp.eq.s32.totalorder %s33, 0
      %p357 = por %p355, %p356
      %p358 = scmp.ne.s32.totalorder %s344, %s345
      %p359 = scmp.eq.s32.totalorder %s34, 1
      %p360 = por %p358, %p359
      %p362 = scmp.ne.s32.totalorder %s345, %s361
      %p363 = scmp.eq.s32.totalorder %s34, 0
      %p364 = por %p362, %p363
      %p365 = scmp.le.s32.totalorder 1, %s28
      %p366 = scmp.lt.s32.totalorder %s28, 3
      %p367 = pnand %p365, %p366
      %p368 = pneg %p367
      // Predicated region
      $region9: #{tpu_custom_call.1} parent=5 // pred_check
        _
      $region10: #{tpu_custom_call.1} parent=5 // pred_check_branch
        %370 = sbr.rel (%p367) target = $region12
      $region11: #{tpu_custom_call.1} parent=5 // pred_region
        %s371 = ssub.s32 %s28, 1
        // Predicated region
        $region13: #{tpu_custom_call.1} parent=11 // pred_check
          %p372 = pneg %p161
        $region14: #{tpu_custom_call.1} parent=11 // pred_check_branch
          %374 = sbr.rel (%p372) target = $region16
        $region15: #{tpu_custom_call.1} parent=11 // pred_region
          _
        $region16: #{tpu_custom_call.1} parent=11 // pred_fallthru
          _
        // Predicated region
        $region17: #{tpu_custom_call.1} parent=11 // pred_check
          %p375 = pneg %p182
        $region18: #{tpu_custom_call.1} parent=11 // pred_check_branch
          %377 = sbr.rel (%p375) target = $region20
        $region19: #{tpu_custom_call.1} parent=11 // pred_region
          %379 = vsyncadd [#allocation9], 0
          %s380 = sshll.u32 %s4, 4
          %s381 = int_to_ptr.hbm [resolvable:$true] %s380
          %s382 = sshll.u32 [#allocation8], 4
          %s383 = int_to_ptr.vmem [resolvable:$true] %s382
          %388 = dma.hbm_to_vmem [thread:$0]  %s381, 4608, %s383, [#allocation9], 64, 64, 4
        $region20: #{tpu_custom_call.1} parent=11 // pred_fallthru
          _
        // Predicated region
        $region21: #{tpu_custom_call.1} parent=11 // pred_check
          %p389 = pneg %p203
        $region22: #{tpu_custom_call.1} parent=11 // pred_check_branch
          %391 = sbr.rel (%p389) target = $region24
        $region23: #{tpu_custom_call.1} parent=11 // pred_region
          _
        $region24: #{tpu_custom_call.1} parent=11 // pred_fallthru
          _
        // Predicated region
        $region25: #{tpu_custom_call.1} parent=11 // pred_check
          %p392 = pneg %p224
        $region26: #{tpu_custom_call.1} parent=11 // pred_check_branch
          %394 = sbr.rel (%p392) target = $region28
        $region27: #{tpu_custom_call.1} parent=11 // pred_region
          _
        $region28: #{tpu_custom_call.1} parent=11 // pred_fallthru
          _
        // Predicated region
        $region29: #{tpu_custom_call.1} parent=11 // pred_check
          %p395 = pneg %p245
        $region30: #{tpu_custom_call.1} parent=11 // pred_check_branch
          %397 = sbr.rel (%p395) target = $region32
        $region31: #{tpu_custom_call.1} parent=11 // pred_region
          _
        $region32: #{tpu_custom_call.1} parent=11 // pred_fallthru
          _
        // Predicated region
        $region33: #{tpu_custom_call.1} parent=11 // pred_check
          %p398 = pneg %p266
        $region34: #{tpu_custom_call.1} parent=11 // pred_check_branch
          %400 = sbr.rel (%p398) target = $region36
        $region35: #{tpu_custom_call.1} parent=11 // pred_region
          _
        $region36: #{tpu_custom_call.1} parent=11 // pred_fallthru
          _
        // Predicated region
        $region37: #{tpu_custom_call.1} parent=11 // pred_check
          %p401 = pneg %p287
        $region38: #{tpu_custom_call.1} parent=11 // pred_check_branch
          %403 = sbr.rel (%p401) target = $region40
        $region39: #{tpu_custom_call.1} parent=11 // pred_region
          _
        $region40: #{tpu_custom_call.1} parent=11 // pred_fallthru
          _
        // Predicated region
        $region41: #{tpu_custom_call.1} parent=11 // pred_check
          %p404 = pneg %p308
        $region42: #{tpu_custom_call.1} parent=11 // pred_check_branch
          %406 = sbr.rel (%p404) target = $region44
        $region43: #{tpu_custom_call.1} parent=11 // pred_region
          _
        $region44: #{tpu_custom_call.1} parent=11 // pred_fallthru
          _
        // Predicated region
        $region45: #{tpu_custom_call.1} parent=11 // pred_check
          %p407 = pneg %p329
        $region46: #{tpu_custom_call.1} parent=11 // pred_check_branch
          %409 = sbr.rel (%p407) target = $region48
        $region47: #{tpu_custom_call.1} parent=11 // pred_region
          _
        $region48: #{tpu_custom_call.1} parent=11 // pred_fallthru
          _
      $region12: #{tpu_custom_call.1} parent=5 // pred_fallthru
        _
      %p410 = scmp.lt.s32.totalorder %s28, 2
      // Predicated region
      $region49: #{tpu_custom_call.1} parent=5 // pred_check
        %p411 = pneg %p410
      $region50: #{tpu_custom_call.1} parent=5 // pred_check_branch
        %413 = sbr.rel (%p411) target = $region52
      $region51: #{tpu_custom_call.1} parent=5 // pred_region
        // Predicated region
        $region53: #{tpu_custom_call.1} parent=51 // pred_check
          %p414 = pneg %p70
        $region54: #{tpu_custom_call.1} parent=51 // pred_check_branch
          %416 = sbr.rel (%p414) target = $region56
        $region55: #{tpu_custom_call.1} parent=51 // pred_region
          %s417 = sand.u32 %s60, 1
          %s418 = scalar_lea.sflag [#allocation3], %s417
          %s419 = sand.u32 %s60, 1
          %s420 = smul.addr %s419, 16
          %s421 = scalar_lea.vmem [#allocation2], %s420
          %s422 = smul.u32 %s36, 16
          %s423 = ssub.s32 %s422, 1
          %p424 = scmp.gt.s32.totalorder %s423, 0
          %s425 = scalar_select %p424, %s423, 0
          %427 = vsyncadd %s418, 0
          %s428 = smul.addr %s425, 4
          %s429 = smul.addr %s35, 64
          %s430 = sadd.s32 %s428, %s429
          %s431 = smul.addr %s430, 4
          %s432 = scalar_lea.hbm %s0, %s431
          %s433 = sshll.u32 %s432, 4
          %s434 = int_to_ptr.hbm [resolvable:$true] %s433
          %s435 = sshll.u32 %s421, 4
          %s436 = int_to_ptr.vmem [resolvable:$true] %s435
          %441 = dma.hbm_to_vmem [thread:$0]  %s434, 256, %s436, %s418, 128, 128, 8
        $region56: #{tpu_custom_call.1} parent=51 // pred_fallthru
          _
        // Predicated region
        $region57: #{tpu_custom_call.1} parent=51 // pred_check
          %p442 = pneg %p98
        $region58: #{tpu_custom_call.1} parent=51 // pred_check_branch
          %444 = sbr.rel (%p442) target = $region60
        $region59: #{tpu_custom_call.1} parent=51 // pred_region
          %s445 = sand.u32 %s28, 1
          %s446 = scalar_lea.sflag [#allocation6], %s445
          %s447 = sand.u32 %s88, 1
          %s448 = smul.addr %s447, 256
          %s449 = scalar_lea.vmem [#allocation5], %s448
          %s450 = smul.u32 16, %s36
          %452 = vsyncadd %s446, 0
          %s453 = smul.addr %s450, 4
          %s454 = smul.addr %s35, 64
          %s455 = sadd.s32 %s453, %s454
          %s456 = smul.addr %s455, 4
          %s457 = scalar_lea.hbm %s1, %s456
          %s458 = sshll.u32 %s457, 4
          %s459 = int_to_ptr.hbm [resolvable:$true] %s458
          %s460 = sshll.u32 %s449, 4
          %s461 = int_to_ptr.vmem [resolvable:$true] %s460
          %466 = dma.hbm_to_vmem [thread:$0]  %s459, 4096, %s461, %s446, 128, 128, 8
        $region60: #{tpu_custom_call.1} parent=51 // pred_fallthru
          _
        // Predicated region
        $region61: #{tpu_custom_call.1} parent=51 // pred_check
          %p467 = pneg %p134
        $region62: #{tpu_custom_call.1} parent=51 // pred_check_branch
          %469 = sbr.rel (%p467) target = $region64
        $region63: #{tpu_custom_call.1} parent=51 // pred_region
          %s470 = sand.u32 %s28, 1
          %s471 = scalar_lea.sflag [#allocation6], %s470
          %s472 = sand.u32 %s124, 1
          %s473 = smul.addr %s472, 16
          %s474 = scalar_lea.vmem [#allocation7], %s473
          %s475 = sadd.s32 %s36, 1
          %s476 = smul.u32 %s475, 16
          %p477 = scmp.lt.s32.totalorder %s476, 15
          %s478 = scalar_select %p477, %s476, 15
          %480 = vsyncadd %s471, 0
          %s481 = smul.addr %s478, 4
          %s482 = smul.addr %s35, 64
          %s483 = sadd.s32 %s481, %s482
          %s484 = smul.addr %s483, 4
          %s485 = scalar_lea.hbm %s2, %s484
          %s486 = sshll.u32 %s485, 4
          %s487 = int_to_ptr.hbm [resolvable:$true] %s486
          %s488 = sshll.u32 %s474, 4
          %s489 = int_to_ptr.vmem [resolvable:$true] %s488
          %494 = dma.hbm_to_vmem [thread:$0]  %s487, 256, %s489, %s471, 128, 128, 8
        $region64: #{tpu_custom_call.1} parent=51 // pred_fallthru
          _
      $region52: #{tpu_custom_call.1} parent=5 // pred_fallthru
        _
      %p495 = scmp.le.s32.totalorder 1, %s28
      %p496 = scmp.lt.s32.totalorder %s28, 3
      %p497 = pnand %p495, %p496
      %p498 = pneg %p497
      // Predicated region
      $region65: #{tpu_custom_call.1} parent=5 // pred_check
        _
      $region66: #{tpu_custom_call.1} parent=5 // pred_check_branch
        %500 = sbr.rel (%p497) target = $region68
      $region67: #{tpu_custom_call.1} parent=5 // pred_region
        %s501 = ssub.s32 %s28, 1
        %s502 = sand.u32 %s63, 1
        %s503 = scalar_lea.sflag [#allocation3], %s502
        %s504 = sand.u32 %s63, 1
        %s505 = smul.addr %s504, 16
        %s506 = scalar_lea.vmem [#allocation2], %s505
        // Predicated region
        $region69: #{tpu_custom_call.1} parent=67 // pred_check
          %p507 = pneg %p76
        $region70: #{tpu_custom_call.1} parent=67 // pred_check_branch
          %509 = sbr.rel (%p507) target = $region72
        $region71: #{tpu_custom_call.1} parent=67 // pred_region
          %511 = dma.done %s503, 256
        $region72: #{tpu_custom_call.1} parent=67 // pred_fallthru
          _
        %s512 = sand.u32 %s33, 1
        %s513 = scalar_lea.sflag [#allocation6], %s512
        %s514 = sand.u32 %s91, 1
        %s515 = smul.addr %s514, 256
        %s516 = scalar_lea.vmem [#allocation5], %s515
        // Predicated region
        $region73: #{tpu_custom_call.1} parent=67 // pred_check
          %p517 = pneg %p104
        $region74: #{tpu_custom_call.1} parent=67 // pred_check_branch
          %519 = sbr.rel (%p517) target = $region76
        $region75: #{tpu_custom_call.1} parent=67 // pred_region
          %521 = dma.done %s513, 4096
        $region76: #{tpu_custom_call.1} parent=67 // pred_fallthru
          _
        %s522 = sand.u32 %s33, 1
        %s523 = scalar_lea.sflag [#allocation6], %s522
        %s524 = sand.u32 %s127, 1
        %s525 = smul.addr %s524, 16
        %s526 = scalar_lea.vmem [#allocation7], %s525
        // Predicated region
        $region77: #{tpu_custom_call.1} parent=67 // pred_check
          %p527 = pneg %p140
        $region78: #{tpu_custom_call.1} parent=67 // pred_check_branch
          %529 = sbr.rel (%p527) target = $region80
        $region79: #{tpu_custom_call.1} parent=67 // pred_region
          %531 = dma.done %s523, 256
        $region80: #{tpu_custom_call.1} parent=67 // pred_fallthru
          _
        // Predicated region
        $region81: #{tpu_custom_call.1} parent=67 // pred_check
          %p532 = pneg %p182
        $region82: #{tpu_custom_call.1} parent=67 // pred_check_branch
          %534 = sbr.rel (%p532) target = $region84
        $region83: #{tpu_custom_call.1} parent=67 // pred_region
          %536 = dma.done [#allocation9], 4608
        $region84: #{tpu_custom_call.1} parent=67 // pred_fallthru
          _
        %s537 = sand.u32 %s63, 1
        %s538 = scalar_lea.sflag [#allocation3], %s537
        %s539 = sand.u32 %s63, 1
        %s540 = smul.addr %s539, 16
        %s541 = scalar_lea.vmem [#allocation2], %s540
        %p542 = pneg %p76
        %p543 = pneg %p73
        %s544 = sand.u32 %s33, 1
        %s545 = scalar_lea.sflag [#allocation6], %s544
        %s546 = sand.u32 %s91, 1
        %s547 = smul.addr %s546, 256
        %s548 = scalar_lea.vmem [#allocation5], %s547
        %p549 = pneg %p104
        %p550 = pneg %p101
        %s551 = sand.u32 %s33, 1
        %s552 = scalar_lea.sflag [#allocation6], %s551
        %s553 = sand.u32 %s127, 1
        %s554 = smul.addr %s553, 16
        %s555 = scalar_lea.vmem [#allocation7], %s554
        %p556 = pneg %p140
        %p557 = pneg %p137
        %p558 = pneg %p161
        %p559 = pneg %p158
        %p560 = pneg %p182
        %p561 = pneg %p179
        %p562 = pneg %p203
        %p563 = pneg %p200
        %p564 = pneg %p224
        %p565 = pneg %p221
        %p566 = pneg %p245
        %p567 = pneg %p242
        %p568 = pneg %p266
        %p569 = pneg %p263
        %p570 = pneg %p287
        %p571 = pneg %p284
        %p572 = pneg %p308
        %p573 = pneg %p305
        %p574 = pneg %p329
        %p575 = pneg %p326
        %p576 = pneg %p357
        %p577 = pneg %p354
        %s578 = sand.u32 %s344, 1
        %s579 = scalar_lea.sflag [#allocation4], %s578
        %s580 = sand.u32 %s344, 1
        %s581 = smul.addr %s580, 256
        %s582 = scalar_lea.vmem [#allocation10], %s581
        %s583 = smul.u32 %s38, 16
        %s584 = ssub.s32 %s583, 1
        %p585 = scmp.gt.s32.totalorder %s584, 0
        %s586 = scalar_select %p585, %s584, 0
        %s587 = smul.u32 16, %s38
        %s588 = sadd.s32 %s38, 1
        %s589 = smul.u32 %s588, 16
        %p590 = scmp.lt.s32.totalorder %s589, 15
        %s591 = scalar_select %p590, %s589, 15
        %s592 = smul.u32 16, %s38
        %v596 = vld [vmem:[%s506] sm:$0xff]
        %v597 = vld [vmem:[%s506 + $0x8] sm:$0xff]
        %v598 = vld [vmem:[%s516] sm:$0xff]
        %v599 = vld [vmem:[%s516 + $0x8] sm:$0xff]
        %v600 = vld [vmem:[%s516 + $0x10] sm:$0xff]
        %v601 = vld [vmem:[%s516 + $0x18] sm:$0xff]
        %v602 = vld [vmem:[%s516 + $0x20] sm:$0xff]
        %v603 = vld [vmem:[%s516 + $0x28] sm:$0xff]
        %v604 = vld [vmem:[%s516 + $0x30] sm:$0xff]
        %v605 = vld [vmem:[%s516 + $0x38] sm:$0xff]
        %v606 = vld [vmem:[%s516 + $0x40] sm:$0xff]
        %v607 = vld [vmem:[%s516 + $0x48] sm:$0xff]
        %v608 = vld [vmem:[%s516 + $0x50] sm:$0xff]
        %v609 = vld [vmem:[%s516 + $0x58] sm:$0xff]
        %v610 = vld [vmem:[%s516 + $0x60] sm:$0xff]
        %v611 = vld [vmem:[%s516 + $0x68] sm:$0xff]
        %v612 = vld [vmem:[%s516 + $0x70] sm:$0xff]
        %v613 = vld [vmem:[%s516 + $0x78] sm:$0xff]
        %v614 = vld [vmem:[%s516 + $0x80] sm:$0xff]
        %v615 = vld [vmem:[%s516 + $0x88] sm:$0xff]
        %v616 = vld [vmem:[%s516 + $0x90] sm:$0xff]
        %v617 = vld [vmem:[%s516 + $0x98] sm:$0xff]
        %v618 = vld [vmem:[%s516 + $0xa0] sm:$0xff]
        %v619 = vld [vmem:[%s516 + $0xa8] sm:$0xff]
        %v620 = vld [vmem:[%s516 + $0xb0] sm:$0xff]
        %v621 = vld [vmem:[%s516 + $0xb8] sm:$0xff]
        %v622 = vld [vmem:[%s516 + $0xc0] sm:$0xff]
        %v623 = vld [vmem:[%s516 + $0xc8] sm:$0xff]
        %v624 = vld [vmem:[%s516 + $0xd0] sm:$0xff]
        %v625 = vld [vmem:[%s516 + $0xd8] sm:$0xff]
        %v626 = vld [vmem:[%s516 + $0xe0] sm:$0xff]
        %v627 = vld [vmem:[%s516 + $0xe8] sm:$0xff]
        %v628 = vld [vmem:[%s516 + $0xf0] sm:$0xff]
        %v629 = vld [vmem:[%s516 + $0xf8] sm:$0xff]
        %v630 = vld [vmem:[%s526] sm:$0xff]
        %v631 = vld [vmem:[%s526 + $0x8] sm:$0xff]
        %v632 = vld [vmem:[%s3] sm:$0xf]
        %v633 = vld [vmem:[%s3 + $0x4] sm:$0xf]
        %v634 = vld [vmem:[%s3 + $0x8] sm:$0xf]
        %v635 = vld [vmem:[%s3 + $0xc] sm:$0xf]
        %v636 = vld [vmem:[%s3 + $0x10] sm:$0xf]
        %v637 = vld [vmem:[%s3 + $0x14] sm:$0xf]
        %v638 = vld [vmem:[%s3 + $0x18] sm:$0xf]
        %v639 = vld [vmem:[%s3 + $0x1c] sm:$0xf]
        %v640 = vld [vmem:[%s3 + $0x20] sm:$0xf]
        %v641 = vld [vmem:[%s3 + $0x24] sm:$0xf]
        %v642 = vld [vmem:[%s3 + $0x28] sm:$0xf]
        %v643 = vld [vmem:[%s3 + $0x2c] sm:$0xf]
        %v644 = vld [vmem:[%s3 + $0x30] sm:$0xf]
        %v645 = vld [vmem:[%s3 + $0x34] sm:$0xf]
        %v646 = vld [vmem:[%s3 + $0x38] sm:$0xf]
        %v647 = vld [vmem:[%s3 + $0x3c] sm:$0xf]
        %v648 = vld [vmem:[%s3 + $0x40] sm:$0xf]
        %v649 = vld [vmem:[%s3 + $0x44] sm:$0xf]
        %v650 = vld [vmem:[%s3 + $0x48] sm:$0xf]
        %v651 = vld [vmem:[%s3 + $0x4c] sm:$0xf]
        %v652 = vld [vmem:[%s3 + $0x50] sm:$0xf]
        %v653 = vld [vmem:[%s3 + $0x54] sm:$0xf]
        %v654 = vld [vmem:[%s3 + $0x58] sm:$0xf]
        %v655 = vld [vmem:[%s3 + $0x5c] sm:$0xf]
        %v656 = vld [vmem:[%s3 + $0x60] sm:$0xf]
        %v657 = vld [vmem:[%s3 + $0x64] sm:$0xf]
        %v658 = vld [vmem:[%s3 + $0x68] sm:$0xf]
        %v659 = vld [vmem:[%s3 + $0x6c] sm:$0xf]
        %v660 = vld [vmem:[%s3 + $0x70] sm:$0xf]
        %v661 = vld [vmem:[%s3 + $0x74] sm:$0xf]
        %v662 = vld [vmem:[%s3 + $0x78] sm:$0xf]
        %v663 = vld [vmem:[%s3 + $0x7c] sm:$0xf]
        %v700 = vunpack.c.l.b16 %v596
        %v701 = vunpack.c.h.b16 %v596
        %v702 = vunpack.c.l.b16 %v597
        %v703 = vunpack.c.h.b16 %v597
        %v704 = vunpack.c.l.b16 %v598
        %v705 = vunpack.c.h.b16 %v598
        %v706 = vunpack.c.l.b16 %v599
        %v707 = vunpack.c.h.b16 %v599
        %v708 = vunpack.c.l.b16 %v600
        %v709 = vunpack.c.h.b16 %v600
        %v710 = vunpack.c.l.b16 %v601
        %v711 = vunpack.c.h.b16 %v601
        %v712 = vunpack.c.l.b16 %v602
        %v713 = vunpack.c.h.b16 %v602
        %v714 = vunpack.c.l.b16 %v603
        %v715 = vunpack.c.h.b16 %v603
        %v716 = vunpack.c.l.b16 %v604
        %v717 = vunpack.c.h.b16 %v604
        %v718 = vunpack.c.l.b16 %v605
        %v719 = vunpack.c.h.b16 %v605
        %v720 = vunpack.c.l.b16 %v606
        %v721 = vunpack.c.h.b16 %v606
        %v722 = vunpack.c.l.b16 %v607
        %v723 = vunpack.c.h.b16 %v607
        %v724 = vunpack.c.l.b16 %v608
        %v725 = vunpack.c.h.b16 %v608
        %v726 = vunpack.c.l.b16 %v609
        %v727 = vunpack.c.h.b16 %v609
        %v728 = vunpack.c.l.b16 %v610
        %v729 = vunpack.c.h.b16 %v610
        %v730 = vunpack.c.l.b16 %v611
        %v731 = vunpack.c.h.b16 %v611
        %v732 = vunpack.c.l.b16 %v612
        %v733 = vunpack.c.h.b16 %v612
        %v734 = vunpack.c.l.b16 %v613
        %v735 = vunpack.c.h.b16 %v613
        %v736 = vunpack.c.l.b16 %v614
        %v737 = vunpack.c.h.b16 %v614
        %v738 = vunpack.c.l.b16 %v615
        %v739 = vunpack.c.h.b16 %v615
        %v740 = vunpack.c.l.b16 %v616
        %v741 = vunpack.c.h.b16 %v616
        %v742 = vunpack.c.l.b16 %v617
        %v743 = vunpack.c.h.b16 %v617
        %v744 = vunpack.c.l.b16 %v618
        %v745 = vunpack.c.h.b16 %v618
        %v746 = vunpack.c.l.b16 %v619
        %v747 = vunpack.c.h.b16 %v619
        %v748 = vunpack.c.l.b16 %v620
        %v749 = vunpack.c.h.b16 %v620
        %v750 = vunpack.c.l.b16 %v621
        %v751 = vunpack.c.h.b16 %v621
        %v752 = vunpack.c.l.b16 %v622
        %v753 = vunpack.c.h.b16 %v622
        %v754 = vunpack.c.l.b16 %v623
        %v755 = vunpack.c.h.b16 %v623
        %v756 = vunpack.c.l.b16 %v624
        %v757 = vunpack.c.h.b16 %v624
        %v758 = vunpack.c.l.b16 %v625
        %v759 = vunpack.c.h.b16 %v625
        %v760 = vunpack.c.l.b16 %v626
        %v761 = vunpack.c.h.b16 %v626
        %v762 = vunpack.c.l.b16 %v627
        %v763 = vunpack.c.h.b16 %v627
        %v764 = vunpack.c.l.b16 %v628
        %v765 = vunpack.c.h.b16 %v628
        %v766 = vunpack.c.l.b16 %v629
        %v767 = vunpack.c.h.b16 %v629
        %v768 = vunpack.c.l.b16 %v630
        %v769 = vunpack.c.h.b16 %v630
        %v770 = vunpack.c.l.b16 %v631
        %v771 = vunpack.c.h.b16 %v631
        %v772 = vpack.c.b16 %v702, %v700
        %v773 = vpack.c.b16 %v703, %v701
        %v774 = vpack.c.b16 %v706, %v704
        %v775 = vpack.c.b16 %v707, %v705
        %v776 = vpack.c.b16 %v710, %v708
        %v777 = vpack.c.b16 %v711, %v709
        %v778 = vpack.c.b16 %v714, %v712
        %v779 = vpack.c.b16 %v715, %v713
        %v780 = vpack.c.b16 %v718, %v716
        %v781 = vpack.c.b16 %v719, %v717
        %v782 = vpack.c.b16 %v722, %v720
        %v783 = vpack.c.b16 %v723, %v721
        %v784 = vpack.c.b16 %v726, %v724
        %v785 = vpack.c.b16 %v727, %v725
        %v786 = vpack.c.b16 %v730, %v728
        %v787 = vpack.c.b16 %v731, %v729
        %v788 = vpack.c.b16 %v734, %v732
        %v789 = vpack.c.b16 %v735, %v733
        %v790 = vpack.c.b16 %v738, %v736
        %v791 = vpack.c.b16 %v739, %v737
        %v792 = vpack.c.b16 %v742, %v740
        %v793 = vpack.c.b16 %v743, %v741
        %v794 = vpack.c.b16 %v746, %v744
        %v795 = vpack.c.b16 %v747, %v745
        %v796 = vpack.c.b16 %v750, %v748
        %v797 = vpack.c.b16 %v751, %v749
        %v798 = vpack.c.b16 %v754, %v752
        %v799 = vpack.c.b16 %v755, %v753
        %v800 = vpack.c.b16 %v758, %v756
        %v801 = vpack.c.b16 %v759, %v757
        %v802 = vpack.c.b16 %v762, %v760
        %v803 = vpack.c.b16 %v763, %v761
        %v804 = vpack.c.b16 %v766, %v764
        %v805 = vpack.c.b16 %v767, %v765
        %v806 = vpack.c.b16 %v770, %v768
        %v807 = vpack.c.b16 %v771, %v769
        %v876 = vunpack.c.l.b16 %v632
        %v877 = vunpack.c.l.b16 %v633
        %v878 = vunpack.c.l.b16 %v634
        %v879 = vunpack.c.l.b16 %v635
        %v880 = vunpack.c.l.b16 %v636
        %v881 = vunpack.c.l.b16 %v637
        %v882 = vunpack.c.l.b16 %v638
        %v883 = vunpack.c.l.b16 %v639
        %v884 = vunpack.c.l.b16 %v640
        %v885 = vunpack.c.l.b16 %v641
        %v886 = vunpack.c.l.b16 %v642
        %v887 = vunpack.c.l.b16 %v643
        %v888 = vunpack.c.l.b16 %v644
        %v889 = vunpack.c.l.b16 %v645
        %v890 = vunpack.c.l.b16 %v646
        %v891 = vunpack.c.l.b16 %v647
        %v892 = vunpack.c.l.b16 %v648
        %v893 = vunpack.c.l.b16 %v649
        %v894 = vunpack.c.l.b16 %v650
        %v895 = vunpack.c.l.b16 %v651
        %v896 = vunpack.c.l.b16 %v652
        %v897 = vunpack.c.l.b16 %v653
        %v898 = vunpack.c.l.b16 %v654
        %v899 = vunpack.c.l.b16 %v655
        %v900 = vunpack.c.l.b16 %v656
        %v901 = vunpack.c.l.b16 %v657
        %v902 = vunpack.c.l.b16 %v658
        %v903 = vunpack.c.l.b16 %v659
        %v904 = vunpack.c.l.b16 %v660
        %v905 = vunpack.c.l.b16 %v661
        %v906 = vunpack.c.l.b16 %v662
        %v907 = vunpack.c.l.b16 %v663
        %v908 = vpack.c.b16 %v877, %v876
        %v909 = vpack.c.b16 %v879, %v878
        %v910 = vpack.c.b16 %v881, %v880
        %v911 = vpack.c.b16 %v883, %v882
        %v912 = vpack.c.b16 %v885, %v884
        %v913 = vpack.c.b16 %v887, %v886
        %v914 = vpack.c.b16 %v889, %v888
        %v915 = vpack.c.b16 %v891, %v890
        %v916 = vpack.c.b16 %v893, %v892
        %v917 = vpack.c.b16 %v895, %v894
        %v918 = vpack.c.b16 %v897, %v896
        %v919 = vpack.c.b16 %v899, %v898
        %v920 = vpack.c.b16 %v901, %v900
        %v921 = vpack.c.b16 %v903, %v902
        %v922 = vpack.c.b16 %v905, %v904
        %v923 = vpack.c.b16 %v907, %v906
        %940 = vmatpush.bf16.msra.mxu0 %v915
        %941 = vmatpush.bf16.msra.mxu0 %v914
        %942 = vmatpush.bf16.msra.mxu0 %v913
        %943 = vmatpush.bf16.msra.mxu0 %v912
        %944 = vmatpush.bf16.msra.mxu0 %v911
        %945 = vmatpush.bf16.msra.mxu0 %v910
        %946 = vmatpush.bf16.msra.mxu0 %v909
        %947 = vmatpush.bf16.msra.mxu0 %v908
        %948 = vmatmul.bf16.gmra.mxu0 %v772
        %v949 = vpop.f32.mrf.mxu0
        %v950 = vadd.f32 0.0, %v949
        %v951 = vpop.f32.mrf.mxu0
        %v952 = vadd.f32 0.0, %v951
        %953 = vmatmul.bf16.gmra.mxu0 %v774
        %v954 = vpop.f32.mrf.mxu0
        %v955 = vadd.f32 0.0, %v954
        %v956 = vpop.f32.mrf.mxu0
        %v957 = vadd.f32 0.0, %v956
        %958 = vmatmul.bf16.gmra.mxu0 %v776
        %v959 = vpop.f32.mrf.mxu0
        %v960 = vadd.f32 0.0, %v959
        %v961 = vpop.f32.mrf.mxu0
        %v962 = vadd.f32 0.0, %v961
        %963 = vmatmul.bf16.gmra.mxu0 %v778
        %v964 = vpop.f32.mrf.mxu0
        %v965 = vadd.f32 0.0, %v964
        %v966 = vpop.f32.mrf.mxu0
        %v967 = vadd.f32 0.0, %v966
        %968 = vmatmul.bf16.gmra.mxu0 %v780
        %v969 = vpop.f32.mrf.mxu0
        %v970 = vadd.f32 0.0, %v969
        %v971 = vpop.f32.mrf.mxu0
        %v972 = vadd.f32 0.0, %v971
        %973 = vmatmul.bf16.gmra.mxu0 %v782
        %v974 = vpop.f32.mrf.mxu0
        %v975 = vadd.f32 0.0, %v974
        %v976 = vpop.f32.mrf.mxu0
        %v977 = vadd.f32 0.0, %v976
        %978 = vmatmul.bf16.gmra.mxu0 %v784
        %v979 = vpop.f32.mrf.mxu0
        %v980 = vadd.f32 0.0, %v979
        %v981 = vpop.f32.mrf.mxu0
        %v982 = vadd.f32 0.0, %v981
        %983 = vmatmul.bf16.gmra.mxu0 %v786
        %v984 = vpop.f32.mrf.mxu0
        %v985 = vadd.f32 0.0, %v984
        %v986 = vpop.f32.mrf.mxu0
        %v987 = vadd.f32 0.0, %v986
        %988 = vmatmul.bf16.gmra.mxu0 %v788
        %v989 = vpop.f32.mrf.mxu0
        %v990 = vadd.f32 0.0, %v989
        %v991 = vpop.f32.mrf.mxu0
        %v992 = vadd.f32 0.0, %v991
        %993 = vmatmul.bf16.gmra.mxu0 %v790
        %v994 = vpop.f32.mrf.mxu0
        %v995 = vadd.f32 0.0, %v994
        %v996 = vpop.f32.mrf.mxu0
        %v997 = vadd.f32 0.0, %v996
        %998 = vmatmul.bf16.gmra.mxu0 %v792
        %v999 = vpop.f32.mrf.mxu0
        %v1000 = vadd.f32 0.0, %v999
        %v1001 = vpop.f32.mrf.mxu0
        %v1002 = vadd.f32 0.0, %v1001
        %1003 = vmatmul.bf16.gmra.mxu0 %v794
        %v1004 = vpop.f32.mrf.mxu0
        %v1005 = vadd.f32 0.0, %v1004
        %v1006 = vpop.f32.mrf.mxu0
        %v1007 = vadd.f32 0.0, %v1006
        %1008 = vmatmul.bf16.gmra.mxu0 %v796
        %v1009 = vpop.f32.mrf.mxu0
        %v1010 = vadd.f32 0.0, %v1009
        %v1011 = vpop.f32.mrf.mxu0
        %v1012 = vadd.f32 0.0, %v1011
        %1013 = vmatmul.bf16.gmra.mxu0 %v798
        %v1014 = vpop.f32.mrf.mxu0
        %v1015 = vadd.f32 0.0, %v1014
        %v1016 = vpop.f32.mrf.mxu0
        %v1017 = vadd.f32 0.0, %v1016
        %1018 = vmatmul.bf16.gmra.mxu0 %v800
        %v1019 = vpop.f32.mrf.mxu0
        %v1020 = vadd.f32 0.0, %v1019
        %v1021 = vpop.f32.mrf.mxu0
        %v1022 = vadd.f32 0.0, %v1021
        %1023 = vmatmul.bf16.gmra.mxu0 %v802
        %v1024 = vpop.f32.mrf.mxu0
        %v1025 = vadd.f32 0.0, %v1024
        %v1026 = vpop.f32.mrf.mxu0
        %v1027 = vadd.f32 0.0, %v1026
        %1028 = vmatmul.bf16.gmra.mxu0 %v804
        %v1029 = vpop.f32.mrf.mxu0
        %v1030 = vadd.f32 0.0, %v1029
        %v1031 = vpop.f32.mrf.mxu0
        %v1032 = vadd.f32 0.0, %v1031
        %1033 = vmatmul.bf16.gmra.mxu0 %v806
        %v1034 = vpop.f32.mrf.mxu0
        %v1035 = vadd.f32 0.0, %v1034
        %v1036 = vpop.f32.mrf.mxu0
        %v1037 = vadd.f32 0.0, %v1036
        %1038 = vdwg.mxu0
        %1039 = vmatpush.bf16.msra.mxu0 %v923
        %1040 = vmatpush.bf16.msra.mxu0 %v922
        %1041 = vmatpush.bf16.msra.mxu0 %v921
        %1042 = vmatpush.bf16.msra.mxu0 %v920
        %1043 = vmatpush.bf16.msra.mxu0 %v919
        %1044 = vmatpush.bf16.msra.mxu0 %v918
        %1045 = vmatpush.bf16.msra.mxu0 %v917
        %1046 = vmatpush.bf16.msra.mxu0 %v916
        %1047 = vmatmul.bf16.gmra.mxu0 %v773
        %v1048 = vpop.f32.mrf.mxu0
        %v1049 = vadd.f32 %v950, %v1048
        %v1050 = vpop.f32.mrf.mxu0
        %v1051 = vadd.f32 %v952, %v1050
        %1052 = vmatmul.bf16.gmra.mxu0 %v775
        %v1053 = vpop.f32.mrf.mxu0
        %v1054 = vadd.f32 %v955, %v1053
        %v1055 = vpop.f32.mrf.mxu0
        %v1056 = vadd.f32 %v957, %v1055
        %1057 = vmatmul.bf16.gmra.mxu0 %v777
        %v1058 = vpop.f32.mrf.mxu0
        %v1059 = vadd.f32 %v960, %v1058
        %v1060 = vpop.f32.mrf.mxu0
        %v1061 = vadd.f32 %v962, %v1060
        %1062 = vmatmul.bf16.gmra.mxu0 %v779
        %v1063 = vpop.f32.mrf.mxu0
        %v1064 = vadd.f32 %v965, %v1063
        %v1065 = vpop.f32.mrf.mxu0
        %v1066 = vadd.f32 %v967, %v1065
        %1067 = vmatmul.bf16.gmra.mxu0 %v781
        %v1068 = vpop.f32.mrf.mxu0
        %v1069 = vadd.f32 %v970, %v1068
        %v1070 = vpop.f32.mrf.mxu0
        %v1071 = vadd.f32 %v972, %v1070
        %1072 = vmatmul.bf16.gmra.mxu0 %v783
        %v1073 = vpop.f32.mrf.mxu0
        %v1074 = vadd.f32 %v975, %v1073
        %v1075 = vpop.f32.mrf.mxu0
        %v1076 = vadd.f32 %v977, %v1075
        %1077 = vmatmul.bf16.gmra.mxu0 %v785
        %v1078 = vpop.f32.mrf.mxu0
        %v1079 = vadd.f32 %v980, %v1078
        %v1080 = vpop.f32.mrf.mxu0
        %v1081 = vadd.f32 %v982, %v1080
        %1082 = vmatmul.bf16.gmra.mxu0 %v787
        %v1083 = vpop.f32.mrf.mxu0
        %v1084 = vadd.f32 %v985, %v1083
        %v1085 = vpop.f32.mrf.mxu0
        %v1086 = vadd.f32 %v987, %v1085
        %1087 = vmatmul.bf16.gmra.mxu0 %v789
        %v1088 = vpop.f32.mrf.mxu0
        %v1089 = vadd.f32 %v990, %v1088
        %v1090 = vpop.f32.mrf.mxu0
        %v1091 = vadd.f32 %v992, %v1090
        %1092 = vmatmul.bf16.gmra.mxu0 %v791
        %v1093 = vpop.f32.mrf.mxu0
        %v1094 = vadd.f32 %v995, %v1093
        %v1095 = vpop.f32.mrf.mxu0
        %v1096 = vadd.f32 %v997, %v1095
        %1097 = vmatmul.bf16.gmra.mxu0 %v793
        %v1098 = vpop.f32.mrf.mxu0
        %v1099 = vadd.f32 %v1000, %v1098
        %v1100 = vpop.f32.mrf.mxu0
        %v1101 = vadd.f32 %v1002, %v1100
        %1102 = vmatmul.bf16.gmra.mxu0 %v795
        %v1103 = vpop.f32.mrf.mxu0
        %v1104 = vadd.f32 %v1005, %v1103
        %v1105 = vpop.f32.mrf.mxu0
        %v1106 = vadd.f32 %v1007, %v1105
        %1107 = vmatmul.bf16.gmra.mxu0 %v797
        %v1108 = vpop.f32.mrf.mxu0
        %v1109 = vadd.f32 %v1010, %v1108
        %v1110 = vpop.f32.mrf.mxu0
        %v1111 = vadd.f32 %v1012, %v1110
        %1112 = vmatmul.bf16.gmra.mxu0 %v799
        %v1113 = vpop.f32.mrf.mxu0
        %v1114 = vadd.f32 %v1015, %v1113
        %v1115 = vpop.f32.mrf.mxu0
        %v1116 = vadd.f32 %v1017, %v1115
        %1117 = vmatmul.bf16.gmra.mxu0 %v801
        %v1118 = vpop.f32.mrf.mxu0
        %v1119 = vadd.f32 %v1020, %v1118
        %v1120 = vpop.f32.mrf.mxu0
        %v1121 = vadd.f32 %v1022, %v1120
        %1122 = vmatmul.bf16.gmra.mxu0 %v803
        %v1123 = vpop.f32.mrf.mxu0
        %v1124 = vadd.f32 %v1025, %v1123
        %v1125 = vpop.f32.mrf.mxu0
        %v1126 = vadd.f32 %v1027, %v1125
        %1127 = vmatmul.bf16.gmra.mxu0 %v805
        %v1128 = vpop.f32.mrf.mxu0
        %v1129 = vadd.f32 %v1030, %v1128
        %v1130 = vpop.f32.mrf.mxu0
        %v1131 = vadd.f32 %v1032, %v1130
        %1132 = vmatmul.bf16.gmra.mxu0 %v807
        %v1133 = vpop.f32.mrf.mxu0
        %v1134 = vadd.f32 %v1035, %v1133
        %v1135 = vpop.f32.mrf.mxu0
        %v1136 = vadd.f32 %v1037, %v1135
        %1137 = vdwg.mxu0
        %v1138 = vld [vmem:[%s6] sm:$0x1]
        %v1140 = vperm.slane %v1138, 0
        %v1142 = vmul.f32 %v1049, %v1140
        %v1143 = vmul.f32 %v1051, %v1140
        %v1144 = vmul.f32 %v1054, %v1140
        %v1145 = vmul.f32 %v1056, %v1140
        %v1146 = vmul.f32 %v1059, %v1140
        %v1147 = vmul.f32 %v1061, %v1140
        %v1148 = vmul.f32 %v1064, %v1140
        %v1149 = vmul.f32 %v1066, %v1140
        %v1150 = vmul.f32 %v1069, %v1140
        %v1151 = vmul.f32 %v1071, %v1140
        %v1152 = vmul.f32 %v1074, %v1140
        %v1153 = vmul.f32 %v1076, %v1140
        %v1154 = vmul.f32 %v1079, %v1140
        %v1155 = vmul.f32 %v1081, %v1140
        %v1156 = vmul.f32 %v1084, %v1140
        %v1157 = vmul.f32 %v1086, %v1140
        %v1158 = vmul.f32 %v1089, %v1140
        %v1159 = vmul.f32 %v1091, %v1140
        %v1160 = vmul.f32 %v1094, %v1140
        %v1161 = vmul.f32 %v1096, %v1140
        %v1162 = vmul.f32 %v1099, %v1140
        %v1163 = vmul.f32 %v1101, %v1140
        %v1164 = vmul.f32 %v1104, %v1140
        %v1165 = vmul.f32 %v1106, %v1140
        %v1166 = vmul.f32 %v1109, %v1140
        %v1167 = vmul.f32 %v1111, %v1140
        %v1168 = vmul.f32 %v1114, %v1140
        %v1169 = vmul.f32 %v1116, %v1140
        %v1170 = vmul.f32 %v1119, %v1140
        %v1171 = vmul.f32 %v1121, %v1140
        %v1172 = vmul.f32 %v1124, %v1140
        %v1173 = vmul.f32 %v1126, %v1140
        %v1174 = vmul.f32 %v1129, %v1140
        %v1175 = vmul.f32 %v1131, %v1140
        %v1176 = vmul.f32 %v1134, %v1140
        %v1177 = vmul.f32 %v1136, %v1140
        %v1178 = vld [vmem:[%s7] sm:$0x1]
        %v1180 = vperm.slane %v1178, 0
        %v1182 = vadd.f32 %v1142, %v1180
        %v1183 = vadd.f32 %v1143, %v1180
        %v1184 = vadd.f32 %v1144, %v1180
        %v1185 = vadd.f32 %v1145, %v1180
        %v1186 = vadd.f32 %v1146, %v1180
        %v1187 = vadd.f32 %v1147, %v1180
        %v1188 = vadd.f32 %v1148, %v1180
        %v1189 = vadd.f32 %v1149, %v1180
        %v1190 = vadd.f32 %v1150, %v1180
        %v1191 = vadd.f32 %v1151, %v1180
        %v1192 = vadd.f32 %v1152, %v1180
        %v1193 = vadd.f32 %v1153, %v1180
        %v1194 = vadd.f32 %v1154, %v1180
        %v1195 = vadd.f32 %v1155, %v1180
        %v1196 = vadd.f32 %v1156, %v1180
        %v1197 = vadd.f32 %v1157, %v1180
        %v1198 = vadd.f32 %v1158, %v1180
        %v1199 = vadd.f32 %v1159, %v1180
        %v1200 = vadd.f32 %v1160, %v1180
        %v1201 = vadd.f32 %v1161, %v1180
        %v1202 = vadd.f32 %v1162, %v1180
        %v1203 = vadd.f32 %v1163, %v1180
        %v1204 = vadd.f32 %v1164, %v1180
        %v1205 = vadd.f32 %v1165, %v1180
        %v1206 = vadd.f32 %v1166, %v1180
        %v1207 = vadd.f32 %v1167, %v1180
        %v1208 = vadd.f32 %v1168, %v1180
        %v1209 = vadd.f32 %v1169, %v1180
        %v1210 = vadd.f32 %v1170, %v1180
        %v1211 = vadd.f32 %v1171, %v1180
        %v1212 = vadd.f32 %v1172, %v1180
        %v1213 = vadd.f32 %v1173, %v1180
        %v1214 = vadd.f32 %v1174, %v1180
        %v1215 = vadd.f32 %v1175, %v1180
        %v1216 = vadd.f32 %v1176, %v1180
        %v1217 = vadd.f32 %v1177, %v1180
        %v1218 = vmax.f32 %v1182, 0.0
        %v1219 = vmax.f32 %v1183, 0.0
        %v1220 = vmax.f32 %v1184, 0.0
        %v1221 = vmax.f32 %v1185, 0.0
        %v1222 = vmax.f32 %v1186, 0.0
        %v1223 = vmax.f32 %v1187, 0.0
        %v1224 = vmax.f32 %v1188, 0.0
        %v1225 = vmax.f32 %v1189, 0.0
        %v1226 = vmax.f32 %v1190, 0.0
        %v1227 = vmax.f32 %v1191, 0.0
        %v1228 = vmax.f32 %v1192, 0.0
        %v1229 = vmax.f32 %v1193, 0.0
        %v1230 = vmax.f32 %v1194, 0.0
        %v1231 = vmax.f32 %v1195, 0.0
        %v1232 = vmax.f32 %v1196, 0.0
        %v1233 = vmax.f32 %v1197, 0.0
        %v1234 = vmax.f32 %v1198, 0.0
        %v1235 = vmax.f32 %v1199, 0.0
        %v1236 = vmax.f32 %v1200, 0.0
        %v1237 = vmax.f32 %v1201, 0.0
        %v1238 = vmax.f32 %v1202, 0.0
        %v1239 = vmax.f32 %v1203, 0.0
        %v1240 = vmax.f32 %v1204, 0.0
        %v1241 = vmax.f32 %v1205, 0.0
        %v1242 = vmax.f32 %v1206, 0.0
        %v1243 = vmax.f32 %v1207, 0.0
        %v1244 = vmax.f32 %v1208, 0.0
        %v1245 = vmax.f32 %v1209, 0.0
        %v1246 = vmax.f32 %v1210, 0.0
        %v1247 = vmax.f32 %v1211, 0.0
        %v1248 = vmax.f32 %v1212, 0.0
        %v1249 = vmax.f32 %v1213, 0.0
        %v1250 = vmax.f32 %v1214, 0.0
        %v1251 = vmax.f32 %v1215, 0.0
        %v1252 = vmax.f32 %v1216, 0.0
        %v1253 = vmax.f32 %v1217, 0.0
        %s1254 = smul.u32 %s38, 16
        %v1255 = vstv %s1254
        %v1256 = vadd.s32 %v1255, 2
        %v1257 = vadd.s32 %v1255, 3
        %v1258 = vadd.s32 %v1255, 4
        %v1259 = vadd.s32 %v1255, 5
        %v1260 = vadd.s32 %v1255, 6
        %v1261 = vadd.s32 %v1255, 7
        %v1262 = vadd.s32 %v1255, 8
        %v1263 = vadd.s32 %v1255, 9
        %v1264 = vadd.s32 %v1255, 10
        %v1265 = vadd.s32 %v1255, 11
        %v1266 = vadd.s32 %v1255, 12
        %v1267 = vadd.s32 %v1255, 13
        %v1268 = vadd.s32 %v1255, 14
        %v1269 = vadd.s32 %v1255, 15
        %v1270 = vadd.s32 %v1255, 16
        %v1271 = vadd.s32 %v1255, 17
        %v1272 = vsub.s32 %v1255, 1
        %v1273 = vsub.s32 %v1256, 1
        %v1274 = vsub.s32 %v1257, 1
        %v1275 = vsub.s32 %v1258, 1
        %v1276 = vsub.s32 %v1259, 1
        %v1277 = vsub.s32 %v1260, 1
        %v1278 = vsub.s32 %v1261, 1
        %v1279 = vsub.s32 %v1262, 1
        %v1280 = vsub.s32 %v1263, 1
        %v1281 = vsub.s32 %v1264, 1
        %v1282 = vsub.s32 %v1265, 1
        %v1283 = vsub.s32 %v1266, 1
        %v1284 = vsub.s32 %v1267, 1
        %v1285 = vsub.s32 %v1268, 1
        %v1286 = vsub.s32 %v1269, 1
        %v1287 = vsub.s32 %v1270, 1
        %v1288 = vsub.s32 %v1271, 1
        %vm1289 = vcmp.ge.s32.totalorder %v1272, 0
        %vm1290 = vcmp.ge.s32.totalorder %v1255, 0
        %vm1291 = vcmp.ge.s32.totalorder %v1273, 0
        %vm1292 = vcmp.ge.s32.totalorder %v1274, 0
        %vm1293 = vcmp.ge.s32.totalorder %v1275, 0
        %vm1294 = vcmp.ge.s32.totalorder %v1276, 0
        %vm1295 = vcmp.ge.s32.totalorder %v1277, 0
        %vm1296 = vcmp.ge.s32.totalorder %v1278, 0
        %vm1297 = vcmp.ge.s32.totalorder %v1279, 0
        %vm1298 = vcmp.ge.s32.totalorder %v1280, 0
        %vm1299 = vcmp.ge.s32.totalorder %v1281, 0
        %vm1300 = vcmp.ge.s32.totalorder %v1282, 0
        %vm1301 = vcmp.ge.s32.totalorder %v1283, 0
        %vm1302 = vcmp.ge.s32.totalorder %v1284, 0
        %vm1303 = vcmp.ge.s32.totalorder %v1285, 0
        %vm1304 = vcmp.ge.s32.totalorder %v1286, 0
        %vm1305 = vcmp.ge.s32.totalorder %v1287, 0
        %vm1306 = vcmp.ge.s32.totalorder %v1288, 0
        %vm1307 = vcmp.lt.s32.totalorder %v1272, 16
        %vm1308 = vcmp.lt.s32.totalorder %v1255, 16
        %vm1309 = vcmp.lt.s32.totalorder %v1273, 16
        %vm1310 = vcmp.lt.s32.totalorder %v1274, 16
        %vm1311 = vcmp.lt.s32.totalorder %v1275, 16
        %vm1312 = vcmp.lt.s32.totalorder %v1276, 16
        %vm1313 = vcmp.lt.s32.totalorder %v1277, 16
        %vm1314 = vcmp.lt.s32.totalorder %v1278, 16
        %vm1315 = vcmp.lt.s32.totalorder %v1279, 16
        %vm1316 = vcmp.lt.s32.totalorder %v1280, 16
        %vm1317 = vcmp.lt.s32.totalorder %v1281, 16
        %vm1318 = vcmp.lt.s32.totalorder %v1282, 16
        %vm1319 = vcmp.lt.s32.totalorder %v1283, 16
        %vm1320 = vcmp.lt.s32.totalorder %v1284, 16
        %vm1321 = vcmp.lt.s32.totalorder %v1285, 16
        %vm1322 = vcmp.lt.s32.totalorder %v1286, 16
        %vm1323 = vcmp.lt.s32.totalorder %v1287, 16
        %vm1324 = vcmp.lt.s32.totalorder %v1288, 16
        %vm1325 = vmand %vm1289, %vm1307
        %vm1326 = vmand %vm1290, %vm1308
        %vm1327 = vmand %vm1291, %vm1309
        %vm1328 = vmand %vm1292, %vm1310
        %vm1329 = vmand %vm1293, %vm1311
        %vm1330 = vmand %vm1294, %vm1312
        %vm1331 = vmand %vm1295, %vm1313
        %vm1332 = vmand %vm1296, %vm1314
        %vm1333 = vmand %vm1297, %vm1315
        %vm1334 = vmand %vm1298, %vm1316
        %vm1335 = vmand %vm1299, %vm1317
        %vm1336 = vmand %vm1300, %vm1318
        %vm1337 = vmand %vm1301, %vm1319
        %vm1338 = vmand %vm1302, %vm1320
        %vm1339 = vmand %vm1303, %vm1321
        %vm1340 = vmand %vm1304, %vm1322
        %vm1341 = vmand %vm1305, %vm1323
        %vm1342 = vmand %vm1306, %vm1324
        %v1343 = vsel %vm1325, %v1218, 0.0
        %v1344 = vsel %vm1325, %v1219, 0.0
        %v1345 = vsel %vm1326, %v1220, 0.0
        %v1346 = vsel %vm1326, %v1221, 0.0
        %v1347 = vsel %vm1327, %v1222, 0.0
        %v1348 = vsel %vm1327, %v1223, 0.0
        %v1349 = vsel %vm1328, %v1224, 0.0
        %v1350 = vsel %vm1328, %v1225, 0.0
        %v1351 = vsel %vm1329, %v1226, 0.0
        %v1352 = vsel %vm1329, %v1227, 0.0
        %v1353 = vsel %vm1330, %v1228, 0.0
        %v1354 = vsel %vm1330, %v1229, 0.0
        %v1355 = vsel %vm1331, %v1230, 0.0
        %v1356 = vsel %vm1331, %v1231, 0.0
        %v1357 = vsel %vm1332, %v1232, 0.0
        %v1358 = vsel %vm1332, %v1233, 0.0
        %v1359 = vsel %vm1333, %v1234, 0.0
        %v1360 = vsel %vm1333, %v1235, 0.0
        %v1361 = vsel %vm1334, %v1236, 0.0
        %v1362 = vsel %vm1334, %v1237, 0.0
        %v1363 = vsel %vm1335, %v1238, 0.0
        %v1364 = vsel %vm1335, %v1239, 0.0
        %v1365 = vsel %vm1336, %v1240, 0.0
        %v1366 = vsel %vm1336, %v1241, 0.0
        %v1367 = vsel %vm1337, %v1242, 0.0
        %v1368 = vsel %vm1337, %v1243, 0.0
        %v1369 = vsel %vm1338, %v1244, 0.0
        %v1370 = vsel %vm1338, %v1245, 0.0
        %v1371 = vsel %vm1339, %v1246, 0.0
        %v1372 = vsel %vm1339, %v1247, 0.0
        %v1373 = vsel %vm1340, %v1248, 0.0
        %v1374 = vsel %vm1340, %v1249, 0.0
        %v1375 = vsel %vm1341, %v1250, 0.0
        %v1376 = vsel %vm1341, %v1251, 0.0
        %v1377 = vsel %vm1342, %v1252, 0.0
        %v1378 = vsel %vm1342, %v1253, 0.0
        %v1379 = vpack.c.bf16 %v1343, %v1343
        %v1380 = vpack.c.bf16 %v1344, %v1344
        %v1381 = vpack.c.bf16 %v1345, %v1345
        %v1382 = vpack.c.bf16 %v1346, %v1346
        %v1383 = vpack.c.bf16 %v1347, %v1347
        %v1384 = vpack.c.bf16 %v1348, %v1348
        %v1385 = vpack.c.bf16 %v1349, %v1349
        %v1386 = vpack.c.bf16 %v1350, %v1350
        %v1387 = vpack.c.bf16 %v1351, %v1351
        %v1388 = vpack.c.bf16 %v1352, %v1352
        %v1389 = vpack.c.bf16 %v1353, %v1353
        %v1390 = vpack.c.bf16 %v1354, %v1354
        %v1391 = vpack.c.bf16 %v1355, %v1355
        %v1392 = vpack.c.bf16 %v1356, %v1356
        %v1393 = vpack.c.bf16 %v1357, %v1357
        %v1394 = vpack.c.bf16 %v1358, %v1358
        %v1395 = vpack.c.bf16 %v1359, %v1359
        %v1396 = vpack.c.bf16 %v1360, %v1360
        %v1397 = vpack.c.bf16 %v1361, %v1361
        %v1398 = vpack.c.bf16 %v1362, %v1362
        %v1399 = vpack.c.bf16 %v1363, %v1363
        %v1400 = vpack.c.bf16 %v1364, %v1364
        %v1401 = vpack.c.bf16 %v1365, %v1365
        %v1402 = vpack.c.bf16 %v1366, %v1366
        %v1403 = vpack.c.bf16 %v1367, %v1367
        %v1404 = vpack.c.bf16 %v1368, %v1368
        %v1405 = vpack.c.bf16 %v1369, %v1369
        %v1406 = vpack.c.bf16 %v1370, %v1370
        %v1407 = vpack.c.bf16 %v1371, %v1371
        %v1408 = vpack.c.bf16 %v1372, %v1372
        %v1409 = vpack.c.bf16 %v1373, %v1373
        %v1410 = vpack.c.bf16 %v1374, %v1374
        %v1411 = vpack.c.bf16 %v1375, %v1375
        %v1412 = vpack.c.bf16 %v1376, %v1376
        %v1413 = vpack.c.bf16 %v1377, %v1377
        %v1414 = vpack.c.bf16 %v1378, %v1378
        %v1415 = vlaneseq
        %v1416 = vshrl.u32 %v1415, 7
        %v1417 = vadd.s32 %v1416, 8
        %vm1418 = vcmp.ge.s32.totalorder %v1416, 1
        %vm1419 = vcmp.ge.s32.totalorder %v1417, 1
        %v1438 = vunpack.c.l.b16 %v1380
        %v1439 = vunpack.c.l.b16 %v1382
        %v1440 = vunpack.c.l.b16 %v1384
        %v1441 = vunpack.c.l.b16 %v1386
        %v1442 = vunpack.c.l.b16 %v1388
        %v1443 = vunpack.c.l.b16 %v1390
        %v1444 = vunpack.c.l.b16 %v1392
        %v1445 = vunpack.c.l.b16 %v1394
        %v1446 = vunpack.c.l.b16 %v1396
        %v1447 = vunpack.c.l.b16 %v1398
        %v1448 = vunpack.c.l.b16 %v1400
        %v1449 = vunpack.c.l.b16 %v1402
        %v1450 = vunpack.c.l.b16 %v1404
        %v1451 = vunpack.c.l.b16 %v1406
        %v1452 = vunpack.c.l.b16 %v1408
        %v1453 = vunpack.c.l.b16 %v1410
        %v1454 = vunpack.c.l.b16 %v1412
        %v1455 = vunpack.c.l.b16 %v1414
        %v1456 = vpack.c.b16 %v1438, %v1438
        %v1457 = vpack.c.b16 %v1439, %v1439
        %v1458 = vpack.c.b16 %v1440, %v1440
        %v1459 = vpack.c.b16 %v1441, %v1441
        %v1460 = vpack.c.b16 %v1442, %v1442
        %v1461 = vpack.c.b16 %v1443, %v1443
        %v1462 = vpack.c.b16 %v1444, %v1444
        %v1463 = vpack.c.b16 %v1445, %v1445
        %v1464 = vpack.c.b16 %v1446, %v1446
        %v1465 = vpack.c.b16 %v1447, %v1447
        %v1466 = vpack.c.b16 %v1448, %v1448
        %v1467 = vpack.c.b16 %v1449, %v1449
        %v1468 = vpack.c.b16 %v1450, %v1450
        %v1469 = vpack.c.b16 %v1451, %v1451
        %v1470 = vpack.c.b16 %v1452, %v1452
        %v1471 = vpack.c.b16 %v1453, %v1453
        %v1472 = vpack.c.b16 %v1454, %v1454
        %v1473 = vpack.c.b16 %v1455, %v1455
        %v1475 = vshrl.u32 %v1456, 16
        %v1477 = vrot.slane %v1475, 3
        %v1479 = vshrl.u32 %v1457, 16
        %v1481 = vrot.slane %v1479, 3
        %v1483 = vshrl.u32 %v1458, 16
        %v1485 = vrot.slane %v1483, 3
        %v1487 = vshrl.u32 %v1459, 16
        %v1489 = vrot.slane %v1487, 3
        %v1491 = vshrl.u32 %v1460, 16
        %v1493 = vrot.slane %v1491, 3
        %v1495 = vshrl.u32 %v1461, 16
        %v1497 = vrot.slane %v1495, 3
        %v1499 = vshrl.u32 %v1462, 16
        %v1501 = vrot.slane %v1499, 3
        %v1503 = vshrl.u32 %v1463, 16
        %v1505 = vrot.slane %v1503, 3
        %v1507 = vshrl.u32 %v1464, 16
        %v1509 = vrot.slane %v1507, 3
        %v1511 = vshrl.u32 %v1465, 16
        %v1513 = vrot.slane %v1511, 3
        %v1515 = vshrl.u32 %v1466, 16
        %v1517 = vrot.slane %v1515, 3
        %v1519 = vshrl.u32 %v1467, 16
        %v1521 = vrot.slane %v1519, 3
        %v1523 = vshrl.u32 %v1468, 16
        %v1525 = vrot.slane %v1523, 3
        %v1527 = vshrl.u32 %v1469, 16
        %v1529 = vrot.slane %v1527, 3
        %v1531 = vshrl.u32 %v1470, 16
        %v1533 = vrot.slane %v1531, 3
        %v1535 = vshrl.u32 %v1471, 16
        %v1537 = vrot.slane %v1535, 3
        %v1539 = vshrl.u32 %v1472, 16
        %v1541 = vrot.slane %v1539, 3
        %v1543 = vshrl.u32 %v1473, 16
        %v1545 = vrot.slane %v1543, 3
        %v1582 = vunpack.c.l.b16 %v1379
        %v1583 = vunpack.c.l.b16 %v1381
        %v1584 = vunpack.c.l.b16 %v1383
        %v1585 = vunpack.c.l.b16 %v1385
        %v1586 = vunpack.c.l.b16 %v1387
        %v1587 = vunpack.c.l.b16 %v1389
        %v1588 = vunpack.c.l.b16 %v1391
        %v1589 = vunpack.c.l.b16 %v1393
        %v1590 = vunpack.c.l.b16 %v1395
        %v1591 = vunpack.c.l.b16 %v1397
        %v1592 = vunpack.c.l.b16 %v1399
        %v1593 = vunpack.c.l.b16 %v1401
        %v1594 = vunpack.c.l.b16 %v1403
        %v1595 = vunpack.c.l.b16 %v1405
        %v1596 = vunpack.c.l.b16 %v1407
        %v1597 = vunpack.c.l.b16 %v1409
        %v1598 = vunpack.c.l.b16 %v1411
        %v1599 = vunpack.c.l.b16 %v1413
        %v1600 = vpack.c.b16 %v1438, %v1582
        %v1601 = vpack.c.b16 %v1439, %v1583
        %v1602 = vpack.c.b16 %v1440, %v1584
        %v1603 = vpack.c.b16 %v1441, %v1585
        %v1604 = vpack.c.b16 %v1442, %v1586
        %v1605 = vpack.c.b16 %v1443, %v1587
        %v1606 = vpack.c.b16 %v1444, %v1588
        %v1607 = vpack.c.b16 %v1445, %v1589
        %v1608 = vpack.c.b16 %v1446, %v1590
        %v1609 = vpack.c.b16 %v1447, %v1591
        %v1610 = vpack.c.b16 %v1448, %v1592
        %v1611 = vpack.c.b16 %v1449, %v1593
        %v1612 = vpack.c.b16 %v1450, %v1594
        %v1613 = vpack.c.b16 %v1451, %v1595
        %v1614 = vpack.c.b16 %v1452, %v1596
        %v1615 = vpack.c.b16 %v1453, %v1597
        %v1616 = vpack.c.b16 %v1454, %v1598
        %v1617 = vpack.c.b16 %v1455, %v1599
        %v1619 = vshrl.u32 %v1600, 16
        %v1621 = vrot.slane %v1619, 7
        %v1622 = vshll.u32 %v1600, 16
        %v1624 = vor.u32 %v1621, %v1622
        %v1626 = vshrl.u32 %v1601, 16
        %v1628 = vrot.slane %v1626, 7
        %v1629 = vshll.u32 %v1601, 16
        %v1631 = vor.u32 %v1628, %v1629
        %v1633 = vshrl.u32 %v1602, 16
        %v1635 = vrot.slane %v1633, 7
        %v1636 = vshll.u32 %v1602, 16
        %v1638 = vor.u32 %v1635, %v1636
        %v1640 = vshrl.u32 %v1603, 16
        %v1642 = vrot.slane %v1640, 7
        %v1643 = vshll.u32 %v1603, 16
        %v1645 = vor.u32 %v1642, %v1643
        %v1647 = vshrl.u32 %v1604, 16
        %v1649 = vrot.slane %v1647, 7
        %v1650 = vshll.u32 %v1604, 16
        %v1652 = vor.u32 %v1649, %v1650
        %v1654 = vshrl.u32 %v1605, 16
        %v1656 = vrot.slane %v1654, 7
        %v1657 = vshll.u32 %v1605, 16
        %v1659 = vor.u32 %v1656, %v1657
        %v1661 = vshrl.u32 %v1606, 16
        %v1663 = vrot.slane %v1661, 7
        %v1664 = vshll.u32 %v1606, 16
        %v1666 = vor.u32 %v1663, %v1664
        %v1668 = vshrl.u32 %v1607, 16
        %v1670 = vrot.slane %v1668, 7
        %v1671 = vshll.u32 %v1607, 16
        %v1673 = vor.u32 %v1670, %v1671
        %v1675 = vshrl.u32 %v1608, 16
        %v1677 = vrot.slane %v1675, 7
        %v1678 = vshll.u32 %v1608, 16
        %v1680 = vor.u32 %v1677, %v1678
        %v1682 = vshrl.u32 %v1609, 16
        %v1684 = vrot.slane %v1682, 7
        %v1685 = vshll.u32 %v1609, 16
        %v1687 = vor.u32 %v1684, %v1685
        %v1689 = vshrl.u32 %v1610, 16
        %v1691 = vrot.slane %v1689, 7
        %v1692 = vshll.u32 %v1610, 16
        %v1694 = vor.u32 %v1691, %v1692
        %v1696 = vshrl.u32 %v1611, 16
        %v1698 = vrot.slane %v1696, 7
        %v1699 = vshll.u32 %v1611, 16
        %v1701 = vor.u32 %v1698, %v1699
        %v1703 = vshrl.u32 %v1612, 16
        %v1705 = vrot.slane %v1703, 7
        %v1706 = vshll.u32 %v1612, 16
        %v1708 = vor.u32 %v1705, %v1706
        %v1710 = vshrl.u32 %v1613, 16
        %v1712 = vrot.slane %v1710, 7
        %v1713 = vshll.u32 %v1613, 16
        %v1715 = vor.u32 %v1712, %v1713
        %v1717 = vshrl.u32 %v1614, 16
        %v1719 = vrot.slane %v1717, 7
        %v1720 = vshll.u32 %v1614, 16
        %v1722 = vor.u32 %v1719, %v1720
        %v1724 = vshrl.u32 %v1615, 16
        %v1726 = vrot.slane %v1724, 7
        %v1727 = vshll.u32 %v1615, 16
        %v1729 = vor.u32 %v1726, %v1727
        %v1731 = vshrl.u32 %v1616, 16
        %v1733 = vrot.slane %v1731, 7
        %v1734 = vshll.u32 %v1616, 16
        %v1736 = vor.u32 %v1733, %v1734
        %v1738 = vshrl.u32 %v1617, 16
        %v1740 = vrot.slane %v1738, 7
        %v1741 = vshll.u32 %v1617, 16
        %v1743 = vor.u32 %v1740, %v1741
        %vm1762 = vcmask 1040384
        %vm1763 = vsmask.f32 256
        %vm1764 = vmand %vm1762, %vm1763
        %v1765 = vsel %vm1764, %v1477, %v1624
        %v1766 = vsel %vm1764, %v1481, %v1631
        %v1767 = vsel %vm1764, %v1485, %v1638
        %v1768 = vsel %vm1764, %v1489, %v1645
        %v1769 = vsel %vm1764, %v1493, %v1652
        %v1770 = vsel %vm1764, %v1497, %v1659
        %v1771 = vsel %vm1764, %v1501, %v1666
        %v1772 = vsel %vm1764, %v1505, %v1673
        %v1773 = vsel %vm1764, %v1509, %v1680
        %v1774 = vsel %vm1764, %v1513, %v1687
        %v1775 = vsel %vm1764, %v1517, %v1694
        %v1776 = vsel %vm1764, %v1521, %v1701
        %v1777 = vsel %vm1764, %v1525, %v1708
        %v1778 = vsel %vm1764, %v1529, %v1715
        %v1779 = vsel %vm1764, %v1533, %v1722
        %v1780 = vsel %vm1764, %v1537, %v1729
        %v1781 = vsel %vm1764, %v1541, %v1736
        %v1782 = vsel %vm1764, %v1545, %v1743
        %vm1783 = vmpackc.low %vm1418, %vm1418
        %vm1784 = vmpackc.low %vm1419, %vm1419
        %v1785 = vsel %vm1783, 65537, 0
        %v1786 = vsel %vm1784, 65537, 0
        %v1787 = vunpack.c.l.b16 %v1785
        %v1788 = vunpack.c.l.b16 %v1786
        %v1789 = vpack.c.b16 %v1788, %v1787
        %v1790 = vunpack.c.l.b16 %v1789
        %v1791 = vunpack.c.h.b16 %v1789
        %v1792 = vunpack.c.l.b16 0
        %v1793 = vunpack.c.h.b16 0
        %vm1794 = vcmp.ne.s32.totalorder %v1790, %v1792
        %vm1795 = vcmp.ne.s32.totalorder %v1791, %v1793
        %vm1796 = vmpackc.low %vm1795, %vm1794
        %v1797 = vsel %vm1796, %v1765, 0
        %v1798 = vsel %vm1796, %v1766, 0
        %v1799 = vsel %vm1796, %v1767, 0
        %v1800 = vsel %vm1796, %v1768, 0
        %v1801 = vsel %vm1796, %v1769, 0
        %v1802 = vsel %vm1796, %v1770, 0
        %v1803 = vsel %vm1796, %v1771, 0
        %v1804 = vsel %vm1796, %v1772, 0
        %v1805 = vsel %vm1796, %v1773, 0
        %v1806 = vsel %vm1796, %v1774, 0
        %v1807 = vsel %vm1796, %v1775, 0
        %v1808 = vsel %vm1796, %v1776, 0
        %v1809 = vsel %vm1796, %v1777, 0
        %v1810 = vsel %vm1796, %v1778, 0
        %v1811 = vsel %vm1796, %v1779, 0
        %v1812 = vsel %vm1796, %v1780, 0
        %v1813 = vsel %vm1796, %v1781, 0
        %v1814 = vsel %vm1796, %v1782, 0
        %vm1815 = vcmp.lt.s32.totalorder %v1416, 15
        %vm1816 = vcmp.lt.s32.totalorder %v1417, 15
        %v1817 = vrot.slane %v1622, 1
        %v1818 = vor.u32 %v1619, %v1817
        %v1819 = vrot.slane %v1629, 1
        %v1820 = vor.u32 %v1626, %v1819
        %v1821 = vrot.slane %v1636, 1
        %v1822 = vor.u32 %v1633, %v1821
        %v1823 = vrot.slane %v1643, 1
        %v1824 = vor.u32 %v1640, %v1823
        %v1825 = vrot.slane %v1650, 1
        %v1826 = vor.u32 %v1647, %v1825
        %v1827 = vrot.slane %v1657, 1
        %v1828 = vor.u32 %v1654, %v1827
        %v1829 = vrot.slane %v1664, 1
        %v1830 = vor.u32 %v1661, %v1829
        %v1831 = vrot.slane %v1671, 1
        %v1832 = vor.u32 %v1668, %v1831
        %v1833 = vrot.slane %v1678, 1
        %v1834 = vor.u32 %v1675, %v1833
        %v1835 = vrot.slane %v1685, 1
        %v1836 = vor.u32 %v1682, %v1835
        %v1837 = vrot.slane %v1692, 1
        %v1838 = vor.u32 %v1689, %v1837
        %v1839 = vrot.slane %v1699, 1
        %v1840 = vor.u32 %v1696, %v1839
        %v1841 = vrot.slane %v1706, 1
        %v1842 = vor.u32 %v1703, %v1841
        %v1843 = vrot.slane %v1713, 1
        %v1844 = vor.u32 %v1710, %v1843
        %v1845 = vrot.slane %v1720, 1
        %v1846 = vor.u32 %v1717, %v1845
        %v1847 = vrot.slane %v1727, 1
        %v1848 = vor.u32 %v1724, %v1847
        %v1849 = vrot.slane %v1734, 1
        %v1850 = vor.u32 %v1731, %v1849
        %v1851 = vrot.slane %v1741, 1
        %v1852 = vor.u32 %v1738, %v1851
        %v1871 = vpack.c.b16 %v1582, %v1582
        %v1872 = vpack.c.b16 %v1583, %v1583
        %v1873 = vpack.c.b16 %v1584, %v1584
        %v1874 = vpack.c.b16 %v1585, %v1585
        %v1875 = vpack.c.b16 %v1586, %v1586
        %v1876 = vpack.c.b16 %v1587, %v1587
        %v1877 = vpack.c.b16 %v1588, %v1588
        %v1878 = vpack.c.b16 %v1589, %v1589
        %v1879 = vpack.c.b16 %v1590, %v1590
        %v1880 = vpack.c.b16 %v1591, %v1591
        %v1881 = vpack.c.b16 %v1592, %v1592
        %v1882 = vpack.c.b16 %v1593, %v1593
        %v1883 = vpack.c.b16 %v1594, %v1594
        %v1884 = vpack.c.b16 %v1595, %v1595
        %v1885 = vpack.c.b16 %v1596, %v1596
        %v1886 = vpack.c.b16 %v1597, %v1597
        %v1887 = vpack.c.b16 %v1598, %v1598
        %v1888 = vpack.c.b16 %v1599, %v1599
        %v1890 = vshll.u32 %v1871, 16
        %v1892 = vrot.slane %v1890, 1
        %v1894 = vshll.u32 %v1872, 16
        %v1896 = vrot.slane %v1894, 1
        %v1898 = vshll.u32 %v1873, 16
        %v1900 = vrot.slane %v1898, 1
        %v1902 = vshll.u32 %v1874, 16
        %v1904 = vrot.slane %v1902, 1
        %v1906 = vshll.u32 %v1875, 16
        %v1908 = vrot.slane %v1906, 1
        %v1910 = vshll.u32 %v1876, 16
        %v1912 = vrot.slane %v1910, 1
        %v1914 = vshll.u32 %v1877, 16
        %v1916 = vrot.slane %v1914, 1
        %v1918 = vshll.u32 %v1878, 16
        %v1920 = vrot.slane %v1918, 1
        %v1922 = vshll.u32 %v1879, 16
        %v1924 = vrot.slane %v1922, 1
        %v1926 = vshll.u32 %v1880, 16
        %v1928 = vrot.slane %v1926, 1
        %v1930 = vshll.u32 %v1881, 16
        %v1932 = vrot.slane %v1930, 1
        %v1934 = vshll.u32 %v1882, 16
        %v1936 = vrot.slane %v1934, 1
        %v1938 = vshll.u32 %v1883, 16
        %v1940 = vrot.slane %v1938, 1
        %v1942 = vshll.u32 %v1884, 16
        %v1944 = vrot.slane %v1942, 1
        %v1946 = vshll.u32 %v1885, 16
        %v1948 = vrot.slane %v1946, 1
        %v1950 = vshll.u32 %v1886, 16
        %v1952 = vrot.slane %v1950, 1
        %v1954 = vshll.u32 %v1887, 16
        %v1956 = vrot.slane %v1954, 1
        %v1958 = vshll.u32 %v1888, 16
        %v1960 = vrot.slane %v1958, 1
        %vm1979 = vcmask 1047552
        %vm1980 = vsmask.f32 7424
        %vm1981 = vmand %vm1979, %vm1980
        %v1982 = vsel %vm1981, %v1818, %v1892
        %v1983 = vsel %vm1981, %v1820, %v1896
        %v1984 = vsel %vm1981, %v1822, %v1900
        %v1985 = vsel %vm1981, %v1824, %v1904
        %v1986 = vsel %vm1981, %v1826, %v1908
        %v1987 = vsel %vm1981, %v1828, %v1912
        %v1988 = vsel %vm1981, %v1830, %v1916
        %v1989 = vsel %vm1981, %v1832, %v1920
        %v1990 = vsel %vm1981, %v1834, %v1924
        %v1991 = vsel %vm1981, %v1836, %v1928
        %v1992 = vsel %vm1981, %v1838, %v1932
        %v1993 = vsel %vm1981, %v1840, %v1936
        %v1994 = vsel %vm1981, %v1842, %v1940
        %v1995 = vsel %vm1981, %v1844, %v1944
        %v1996 = vsel %vm1981, %v1846, %v1948
        %v1997 = vsel %vm1981, %v1848, %v1952
        %v1998 = vsel %vm1981, %v1850, %v1956
        %v1999 = vsel %vm1981, %v1852, %v1960
        %vm2000 = vmpackc.low %vm1815, %vm1815
        %vm2001 = vmpackc.low %vm1816, %vm1816
        %v2002 = vsel %vm2000, 65537, 0
        %v2003 = vsel %vm2001, 65537, 0
        %v2004 = vunpack.c.l.b16 %v2002
        %v2005 = vunpack.c.l.b16 %v2003
        %v2006 = vpack.c.b16 %v2005, %v2004
        %v2007 = vunpack.c.l.b16 %v2006
        %v2008 = vunpack.c.h.b16 %v2006
        %v2009 = vunpack.c.l.b16 0
        %v2010 = vunpack.c.h.b16 0
        %vm2011 = vcmp.ne.s32.totalorder %v2007, %v2009
        %vm2012 = vcmp.ne.s32.totalorder %v2008, %v2010
        %vm2013 = vmpackc.low %vm2012, %vm2011
        %v2014 = vsel %vm2013, %v1982, 0
        %v2015 = vsel %vm2013, %v1983, 0
        %v2016 = vsel %vm2013, %v1984, 0
        %v2017 = vsel %vm2013, %v1985, 0
        %v2018 = vsel %vm2013, %v1986, 0
        %v2019 = vsel %vm2013, %v1987, 0
        %v2020 = vsel %vm2013, %v1988, 0
        %v2021 = vsel %vm2013, %v1989, 0
        %v2022 = vsel %vm2013, %v1990, 0
        %v2023 = vsel %vm2013, %v1991, 0
        %v2024 = vsel %vm2013, %v1992, 0
        %v2025 = vsel %vm2013, %v1993, 0
        %v2026 = vsel %vm2013, %v1994, 0
        %v2027 = vsel %vm2013, %v1995, 0
        %v2028 = vsel %vm2013, %v1996, 0
        %v2029 = vsel %vm2013, %v1997, 0
        %v2030 = vsel %vm2013, %v1998, 0
        %v2031 = vsel %vm2013, %v1999, 0
        %v2032 = vld [vmem:[#allocation8] sm:$0xf]
        %v2033 = vld [vmem:[#allocation8 + $0x4] sm:$0xf]
        %v2034 = vld [vmem:[#allocation8 + $0x8] sm:$0xf]
        %v2035 = vld [vmem:[#allocation8 + $0xc] sm:$0xf]
        %v2036 = vld [vmem:[#allocation8 + $0x10] sm:$0xf]
        %v2037 = vld [vmem:[#allocation8 + $0x14] sm:$0xf]
        %v2038 = vld [vmem:[#allocation8 + $0x18] sm:$0xf]
        %v2039 = vld [vmem:[#allocation8 + $0x1c] sm:$0xf]
        %s2040 = scalar_lea.vmem [#allocation8], 32
        %v2041 = vld [vmem:[%s2040] sm:$0xf]
        %v2042 = vld [vmem:[%s2040 + $0x4] sm:$0xf]
        %v2043 = vld [vmem:[%s2040 + $0x8] sm:$0xf]
        %v2044 = vld [vmem:[%s2040 + $0xc] sm:$0xf]
        %v2045 = vld [vmem:[%s2040 + $0x10] sm:$0xf]
        %v2046 = vld [vmem:[%s2040 + $0x14] sm:$0xf]
        %v2047 = vld [vmem:[%s2040 + $0x18] sm:$0xf]
        %v2048 = vld [vmem:[%s2040 + $0x1c] sm:$0xf]
        %v2057 = vunpack.c.l.b16 %v2041
        %v2058 = vunpack.c.l.b16 %v2042
        %v2059 = vunpack.c.l.b16 %v2043
        %v2060 = vunpack.c.l.b16 %v2044
        %v2061 = vunpack.c.l.b16 %v2045
        %v2062 = vunpack.c.l.b16 %v2046
        %v2063 = vunpack.c.l.b16 %v2047
        %v2064 = vunpack.c.l.b16 %v2048
        %v2065 = vpack.c.b16 %v2058, %v2057
        %v2066 = vpack.c.b16 %v2060, %v2059
        %v2067 = vpack.c.b16 %v2062, %v2061
        %v2068 = vpack.c.b16 %v2064, %v2063
        %vm2073 = vcmask 523264
        %v2074 = vsel %vm2073, %v1600, 0
        %v2076 = vsel %vm2073, %v1601, 0
        %v2078 = vsel %vm2073, %v1602, 0
        %v2080 = vsel %vm2073, %v1603, 0
        %v2082 = vsel %vm2073, %v1604, 0
        %v2084 = vsel %vm2073, %v1605, 0
        %v2086 = vsel %vm2073, %v1606, 0
        %v2088 = vsel %vm2073, %v1607, 0
        %v2090 = vsel %vm2073, %v1608, 0
        %v2092 = vsel %vm2073, %v1609, 0
        %v2094 = vsel %vm2073, %v1610, 0
        %v2096 = vsel %vm2073, %v1611, 0
        %v2098 = vsel %vm2073, %v1612, 0
        %v2100 = vsel %vm2073, %v1613, 0
        %v2102 = vsel %vm2073, %v1614, 0
        %v2104 = vsel %vm2073, %v1615, 0
        %2106 = vmatpush.bf16.msra.mxu0 0
        %2107 = vmatpush.bf16.msra.mxu0 0
        %2108 = vmatpush.bf16.msra.mxu0 0
        %2109 = vmatpush.bf16.msra.mxu0 0
        %2110 = vmatpush.bf16.msra.mxu0 %v2068
        %2111 = vmatpush.bf16.msra.mxu0 %v2067
        %2112 = vmatpush.bf16.msra.mxu0 %v2066
        %2113 = vmatpush.bf16.msra.mxu0 %v2065
        %2114 = vmatmul.bf16.gmra.mxu0 %v2074
        %v2115 = vpop.f32.mrf.mxu0
        %v2116 = vadd.f32 0.0, %v2115
        %v2117 = vpop.f32.mrf.mxu0
        %v2118 = vadd.f32 0.0, %v2117
        %2119 = vmatmul.bf16.gmra.mxu0 %v2076
        %v2120 = vpop.f32.mrf.mxu0
        %v2121 = vadd.f32 0.0, %v2120
        %v2122 = vpop.f32.mrf.mxu0
        %v2123 = vadd.f32 0.0, %v2122
        %2124 = vmatmul.bf16.gmra.mxu0 %v2078
        %v2125 = vpop.f32.mrf.mxu0
        %v2126 = vadd.f32 0.0, %v2125
        %v2127 = vpop.f32.mrf.mxu0
        %v2128 = vadd.f32 0.0, %v2127
        %2129 = vmatmul.bf16.gmra.mxu0 %v2080
        %v2130 = vpop.f32.mrf.mxu0
        %v2131 = vadd.f32 0.0, %v2130
        %v2132 = vpop.f32.mrf.mxu0
        %v2133 = vadd.f32 0.0, %v2132
        %2134 = vmatmul.bf16.gmra.mxu0 %v2082
        %v2135 = vpop.f32.mrf.mxu0
        %v2136 = vadd.f32 0.0, %v2135
        %v2137 = vpop.f32.mrf.mxu0
        %v2138 = vadd.f32 0.0, %v2137
        %2139 = vmatmul.bf16.gmra.mxu0 %v2084
        %v2140 = vpop.f32.mrf.mxu0
        %v2141 = vadd.f32 0.0, %v2140
        %v2142 = vpop.f32.mrf.mxu0
        %v2143 = vadd.f32 0.0, %v2142
        %2144 = vmatmul.bf16.gmra.mxu0 %v2086
        %v2145 = vpop.f32.mrf.mxu0
        %v2146 = vadd.f32 0.0, %v2145
        %v2147 = vpop.f32.mrf.mxu0
        %v2148 = vadd.f32 0.0, %v2147
        %2149 = vmatmul.bf16.gmra.mxu0 %v2088
        %v2150 = vpop.f32.mrf.mxu0
        %v2151 = vadd.f32 0.0, %v2150
        %v2152 = vpop.f32.mrf.mxu0
        %v2153 = vadd.f32 0.0, %v2152
        %2154 = vmatmul.bf16.gmra.mxu0 %v2090
        %v2155 = vpop.f32.mrf.mxu0
        %v2156 = vadd.f32 0.0, %v2155
        %v2157 = vpop.f32.mrf.mxu0
        %v2158 = vadd.f32 0.0, %v2157
        %2159 = vmatmul.bf16.gmra.mxu0 %v2092
        %v2160 = vpop.f32.mrf.mxu0
        %v2161 = vadd.f32 0.0, %v2160
        %v2162 = vpop.f32.mrf.mxu0
        %v2163 = vadd.f32 0.0, %v2162
        %2164 = vmatmul.bf16.gmra.mxu0 %v2094
        %v2165 = vpop.f32.mrf.mxu0
        %v2166 = vadd.f32 0.0, %v2165
        %v2167 = vpop.f32.mrf.mxu0
        %v2168 = vadd.f32 0.0, %v2167
        %2169 = vmatmul.bf16.gmra.mxu0 %v2096
        %v2170 = vpop.f32.mrf.mxu0
        %v2171 = vadd.f32 0.0, %v2170
        %v2172 = vpop.f32.mrf.mxu0
        %v2173 = vadd.f32 0.0, %v2172
        %2174 = vmatmul.bf16.gmra.mxu0 %v2098
        %v2175 = vpop.f32.mrf.mxu0
        %v2176 = vadd.f32 0.0, %v2175
        %v2177 = vpop.f32.mrf.mxu0
        %v2178 = vadd.f32 0.0, %v2177
        %2179 = vmatmul.bf16.gmra.mxu0 %v2100
        %v2180 = vpop.f32.mrf.mxu0
        %v2181 = vadd.f32 0.0, %v2180
        %v2182 = vpop.f32.mrf.mxu0
        %v2183 = vadd.f32 0.0, %v2182
        %2184 = vmatmul.bf16.gmra.mxu0 %v2102
        %v2185 = vpop.f32.mrf.mxu0
        %v2186 = vadd.f32 0.0, %v2185
        %v2187 = vpop.f32.mrf.mxu0
        %v2188 = vadd.f32 0.0, %v2187
        %2189 = vmatmul.bf16.gmra.mxu0 %v2104
        %v2190 = vpop.f32.mrf.mxu0
        %v2191 = vadd.f32 0.0, %v2190
        %v2192 = vpop.f32.mrf.mxu0
        %v2193 = vadd.f32 0.0, %v2192
        %2194 = vdwg.mxu0
        %v2203 = vunpack.c.l.b16 %v2032
        %v2204 = vunpack.c.l.b16 %v2033
        %v2205 = vunpack.c.l.b16 %v2034
        %v2206 = vunpack.c.l.b16 %v2035
        %v2207 = vunpack.c.l.b16 %v2036
        %v2208 = vunpack.c.l.b16 %v2037
        %v2209 = vunpack.c.l.b16 %v2038
        %v2210 = vunpack.c.l.b16 %v2039
        %v2211 = vpack.c.b16 %v2204, %v2203
        %v2212 = vpack.c.b16 %v2206, %v2205
        %v2213 = vpack.c.b16 %v2208, %v2207
        %v2214 = vpack.c.b16 %v2210, %v2209
        %v2220 = vsel %vm2073, %v1797, 0
        %v2223 = vsel %vm2073, %v1798, 0
        %v2226 = vsel %vm2073, %v1799, 0
        %v2229 = vsel %vm2073, %v1800, 0
        %v2232 = vsel %vm2073, %v1801, 0
        %v2235 = vsel %vm2073, %v1802, 0
        %v2238 = vsel %vm2073, %v1803, 0
        %v2241 = vsel %vm2073, %v1804, 0
        %v2244 = vsel %vm2073, %v1805, 0
        %v2247 = vsel %vm2073, %v1806, 0
        %v2250 = vsel %vm2073, %v1807, 0
        %v2253 = vsel %vm2073, %v1808, 0
        %v2256 = vsel %vm2073, %v1809, 0
        %v2259 = vsel %vm2073, %v1810, 0
        %v2262 = vsel %vm2073, %v1811, 0
        %v2265 = vsel %vm2073, %v1812, 0
        %2267 = vmatpush.bf16.msra.mxu0 0
        %2268 = vmatpush.bf16.msra.mxu0 0
        %2269 = vmatpush.bf16.msra.mxu0 0
        %2270 = vmatpush.bf16.msra.mxu0 0
        %2271 = vmatpush.bf16.msra.mxu0 %v2214
        %2272 = vmatpush.bf16.msra.mxu0 %v2213
        %2273 = vmatpush.bf16.msra.mxu0 %v2212
        %2274 = vmatpush.bf16.msra.mxu0 %v2211
        %2275 = vmatmul.bf16.gmra.mxu0 %v2220
        %v2276 = vpop.f32.mrf.mxu0
        %v2277 = vadd.f32 %v2116, %v2276
        %v2278 = vpop.f32.mrf.mxu0
        %v2279 = vadd.f32 %v2118, %v2278
        %2280 = vmatmul.bf16.gmra.mxu0 %v2223
        %v2281 = vpop.f32.mrf.mxu0
        %v2282 = vadd.f32 %v2121, %v2281
        %v2283 = vpop.f32.mrf.mxu0
        %v2284 = vadd.f32 %v2123, %v2283
        %2285 = vmatmul.bf16.gmra.mxu0 %v2226
        %v2286 = vpop.f32.mrf.mxu0
        %v2287 = vadd.f32 %v2126, %v2286
        %v2288 = vpop.f32.mrf.mxu0
        %v2289 = vadd.f32 %v2128, %v2288
        %2290 = vmatmul.bf16.gmra.mxu0 %v2229
        %v2291 = vpop.f32.mrf.mxu0
        %v2292 = vadd.f32 %v2131, %v2291
        %v2293 = vpop.f32.mrf.mxu0
        %v2294 = vadd.f32 %v2133, %v2293
        %2295 = vmatmul.bf16.gmra.mxu0 %v2232
        %v2296 = vpop.f32.mrf.mxu0
        %v2297 = vadd.f32 %v2136, %v2296
        %v2298 = vpop.f32.mrf.mxu0
        %v2299 = vadd.f32 %v2138, %v2298
        %2300 = vmatmul.bf16.gmra.mxu0 %v2235
        %v2301 = vpop.f32.mrf.mxu0
        %v2302 = vadd.f32 %v2141, %v2301
        %v2303 = vpop.f32.mrf.mxu0
        %v2304 = vadd.f32 %v2143, %v2303
        %2305 = vmatmul.bf16.gmra.mxu0 %v2238
        %v2306 = vpop.f32.mrf.mxu0
        %v2307 = vadd.f32 %v2146, %v2306
        %v2308 = vpop.f32.mrf.mxu0
        %v2309 = vadd.f32 %v2148, %v2308
        %2310 = vmatmul.bf16.gmra.mxu0 %v2241
        %v2311 = vpop.f32.mrf.mxu0
        %v2312 = vadd.f32 %v2151, %v2311
        %v2313 = vpop.f32.mrf.mxu0
        %v2314 = vadd.f32 %v2153, %v2313
        %2315 = vmatmul.bf16.gmra.mxu0 %v2244
        %v2316 = vpop.f32.mrf.mxu0
        %v2317 = vadd.f32 %v2156, %v2316
        %v2318 = vpop.f32.mrf.mxu0
        %v2319 = vadd.f32 %v2158, %v2318
        %2320 = vmatmul.bf16.gmra.mxu0 %v2247
        %v2321 = vpop.f32.mrf.mxu0
        %v2322 = vadd.f32 %v2161, %v2321
        %v2323 = vpop.f32.mrf.mxu0
        %v2324 = vadd.f32 %v2163, %v2323
        %2325 = vmatmul.bf16.gmra.mxu0 %v2250
        %v2326 = vpop.f32.mrf.mxu0
        %v2327 = vadd.f32 %v2166, %v2326
        %v2328 = vpop.f32.mrf.mxu0
        %v2329 = vadd.f32 %v2168, %v2328
        %2330 = vmatmul.bf16.gmra.mxu0 %v2253
        %v2331 = vpop.f32.mrf.mxu0
        %v2332 = vadd.f32 %v2171, %v2331
        %v2333 = vpop.f32.mrf.mxu0
        %v2334 = vadd.f32 %v2173, %v2333
        %2335 = vmatmul.bf16.gmra.mxu0 %v2256
        %v2336 = vpop.f32.mrf.mxu0
        %v2337 = vadd.f32 %v2176, %v2336
        %v2338 = vpop.f32.mrf.mxu0
        %v2339 = vadd.f32 %v2178, %v2338
        %2340 = vmatmul.bf16.gmra.mxu0 %v2259
        %v2341 = vpop.f32.mrf.mxu0
        %v2342 = vadd.f32 %v2181, %v2341
        %v2343 = vpop.f32.mrf.mxu0
        %v2344 = vadd.f32 %v2183, %v2343
        %2345 = vmatmul.bf16.gmra.mxu0 %v2262
        %v2346 = vpop.f32.mrf.mxu0
        %v2347 = vadd.f32 %v2186, %v2346
        %v2348 = vpop.f32.mrf.mxu0
        %v2349 = vadd.f32 %v2188, %v2348
        %2350 = vmatmul.bf16.gmra.mxu0 %v2265
        %v2351 = vpop.f32.mrf.mxu0
        %v2352 = vadd.f32 %v2191, %v2351
        %v2353 = vpop.f32.mrf.mxu0
        %v2354 = vadd.f32 %v2193, %v2353
        %2355 = vdwg.mxu0
        %s2356 = scalar_lea.vmem [#allocation8], 64
        %v2357 = vld [vmem:[%s2356] sm:$0xf]
        %v2358 = vld [vmem:[%s2356 + $0x4] sm:$0xf]
        %v2359 = vld [vmem:[%s2356 + $0x8] sm:$0xf]
        %v2360 = vld [vmem:[%s2356 + $0xc] sm:$0xf]
        %v2361 = vld [vmem:[%s2356 + $0x10] sm:$0xf]
        %v2362 = vld [vmem:[%s2356 + $0x14] sm:$0xf]
        %v2363 = vld [vmem:[%s2356 + $0x18] sm:$0xf]
        %v2364 = vld [vmem:[%s2356 + $0x1c] sm:$0xf]
        %v2373 = vunpack.c.l.b16 %v2357
        %v2374 = vunpack.c.l.b16 %v2358
        %v2375 = vunpack.c.l.b16 %v2359
        %v2376 = vunpack.c.l.b16 %v2360
        %v2377 = vunpack.c.l.b16 %v2361
        %v2378 = vunpack.c.l.b16 %v2362
        %v2379 = vunpack.c.l.b16 %v2363
        %v2380 = vunpack.c.l.b16 %v2364
        %v2381 = vpack.c.b16 %v2374, %v2373
        %v2382 = vpack.c.b16 %v2376, %v2375
        %v2383 = vpack.c.b16 %v2378, %v2377
        %v2384 = vpack.c.b16 %v2380, %v2379
        %v2390 = vsel %vm2073, %v2014, 0
        %v2393 = vsel %vm2073, %v2015, 0
        %v2396 = vsel %vm2073, %v2016, 0
        %v2399 = vsel %vm2073, %v2017, 0
        %v2402 = vsel %vm2073, %v2018, 0
        %v2405 = vsel %vm2073, %v2019, 0
        %v2408 = vsel %vm2073, %v2020, 0
        %v2411 = vsel %vm2073, %v2021, 0
        %v2414 = vsel %vm2073, %v2022, 0
        %v2417 = vsel %vm2073, %v2023, 0
        %v2420 = vsel %vm2073, %v2024, 0
        %v2423 = vsel %vm2073, %v2025, 0
        %v2426 = vsel %vm2073, %v2026, 0
        %v2429 = vsel %vm2073, %v2027, 0
        %v2432 = vsel %vm2073, %v2028, 0
        %v2435 = vsel %vm2073, %v2029, 0
        %2437 = vmatpush.bf16.msra.mxu0 0
        %2438 = vmatpush.bf16.msra.mxu0 0
        %2439 = vmatpush.bf16.msra.mxu0 0
        %2440 = vmatpush.bf16.msra.mxu0 0
        %2441 = vmatpush.bf16.msra.mxu0 %v2384
        %2442 = vmatpush.bf16.msra.mxu0 %v2383
        %2443 = vmatpush.bf16.msra.mxu0 %v2382
        %2444 = vmatpush.bf16.msra.mxu0 %v2381
        %2445 = vmatmul.bf16.gmra.mxu0 %v2390
        %v2446 = vpop.f32.mrf.mxu0
        %v2447 = vadd.f32 0.0, %v2446
        %v2448 = vpop.f32.mrf.mxu0
        %v2449 = vadd.f32 0.0, %v2448
        %2450 = vmatmul.bf16.gmra.mxu0 %v2393
        %v2451 = vpop.f32.mrf.mxu0
        %v2452 = vadd.f32 0.0, %v2451
        %v2453 = vpop.f32.mrf.mxu0
        %v2454 = vadd.f32 0.0, %v2453
        %2455 = vmatmul.bf16.gmra.mxu0 %v2396
        %v2456 = vpop.f32.mrf.mxu0
        %v2457 = vadd.f32 0.0, %v2456
        %v2458 = vpop.f32.mrf.mxu0
        %v2459 = vadd.f32 0.0, %v2458
        %2460 = vmatmul.bf16.gmra.mxu0 %v2399
        %v2461 = vpop.f32.mrf.mxu0
        %v2462 = vadd.f32 0.0, %v2461
        %v2463 = vpop.f32.mrf.mxu0
        %v2464 = vadd.f32 0.0, %v2463
        %2465 = vmatmul.bf16.gmra.mxu0 %v2402
        %v2466 = vpop.f32.mrf.mxu0
        %v2467 = vadd.f32 0.0, %v2466
        %v2468 = vpop.f32.mrf.mxu0
        %v2469 = vadd.f32 0.0, %v2468
        %2470 = vmatmul.bf16.gmra.mxu0 %v2405
        %v2471 = vpop.f32.mrf.mxu0
        %v2472 = vadd.f32 0.0, %v2471
        %v2473 = vpop.f32.mrf.mxu0
        %v2474 = vadd.f32 0.0, %v2473
        %2475 = vmatmul.bf16.gmra.mxu0 %v2408
        %v2476 = vpop.f32.mrf.mxu0
        %v2477 = vadd.f32 0.0, %v2476
        %v2478 = vpop.f32.mrf.mxu0
        %v2479 = vadd.f32 0.0, %v2478
        %2480 = vmatmul.bf16.gmra.mxu0 %v2411
        %v2481 = vpop.f32.mrf.mxu0
        %v2482 = vadd.f32 0.0, %v2481
        %v2483 = vpop.f32.mrf.mxu0
        %v2484 = vadd.f32 0.0, %v2483
        %2485 = vmatmul.bf16.gmra.mxu0 %v2414
        %v2486 = vpop.f32.mrf.mxu0
        %v2487 = vadd.f32 0.0, %v2486
        %v2488 = vpop.f32.mrf.mxu0
        %v2489 = vadd.f32 0.0, %v2488
        %2490 = vmatmul.bf16.gmra.mxu0 %v2417
        %v2491 = vpop.f32.mrf.mxu0
        %v2492 = vadd.f32 0.0, %v2491
        %v2493 = vpop.f32.mrf.mxu0
        %v2494 = vadd.f32 0.0, %v2493
        %2495 = vmatmul.bf16.gmra.mxu0 %v2420
        %v2496 = vpop.f32.mrf.mxu0
        %v2497 = vadd.f32 0.0, %v2496
        %v2498 = vpop.f32.mrf.mxu0
        %v2499 = vadd.f32 0.0, %v2498
        %2500 = vmatmul.bf16.gmra.mxu0 %v2423
        %v2501 = vpop.f32.mrf.mxu0
        %v2502 = vadd.f32 0.0, %v2501
        %v2503 = vpop.f32.mrf.mxu0
        %v2504 = vadd.f32 0.0, %v2503
        %2505 = vmatmul.bf16.gmra.mxu0 %v2426
        %v2506 = vpop.f32.mrf.mxu0
        %v2507 = vadd.f32 0.0, %v2506
        %v2508 = vpop.f32.mrf.mxu0
        %v2509 = vadd.f32 0.0, %v2508
        %2510 = vmatmul.bf16.gmra.mxu0 %v2429
        %v2511 = vpop.f32.mrf.mxu0
        %v2512 = vadd.f32 0.0, %v2511
        %v2513 = vpop.f32.mrf.mxu0
        %v2514 = vadd.f32 0.0, %v2513
        %2515 = vmatmul.bf16.gmra.mxu0 %v2432
        %v2516 = vpop.f32.mrf.mxu0
        %v2517 = vadd.f32 0.0, %v2516
        %v2518 = vpop.f32.mrf.mxu0
        %v2519 = vadd.f32 0.0, %v2518
        %2520 = vmatmul.bf16.gmra.mxu0 %v2435
        %v2521 = vpop.f32.mrf.mxu0
        %v2522 = vadd.f32 0.0, %v2521
        %v2523 = vpop.f32.mrf.mxu0
        %v2524 = vadd.f32 0.0, %v2523
        %2525 = vdwg.mxu0
        %v2526 = vadd.f32 %v2277, %v2447
        %v2527 = vadd.f32 %v2279, %v2449
        %v2528 = vadd.f32 %v2282, %v2452
        %v2529 = vadd.f32 %v2284, %v2454
        %v2530 = vadd.f32 %v2287, %v2457
        %v2531 = vadd.f32 %v2289, %v2459
        %v2532 = vadd.f32 %v2292, %v2462
        %v2533 = vadd.f32 %v2294, %v2464
        %v2534 = vadd.f32 %v2297, %v2467
        %v2535 = vadd.f32 %v2299, %v2469
        %v2536 = vadd.f32 %v2302, %v2472
        %v2537 = vadd.f32 %v2304, %v2474
        %v2538 = vadd.f32 %v2307, %v2477
        %v2539 = vadd.f32 %v2309, %v2479
        %v2540 = vadd.f32 %v2312, %v2482
        %v2541 = vadd.f32 %v2314, %v2484
        %v2542 = vadd.f32 %v2317, %v2487
        %v2543 = vadd.f32 %v2319, %v2489
        %v2544 = vadd.f32 %v2322, %v2492
        %v2545 = vadd.f32 %v2324, %v2494
        %v2546 = vadd.f32 %v2327, %v2497
        %v2547 = vadd.f32 %v2329, %v2499
        %v2548 = vadd.f32 %v2332, %v2502
        %v2549 = vadd.f32 %v2334, %v2504
        %v2550 = vadd.f32 %v2337, %v2507
        %v2551 = vadd.f32 %v2339, %v2509
        %v2552 = vadd.f32 %v2342, %v2512
        %v2553 = vadd.f32 %v2344, %v2514
        %v2554 = vadd.f32 %v2347, %v2517
        %v2555 = vadd.f32 %v2349, %v2519
        %v2556 = vadd.f32 %v2352, %v2522
        %v2557 = vadd.f32 %v2354, %v2524
        %s2558 = scalar_lea.vmem [#allocation8], 96
        %v2559 = vld [vmem:[%s2558] sm:$0xf]
        %v2560 = vld [vmem:[%s2558 + $0x4] sm:$0xf]
        %v2561 = vld [vmem:[%s2558 + $0x8] sm:$0xf]
        %v2562 = vld [vmem:[%s2558 + $0xc] sm:$0xf]
        %v2563 = vld [vmem:[%s2558 + $0x10] sm:$0xf]
        %v2564 = vld [vmem:[%s2558 + $0x14] sm:$0xf]
        %v2565 = vld [vmem:[%s2558 + $0x18] sm:$0xf]
        %v2566 = vld [vmem:[%s2558 + $0x1c] sm:$0xf]
        %v2575 = vunpack.c.l.b16 %v2559
        %v2576 = vunpack.c.l.b16 %v2560
        %v2577 = vunpack.c.l.b16 %v2561
        %v2578 = vunpack.c.l.b16 %v2562
        %v2579 = vunpack.c.l.b16 %v2563
        %v2580 = vunpack.c.l.b16 %v2564
        %v2581 = vunpack.c.l.b16 %v2565
        %v2582 = vunpack.c.l.b16 %v2566
        %v2583 = vpack.c.b16 %v2576, %v2575
        %v2584 = vpack.c.b16 %v2578, %v2577
        %v2585 = vpack.c.b16 %v2580, %v2579
        %v2586 = vpack.c.b16 %v2582, %v2581
        %v2592 = vsel %vm2073, %v1813, 0
        %2594 = vmatpush.bf16.msra.mxu0 0
        %2595 = vmatpush.bf16.msra.mxu0 0
        %2596 = vmatpush.bf16.msra.mxu0 0
        %2597 = vmatpush.bf16.msra.mxu0 0
        %2598 = vmatpush.bf16.msra.mxu0 %v2586
        %2599 = vmatpush.bf16.msra.mxu0 %v2585
        %2600 = vmatpush.bf16.msra.mxu0 %v2584
        %2601 = vmatpush.bf16.msra.mxu0 %v2583
        %2602 = vmatmul.bf16.gmra.mxu0 %v2223
        %v2603 = vpop.f32.mrf.mxu0
        %v2604 = vadd.f32 0.0, %v2603
        %v2605 = vpop.f32.mrf.mxu0
        %v2606 = vadd.f32 0.0, %v2605
        %2607 = vmatmul.bf16.gmra.mxu0 %v2226
        %v2608 = vpop.f32.mrf.mxu0
        %v2609 = vadd.f32 0.0, %v2608
        %v2610 = vpop.f32.mrf.mxu0
        %v2611 = vadd.f32 0.0, %v2610
        %2612 = vmatmul.bf16.gmra.mxu0 %v2229
        %v2613 = vpop.f32.mrf.mxu0
        %v2614 = vadd.f32 0.0, %v2613
        %v2615 = vpop.f32.mrf.mxu0
        %v2616 = vadd.f32 0.0, %v2615
        %2617 = vmatmul.bf16.gmra.mxu0 %v2232
        %v2618 = vpop.f32.mrf.mxu0
        %v2619 = vadd.f32 0.0, %v2618
        %v2620 = vpop.f32.mrf.mxu0
        %v2621 = vadd.f32 0.0, %v2620
        %2622 = vmatmul.bf16.gmra.mxu0 %v2235
        %v2623 = vpop.f32.mrf.mxu0
        %v2624 = vadd.f32 0.0, %v2623
        %v2625 = vpop.f32.mrf.mxu0
        %v2626 = vadd.f32 0.0, %v2625
        %2627 = vmatmul.bf16.gmra.mxu0 %v2238
        %v2628 = vpop.f32.mrf.mxu0
        %v2629 = vadd.f32 0.0, %v2628
        %v2630 = vpop.f32.mrf.mxu0
        %v2631 = vadd.f32 0.0, %v2630
        %2632 = vmatmul.bf16.gmra.mxu0 %v2241
        %v2633 = vpop.f32.mrf.mxu0
        %v2634 = vadd.f32 0.0, %v2633
        %v2635 = vpop.f32.mrf.mxu0
        %v2636 = vadd.f32 0.0, %v2635
        %2637 = vmatmul.bf16.gmra.mxu0 %v2244
        %v2638 = vpop.f32.mrf.mxu0
        %v2639 = vadd.f32 0.0, %v2638
        %v2640 = vpop.f32.mrf.mxu0
        %v2641 = vadd.f32 0.0, %v2640
        %2642 = vmatmul.bf16.gmra.mxu0 %v2247
        %v2643 = vpop.f32.mrf.mxu0
        %v2644 = vadd.f32 0.0, %v2643
        %v2645 = vpop.f32.mrf.mxu0
        %v2646 = vadd.f32 0.0, %v2645
        %2647 = vmatmul.bf16.gmra.mxu0 %v2250
        %v2648 = vpop.f32.mrf.mxu0
        %v2649 = vadd.f32 0.0, %v2648
        %v2650 = vpop.f32.mrf.mxu0
        %v2651 = vadd.f32 0.0, %v2650
        %2652 = vmatmul.bf16.gmra.mxu0 %v2253
        %v2653 = vpop.f32.mrf.mxu0
        %v2654 = vadd.f32 0.0, %v2653
        %v2655 = vpop.f32.mrf.mxu0
        %v2656 = vadd.f32 0.0, %v2655
        %2657 = vmatmul.bf16.gmra.mxu0 %v2256
        %v2658 = vpop.f32.mrf.mxu0
        %v2659 = vadd.f32 0.0, %v2658
        %v2660 = vpop.f32.mrf.mxu0
        %v2661 = vadd.f32 0.0, %v2660
        %2662 = vmatmul.bf16.gmra.mxu0 %v2259
        %v2663 = vpop.f32.mrf.mxu0
        %v2664 = vadd.f32 0.0, %v2663
        %v2665 = vpop.f32.mrf.mxu0
        %v2666 = vadd.f32 0.0, %v2665
        %2667 = vmatmul.bf16.gmra.mxu0 %v2262
        %v2668 = vpop.f32.mrf.mxu0
        %v2669 = vadd.f32 0.0, %v2668
        %v2670 = vpop.f32.mrf.mxu0
        %v2671 = vadd.f32 0.0, %v2670
        %2672 = vmatmul.bf16.gmra.mxu0 %v2265
        %v2673 = vpop.f32.mrf.mxu0
        %v2674 = vadd.f32 0.0, %v2673
        %v2675 = vpop.f32.mrf.mxu0
        %v2676 = vadd.f32 0.0, %v2675
        %2677 = vmatmul.bf16.gmra.mxu0 %v2592
        %v2678 = vpop.f32.mrf.mxu0
        %v2679 = vadd.f32 0.0, %v2678
        %v2680 = vpop.f32.mrf.mxu0
        %v2681 = vadd.f32 0.0, %v2680
        %2682 = vdwg.mxu0
        %v2683 = vadd.f32 %v2526, %v2604
        %v2684 = vadd.f32 %v2527, %v2606
        %v2685 = vadd.f32 %v2528, %v2609
        %v2686 = vadd.f32 %v2529, %v2611
        %v2687 = vadd.f32 %v2530, %v2614
        %v2688 = vadd.f32 %v2531, %v2616
        %v2689 = vadd.f32 %v2532, %v2619
        %v2690 = vadd.f32 %v2533, %v2621
        %v2691 = vadd.f32 %v2534, %v2624
        %v2692 = vadd.f32 %v2535, %v2626
        %v2693 = vadd.f32 %v2536, %v2629
        %v2694 = vadd.f32 %v2537, %v2631
        %v2695 = vadd.f32 %v2538, %v2634
        %v2696 = vadd.f32 %v2539, %v2636
        %v2697 = vadd.f32 %v2540, %v2639
        %v2698 = vadd.f32 %v2541, %v2641
        %v2699 = vadd.f32 %v2542, %v2644
        %v2700 = vadd.f32 %v2543, %v2646
        %v2701 = vadd.f32 %v2544, %v2649
        %v2702 = vadd.f32 %v2545, %v2651
        %v2703 = vadd.f32 %v2546, %v2654
        %v2704 = vadd.f32 %v2547, %v2656
        %v2705 = vadd.f32 %v2548, %v2659
        %v2706 = vadd.f32 %v2549, %v2661
        %v2707 = vadd.f32 %v2550, %v2664
        %v2708 = vadd.f32 %v2551, %v2666
        %v2709 = vadd.f32 %v2552, %v2669
        %v2710 = vadd.f32 %v2553, %v2671
        %v2711 = vadd.f32 %v2554, %v2674
        %v2712 = vadd.f32 %v2555, %v2676
        %v2713 = vadd.f32 %v2556, %v2679
        %v2714 = vadd.f32 %v2557, %v2681
        %s2715 = scalar_lea.vmem [#allocation8], 128
        %v2716 = vld [vmem:[%s2715] sm:$0xf]
        %v2717 = vld [vmem:[%s2715 + $0x4] sm:$0xf]
        %v2718 = vld [vmem:[%s2715 + $0x8] sm:$0xf]
        %v2719 = vld [vmem:[%s2715 + $0xc] sm:$0xf]
        %v2720 = vld [vmem:[%s2715 + $0x10] sm:$0xf]
        %v2721 = vld [vmem:[%s2715 + $0x14] sm:$0xf]
        %v2722 = vld [vmem:[%s2715 + $0x18] sm:$0xf]
        %v2723 = vld [vmem:[%s2715 + $0x1c] sm:$0xf]
        %v2732 = vunpack.c.l.b16 %v2716
        %v2733 = vunpack.c.l.b16 %v2717
        %v2734 = vunpack.c.l.b16 %v2718
        %v2735 = vunpack.c.l.b16 %v2719
        %v2736 = vunpack.c.l.b16 %v2720
        %v2737 = vunpack.c.l.b16 %v2721
        %v2738 = vunpack.c.l.b16 %v2722
        %v2739 = vunpack.c.l.b16 %v2723
        %v2740 = vpack.c.b16 %v2733, %v2732
        %v2741 = vpack.c.b16 %v2735, %v2734
        %v2742 = vpack.c.b16 %v2737, %v2736
        %v2743 = vpack.c.b16 %v2739, %v2738
        %v2748 = vsel %vm2073, %v1616, 0
        %2750 = vmatpush.bf16.msra.mxu0 0
        %2751 = vmatpush.bf16.msra.mxu0 0
        %2752 = vmatpush.bf16.msra.mxu0 0
        %2753 = vmatpush.bf16.msra.mxu0 0
        %2754 = vmatpush.bf16.msra.mxu0 %v2743
        %2755 = vmatpush.bf16.msra.mxu0 %v2742
        %2756 = vmatpush.bf16.msra.mxu0 %v2741
        %2757 = vmatpush.bf16.msra.mxu0 %v2740
        %2758 = vmatmul.bf16.gmra.mxu0 %v2076
        %v2759 = vpop.f32.mrf.mxu0
        %v2760 = vadd.f32 0.0, %v2759
        %v2761 = vpop.f32.mrf.mxu0
        %v2762 = vadd.f32 0.0, %v2761
        %2763 = vmatmul.bf16.gmra.mxu0 %v2078
        %v2764 = vpop.f32.mrf.mxu0
        %v2765 = vadd.f32 0.0, %v2764
        %v2766 = vpop.f32.mrf.mxu0
        %v2767 = vadd.f32 0.0, %v2766
        %2768 = vmatmul.bf16.gmra.mxu0 %v2080
        %v2769 = vpop.f32.mrf.mxu0
        %v2770 = vadd.f32 0.0, %v2769
        %v2771 = vpop.f32.mrf.mxu0
        %v2772 = vadd.f32 0.0, %v2771
        %2773 = vmatmul.bf16.gmra.mxu0 %v2082
        %v2774 = vpop.f32.mrf.mxu0
        %v2775 = vadd.f32 0.0, %v2774
        %v2776 = vpop.f32.mrf.mxu0
        %v2777 = vadd.f32 0.0, %v2776
        %2778 = vmatmul.bf16.gmra.mxu0 %v2084
        %v2779 = vpop.f32.mrf.mxu0
        %v2780 = vadd.f32 0.0, %v2779
        %v2781 = vpop.f32.mrf.mxu0
        %v2782 = vadd.f32 0.0, %v2781
        %2783 = vmatmul.bf16.gmra.mxu0 %v2086
        %v2784 = vpop.f32.mrf.mxu0
        %v2785 = vadd.f32 0.0, %v2784
        %v2786 = vpop.f32.mrf.mxu0
        %v2787 = vadd.f32 0.0, %v2786
        %2788 = vmatmul.bf16.gmra.mxu0 %v2088
        %v2789 = vpop.f32.mrf.mxu0
        %v2790 = vadd.f32 0.0, %v2789
        %v2791 = vpop.f32.mrf.mxu0
        %v2792 = vadd.f32 0.0, %v2791
        %2793 = vmatmul.bf16.gmra.mxu0 %v2090
        %v2794 = vpop.f32.mrf.mxu0
        %v2795 = vadd.f32 0.0, %v2794
        %v2796 = vpop.f32.mrf.mxu0
        %v2797 = vadd.f32 0.0, %v2796
        %2798 = vmatmul.bf16.gmra.mxu0 %v2092
        %v2799 = vpop.f32.mrf.mxu0
        %v2800 = vadd.f32 0.0, %v2799
        %v2801 = vpop.f32.mrf.mxu0
        %v2802 = vadd.f32 0.0, %v2801
        %2803 = vmatmul.bf16.gmra.mxu0 %v2094
        %v2804 = vpop.f32.mrf.mxu0
        %v2805 = vadd.f32 0.0, %v2804
        %v2806 = vpop.f32.mrf.mxu0
        %v2807 = vadd.f32 0.0, %v2806
        %2808 = vmatmul.bf16.gmra.mxu0 %v2096
        %v2809 = vpop.f32.mrf.mxu0
        %v2810 = vadd.f32 0.0, %v2809
        %v2811 = vpop.f32.mrf.mxu0
        %v2812 = vadd.f32 0.0, %v2811
        %2813 = vmatmul.bf16.gmra.mxu0 %v2098
        %v2814 = vpop.f32.mrf.mxu0
        %v2815 = vadd.f32 0.0, %v2814
        %v2816 = vpop.f32.mrf.mxu0
        %v2817 = vadd.f32 0.0, %v2816
        %2818 = vmatmul.bf16.gmra.mxu0 %v2100
        %v2819 = vpop.f32.mrf.mxu0
        %v2820 = vadd.f32 0.0, %v2819
        %v2821 = vpop.f32.mrf.mxu0
        %v2822 = vadd.f32 0.0, %v2821
        %2823 = vmatmul.bf16.gmra.mxu0 %v2102
        %v2824 = vpop.f32.mrf.mxu0
        %v2825 = vadd.f32 0.0, %v2824
        %v2826 = vpop.f32.mrf.mxu0
        %v2827 = vadd.f32 0.0, %v2826
        %2828 = vmatmul.bf16.gmra.mxu0 %v2104
        %v2829 = vpop.f32.mrf.mxu0
        %v2830 = vadd.f32 0.0, %v2829
        %v2831 = vpop.f32.mrf.mxu0
        %v2832 = vadd.f32 0.0, %v2831
        %2833 = vmatmul.bf16.gmra.mxu0 %v2748
        %v2834 = vpop.f32.mrf.mxu0
        %v2835 = vadd.f32 0.0, %v2834
        %v2836 = vpop.f32.mrf.mxu0
        %v2837 = vadd.f32 0.0, %v2836
        %2838 = vdwg.mxu0
        %v2839 = vadd.f32 %v2683, %v2760
        %v2840 = vadd.f32 %v2684, %v2762
        %v2841 = vadd.f32 %v2685, %v2765
        %v2842 = vadd.f32 %v2686, %v2767
        %v2843 = vadd.f32 %v2687, %v2770
        %v2844 = vadd.f32 %v2688, %v2772
        %v2845 = vadd.f32 %v2689, %v2775
        %v2846 = vadd.f32 %v2690, %v2777
        %v2847 = vadd.f32 %v2691, %v2780
        %v2848 = vadd.f32 %v2692, %v2782
        %v2849 = vadd.f32 %v2693, %v2785
        %v2850 = vadd.f32 %v2694, %v2787
        %v2851 = vadd.f32 %v2695, %v2790
        %v2852 = vadd.f32 %v2696, %v2792
        %v2853 = vadd.f32 %v2697, %v2795
        %v2854 = vadd.f32 %v2698, %v2797
        %v2855 = vadd.f32 %v2699, %v2800
        %v2856 = vadd.f32 %v2700, %v2802
        %v2857 = vadd.f32 %v2701, %v2805
        %v2858 = vadd.f32 %v2702, %v2807
        %v2859 = vadd.f32 %v2703, %v2810
        %v2860 = vadd.f32 %v2704, %v2812
        %v2861 = vadd.f32 %v2705, %v2815
        %v2862 = vadd.f32 %v2706, %v2817
        %v2863 = vadd.f32 %v2707, %v2820
        %v2864 = vadd.f32 %v2708, %v2822
        %v2865 = vadd.f32 %v2709, %v2825
        %v2866 = vadd.f32 %v2710, %v2827
        %v2867 = vadd.f32 %v2711, %v2830
        %v2868 = vadd.f32 %v2712, %v2832
        %v2869 = vadd.f32 %v2713, %v2835
        %v2870 = vadd.f32 %v2714, %v2837
        %s2871 = scalar_lea.vmem [#allocation8], 160
        %v2872 = vld [vmem:[%s2871] sm:$0xf]
        %v2873 = vld [vmem:[%s2871 + $0x4] sm:$0xf]
        %v2874 = vld [vmem:[%s2871 + $0x8] sm:$0xf]
        %v2875 = vld [vmem:[%s2871 + $0xc] sm:$0xf]
        %v2876 = vld [vmem:[%s2871 + $0x10] sm:$0xf]
        %v2877 = vld [vmem:[%s2871 + $0x14] sm:$0xf]
        %v2878 = vld [vmem:[%s2871 + $0x18] sm:$0xf]
        %v2879 = vld [vmem:[%s2871 + $0x1c] sm:$0xf]
        %v2888 = vunpack.c.l.b16 %v2872
        %v2889 = vunpack.c.l.b16 %v2873
        %v2890 = vunpack.c.l.b16 %v2874
        %v2891 = vunpack.c.l.b16 %v2875
        %v2892 = vunpack.c.l.b16 %v2876
        %v2893 = vunpack.c.l.b16 %v2877
        %v2894 = vunpack.c.l.b16 %v2878
        %v2895 = vunpack.c.l.b16 %v2879
        %v2896 = vpack.c.b16 %v2889, %v2888
        %v2897 = vpack.c.b16 %v2891, %v2890
        %v2898 = vpack.c.b16 %v2893, %v2892
        %v2899 = vpack.c.b16 %v2895, %v2894
        %v2905 = vsel %vm2073, %v2030, 0
        %2907 = vmatpush.bf16.msra.mxu0 0
        %2908 = vmatpush.bf16.msra.mxu0 0
        %2909 = vmatpush.bf16.msra.mxu0 0
        %2910 = vmatpush.bf16.msra.mxu0 0
        %2911 = vmatpush.bf16.msra.mxu0 %v2899
        %2912 = vmatpush.bf16.msra.mxu0 %v2898
        %2913 = vmatpush.bf16.msra.mxu0 %v2897
        %2914 = vmatpush.bf16.msra.mxu0 %v2896
        %2915 = vmatmul.bf16.gmra.mxu0 %v2393
        %v2916 = vpop.f32.mrf.mxu0
        %v2917 = vadd.f32 0.0, %v2916
        %v2918 = vpop.f32.mrf.mxu0
        %v2919 = vadd.f32 0.0, %v2918
        %2920 = vmatmul.bf16.gmra.mxu0 %v2396
        %v2921 = vpop.f32.mrf.mxu0
        %v2922 = vadd.f32 0.0, %v2921
        %v2923 = vpop.f32.mrf.mxu0
        %v2924 = vadd.f32 0.0, %v2923
        %2925 = vmatmul.bf16.gmra.mxu0 %v2399
        %v2926 = vpop.f32.mrf.mxu0
        %v2927 = vadd.f32 0.0, %v2926
        %v2928 = vpop.f32.mrf.mxu0
        %v2929 = vadd.f32 0.0, %v2928
        %2930 = vmatmul.bf16.gmra.mxu0 %v2402
        %v2931 = vpop.f32.mrf.mxu0
        %v2932 = vadd.f32 0.0, %v2931
        %v2933 = vpop.f32.mrf.mxu0
        %v2934 = vadd.f32 0.0, %v2933
        %2935 = vmatmul.bf16.gmra.mxu0 %v2405
        %v2936 = vpop.f32.mrf.mxu0
        %v2937 = vadd.f32 0.0, %v2936
        %v2938 = vpop.f32.mrf.mxu0
        %v2939 = vadd.f32 0.0, %v2938
        %2940 = vmatmul.bf16.gmra.mxu0 %v2408
        %v2941 = vpop.f32.mrf.mxu0
        %v2942 = vadd.f32 0.0, %v2941
        %v2943 = vpop.f32.mrf.mxu0
        %v2944 = vadd.f32 0.0, %v2943
        %2945 = vmatmul.bf16.gmra.mxu0 %v2411
        %v2946 = vpop.f32.mrf.mxu0
        %v2947 = vadd.f32 0.0, %v2946
        %v2948 = vpop.f32.mrf.mxu0
        %v2949 = vadd.f32 0.0, %v2948
        %2950 = vmatmul.bf16.gmra.mxu0 %v2414
        %v2951 = vpop.f32.mrf.mxu0
        %v2952 = vadd.f32 0.0, %v2951
        %v2953 = vpop.f32.mrf.mxu0
        %v2954 = vadd.f32 0.0, %v2953
        %2955 = vmatmul.bf16.gmra.mxu0 %v2417
        %v2956 = vpop.f32.mrf.mxu0
        %v2957 = vadd.f32 0.0, %v2956
        %v2958 = vpop.f32.mrf.mxu0
        %v2959 = vadd.f32 0.0, %v2958
        %2960 = vmatmul.bf16.gmra.mxu0 %v2420
        %v2961 = vpop.f32.mrf.mxu0
        %v2962 = vadd.f32 0.0, %v2961
        %v2963 = vpop.f32.mrf.mxu0
        %v2964 = vadd.f32 0.0, %v2963
        %2965 = vmatmul.bf16.gmra.mxu0 %v2423
        %v2966 = vpop.f32.mrf.mxu0
        %v2967 = vadd.f32 0.0, %v2966
        %v2968 = vpop.f32.mrf.mxu0
        %v2969 = vadd.f32 0.0, %v2968
        %2970 = vmatmul.bf16.gmra.mxu0 %v2426
        %v2971 = vpop.f32.mrf.mxu0
        %v2972 = vadd.f32 0.0, %v2971
        %v2973 = vpop.f32.mrf.mxu0
        %v2974 = vadd.f32 0.0, %v2973
        %2975 = vmatmul.bf16.gmra.mxu0 %v2429
        %v2976 = vpop.f32.mrf.mxu0
        %v2977 = vadd.f32 0.0, %v2976
        %v2978 = vpop.f32.mrf.mxu0
        %v2979 = vadd.f32 0.0, %v2978
        %2980 = vmatmul.bf16.gmra.mxu0 %v2432
        %v2981 = vpop.f32.mrf.mxu0
        %v2982 = vadd.f32 0.0, %v2981
        %v2983 = vpop.f32.mrf.mxu0
        %v2984 = vadd.f32 0.0, %v2983
        %2985 = vmatmul.bf16.gmra.mxu0 %v2435
        %v2986 = vpop.f32.mrf.mxu0
        %v2987 = vadd.f32 0.0, %v2986
        %v2988 = vpop.f32.mrf.mxu0
        %v2989 = vadd.f32 0.0, %v2988
        %2990 = vmatmul.bf16.gmra.mxu0 %v2905
        %v2991 = vpop.f32.mrf.mxu0
        %v2992 = vadd.f32 0.0, %v2991
        %v2993 = vpop.f32.mrf.mxu0
        %v2994 = vadd.f32 0.0, %v2993
        %2995 = vdwg.mxu0
        %v2996 = vadd.f32 %v2839, %v2917
        %v2997 = vadd.f32 %v2840, %v2919
        %v2998 = vadd.f32 %v2841, %v2922
        %v2999 = vadd.f32 %v2842, %v2924
        %v3000 = vadd.f32 %v2843, %v2927
        %v3001 = vadd.f32 %v2844, %v2929
        %v3002 = vadd.f32 %v2845, %v2932
        %v3003 = vadd.f32 %v2846, %v2934
        %v3004 = vadd.f32 %v2847, %v2937
        %v3005 = vadd.f32 %v2848, %v2939
        %v3006 = vadd.f32 %v2849, %v2942
        %v3007 = vadd.f32 %v2850, %v2944
        %v3008 = vadd.f32 %v2851, %v2947
        %v3009 = vadd.f32 %v2852, %v2949
        %v3010 = vadd.f32 %v2853, %v2952
        %v3011 = vadd.f32 %v2854, %v2954
        %v3012 = vadd.f32 %v2855, %v2957
        %v3013 = vadd.f32 %v2856, %v2959
        %v3014 = vadd.f32 %v2857, %v2962
        %v3015 = vadd.f32 %v2858, %v2964
        %v3016 = vadd.f32 %v2859, %v2967
        %v3017 = vadd.f32 %v2860, %v2969
        %v3018 = vadd.f32 %v2861, %v2972
        %v3019 = vadd.f32 %v2862, %v2974
        %v3020 = vadd.f32 %v2863, %v2977
        %v3021 = vadd.f32 %v2864, %v2979
        %v3022 = vadd.f32 %v2865, %v2982
        %v3023 = vadd.f32 %v2866, %v2984
        %v3024 = vadd.f32 %v2867, %v2987
        %v3025 = vadd.f32 %v2868, %v2989
        %v3026 = vadd.f32 %v2869, %v2992
        %v3027 = vadd.f32 %v2870, %v2994
        %s3028 = scalar_lea.vmem [#allocation8], 192
        %v3029 = vld [vmem:[%s3028] sm:$0xf]
        %v3030 = vld [vmem:[%s3028 + $0x4] sm:$0xf]
        %v3031 = vld [vmem:[%s3028 + $0x8] sm:$0xf]
        %v3032 = vld [vmem:[%s3028 + $0xc] sm:$0xf]
        %v3033 = vld [vmem:[%s3028 + $0x10] sm:$0xf]
        %v3034 = vld [vmem:[%s3028 + $0x14] sm:$0xf]
        %v3035 = vld [vmem:[%s3028 + $0x18] sm:$0xf]
        %v3036 = vld [vmem:[%s3028 + $0x1c] sm:$0xf]
        %v3045 = vunpack.c.l.b16 %v3029
        %v3046 = vunpack.c.l.b16 %v3030
        %v3047 = vunpack.c.l.b16 %v3031
        %v3048 = vunpack.c.l.b16 %v3032
        %v3049 = vunpack.c.l.b16 %v3033
        %v3050 = vunpack.c.l.b16 %v3034
        %v3051 = vunpack.c.l.b16 %v3035
        %v3052 = vunpack.c.l.b16 %v3036
        %v3053 = vpack.c.b16 %v3046, %v3045
        %v3054 = vpack.c.b16 %v3048, %v3047
        %v3055 = vpack.c.b16 %v3050, %v3049
        %v3056 = vpack.c.b16 %v3052, %v3051
        %v3062 = vsel %vm2073, %v1814, 0
        %3064 = vmatpush.bf16.msra.mxu0 0
        %3065 = vmatpush.bf16.msra.mxu0 0
        %3066 = vmatpush.bf16.msra.mxu0 0
        %3067 = vmatpush.bf16.msra.mxu0 0
        %3068 = vmatpush.bf16.msra.mxu0 %v3056
        %3069 = vmatpush.bf16.msra.mxu0 %v3055
        %3070 = vmatpush.bf16.msra.mxu0 %v3054
        %3071 = vmatpush.bf16.msra.mxu0 %v3053
        %3072 = vmatmul.bf16.gmra.mxu0 %v2226
        %v3073 = vpop.f32.mrf.mxu0
        %v3074 = vadd.f32 0.0, %v3073
        %v3075 = vpop.f32.mrf.mxu0
        %v3076 = vadd.f32 0.0, %v3075
        %3077 = vmatmul.bf16.gmra.mxu0 %v2229
        %v3078 = vpop.f32.mrf.mxu0
        %v3079 = vadd.f32 0.0, %v3078
        %v3080 = vpop.f32.mrf.mxu0
        %v3081 = vadd.f32 0.0, %v3080
        %3082 = vmatmul.bf16.gmra.mxu0 %v2232
        %v3083 = vpop.f32.mrf.mxu0
        %v3084 = vadd.f32 0.0, %v3083
        %v3085 = vpop.f32.mrf.mxu0
        %v3086 = vadd.f32 0.0, %v3085
        %3087 = vmatmul.bf16.gmra.mxu0 %v2235
        %v3088 = vpop.f32.mrf.mxu0
        %v3089 = vadd.f32 0.0, %v3088
        %v3090 = vpop.f32.mrf.mxu0
        %v3091 = vadd.f32 0.0, %v3090
        %3092 = vmatmul.bf16.gmra.mxu0 %v2238
        %v3093 = vpop.f32.mrf.mxu0
        %v3094 = vadd.f32 0.0, %v3093
        %v3095 = vpop.f32.mrf.mxu0
        %v3096 = vadd.f32 0.0, %v3095
        %3097 = vmatmul.bf16.gmra.mxu0 %v2241
        %v3098 = vpop.f32.mrf.mxu0
        %v3099 = vadd.f32 0.0, %v3098
        %v3100 = vpop.f32.mrf.mxu0
        %v3101 = vadd.f32 0.0, %v3100
        %3102 = vmatmul.bf16.gmra.mxu0 %v2244
        %v3103 = vpop.f32.mrf.mxu0
        %v3104 = vadd.f32 0.0, %v3103
        %v3105 = vpop.f32.mrf.mxu0
        %v3106 = vadd.f32 0.0, %v3105
        %3107 = vmatmul.bf16.gmra.mxu0 %v2247
        %v3108 = vpop.f32.mrf.mxu0
        %v3109 = vadd.f32 0.0, %v3108
        %v3110 = vpop.f32.mrf.mxu0
        %v3111 = vadd.f32 0.0, %v3110
        %3112 = vmatmul.bf16.gmra.mxu0 %v2250
        %v3113 = vpop.f32.mrf.mxu0
        %v3114 = vadd.f32 0.0, %v3113
        %v3115 = vpop.f32.mrf.mxu0
        %v3116 = vadd.f32 0.0, %v3115
        %3117 = vmatmul.bf16.gmra.mxu0 %v2253
        %v3118 = vpop.f32.mrf.mxu0
        %v3119 = vadd.f32 0.0, %v3118
        %v3120 = vpop.f32.mrf.mxu0
        %v3121 = vadd.f32 0.0, %v3120
        %3122 = vmatmul.bf16.gmra.mxu0 %v2256
        %v3123 = vpop.f32.mrf.mxu0
        %v3124 = vadd.f32 0.0, %v3123
        %v3125 = vpop.f32.mrf.mxu0
        %v3126 = vadd.f32 0.0, %v3125
        %3127 = vmatmul.bf16.gmra.mxu0 %v2259
        %v3128 = vpop.f32.mrf.mxu0
        %v3129 = vadd.f32 0.0, %v3128
        %v3130 = vpop.f32.mrf.mxu0
        %v3131 = vadd.f32 0.0, %v3130
        %3132 = vmatmul.bf16.gmra.mxu0 %v2262
        %v3133 = vpop.f32.mrf.mxu0
        %v3134 = vadd.f32 0.0, %v3133
        %v3135 = vpop.f32.mrf.mxu0
        %v3136 = vadd.f32 0.0, %v3135
        %3137 = vmatmul.bf16.gmra.mxu0 %v2265
        %v3138 = vpop.f32.mrf.mxu0
        %v3139 = vadd.f32 0.0, %v3138
        %v3140 = vpop.f32.mrf.mxu0
        %v3141 = vadd.f32 0.0, %v3140
        %3142 = vmatmul.bf16.gmra.mxu0 %v2592
        %v3143 = vpop.f32.mrf.mxu0
        %v3144 = vadd.f32 0.0, %v3143
        %v3145 = vpop.f32.mrf.mxu0
        %v3146 = vadd.f32 0.0, %v3145
        %3147 = vmatmul.bf16.gmra.mxu0 %v3062
        %v3148 = vpop.f32.mrf.mxu0
        %v3149 = vadd.f32 0.0, %v3148
        %v3150 = vpop.f32.mrf.mxu0
        %v3151 = vadd.f32 0.0, %v3150
        %3152 = vdwg.mxu0
        %v3153 = vadd.f32 %v2996, %v3074
        %v3154 = vadd.f32 %v2997, %v3076
        %v3155 = vadd.f32 %v2998, %v3079
        %v3156 = vadd.f32 %v2999, %v3081
        %v3157 = vadd.f32 %v3000, %v3084
        %v3158 = vadd.f32 %v3001, %v3086
        %v3159 = vadd.f32 %v3002, %v3089
        %v3160 = vadd.f32 %v3003, %v3091
        %v3161 = vadd.f32 %v3004, %v3094
        %v3162 = vadd.f32 %v3005, %v3096
        %v3163 = vadd.f32 %v3006, %v3099
        %v3164 = vadd.f32 %v3007, %v3101
        %v3165 = vadd.f32 %v3008, %v3104
        %v3166 = vadd.f32 %v3009, %v3106
        %v3167 = vadd.f32 %v3010, %v3109
        %v3168 = vadd.f32 %v3011, %v3111
        %v3169 = vadd.f32 %v3012, %v3114
        %v3170 = vadd.f32 %v3013, %v3116
        %v3171 = vadd.f32 %v3014, %v3119
        %v3172 = vadd.f32 %v3015, %v3121
        %v3173 = vadd.f32 %v3016, %v3124
        %v3174 = vadd.f32 %v3017, %v3126
        %v3175 = vadd.f32 %v3018, %v3129
        %v3176 = vadd.f32 %v3019, %v3131
        %v3177 = vadd.f32 %v3020, %v3134
        %v3178 = vadd.f32 %v3021, %v3136
        %v3179 = vadd.f32 %v3022, %v3139
        %v3180 = vadd.f32 %v3023, %v3141
        %v3181 = vadd.f32 %v3024, %v3144
        %v3182 = vadd.f32 %v3025, %v3146
        %v3183 = vadd.f32 %v3026, %v3149
        %v3184 = vadd.f32 %v3027, %v3151
        %s3185 = scalar_lea.vmem [#allocation8], 224
        %v3186 = vld [vmem:[%s3185] sm:$0xf]
        %v3187 = vld [vmem:[%s3185 + $0x4] sm:$0xf]
        %v3188 = vld [vmem:[%s3185 + $0x8] sm:$0xf]
        %v3189 = vld [vmem:[%s3185 + $0xc] sm:$0xf]
        %v3190 = vld [vmem:[%s3185 + $0x10] sm:$0xf]
        %v3191 = vld [vmem:[%s3185 + $0x14] sm:$0xf]
        %v3192 = vld [vmem:[%s3185 + $0x18] sm:$0xf]
        %v3193 = vld [vmem:[%s3185 + $0x1c] sm:$0xf]
        %v3202 = vunpack.c.l.b16 %v3186
        %v3203 = vunpack.c.l.b16 %v3187
        %v3204 = vunpack.c.l.b16 %v3188
        %v3205 = vunpack.c.l.b16 %v3189
        %v3206 = vunpack.c.l.b16 %v3190
        %v3207 = vunpack.c.l.b16 %v3191
        %v3208 = vunpack.c.l.b16 %v3192
        %v3209 = vunpack.c.l.b16 %v3193
        %v3210 = vpack.c.b16 %v3203, %v3202
        %v3211 = vpack.c.b16 %v3205, %v3204
        %v3212 = vpack.c.b16 %v3207, %v3206
        %v3213 = vpack.c.b16 %v3209, %v3208
        %v3218 = vsel %vm2073, %v1617, 0
        %3220 = vmatpush.bf16.msra.mxu0 0
        %3221 = vmatpush.bf16.msra.mxu0 0
        %3222 = vmatpush.bf16.msra.mxu0 0
        %3223 = vmatpush.bf16.msra.mxu0 0
        %3224 = vmatpush.bf16.msra.mxu0 %v3213
        %3225 = vmatpush.bf16.msra.mxu0 %v3212
        %3226 = vmatpush.bf16.msra.mxu0 %v3211
        %3227 = vmatpush.bf16.msra.mxu0 %v3210
        %3228 = vmatmul.bf16.gmra.mxu0 %v2078
        %v3229 = vpop.f32.mrf.mxu0
        %v3230 = vadd.f32 0.0, %v3229
        %v3231 = vpop.f32.mrf.mxu0
        %v3232 = vadd.f32 0.0, %v3231
        %3233 = vmatmul.bf16.gmra.mxu0 %v2080
        %v3234 = vpop.f32.mrf.mxu0
        %v3235 = vadd.f32 0.0, %v3234
        %v3236 = vpop.f32.mrf.mxu0
        %v3237 = vadd.f32 0.0, %v3236
        %3238 = vmatmul.bf16.gmra.mxu0 %v2082
        %v3239 = vpop.f32.mrf.mxu0
        %v3240 = vadd.f32 0.0, %v3239
        %v3241 = vpop.f32.mrf.mxu0
        %v3242 = vadd.f32 0.0, %v3241
        %3243 = vmatmul.bf16.gmra.mxu0 %v2084
        %v3244 = vpop.f32.mrf.mxu0
        %v3245 = vadd.f32 0.0, %v3244
        %v3246 = vpop.f32.mrf.mxu0
        %v3247 = vadd.f32 0.0, %v3246
        %3248 = vmatmul.bf16.gmra.mxu0 %v2086
        %v3249 = vpop.f32.mrf.mxu0
        %v3250 = vadd.f32 0.0, %v3249
        %v3251 = vpop.f32.mrf.mxu0
        %v3252 = vadd.f32 0.0, %v3251
        %3253 = vmatmul.bf16.gmra.mxu0 %v2088
        %v3254 = vpop.f32.mrf.mxu0
        %v3255 = vadd.f32 0.0, %v3254
        %v3256 = vpop.f32.mrf.mxu0
        %v3257 = vadd.f32 0.0, %v3256
        %3258 = vmatmul.bf16.gmra.mxu0 %v2090
        %v3259 = vpop.f32.mrf.mxu0
        %v3260 = vadd.f32 0.0, %v3259
        %v3261 = vpop.f32.mrf.mxu0
        %v3262 = vadd.f32 0.0, %v3261
        %3263 = vmatmul.bf16.gmra.mxu0 %v2092
        %v3264 = vpop.f32.mrf.mxu0
        %v3265 = vadd.f32 0.0, %v3264
        %v3266 = vpop.f32.mrf.mxu0
        %v3267 = vadd.f32 0.0, %v3266
        %3268 = vmatmul.bf16.gmra.mxu0 %v2094
        %v3269 = vpop.f32.mrf.mxu0
        %v3270 = vadd.f32 0.0, %v3269
        %v3271 = vpop.f32.mrf.mxu0
        %v3272 = vadd.f32 0.0, %v3271
        %3273 = vmatmul.bf16.gmra.mxu0 %v2096
        %v3274 = vpop.f32.mrf.mxu0
        %v3275 = vadd.f32 0.0, %v3274
        %v3276 = vpop.f32.mrf.mxu0
        %v3277 = vadd.f32 0.0, %v3276
        %3278 = vmatmul.bf16.gmra.mxu0 %v2098
        %v3279 = vpop.f32.mrf.mxu0
        %v3280 = vadd.f32 0.0, %v3279
        %v3281 = vpop.f32.mrf.mxu0
        %v3282 = vadd.f32 0.0, %v3281
        %3283 = vmatmul.bf16.gmra.mxu0 %v2100
        %v3284 = vpop.f32.mrf.mxu0
        %v3285 = vadd.f32 0.0, %v3284
        %v3286 = vpop.f32.mrf.mxu0
        %v3287 = vadd.f32 0.0, %v3286
        %3288 = vmatmul.bf16.gmra.mxu0 %v2102
        %v3289 = vpop.f32.mrf.mxu0
        %v3290 = vadd.f32 0.0, %v3289
        %v3291 = vpop.f32.mrf.mxu0
        %v3292 = vadd.f32 0.0, %v3291
        %3293 = vmatmul.bf16.gmra.mxu0 %v2104
        %v3294 = vpop.f32.mrf.mxu0
        %v3295 = vadd.f32 0.0, %v3294
        %v3296 = vpop.f32.mrf.mxu0
        %v3297 = vadd.f32 0.0, %v3296
        %3298 = vmatmul.bf16.gmra.mxu0 %v2748
        %v3299 = vpop.f32.mrf.mxu0
        %v3300 = vadd.f32 0.0, %v3299
        %v3301 = vpop.f32.mrf.mxu0
        %v3302 = vadd.f32 0.0, %v3301
        %3303 = vmatmul.bf16.gmra.mxu0 %v3218
        %v3304 = vpop.f32.mrf.mxu0
        %v3305 = vadd.f32 0.0, %v3304
        %v3306 = vpop.f32.mrf.mxu0
        %v3307 = vadd.f32 0.0, %v3306
        %3308 = vdwg.mxu0
        %v3309 = vadd.f32 %v3153, %v3230
        %v3310 = vadd.f32 %v3154, %v3232
        %v3311 = vadd.f32 %v3155, %v3235
        %v3312 = vadd.f32 %v3156, %v3237
        %v3313 = vadd.f32 %v3157, %v3240
        %v3314 = vadd.f32 %v3158, %v3242
        %v3315 = vadd.f32 %v3159, %v3245
        %v3316 = vadd.f32 %v3160, %v3247
        %v3317 = vadd.f32 %v3161, %v3250
        %v3318 = vadd.f32 %v3162, %v3252
        %v3319 = vadd.f32 %v3163, %v3255
        %v3320 = vadd.f32 %v3164, %v3257
        %v3321 = vadd.f32 %v3165, %v3260
        %v3322 = vadd.f32 %v3166, %v3262
        %v3323 = vadd.f32 %v3167, %v3265
        %v3324 = vadd.f32 %v3168, %v3267
        %v3325 = vadd.f32 %v3169, %v3270
        %v3326 = vadd.f32 %v3170, %v3272
        %v3327 = vadd.f32 %v3171, %v3275
        %v3328 = vadd.f32 %v3172, %v3277
        %v3329 = vadd.f32 %v3173, %v3280
        %v3330 = vadd.f32 %v3174, %v3282
        %v3331 = vadd.f32 %v3175, %v3285
        %v3332 = vadd.f32 %v3176, %v3287
        %v3333 = vadd.f32 %v3177, %v3290
        %v3334 = vadd.f32 %v3178, %v3292
        %v3335 = vadd.f32 %v3179, %v3295
        %v3336 = vadd.f32 %v3180, %v3297
        %v3337 = vadd.f32 %v3181, %v3300
        %v3338 = vadd.f32 %v3182, %v3302
        %v3339 = vadd.f32 %v3183, %v3305
        %v3340 = vadd.f32 %v3184, %v3307
        %s3341 = scalar_lea.vmem [#allocation8], 256
        %v3342 = vld [vmem:[%s3341] sm:$0xf]
        %v3343 = vld [vmem:[%s3341 + $0x4] sm:$0xf]
        %v3344 = vld [vmem:[%s3341 + $0x8] sm:$0xf]
        %v3345 = vld [vmem:[%s3341 + $0xc] sm:$0xf]
        %v3346 = vld [vmem:[%s3341 + $0x10] sm:$0xf]
        %v3347 = vld [vmem:[%s3341 + $0x14] sm:$0xf]
        %v3348 = vld [vmem:[%s3341 + $0x18] sm:$0xf]
        %v3349 = vld [vmem:[%s3341 + $0x1c] sm:$0xf]
        %v3358 = vunpack.c.l.b16 %v3342
        %v3359 = vunpack.c.l.b16 %v3343
        %v3360 = vunpack.c.l.b16 %v3344
        %v3361 = vunpack.c.l.b16 %v3345
        %v3362 = vunpack.c.l.b16 %v3346
        %v3363 = vunpack.c.l.b16 %v3347
        %v3364 = vunpack.c.l.b16 %v3348
        %v3365 = vunpack.c.l.b16 %v3349
        %v3366 = vpack.c.b16 %v3359, %v3358
        %v3367 = vpack.c.b16 %v3361, %v3360
        %v3368 = vpack.c.b16 %v3363, %v3362
        %v3369 = vpack.c.b16 %v3365, %v3364
        %v3375 = vsel %vm2073, %v2031, 0
        %3377 = vmatpush.bf16.msra.mxu0 0
        %3378 = vmatpush.bf16.msra.mxu0 0
        %3379 = vmatpush.bf16.msra.mxu0 0
        %3380 = vmatpush.bf16.msra.mxu0 0
        %3381 = vmatpush.bf16.msra.mxu0 %v3369
        %3382 = vmatpush.bf16.msra.mxu0 %v3368
        %3383 = vmatpush.bf16.msra.mxu0 %v3367
        %3384 = vmatpush.bf16.msra.mxu0 %v3366
        %3385 = vmatmul.bf16.gmra.mxu0 %v2396
        %v3386 = vpop.f32.mrf.mxu0
        %v3387 = vadd.f32 0.0, %v3386
        %v3388 = vpop.f32.mrf.mxu0
        %v3389 = vadd.f32 0.0, %v3388
        %3390 = vmatmul.bf16.gmra.mxu0 %v2399
        %v3391 = vpop.f32.mrf.mxu0
        %v3392 = vadd.f32 0.0, %v3391
        %v3393 = vpop.f32.mrf.mxu0
        %v3394 = vadd.f32 0.0, %v3393
        %3395 = vmatmul.bf16.gmra.mxu0 %v2402
        %v3396 = vpop.f32.mrf.mxu0
        %v3397 = vadd.f32 0.0, %v3396
        %v3398 = vpop.f32.mrf.mxu0
        %v3399 = vadd.f32 0.0, %v3398
        %3400 = vmatmul.bf16.gmra.mxu0 %v2405
        %v3401 = vpop.f32.mrf.mxu0
        %v3402 = vadd.f32 0.0, %v3401
        %v3403 = vpop.f32.mrf.mxu0
        %v3404 = vadd.f32 0.0, %v3403
        %3405 = vmatmul.bf16.gmra.mxu0 %v2408
        %v3406 = vpop.f32.mrf.mxu0
        %v3407 = vadd.f32 0.0, %v3406
        %v3408 = vpop.f32.mrf.mxu0
        %v3409 = vadd.f32 0.0, %v3408
        %3410 = vmatmul.bf16.gmra.mxu0 %v2411
        %v3411 = vpop.f32.mrf.mxu0
        %v3412 = vadd.f32 0.0, %v3411
        %v3413 = vpop.f32.mrf.mxu0
        %v3414 = vadd.f32 0.0, %v3413
        %3415 = vmatmul.bf16.gmra.mxu0 %v2414
        %v3416 = vpop.f32.mrf.mxu0
        %v3417 = vadd.f32 0.0, %v3416
        %v3418 = vpop.f32.mrf.mxu0
        %v3419 = vadd.f32 0.0, %v3418
        %3420 = vmatmul.bf16.gmra.mxu0 %v2417
        %v3421 = vpop.f32.mrf.mxu0
        %v3422 = vadd.f32 0.0, %v3421
        %v3423 = vpop.f32.mrf.mxu0
        %v3424 = vadd.f32 0.0, %v3423
        %3425 = vmatmul.bf16.gmra.mxu0 %v2420
        %v3426 = vpop.f32.mrf.mxu0
        %v3427 = vadd.f32 0.0, %v3426
        %v3428 = vpop.f32.mrf.mxu0
        %v3429 = vadd.f32 0.0, %v3428
        %3430 = vmatmul.bf16.gmra.mxu0 %v2423
        %v3431 = vpop.f32.mrf.mxu0
        %v3432 = vadd.f32 0.0, %v3431
        %v3433 = vpop.f32.mrf.mxu0
        %v3434 = vadd.f32 0.0, %v3433
        %3435 = vmatmul.bf16.gmra.mxu0 %v2426
        %v3436 = vpop.f32.mrf.mxu0
        %v3437 = vadd.f32 0.0, %v3436
        %v3438 = vpop.f32.mrf.mxu0
        %v3439 = vadd.f32 0.0, %v3438
        %3440 = vmatmul.bf16.gmra.mxu0 %v2429
        %v3441 = vpop.f32.mrf.mxu0
        %v3442 = vadd.f32 0.0, %v3441
        %v3443 = vpop.f32.mrf.mxu0
        %v3444 = vadd.f32 0.0, %v3443
        %3445 = vmatmul.bf16.gmra.mxu0 %v2432
        %v3446 = vpop.f32.mrf.mxu0
        %v3447 = vadd.f32 0.0, %v3446
        %v3448 = vpop.f32.mrf.mxu0
        %v3449 = vadd.f32 0.0, %v3448
        %3450 = vmatmul.bf16.gmra.mxu0 %v2435
        %v3451 = vpop.f32.mrf.mxu0
        %v3452 = vadd.f32 0.0, %v3451
        %v3453 = vpop.f32.mrf.mxu0
        %v3454 = vadd.f32 0.0, %v3453
        %3455 = vmatmul.bf16.gmra.mxu0 %v2905
        %v3456 = vpop.f32.mrf.mxu0
        %v3457 = vadd.f32 0.0, %v3456
        %v3458 = vpop.f32.mrf.mxu0
        %v3459 = vadd.f32 0.0, %v3458
        %3460 = vmatmul.bf16.gmra.mxu0 %v3375
        %v3461 = vpop.f32.mrf.mxu0
        %v3462 = vadd.f32 0.0, %v3461
        %v3463 = vpop.f32.mrf.mxu0
        %v3464 = vadd.f32 0.0, %v3463
        %3465 = vdwg.mxu0
        %v3466 = vadd.f32 %v3309, %v3387
        %v3467 = vadd.f32 %v3310, %v3389
        %v3468 = vadd.f32 %v3311, %v3392
        %v3469 = vadd.f32 %v3312, %v3394
        %v3470 = vadd.f32 %v3313, %v3397
        %v3471 = vadd.f32 %v3314, %v3399
        %v3472 = vadd.f32 %v3315, %v3402
        %v3473 = vadd.f32 %v3316, %v3404
        %v3474 = vadd.f32 %v3317, %v3407
        %v3475 = vadd.f32 %v3318, %v3409
        %v3476 = vadd.f32 %v3319, %v3412
        %v3477 = vadd.f32 %v3320, %v3414
        %v3478 = vadd.f32 %v3321, %v3417
        %v3479 = vadd.f32 %v3322, %v3419
        %v3480 = vadd.f32 %v3323, %v3422
        %v3481 = vadd.f32 %v3324, %v3424
        %v3482 = vadd.f32 %v3325, %v3427
        %v3483 = vadd.f32 %v3326, %v3429
        %v3484 = vadd.f32 %v3327, %v3432
        %v3485 = vadd.f32 %v3328, %v3434
        %v3486 = vadd.f32 %v3329, %v3437
        %v3487 = vadd.f32 %v3330, %v3439
        %v3488 = vadd.f32 %v3331, %v3442
        %v3489 = vadd.f32 %v3332, %v3444
        %v3490 = vadd.f32 %v3333, %v3447
        %v3491 = vadd.f32 %v3334, %v3449
        %v3492 = vadd.f32 %v3335, %v3452
        %v3493 = vadd.f32 %v3336, %v3454
        %v3494 = vadd.f32 %v3337, %v3457
        %v3495 = vadd.f32 %v3338, %v3459
        %v3496 = vadd.f32 %v3339, %v3462
        %v3497 = vadd.f32 %v3340, %v3464
        %v3498 = vld [vmem:[%s8] sm:$0x1]
        %v3500 = vperm.slane %v3498, 0
        %v3502 = vmul.f32 %v3466, %v3500
        %v3503 = vmul.f32 %v3467, %v3500
        %v3504 = vmul.f32 %v3468, %v3500
        %v3505 = vmul.f32 %v3469, %v3500
        %v3506 = vmul.f32 %v3470, %v3500
        %v3507 = vmul.f32 %v3471, %v3500
        %v3508 = vmul.f32 %v3472, %v3500
        %v3509 = vmul.f32 %v3473, %v3500
        %v3510 = vmul.f32 %v3474, %v3500
        %v3511 = vmul.f32 %v3475, %v3500
        %v3512 = vmul.f32 %v3476, %v3500
        %v3513 = vmul.f32 %v3477, %v3500
        %v3514 = vmul.f32 %v3478, %v3500
        %v3515 = vmul.f32 %v3479, %v3500
        %v3516 = vmul.f32 %v3480, %v3500
        %v3517 = vmul.f32 %v3481, %v3500
        %v3518 = vmul.f32 %v3482, %v3500
        %v3519 = vmul.f32 %v3483, %v3500
        %v3520 = vmul.f32 %v3484, %v3500
        %v3521 = vmul.f32 %v3485, %v3500
        %v3522 = vmul.f32 %v3486, %v3500
        %v3523 = vmul.f32 %v3487, %v3500
        %v3524 = vmul.f32 %v3488, %v3500
        %v3525 = vmul.f32 %v3489, %v3500
        %v3526 = vmul.f32 %v3490, %v3500
        %v3527 = vmul.f32 %v3491, %v3500
        %v3528 = vmul.f32 %v3492, %v3500
        %v3529 = vmul.f32 %v3493, %v3500
        %v3530 = vmul.f32 %v3494, %v3500
        %v3531 = vmul.f32 %v3495, %v3500
        %v3532 = vmul.f32 %v3496, %v3500
        %v3533 = vmul.f32 %v3497, %v3500
        %v3534 = vld [vmem:[%s9] sm:$0x1]
        %v3536 = vperm.slane %v3534, 0
        %v3538 = vadd.f32 %v3502, %v3536
        %v3539 = vadd.f32 %v3503, %v3536
        %v3540 = vadd.f32 %v3504, %v3536
        %v3541 = vadd.f32 %v3505, %v3536
        %v3542 = vadd.f32 %v3506, %v3536
        %v3543 = vadd.f32 %v3507, %v3536
        %v3544 = vadd.f32 %v3508, %v3536
        %v3545 = vadd.f32 %v3509, %v3536
        %v3546 = vadd.f32 %v3510, %v3536
        %v3547 = vadd.f32 %v3511, %v3536
        %v3548 = vadd.f32 %v3512, %v3536
        %v3549 = vadd.f32 %v3513, %v3536
        %v3550 = vadd.f32 %v3514, %v3536
        %v3551 = vadd.f32 %v3515, %v3536
        %v3552 = vadd.f32 %v3516, %v3536
        %v3553 = vadd.f32 %v3517, %v3536
        %v3554 = vadd.f32 %v3518, %v3536
        %v3555 = vadd.f32 %v3519, %v3536
        %v3556 = vadd.f32 %v3520, %v3536
        %v3557 = vadd.f32 %v3521, %v3536
        %v3558 = vadd.f32 %v3522, %v3536
        %v3559 = vadd.f32 %v3523, %v3536
        %v3560 = vadd.f32 %v3524, %v3536
        %v3561 = vadd.f32 %v3525, %v3536
        %v3562 = vadd.f32 %v3526, %v3536
        %v3563 = vadd.f32 %v3527, %v3536
        %v3564 = vadd.f32 %v3528, %v3536
        %v3565 = vadd.f32 %v3529, %v3536
        %v3566 = vadd.f32 %v3530, %v3536
        %v3567 = vadd.f32 %v3531, %v3536
        %v3568 = vadd.f32 %v3532, %v3536
        %v3569 = vadd.f32 %v3533, %v3536
        %v3570 = vmax.f32 %v3538, 0.0
        %v3571 = vmax.f32 %v3539, 0.0
        %v3572 = vmax.f32 %v3540, 0.0
        %v3573 = vmax.f32 %v3541, 0.0
        %v3574 = vmax.f32 %v3542, 0.0
        %v3575 = vmax.f32 %v3543, 0.0
        %v3576 = vmax.f32 %v3544, 0.0
        %v3577 = vmax.f32 %v3545, 0.0
        %v3578 = vmax.f32 %v3546, 0.0
        %v3579 = vmax.f32 %v3547, 0.0
        %v3580 = vmax.f32 %v3548, 0.0
        %v3581 = vmax.f32 %v3549, 0.0
        %v3582 = vmax.f32 %v3550, 0.0
        %v3583 = vmax.f32 %v3551, 0.0
        %v3584 = vmax.f32 %v3552, 0.0
        %v3585 = vmax.f32 %v3553, 0.0
        %v3586 = vmax.f32 %v3554, 0.0
        %v3587 = vmax.f32 %v3555, 0.0
        %v3588 = vmax.f32 %v3556, 0.0
        %v3589 = vmax.f32 %v3557, 0.0
        %v3590 = vmax.f32 %v3558, 0.0
        %v3591 = vmax.f32 %v3559, 0.0
        %v3592 = vmax.f32 %v3560, 0.0
        %v3593 = vmax.f32 %v3561, 0.0
        %v3594 = vmax.f32 %v3562, 0.0
        %v3595 = vmax.f32 %v3563, 0.0
        %v3596 = vmax.f32 %v3564, 0.0
        %v3597 = vmax.f32 %v3565, 0.0
        %v3598 = vmax.f32 %v3566, 0.0
        %v3599 = vmax.f32 %v3567, 0.0
        %v3600 = vmax.f32 %v3568, 0.0
        %v3601 = vmax.f32 %v3569, 0.0
        %v3602 = vpack.c.bf16 %v3571, %v3570
        %v3603 = vpack.c.bf16 %v3573, %v3572
        %v3604 = vpack.c.bf16 %v3575, %v3574
        %v3605 = vpack.c.bf16 %v3577, %v3576
        %v3606 = vpack.c.bf16 %v3579, %v3578
        %v3607 = vpack.c.bf16 %v3581, %v3580
        %v3608 = vpack.c.bf16 %v3583, %v3582
        %v3609 = vpack.c.bf16 %v3585, %v3584
        %v3610 = vpack.c.bf16 %v3587, %v3586
        %v3611 = vpack.c.bf16 %v3589, %v3588
        %v3612 = vpack.c.bf16 %v3591, %v3590
        %v3613 = vpack.c.bf16 %v3593, %v3592
        %v3614 = vpack.c.bf16 %v3595, %v3594
        %v3615 = vpack.c.bf16 %v3597, %v3596
        %v3616 = vpack.c.bf16 %v3599, %v3598
        %v3617 = vpack.c.bf16 %v3601, %v3600
        %v3618 = vld [vmem:[%s5] sm:$0xff]
        %v3619 = vld [vmem:[%s5 + $0x8] sm:$0xff]
        %v3620 = vld [vmem:[%s5 + $0x10] sm:$0xff]
        %v3621 = vld [vmem:[%s5 + $0x18] sm:$0xff]
        %v3622 = vld [vmem:[%s5 + $0x20] sm:$0xff]
        %v3623 = vld [vmem:[%s5 + $0x28] sm:$0xff]
        %v3624 = vld [vmem:[%s5 + $0x30] sm:$0xff]
        %v3625 = vld [vmem:[%s5 + $0x38] sm:$0xff]
        %v3634 = vunpack.c.l.b16 %v3618
        %v3635 = vunpack.c.h.b16 %v3618
        %v3636 = vunpack.c.l.b16 %v3619
        %v3637 = vunpack.c.h.b16 %v3619
        %v3638 = vunpack.c.l.b16 %v3620
        %v3639 = vunpack.c.h.b16 %v3620
        %v3640 = vunpack.c.l.b16 %v3621
        %v3641 = vunpack.c.h.b16 %v3621
        %v3642 = vunpack.c.l.b16 %v3622
        %v3643 = vunpack.c.h.b16 %v3622
        %v3644 = vunpack.c.l.b16 %v3623
        %v3645 = vunpack.c.h.b16 %v3623
        %v3646 = vunpack.c.l.b16 %v3624
        %v3647 = vunpack.c.h.b16 %v3624
        %v3648 = vunpack.c.l.b16 %v3625
        %v3649 = vunpack.c.h.b16 %v3625
        %v3650 = vpack.c.b16 %v3636, %v3634
        %v3651 = vpack.c.b16 %v3637, %v3635
        %v3652 = vpack.c.b16 %v3640, %v3638
        %v3653 = vpack.c.b16 %v3641, %v3639
        %v3654 = vpack.c.b16 %v3644, %v3642
        %v3655 = vpack.c.b16 %v3645, %v3643
        %v3656 = vpack.c.b16 %v3648, %v3646
        %v3657 = vpack.c.b16 %v3649, %v3647
        %v3667 = vsel %vm2073, %v3602, 0
        %v3670 = vsel %vm2073, %v3603, 0
        %v3673 = vsel %vm2073, %v3604, 0
        %v3676 = vsel %vm2073, %v3605, 0
        %v3679 = vsel %vm2073, %v3606, 0
        %v3682 = vsel %vm2073, %v3607, 0
        %v3685 = vsel %vm2073, %v3608, 0
        %v3688 = vsel %vm2073, %v3609, 0
        %v3691 = vsel %vm2073, %v3610, 0
        %v3694 = vsel %vm2073, %v3611, 0
        %v3697 = vsel %vm2073, %v3612, 0
        %v3700 = vsel %vm2073, %v3613, 0
        %v3703 = vsel %vm2073, %v3614, 0
        %v3706 = vsel %vm2073, %v3615, 0
        %v3709 = vsel %vm2073, %v3616, 0
        %v3712 = vsel %vm2073, %v3617, 0
        %3714 = vmatpush.bf16.msra.mxu0 0
        %3715 = vmatpush.bf16.msra.mxu0 0
        %3716 = vmatpush.bf16.msra.mxu0 0
        %3717 = vmatpush.bf16.msra.mxu0 0
        %3718 = vmatpush.bf16.msra.mxu0 %v3656
        %3719 = vmatpush.bf16.msra.mxu0 %v3654
        %3720 = vmatpush.bf16.msra.mxu0 %v3652
        %3721 = vmatpush.bf16.msra.mxu0 %v3650
        %3722 = vmatmul.bf16.gmra.mxu0 %v3667
        %v3723 = vpop.f32.mrf.mxu0
        %v3724 = vadd.f32 0.0, %v3723
        %v3725 = vpop.f32.mrf.mxu0
        %v3726 = vadd.f32 0.0, %v3725
        %3727 = vmatmul.bf16.gmra.mxu0 %v3670
        %v3728 = vpop.f32.mrf.mxu0
        %v3729 = vadd.f32 0.0, %v3728
        %v3730 = vpop.f32.mrf.mxu0
        %v3731 = vadd.f32 0.0, %v3730
        %3732 = vmatmul.bf16.gmra.mxu0 %v3673
        %v3733 = vpop.f32.mrf.mxu0
        %v3734 = vadd.f32 0.0, %v3733
        %v3735 = vpop.f32.mrf.mxu0
        %v3736 = vadd.f32 0.0, %v3735
        %3737 = vmatmul.bf16.gmra.mxu0 %v3676
        %v3738 = vpop.f32.mrf.mxu0
        %v3739 = vadd.f32 0.0, %v3738
        %v3740 = vpop.f32.mrf.mxu0
        %v3741 = vadd.f32 0.0, %v3740
        %3742 = vmatmul.bf16.gmra.mxu0 %v3679
        %v3743 = vpop.f32.mrf.mxu0
        %v3744 = vadd.f32 0.0, %v3743
        %v3745 = vpop.f32.mrf.mxu0
        %v3746 = vadd.f32 0.0, %v3745
        %3747 = vmatmul.bf16.gmra.mxu0 %v3682
        %v3748 = vpop.f32.mrf.mxu0
        %v3749 = vadd.f32 0.0, %v3748
        %v3750 = vpop.f32.mrf.mxu0
        %v3751 = vadd.f32 0.0, %v3750
        %3752 = vmatmul.bf16.gmra.mxu0 %v3685
        %v3753 = vpop.f32.mrf.mxu0
        %v3754 = vadd.f32 0.0, %v3753
        %v3755 = vpop.f32.mrf.mxu0
        %v3756 = vadd.f32 0.0, %v3755
        %3757 = vmatmul.bf16.gmra.mxu0 %v3688
        %v3758 = vpop.f32.mrf.mxu0
        %v3759 = vadd.f32 0.0, %v3758
        %v3760 = vpop.f32.mrf.mxu0
        %v3761 = vadd.f32 0.0, %v3760
        %3762 = vmatmul.bf16.gmra.mxu0 %v3691
        %v3763 = vpop.f32.mrf.mxu0
        %v3764 = vadd.f32 0.0, %v3763
        %v3765 = vpop.f32.mrf.mxu0
        %v3766 = vadd.f32 0.0, %v3765
        %3767 = vmatmul.bf16.gmra.mxu0 %v3694
        %v3768 = vpop.f32.mrf.mxu0
        %v3769 = vadd.f32 0.0, %v3768
        %v3770 = vpop.f32.mrf.mxu0
        %v3771 = vadd.f32 0.0, %v3770
        %3772 = vmatmul.bf16.gmra.mxu0 %v3697
        %v3773 = vpop.f32.mrf.mxu0
        %v3774 = vadd.f32 0.0, %v3773
        %v3775 = vpop.f32.mrf.mxu0
        %v3776 = vadd.f32 0.0, %v3775
        %3777 = vmatmul.bf16.gmra.mxu0 %v3700
        %v3778 = vpop.f32.mrf.mxu0
        %v3779 = vadd.f32 0.0, %v3778
        %v3780 = vpop.f32.mrf.mxu0
        %v3781 = vadd.f32 0.0, %v3780
        %3782 = vmatmul.bf16.gmra.mxu0 %v3703
        %v3783 = vpop.f32.mrf.mxu0
        %v3784 = vadd.f32 0.0, %v3783
        %v3785 = vpop.f32.mrf.mxu0
        %v3786 = vadd.f32 0.0, %v3785
        %3787 = vmatmul.bf16.gmra.mxu0 %v3706
        %v3788 = vpop.f32.mrf.mxu0
        %v3789 = vadd.f32 0.0, %v3788
        %v3790 = vpop.f32.mrf.mxu0
        %v3791 = vadd.f32 0.0, %v3790
        %3792 = vmatmul.bf16.gmra.mxu0 %v3709
        %v3793 = vpop.f32.mrf.mxu0
        %v3794 = vadd.f32 0.0, %v3793
        %v3795 = vpop.f32.mrf.mxu0
        %v3796 = vadd.f32 0.0, %v3795
        %3797 = vmatmul.bf16.gmra.mxu0 %v3712
        %v3798 = vpop.f32.mrf.mxu0
        %v3799 = vadd.f32 0.0, %v3798
        %v3800 = vpop.f32.mrf.mxu0
        %v3801 = vadd.f32 0.0, %v3800
        %3802 = vdwg.mxu0
        %3803 = vmatpush.bf16.msra.mxu0 0
        %3804 = vmatpush.bf16.msra.mxu0 0
        %3805 = vmatpush.bf16.msra.mxu0 0
        %3806 = vmatpush.bf16.msra.mxu0 0
        %3807 = vmatpush.bf16.msra.mxu0 %v3657
        %3808 = vmatpush.bf16.msra.mxu0 %v3655
        %3809 = vmatpush.bf16.msra.mxu0 %v3653
        %3810 = vmatpush.bf16.msra.mxu0 %v3651
        %3811 = vmatmul.bf16.gmra.mxu0 %v3667
        %v3812 = vpop.f32.mrf.mxu0
        %v3813 = vadd.f32 0.0, %v3812
        %v3814 = vpop.f32.mrf.mxu0
        %v3815 = vadd.f32 0.0, %v3814
        %3816 = vmatmul.bf16.gmra.mxu0 %v3670
        %v3817 = vpop.f32.mrf.mxu0
        %v3818 = vadd.f32 0.0, %v3817
        %v3819 = vpop.f32.mrf.mxu0
        %v3820 = vadd.f32 0.0, %v3819
        %3821 = vmatmul.bf16.gmra.mxu0 %v3673
        %v3822 = vpop.f32.mrf.mxu0
        %v3823 = vadd.f32 0.0, %v3822
        %v3824 = vpop.f32.mrf.mxu0
        %v3825 = vadd.f32 0.0, %v3824
        %3826 = vmatmul.bf16.gmra.mxu0 %v3676
        %v3827 = vpop.f32.mrf.mxu0
        %v3828 = vadd.f32 0.0, %v3827
        %v3829 = vpop.f32.mrf.mxu0
        %v3830 = vadd.f32 0.0, %v3829
        %3831 = vmatmul.bf16.gmra.mxu0 %v3679
        %v3832 = vpop.f32.mrf.mxu0
        %v3833 = vadd.f32 0.0, %v3832
        %v3834 = vpop.f32.mrf.mxu0
        %v3835 = vadd.f32 0.0, %v3834
        %3836 = vmatmul.bf16.gmra.mxu0 %v3682
        %v3837 = vpop.f32.mrf.mxu0
        %v3838 = vadd.f32 0.0, %v3837
        %v3839 = vpop.f32.mrf.mxu0
        %v3840 = vadd.f32 0.0, %v3839
        %3841 = vmatmul.bf16.gmra.mxu0 %v3685
        %v3842 = vpop.f32.mrf.mxu0
        %v3843 = vadd.f32 0.0, %v3842
        %v3844 = vpop.f32.mrf.mxu0
        %v3845 = vadd.f32 0.0, %v3844
        %3846 = vmatmul.bf16.gmra.mxu0 %v3688
        %v3847 = vpop.f32.mrf.mxu0
        %v3848 = vadd.f32 0.0, %v3847
        %v3849 = vpop.f32.mrf.mxu0
        %v3850 = vadd.f32 0.0, %v3849
        %3851 = vmatmul.bf16.gmra.mxu0 %v3691
        %v3852 = vpop.f32.mrf.mxu0
        %v3853 = vadd.f32 0.0, %v3852
        %v3854 = vpop.f32.mrf.mxu0
        %v3855 = vadd.f32 0.0, %v3854
        %3856 = vmatmul.bf16.gmra.mxu0 %v3694
        %v3857 = vpop.f32.mrf.mxu0
        %v3858 = vadd.f32 0.0, %v3857
        %v3859 = vpop.f32.mrf.mxu0
        %v3860 = vadd.f32 0.0, %v3859
        %3861 = vmatmul.bf16.gmra.mxu0 %v3697
        %v3862 = vpop.f32.mrf.mxu0
        %v3863 = vadd.f32 0.0, %v3862
        %v3864 = vpop.f32.mrf.mxu0
        %v3865 = vadd.f32 0.0, %v3864
        %3866 = vmatmul.bf16.gmra.mxu0 %v3700
        %v3867 = vpop.f32.mrf.mxu0
        %v3868 = vadd.f32 0.0, %v3867
        %v3869 = vpop.f32.mrf.mxu0
        %v3870 = vadd.f32 0.0, %v3869
        %3871 = vmatmul.bf16.gmra.mxu0 %v3703
        %v3872 = vpop.f32.mrf.mxu0
        %v3873 = vadd.f32 0.0, %v3872
        %v3874 = vpop.f32.mrf.mxu0
        %v3875 = vadd.f32 0.0, %v3874
        %3876 = vmatmul.bf16.gmra.mxu0 %v3706
        %v3877 = vpop.f32.mrf.mxu0
        %v3878 = vadd.f32 0.0, %v3877
        %v3879 = vpop.f32.mrf.mxu0
        %v3880 = vadd.f32 0.0, %v3879
        %3881 = vmatmul.bf16.gmra.mxu0 %v3709
        %v3882 = vpop.f32.mrf.mxu0
        %v3883 = vadd.f32 0.0, %v3882
        %v3884 = vpop.f32.mrf.mxu0
        %v3885 = vadd.f32 0.0, %v3884
        %3886 = vmatmul.bf16.gmra.mxu0 %v3712
        %v3887 = vpop.f32.mrf.mxu0
        %v3888 = vadd.f32 0.0, %v3887
        %v3889 = vpop.f32.mrf.mxu0
        %v3890 = vadd.f32 0.0, %v3889
        %3891 = vdwg.mxu0
        %v3892 = vld [vmem:[%s10] sm:$0x3]
        %v3894 = vperm.slane %v3892, 0
        %v3895 = vperm.slane %v3892, 1
        %v3898 = vmul.f32 %v3724, %v3894
        %v3899 = vmul.f32 %v3813, %v3895
        %v3900 = vmul.f32 %v3726, %v3894
        %v3901 = vmul.f32 %v3815, %v3895
        %v3902 = vmul.f32 %v3729, %v3894
        %v3903 = vmul.f32 %v3818, %v3895
        %v3904 = vmul.f32 %v3731, %v3894
        %v3905 = vmul.f32 %v3820, %v3895
        %v3906 = vmul.f32 %v3734, %v3894
        %v3907 = vmul.f32 %v3823, %v3895
        %v3908 = vmul.f32 %v3736, %v3894
        %v3909 = vmul.f32 %v3825, %v3895
        %v3910 = vmul.f32 %v3739, %v3894
        %v3911 = vmul.f32 %v3828, %v3895
        %v3912 = vmul.f32 %v3741, %v3894
        %v3913 = vmul.f32 %v3830, %v3895
        %v3914 = vmul.f32 %v3744, %v3894
        %v3915 = vmul.f32 %v3833, %v3895
        %v3916 = vmul.f32 %v3746, %v3894
        %v3917 = vmul.f32 %v3835, %v3895
        %v3918 = vmul.f32 %v3749, %v3894
        %v3919 = vmul.f32 %v3838, %v3895
        %v3920 = vmul.f32 %v3751, %v3894
        %v3921 = vmul.f32 %v3840, %v3895
        %v3922 = vmul.f32 %v3754, %v3894
        %v3923 = vmul.f32 %v3843, %v3895
        %v3924 = vmul.f32 %v3756, %v3894
        %v3925 = vmul.f32 %v3845, %v3895
        %v3926 = vmul.f32 %v3759, %v3894
        %v3927 = vmul.f32 %v3848, %v3895
        %v3928 = vmul.f32 %v3761, %v3894
        %v3929 = vmul.f32 %v3850, %v3895
        %v3930 = vmul.f32 %v3764, %v3894
        %v3931 = vmul.f32 %v3853, %v3895
        %v3932 = vmul.f32 %v3766, %v3894
        %v3933 = vmul.f32 %v3855, %v3895
        %v3934 = vmul.f32 %v3769, %v3894
        %v3935 = vmul.f32 %v3858, %v3895
        %v3936 = vmul.f32 %v3771, %v3894
        %v3937 = vmul.f32 %v3860, %v3895
        %v3938 = vmul.f32 %v3774, %v3894
        %v3939 = vmul.f32 %v3863, %v3895
        %v3940 = vmul.f32 %v3776, %v3894
        %v3941 = vmul.f32 %v3865, %v3895
        %v3942 = vmul.f32 %v3779, %v3894
        %v3943 = vmul.f32 %v3868, %v3895
        %v3944 = vmul.f32 %v3781, %v3894
        %v3945 = vmul.f32 %v3870, %v3895
        %v3946 = vmul.f32 %v3784, %v3894
        %v3947 = vmul.f32 %v3873, %v3895
        %v3948 = vmul.f32 %v3786, %v3894
        %v3949 = vmul.f32 %v3875, %v3895
        %v3950 = vmul.f32 %v3789, %v3894
        %v3951 = vmul.f32 %v3878, %v3895
        %v3952 = vmul.f32 %v3791, %v3894
        %v3953 = vmul.f32 %v3880, %v3895
        %v3954 = vmul.f32 %v3794, %v3894
        %v3955 = vmul.f32 %v3883, %v3895
        %v3956 = vmul.f32 %v3796, %v3894
        %v3957 = vmul.f32 %v3885, %v3895
        %v3958 = vmul.f32 %v3799, %v3894
        %v3959 = vmul.f32 %v3888, %v3895
        %v3960 = vmul.f32 %v3801, %v3894
        %v3961 = vmul.f32 %v3890, %v3895
        %v3962 = vld [vmem:[%s11] sm:$0x3]
        %v3964 = vperm.slane %v3962, 0
        %v3965 = vperm.slane %v3962, 1
        %v3968 = vadd.f32 %v3898, %v3964
        %v3969 = vadd.f32 %v3899, %v3965
        %v3970 = vadd.f32 %v3900, %v3964
        %v3971 = vadd.f32 %v3901, %v3965
        %v3972 = vadd.f32 %v3902, %v3964
        %v3973 = vadd.f32 %v3903, %v3965
        %v3974 = vadd.f32 %v3904, %v3964
        %v3975 = vadd.f32 %v3905, %v3965
        %v3976 = vadd.f32 %v3906, %v3964
        %v3977 = vadd.f32 %v3907, %v3965
        %v3978 = vadd.f32 %v3908, %v3964
        %v3979 = vadd.f32 %v3909, %v3965
        %v3980 = vadd.f32 %v3910, %v3964
        %v3981 = vadd.f32 %v3911, %v3965
        %v3982 = vadd.f32 %v3912, %v3964
        %v3983 = vadd.f32 %v3913, %v3965
        %v3984 = vadd.f32 %v3914, %v3964
        %v3985 = vadd.f32 %v3915, %v3965
        %v3986 = vadd.f32 %v3916, %v3964
        %v3987 = vadd.f32 %v3917, %v3965
        %v3988 = vadd.f32 %v3918, %v3964
        %v3989 = vadd.f32 %v3919, %v3965
        %v3990 = vadd.f32 %v3920, %v3964
        %v3991 = vadd.f32 %v3921, %v3965
        %v3992 = vadd.f32 %v3922, %v3964
        %v3993 = vadd.f32 %v3923, %v3965
        %v3994 = vadd.f32 %v3924, %v3964
        %v3995 = vadd.f32 %v3925, %v3965
        %v3996 = vadd.f32 %v3926, %v3964
        %v3997 = vadd.f32 %v3927, %v3965
        %v3998 = vadd.f32 %v3928, %v3964
        %v3999 = vadd.f32 %v3929, %v3965
        %v4000 = vadd.f32 %v3930, %v3964
        %v4001 = vadd.f32 %v3931, %v3965
        %v4002 = vadd.f32 %v3932, %v3964
        %v4003 = vadd.f32 %v3933, %v3965
        %v4004 = vadd.f32 %v3934, %v3964
        %v4005 = vadd.f32 %v3935, %v3965
        %v4006 = vadd.f32 %v3936, %v3964
        %v4007 = vadd.f32 %v3937, %v3965
        %v4008 = vadd.f32 %v3938, %v3964
        %v4009 = vadd.f32 %v3939, %v3965
        %v4010 = vadd.f32 %v3940, %v3964
        %v4011 = vadd.f32 %v3941, %v3965
        %v4012 = vadd.f32 %v3942, %v3964
        %v4013 = vadd.f32 %v3943, %v3965
        %v4014 = vadd.f32 %v3944, %v3964
        %v4015 = vadd.f32 %v3945, %v3965
        %v4016 = vadd.f32 %v3946, %v3964
        %v4017 = vadd.f32 %v3947, %v3965
        %v4018 = vadd.f32 %v3948, %v3964
        %v4019 = vadd.f32 %v3949, %v3965
        %v4020 = vadd.f32 %v3950, %v3964
        %v4021 = vadd.f32 %v3951, %v3965
        %v4022 = vadd.f32 %v3952, %v3964
        %v4023 = vadd.f32 %v3953, %v3965
        %v4024 = vadd.f32 %v3954, %v3964
        %v4025 = vadd.f32 %v3955, %v3965
        %v4026 = vadd.f32 %v3956, %v3964
        %v4027 = vadd.f32 %v3957, %v3965
        %v4028 = vadd.f32 %v3958, %v3964
        %v4029 = vadd.f32 %v3959, %v3965
        %v4030 = vadd.f32 %v3960, %v3964
        %v4031 = vadd.f32 %v3961, %v3965
        %v4032 = vunpack.c.l.bf16 %v598
        %v4033 = vunpack.c.h.bf16 %v598
        %v4034 = vunpack.c.l.bf16 %v599
        %v4035 = vunpack.c.h.bf16 %v599
        %v4036 = vunpack.c.l.bf16 %v600
        %v4037 = vunpack.c.h.bf16 %v600
        %v4038 = vunpack.c.l.bf16 %v601
        %v4039 = vunpack.c.h.bf16 %v601
        %v4040 = vunpack.c.l.bf16 %v602
        %v4041 = vunpack.c.h.bf16 %v602
        %v4042 = vunpack.c.l.bf16 %v603
        %v4043 = vunpack.c.h.bf16 %v603
        %v4044 = vunpack.c.l.bf16 %v604
        %v4045 = vunpack.c.h.bf16 %v604
        %v4046 = vunpack.c.l.bf16 %v605
        %v4047 = vunpack.c.h.bf16 %v605
        %v4048 = vunpack.c.l.bf16 %v606
        %v4049 = vunpack.c.h.bf16 %v606
        %v4050 = vunpack.c.l.bf16 %v607
        %v4051 = vunpack.c.h.bf16 %v607
        %v4052 = vunpack.c.l.bf16 %v608
        %v4053 = vunpack.c.h.bf16 %v608
        %v4054 = vunpack.c.l.bf16 %v609
        %v4055 = vunpack.c.h.bf16 %v609
        %v4056 = vunpack.c.l.bf16 %v610
        %v4057 = vunpack.c.h.bf16 %v610
        %v4058 = vunpack.c.l.bf16 %v611
        %v4059 = vunpack.c.h.bf16 %v611
        %v4060 = vunpack.c.l.bf16 %v612
        %v4061 = vunpack.c.h.bf16 %v612
        %v4062 = vunpack.c.l.bf16 %v613
        %v4063 = vunpack.c.h.bf16 %v613
        %v4064 = vunpack.c.l.bf16 %v614
        %v4065 = vunpack.c.h.bf16 %v614
        %v4066 = vunpack.c.l.bf16 %v615
        %v4067 = vunpack.c.h.bf16 %v615
        %v4068 = vunpack.c.l.bf16 %v616
        %v4069 = vunpack.c.h.bf16 %v616
        %v4070 = vunpack.c.l.bf16 %v617
        %v4071 = vunpack.c.h.bf16 %v617
        %v4072 = vunpack.c.l.bf16 %v618
        %v4073 = vunpack.c.h.bf16 %v618
        %v4074 = vunpack.c.l.bf16 %v619
        %v4075 = vunpack.c.h.bf16 %v619
        %v4076 = vunpack.c.l.bf16 %v620
        %v4077 = vunpack.c.h.bf16 %v620
        %v4078 = vunpack.c.l.bf16 %v621
        %v4079 = vunpack.c.h.bf16 %v621
        %v4080 = vunpack.c.l.bf16 %v622
        %v4081 = vunpack.c.h.bf16 %v622
        %v4082 = vunpack.c.l.bf16 %v623
        %v4083 = vunpack.c.h.bf16 %v623
        %v4084 = vunpack.c.l.bf16 %v624
        %v4085 = vunpack.c.h.bf16 %v624
        %v4086 = vunpack.c.l.bf16 %v625
        %v4087 = vunpack.c.h.bf16 %v625
        %v4088 = vunpack.c.l.bf16 %v626
        %v4089 = vunpack.c.h.bf16 %v626
        %v4090 = vunpack.c.l.bf16 %v627
        %v4091 = vunpack.c.h.bf16 %v627
        %v4092 = vunpack.c.l.bf16 %v628
        %v4093 = vunpack.c.h.bf16 %v628
        %v4094 = vunpack.c.l.bf16 %v629
        %v4095 = vunpack.c.h.bf16 %v629
        %v4096 = vadd.f32 %v3968, %v4032
        %v4097 = vadd.f32 %v3969, %v4033
        %v4098 = vadd.f32 %v3970, %v4034
        %v4099 = vadd.f32 %v3971, %v4035
        %v4100 = vadd.f32 %v3972, %v4036
        %v4101 = vadd.f32 %v3973, %v4037
        %v4102 = vadd.f32 %v3974, %v4038
        %v4103 = vadd.f32 %v3975, %v4039
        %v4104 = vadd.f32 %v3976, %v4040
        %v4105 = vadd.f32 %v3977, %v4041
        %v4106 = vadd.f32 %v3978, %v4042
        %v4107 = vadd.f32 %v3979, %v4043
        %v4108 = vadd.f32 %v3980, %v4044
        %v4109 = vadd.f32 %v3981, %v4045
        %v4110 = vadd.f32 %v3982, %v4046
        %v4111 = vadd.f32 %v3983, %v4047
        %v4112 = vadd.f32 %v3984, %v4048
        %v4113 = vadd.f32 %v3985, %v4049
        %v4114 = vadd.f32 %v3986, %v4050
        %v4115 = vadd.f32 %v3987, %v4051
        %v4116 = vadd.f32 %v3988, %v4052
        %v4117 = vadd.f32 %v3989, %v4053
        %v4118 = vadd.f32 %v3990, %v4054
        %v4119 = vadd.f32 %v3991, %v4055
        %v4120 = vadd.f32 %v3992, %v4056
        %v4121 = vadd.f32 %v3993, %v4057
        %v4122 = vadd.f32 %v3994, %v4058
        %v4123 = vadd.f32 %v3995, %v4059
        %v4124 = vadd.f32 %v3996, %v4060
        %v4125 = vadd.f32 %v3997, %v4061
        %v4126 = vadd.f32 %v3998, %v4062
        %v4127 = vadd.f32 %v3999, %v4063
        %v4128 = vadd.f32 %v4000, %v4064
        %v4129 = vadd.f32 %v4001, %v4065
        %v4130 = vadd.f32 %v4002, %v4066
        %v4131 = vadd.f32 %v4003, %v4067
        %v4132 = vadd.f32 %v4004, %v4068
        %v4133 = vadd.f32 %v4005, %v4069
        %v4134 = vadd.f32 %v4006, %v4070
        %v4135 = vadd.f32 %v4007, %v4071
        %v4136 = vadd.f32 %v4008, %v4072
        %v4137 = vadd.f32 %v4009, %v4073
        %v4138 = vadd.f32 %v4010, %v4074
        %v4139 = vadd.f32 %v4011, %v4075
        %v4140 = vadd.f32 %v4012, %v4076
        %v4141 = vadd.f32 %v4013, %v4077
        %v4142 = vadd.f32 %v4014, %v4078
        %v4143 = vadd.f32 %v4015, %v4079
        %v4144 = vadd.f32 %v4016, %v4080
        %v4145 = vadd.f32 %v4017, %v4081
        %v4146 = vadd.f32 %v4018, %v4082
        %v4147 = vadd.f32 %v4019, %v4083
        %v4148 = vadd.f32 %v4020, %v4084
        %v4149 = vadd.f32 %v4021, %v4085
        %v4150 = vadd.f32 %v4022, %v4086
        %v4151 = vadd.f32 %v4023, %v4087
        %v4152 = vadd.f32 %v4024, %v4088
        %v4153 = vadd.f32 %v4025, %v4089
        %v4154 = vadd.f32 %v4026, %v4090
        %v4155 = vadd.f32 %v4027, %v4091
        %v4156 = vadd.f32 %v4028, %v4092
        %v4157 = vadd.f32 %v4029, %v4093
        %v4158 = vadd.f32 %v4030, %v4094
        %v4159 = vadd.f32 %v4031, %v4095
        %v4160 = vmax.f32 %v4096, 0.0
        %v4161 = vmax.f32 %v4097, 0.0
        %v4162 = vmax.f32 %v4098, 0.0
        %v4163 = vmax.f32 %v4099, 0.0
        %v4164 = vmax.f32 %v4100, 0.0
        %v4165 = vmax.f32 %v4101, 0.0
        %v4166 = vmax.f32 %v4102, 0.0
        %v4167 = vmax.f32 %v4103, 0.0
        %v4168 = vmax.f32 %v4104, 0.0
        %v4169 = vmax.f32 %v4105, 0.0
        %v4170 = vmax.f32 %v4106, 0.0
        %v4171 = vmax.f32 %v4107, 0.0
        %v4172 = vmax.f32 %v4108, 0.0
        %v4173 = vmax.f32 %v4109, 0.0
        %v4174 = vmax.f32 %v4110, 0.0
        %v4175 = vmax.f32 %v4111, 0.0
        %v4176 = vmax.f32 %v4112, 0.0
        %v4177 = vmax.f32 %v4113, 0.0
        %v4178 = vmax.f32 %v4114, 0.0
        %v4179 = vmax.f32 %v4115, 0.0
        %v4180 = vmax.f32 %v4116, 0.0
        %v4181 = vmax.f32 %v4117, 0.0
        %v4182 = vmax.f32 %v4118, 0.0
        %v4183 = vmax.f32 %v4119, 0.0
        %v4184 = vmax.f32 %v4120, 0.0
        %v4185 = vmax.f32 %v4121, 0.0
        %v4186 = vmax.f32 %v4122, 0.0
        %v4187 = vmax.f32 %v4123, 0.0
        %v4188 = vmax.f32 %v4124, 0.0
        %v4189 = vmax.f32 %v4125, 0.0
        %v4190 = vmax.f32 %v4126, 0.0
        %v4191 = vmax.f32 %v4127, 0.0
        %v4192 = vmax.f32 %v4128, 0.0
        %v4193 = vmax.f32 %v4129, 0.0
        %v4194 = vmax.f32 %v4130, 0.0
        %v4195 = vmax.f32 %v4131, 0.0
        %v4196 = vmax.f32 %v4132, 0.0
        %v4197 = vmax.f32 %v4133, 0.0
        %v4198 = vmax.f32 %v4134, 0.0
        %v4199 = vmax.f32 %v4135, 0.0
        %v4200 = vmax.f32 %v4136, 0.0
        %v4201 = vmax.f32 %v4137, 0.0
        %v4202 = vmax.f32 %v4138, 0.0
        %v4203 = vmax.f32 %v4139, 0.0
        %v4204 = vmax.f32 %v4140, 0.0
        %v4205 = vmax.f32 %v4141, 0.0
        %v4206 = vmax.f32 %v4142, 0.0
        %v4207 = vmax.f32 %v4143, 0.0
        %v4208 = vmax.f32 %v4144, 0.0
        %v4209 = vmax.f32 %v4145, 0.0
        %v4210 = vmax.f32 %v4146, 0.0
        %v4211 = vmax.f32 %v4147, 0.0
        %v4212 = vmax.f32 %v4148, 0.0
        %v4213 = vmax.f32 %v4149, 0.0
        %v4214 = vmax.f32 %v4150, 0.0
        %v4215 = vmax.f32 %v4151, 0.0
        %v4216 = vmax.f32 %v4152, 0.0
        %v4217 = vmax.f32 %v4153, 0.0
        %v4218 = vmax.f32 %v4154, 0.0
        %v4219 = vmax.f32 %v4155, 0.0
        %v4220 = vmax.f32 %v4156, 0.0
        %v4221 = vmax.f32 %v4157, 0.0
        %v4222 = vmax.f32 %v4158, 0.0
        %v4223 = vmax.f32 %v4159, 0.0
        %v4224 = vpack.c.bf16 %v4161, %v4160
        %v4225 = vpack.c.bf16 %v4163, %v4162
        %v4226 = vpack.c.bf16 %v4165, %v4164
        %v4227 = vpack.c.bf16 %v4167, %v4166
        %v4228 = vpack.c.bf16 %v4169, %v4168
        %v4229 = vpack.c.bf16 %v4171, %v4170
        %v4230 = vpack.c.bf16 %v4173, %v4172
        %v4231 = vpack.c.bf16 %v4175, %v4174
        %v4232 = vpack.c.bf16 %v4177, %v4176
        %v4233 = vpack.c.bf16 %v4179, %v4178
        %v4234 = vpack.c.bf16 %v4181, %v4180
        %v4235 = vpack.c.bf16 %v4183, %v4182
        %v4236 = vpack.c.bf16 %v4185, %v4184
        %v4237 = vpack.c.bf16 %v4187, %v4186
        %v4238 = vpack.c.bf16 %v4189, %v4188
        %v4239 = vpack.c.bf16 %v4191, %v4190
        %v4240 = vpack.c.bf16 %v4193, %v4192
        %v4241 = vpack.c.bf16 %v4195, %v4194
        %v4242 = vpack.c.bf16 %v4197, %v4196
        %v4243 = vpack.c.bf16 %v4199, %v4198
        %v4244 = vpack.c.bf16 %v4201, %v4200
        %v4245 = vpack.c.bf16 %v4203, %v4202
        %v4246 = vpack.c.bf16 %v4205, %v4204
        %v4247 = vpack.c.bf16 %v4207, %v4206
        %v4248 = vpack.c.bf16 %v4209, %v4208
        %v4249 = vpack.c.bf16 %v4211, %v4210
        %v4250 = vpack.c.bf16 %v4213, %v4212
        %v4251 = vpack.c.bf16 %v4215, %v4214
        %v4252 = vpack.c.bf16 %v4217, %v4216
        %v4253 = vpack.c.bf16 %v4219, %v4218
        %v4254 = vpack.c.bf16 %v4221, %v4220
        %v4255 = vpack.c.bf16 %v4223, %v4222
        %4256 = vst [vmem:[%s582] sm:$0xff] %v4224
        %4257 = vst [vmem:[%s582 + $0x8] sm:$0xff] %v4225
        %4258 = vst [vmem:[%s582 + $0x10] sm:$0xff] %v4226
        %4259 = vst [vmem:[%s582 + $0x18] sm:$0xff] %v4227
        %4260 = vst [vmem:[%s582 + $0x20] sm:$0xff] %v4228
        %4261 = vst [vmem:[%s582 + $0x28] sm:$0xff] %v4229
        %4262 = vst [vmem:[%s582 + $0x30] sm:$0xff] %v4230
        %4263 = vst [vmem:[%s582 + $0x38] sm:$0xff] %v4231
        %4264 = vst [vmem:[%s582 + $0x40] sm:$0xff] %v4232
        %4265 = vst [vmem:[%s582 + $0x48] sm:$0xff] %v4233
        %4266 = vst [vmem:[%s582 + $0x50] sm:$0xff] %v4234
        %4267 = vst [vmem:[%s582 + $0x58] sm:$0xff] %v4235
        %4268 = vst [vmem:[%s582 + $0x60] sm:$0xff] %v4236
        %4269 = vst [vmem:[%s582 + $0x68] sm:$0xff] %v4237
        %4270 = vst [vmem:[%s582 + $0x70] sm:$0xff] %v4238
        %4271 = vst [vmem:[%s582 + $0x78] sm:$0xff] %v4239
        %4272 = vst [vmem:[%s582 + $0x80] sm:$0xff] %v4240
        %4273 = vst [vmem:[%s582 + $0x88] sm:$0xff] %v4241
        %4274 = vst [vmem:[%s582 + $0x90] sm:$0xff] %v4242
        %4275 = vst [vmem:[%s582 + $0x98] sm:$0xff] %v4243
        %4276 = vst [vmem:[%s582 + $0xa0] sm:$0xff] %v4244
        %4277 = vst [vmem:[%s582 + $0xa8] sm:$0xff] %v4245
        %4278 = vst [vmem:[%s582 + $0xb0] sm:$0xff] %v4246
        %4279 = vst [vmem:[%s582 + $0xb8] sm:$0xff] %v4247
        %4280 = vst [vmem:[%s582 + $0xc0] sm:$0xff] %v4248
        %4281 = vst [vmem:[%s582 + $0xc8] sm:$0xff] %v4249
        %4282 = vst [vmem:[%s582 + $0xd0] sm:$0xff] %v4250
        %4283 = vst [vmem:[%s582 + $0xd8] sm:$0xff] %v4251
        %4284 = vst [vmem:[%s582 + $0xe0] sm:$0xff] %v4252
        %4285 = vst [vmem:[%s582 + $0xe8] sm:$0xff] %v4253
        %4286 = vst [vmem:[%s582 + $0xf0] sm:$0xff] %v4254
        %4287 = vst [vmem:[%s582 + $0xf8] sm:$0xff] %v4255
        %s4288 = sand.u32 %s344, 1
        %s4289 = scalar_lea.sflag [#allocation4], %s4288
        %s4290 = sand.u32 %s344, 1
        %s4291 = smul.addr %s4290, 256
        %s4292 = scalar_lea.vmem [#allocation10], %s4291
        // Predicated region
        $region85: #{tpu_custom_call.1} parent=67 // pred_check
          %p4293 = pneg %p354
        $region86: #{tpu_custom_call.1} parent=67 // pred_check_branch
          %4295 = sbr.rel (%p4293) target = $region88
        $region87: #{tpu_custom_call.1} parent=67 // pred_region
          %s4296 = smul.u32 16, %s38
          %4298 = vsyncadd %s4289, 0
          %s4299 = smul.addr %s4296, 4
          %s4300 = smul.addr %s37, 64
          %s4301 = sadd.s32 %s4299, %s4300
          %s4302 = smul.addr %s4301, 4
          %s4303 = scalar_lea.hbm %s12, %s4302
          %s4304 = sshll.u32 %s4292, 4
          %s4305 = int_to_ptr.vmem [resolvable:$true] %s4304
          %s4306 = sshll.u32 %s4303, 4
          %s4307 = int_to_ptr.hbm [resolvable:$true] %s4306
          %4312 = dma.vmem_to_hbm [thread:$0]  %s4305, 4096, %s4307, %s4289, 128, 128, 8
        $region88: #{tpu_custom_call.1} parent=67 // pred_fallthru
          _
      $region68: #{tpu_custom_call.1} parent=5 // pred_fallthru
        _
      %p4313 = scmp.le.s32.totalorder 2, %s28
      // Predicated region
      $region89: #{tpu_custom_call.1} parent=5 // pred_check
        %p4314 = pneg %p4313
      $region90: #{tpu_custom_call.1} parent=5 // pred_check_branch
        %4316 = sbr.rel (%p4314) target = $region92
      $region91: #{tpu_custom_call.1} parent=5 // pred_region
        %s4317 = ssub.s32 %s28, 2
        // Predicated region
        $region93: #{tpu_custom_call.1} parent=91 // pred_check
          %p4318 = pneg %p360
        $region94: #{tpu_custom_call.1} parent=91 // pred_check_branch
          %4320 = sbr.rel (%p4318) target = $region96
        $region95: #{tpu_custom_call.1} parent=91 // pred_region
          %s4321 = sand.u32 %s345, 1
          %s4322 = scalar_lea.sflag [#allocation4], %s4321
          %s4323 = sand.u32 %s345, 1
          %s4324 = smul.addr %s4323, 256
          %s4325 = scalar_lea.vmem [#allocation10], %s4324
          %4327 = dma.done %s4322, 4096
        $region96: #{tpu_custom_call.1} parent=91 // pred_fallthru
          _
      $region92: #{tpu_custom_call.1} parent=5 // pred_fallthru
        _
    $region6: #{tpu_custom_call.1} parent=1 // loop_footer
      %s32 = sadd.s32 1, %s28
    $region7: #{tpu_custom_call.1} parent=1 // loop_footer_branch
      %27 = sbr.rel target = $region3
    $region8: #{tpu_custom_call.1} parent=1 // loop_exit
      _
    %4328 = vsyncpa [#allocation3], 1
    %s4329 = scalar_lea.sflag [#allocation3], 1
    %4330 = vsyncpa %s4329, 1
    %4331 = vsyncpa [#allocation6], 1
    %s4332 = scalar_lea.sflag [#allocation6], 1
    %4333 = vsyncpa %s4332, 1
    %4334 = vsyncpa [#allocation9], 1
    %4335 = vsyncpa [#allocation4], 1
    %s4336 = scalar_lea.sflag [#allocation4], 1
    %4337 = vsyncpa %s4336, 1

// kernel: tpu_custom_call.1
$region0: #{tpu_custom_call.1}
  #allocation0 [shape = 'u32[]', space=smem, size = 0x4, offset = 0x4, fixed_abs, tag = 'smem constant byte address 0x4 - core index']
  #allocation1 [shape = 'u32[72,128]{1,0:T(1,128)}', space=vmem, size = 0x9000, scoped, tag = 'internal scratch']
  %s0 = inlined_call_operand.hbm [shape: bf16[2,16,16,256], index: 0, kind: input, shape index: {}]
  %s1 = inlined_call_operand.hbm [shape: bf16[2,16,16,256], index: 1, kind: input, shape index: {}]
  %s2 = inlined_call_operand.hbm [shape: bf16[2,16,16,256], index: 2, kind: input, shape index: {}]
  %s3 = inlined_call_operand.vmem [shape: bf16[256,64], index: 3, kind: input, shape index: {}]
  %s4 = inlined_call_operand.hbm [shape: bf16[9,64,64], index: 4, kind: input, shape index: {}]
  %s5 = inlined_call_operand.vmem [shape: bf16[64,256], index: 5, kind: input, shape index: {}]
  %s6 = inlined_call_operand.vmem [shape: f32[1,64], index: 6, kind: input, shape index: {}]
  %s7 = inlined_call_operand.vmem [shape: f32[1,64], index: 7, kind: input, shape index: {}]
  %s8 = inlined_call_operand.vmem [shape: f32[1,64], index: 8, kind: input, shape index: {}]
  %s9 = inlined_call_operand.vmem [shape: f32[1,64], index: 9, kind: input, shape index: {}]
  %s10 = inlined_call_operand.vmem [shape: f32[1,256], index: 10, kind: input, shape index: {}]
  %s11 = inlined_call_operand.vmem [shape: f32[1,256], index: 11, kind: input, shape index: {}]
  %s12 = inlined_call_operand.hbm [shape: bf16[2,16,16,256], index: 12, kind: output, shape index: {}]
  %s13 = sld [smem:[#allocation0]]
  $region97: #{tpu_custom_call.1} parent=0
    _
  %s15 = ssub.s32 1, %s13
  %s16 = scalar_select 0, %s15, %s13
  $region1: #{tpu_custom_call.1} parent=0
    #allocation2 [shape = 'u8[16384]{0}', space=vmem, size = 0x4000, scoped, tag = 'input window, operand 0']
    #allocation3 [shape = 's32[2]{0}', space=sflag, size = 0x8, scoped, tag = 'scoped memory for tpu_custom_call.1']
    #allocation4 [shape = 's32[2]{0}', space=sflag, size = 0x8, scoped, tag = 'scoped memory for tpu_custom_call.1']
    #allocation5 [shape = 'u8[262144]{0}', space=vmem, size = 0x40000, scoped, tag = 'input window, operand 1']
    #allocation6 [shape = 's32[2]{0}', space=sflag, size = 0x8, scoped, tag = 'scoped memory for tpu_custom_call.1']
    #allocation7 [shape = 'u8[16384]{0}', space=vmem, size = 0x4000, scoped, tag = 'input window, operand 2']
    #allocation8 [shape = 'u8[147456]{0}', space=vmem, size = 0x24000, scoped, tag = 'input window, operand 4, single buffered']
    #allocation9 [shape = 's32[1]{0}', space=sflag, size = 0x4, scoped, tag = 'scoped memory for tpu_custom_call.1']
    #allocation10 [shape = 'u8[262144]{0}', space=vmem, size = 0x40000, scoped, tag = 'output window, operand 0']
    %17 = vsyncpa [#allocation3], 0
    %s18 = scalar_lea.sflag [#allocation3], 1
    %19 = vsyncpa %s18, 0
    %20 = vsyncpa [#allocation6], 0
    %s21 = scalar_lea.sflag [#allocation6], 1
    %22 = vsyncpa %s21, 0
    %23 = vsyncpa [#allocation9], 0
    %24 = vsyncpa [#allocation4], 0
    %s25 = scalar_lea.sflag [#allocation4], 1
    %26 = vsyncpa %s25, 0
    loop: start=0, step=1, limit=4
    $region2: #{tpu_custom_call.1} parent=1 // loop_pre_header
      _
    $region3: #{tpu_custom_call.1} parent=1 // loop_header
      %s28 = sphi 0, %s32
      %p29 = scmp.ge.s32.totalorder %s28, 4
      %s35 = sphi 0, %s47
      %s36 = sphi 0, %s43
      %s37 = sphi 0, %s35
      %s38 = sphi 0, %s36
      %s39 = sphi 0, %s37
      %s40 = sphi 0, %s38
      %s60 = sphi 0, %s62
      %s63 = sphi 0, %s60
      %s64 = sphi 0, %s63
      %s80 = sphi 0, %s64
      %s88 = sphi 0, %s90
      %s91 = sphi 0, %s88
      %s92 = sphi 0, %s91
      %s108 = sphi 0, %s92
      %s124 = sphi 0, %s126
      %s127 = sphi 0, %s124
      %s128 = sphi 0, %s127
      %s144 = sphi 0, %s128
      %s148 = sphi 0, %s148
      %s150 = sphi 0, %s148
      %s151 = sphi 0, %s150
      %s165 = sphi 0, %s151
      %s169 = sphi 0, %s169
      %s171 = sphi 0, %s169
      %s172 = sphi 0, %s171
      %s186 = sphi 0, %s172
      %s190 = sphi 0, %s190
      %s192 = sphi 0, %s190
      %s193 = sphi 0, %s192
      %s207 = sphi 0, %s193
      %s211 = sphi 0, %s211
      %s213 = sphi 0, %s211
      %s214 = sphi 0, %s213
      %s228 = sphi 0, %s214
      %s232 = sphi 0, %s232
      %s234 = sphi 0, %s232
      %s235 = sphi 0, %s234
      %s249 = sphi 0, %s235
      %s253 = sphi 0, %s253
      %s255 = sphi 0, %s253
      %s256 = sphi 0, %s255
      %s270 = sphi 0, %s256
      %s274 = sphi 0, %s274
      %s276 = sphi 0, %s274
      %s277 = sphi 0, %s276
      %s291 = sphi 0, %s277
      %s295 = sphi 0, %s295
      %s297 = sphi 0, %s295
      %s298 = sphi 0, %s297
      %s312 = sphi 0, %s298
      %s316 = sphi 0, %s316
      %s318 = sphi 0, %s316
      %s319 = sphi 0, %s318
      %s333 = sphi 0, %s319
      %s341 = sphi 0, %s343
      %s344 = sphi 0, %s341
      %s345 = sphi 0, %s344
      %s361 = sphi 0, %s345
    $region4: #{tpu_custom_call.1} parent=1 // loop_header_branch
      %31 = sbr.rel (%p29) target = $region8
    $region5: #{tpu_custom_call.1} parent=1 // loop_body
      %s33 = ssub.s32 %s28, 1
      %s34 = ssub.s32 %s28, 2
      %s41 = sadd.s32 1, %s36
      %p42 = scmp.ge.s32.totalorder %s41, 1
      %s43 = scalar_select %p42, 0, %s41
      %s44 = sadd.s32 1, %s35
      %s45 = scalar_select %p42, %s44, %s35
      %p46 = scmp.ge.s32.totalorder %s45, 2
      %s47 = scalar_select %p46, 0, %s45
      %s48 = smul.u32 %s36, 16
      %s49 = ssub.s32 %s48, 1
      %p50 = scmp.gt.s32.totalorder %s49, 0
      %s51 = scalar_select %p50, %s49, 0
      %s52 = smul.u32 %s43, 16
      %s53 = ssub.s32 %s52, 1
      %p54 = scmp.gt.s32.totalorder %s53, 0
      %s55 = scalar_select %p54, %s53, 0
      %s56 = ssub.s32 %s35, %s47
      %s57 = ssub.s32 %s51, %s55
      %s58 = sor.u32 %s56, %s57
      %p59 = scmp.eq.s32.totalorder %s58, 0
      %s61 = sadd.s32 %s60, 1
      %s62 = scalar_select %p59, %s60, %s61
      %p65 = pneg %p59
      %p66 = scmp.eq.s32.totalorder %s28, 1
      %p67 = por %p65, %p66
      %p68 = scmp.ne.s32.totalorder %s60, %s63
      %p69 = scmp.eq.s32.totalorder %s28, 0
      %p70 = por %p68, %p69
      %p71 = scmp.ne.s32.totalorder %s60, %s63
      %p72 = scmp.eq.s32.totalorder %s33, 1
      %p73 = por %p71, %p72
      %p74 = scmp.ne.s32.totalorder %s63, %s64
      %p75 = scmp.eq.s32.totalorder %s33, 0
      %p76 = por %p74, %p75
      %p77 = scmp.ne.s32.totalorder %s63, %s64
      %p78 = scmp.eq.s32.totalorder %s34, 1
      %p79 = por %p77, %p78
      %p81 = scmp.ne.s32.totalorder %s64, %s80
      %p82 = scmp.eq.s32.totalorder %s34, 0
      %p83 = por %p81, %p82
      %s84 = ssub.s32 %s35, %s47
      %s85 = ssub.s32 %s36, %s43
      %s86 = sor.u32 %s84, %s85
      %p87 = scmp.eq.s32.totalorder %s86, 0
      %s89 = sadd.s32 %s88, 1
      %s90 = scalar_select %p87, %s88, %s89
      %p93 = pneg %p87
      %p94 = scmp.eq.s32.totalorder %s28, 1
      %p95 = por %p93, %p94
      %p96 = scmp.ne.s32.totalorder %s88, %s91
      %p97 = scmp.eq.s32.totalorder %s28, 0
      %p98 = por %p96, %p97
      %p99 = scmp.ne.s32.totalorder %s88, %s91
      %p100 = scmp.eq.s32.totalorder %s33, 1
      %p101 = por %p99, %p100
      %p102 = scmp.ne.s32.totalorder %s91, %s92
      %p103 = scmp.eq.s32.totalorder %s33, 0
      %p104 = por %p102, %p103
      %p105 = scmp.ne.s32.totalorder %s91, %s92
      %p106 = scmp.eq.s32.totalorder %s34, 1
      %p107 = por %p105, %p106
      %p109 = scmp.ne.s32.totalorder %s92, %s108
      %p110 = scmp.eq.s32.totalorder %s34, 0
      %p111 = por %p109, %p110
      %s112 = sadd.s32 %s36, 1
      %s113 = smul.u32 %s112, 16
      %p114 = scmp.lt.s32.totalorder %s113, 15
      %s115 = scalar_select %p114, %s113, 15
      %s116 = sadd.s32 %s43, 1
      %s117 = smul.u32 %s116, 16
      %p118 = scmp.lt.s32.totalorder %s117, 15
      %s119 = scalar_select %p118, %s117, 15
      %s120 = ssub.s32 %s35, %s47
      %s121 = ssub.s32 %s115, %s119
      %s122 = sor.u32 %s120, %s121
      %p123 = scmp.eq.s32.totalorder %s122, 0
      %s125 = sadd.s32 %s124, 1
      %s126 = scalar_select %p123, %s124, %s125
      %p129 = pneg %p123
      %p130 = scmp.eq.s32.totalorder %s28, 1
      %p131 = por %p129, %p130
      %p132 = scmp.ne.s32.totalorder %s124, %s127
      %p133 = scmp.eq.s32.totalorder %s28, 0
      %p134 = por %p132, %p133
      %p135 = scmp.ne.s32.totalorder %s124, %s127
      %p136 = scmp.eq.s32.totalorder %s33, 1
      %p137 = por %p135, %p136
      %p138 = scmp.ne.s32.totalorder %s127, %s128
      %p139 = scmp.eq.s32.totalorder %s33, 0
      %p140 = por %p138, %p139
      %p141 = scmp.ne.s32.totalorder %s127, %s128
      %p142 = scmp.eq.s32.totalorder %s34, 1
      %p143 = por %p141, %p142
      %p145 = scmp.ne.s32.totalorder %s128, %s144
      %p146 = scmp.eq.s32.totalorder %s34, 0
      %p147 = por %p145, %p146
      %s149 = sadd.s32 %s148, 1
      %p152 = scmp.eq.s32.totalorder %s28, 1
      %p153 = scmp.ne.s32.totalorder %s148, %s150
      %p154 = scmp.eq.s32.totalorder %s28, 0
      %p155 = por %p153, %p154
      %p156 = scmp.ne.s32.totalorder %s148, %s150
      %p157 = scmp.eq.s32.totalorder %s33, 1
      %p158 = por %p156, %p157
      %p159 = scmp.ne.s32.totalorder %s150, %s151
      %p160 = scmp.eq.s32.totalorder %s33, 0
      %p161 = por %p159, %p160
      %p162 = scmp.ne.s32.totalorder %s150, %s151
      %p163 = scmp.eq.s32.totalorder %s34, 1
      %p164 = por %p162, %p163
      %p166 = scmp.ne.s32.totalorder %s151, %s165
      %p167 = scmp.eq.s32.totalorder %s34, 0
      %p168 = por %p166, %p167
      %s170 = sadd.s32 %s169, 1
      %p173 = scmp.eq.s32.totalorder %s28, 1
      %p174 = scmp.ne.s32.totalorder %s169, %s171
      %p175 = scmp.eq.s32.totalorder %s28, 0
      %p176 = por %p174, %p175
      %p177 = scmp.ne.s32.totalorder %s169, %s171
      %p178 = scmp.eq.s32.totalorder %s33, 1
      %p179 = por %p177, %p178
      %p180 = scmp.ne.s32.totalorder %s171, %s172
      %p181 = scmp.eq.s32.totalorder %s33, 0
      %p182 = por %p180, %p181
      %p183 = scmp.ne.s32.totalorder %s171, %s172
      %p184 = scmp.eq.s32.totalorder %s34, 1
      %p185 = por %p183, %p184
      %p187 = scmp.ne.s32.totalorder %s172, %s186
      %p188 = scmp.eq.s32.totalorder %s34, 0
      %p189 = por %p187, %p188
      %s191 = sadd.s32 %s190, 1
      %p194 = scmp.eq.s32.totalorder %s28, 1
      %p195 = scmp.ne.s32.totalorder %s190, %s192
      %p196 = scmp.eq.s32.totalorder %s28, 0
      %p197 = por %p195, %p196
      %p198 = scmp.ne.s32.totalorder %s190, %s192
      %p199 = scmp.eq.s32.totalorder %s33, 1
      %p200 = por %p198, %p199
      %p201 = scmp.ne.s32.totalorder %s192, %s193
      %p202 = scmp.eq.s32.totalorder %s33, 0
      %p203 = por %p201, %p202
      %p204 = scmp.ne.s32.totalorder %s192, %s193
      %p205 = scmp.eq.s32.totalorder %s34, 1
      %p206 = por %p204, %p205
      %p208 = scmp.ne.s32.totalorder %s193, %s207
      %p209 = scmp.eq.s32.totalorder %s34, 0
      %p210 = por %p208, %p209
      %s212 = sadd.s32 %s211, 1
      %p215 = scmp.eq.s32.totalorder %s28, 1
      %p216 = scmp.ne.s32.totalorder %s211, %s213
      %p217 = scmp.eq.s32.totalorder %s28, 0
      %p218 = por %p216, %p217
      %p219 = scmp.ne.s32.totalorder %s211, %s213
      %p220 = scmp.eq.s32.totalorder %s33, 1
      %p221 = por %p219, %p220
      %p222 = scmp.ne.s32.totalorder %s213, %s214
      %p223 = scmp.eq.s32.totalorder %s33, 0
      %p224 = por %p222, %p223
      %p225 = scmp.ne.s32.totalorder %s213, %s214
      %p226 = scmp.eq.s32.totalorder %s34, 1
      %p227 = por %p225, %p226
      %p229 = scmp.ne.s32.totalorder %s214, %s228
      %p230 = scmp.eq.s32.totalorder %s34, 0
      %p231 = por %p229, %p230
      %s233 = sadd.s32 %s232, 1
      %p236 = scmp.eq.s32.totalorder %s28, 1
      %p237 = scmp.ne.s32.totalorder %s232, %s234
      %p238 = scmp.eq.s32.totalorder %s28, 0
      %p239 = por %p237, %p238
      %p240 = scmp.ne.s32.totalorder %s232, %s234
      %p241 = scmp.eq.s32.totalorder %s33, 1
      %p242 = por %p240, %p241
      %p243 = scmp.ne.s32.totalorder %s234, %s235
      %p244 = scmp.eq.s32.totalorder %s33, 0
      %p245 = por %p243, %p244
      %p246 = scmp.ne.s32.totalorder %s234, %s235
      %p247 = scmp.eq.s32.totalorder %s34, 1
      %p248 = por %p246, %p247
      %p250 = scmp.ne.s32.totalorder %s235, %s249
      %p251 = scmp.eq.s32.totalorder %s34, 0
      %p252 = por %p250, %p251
      %s254 = sadd.s32 %s253, 1
      %p257 = scmp.eq.s32.totalorder %s28, 1
      %p258 = scmp.ne.s32.totalorder %s253, %s255
      %p259 = scmp.eq.s32.totalorder %s28, 0
      %p260 = por %p258, %p259
      %p261 = scmp.ne.s32.totalorder %s253, %s255
      %p262 = scmp.eq.s32.totalorder %s33, 1
      %p263 = por %p261, %p262
      %p264 = scmp.ne.s32.totalorder %s255, %s256
      %p265 = scmp.eq.s32.totalorder %s33, 0
      %p266 = por %p264, %p265
      %p267 = scmp.ne.s32.totalorder %s255, %s256
      %p268 = scmp.eq.s32.totalorder %s34, 1
      %p269 = por %p267, %p268
      %p271 = scmp.ne.s32.totalorder %s256, %s270
      %p272 = scmp.eq.s32.totalorder %s34, 0
      %p273 = por %p271, %p272
      %s275 = sadd.s32 %s274, 1
      %p278 = scmp.eq.s32.totalorder %s28, 1
      %p279 = scmp.ne.s32.totalorder %s274, %s276
      %p280 = scmp.eq.s32.totalorder %s28, 0
      %p281 = por %p279, %p280
      %p282 = scmp.ne.s32.totalorder %s274, %s276
      %p283 = scmp.eq.s32.totalorder %s33, 1
      %p284 = por %p282, %p283
      %p285 = scmp.ne.s32.totalorder %s276, %s277
      %p286 = scmp.eq.s32.totalorder %s33, 0
      %p287 = por %p285, %p286
      %p288 = scmp.ne.s32.totalorder %s276, %s277
      %p289 = scmp.eq.s32.totalorder %s34, 1
      %p290 = por %p288, %p289
      %p292 = scmp.ne.s32.totalorder %s277, %s291
      %p293 = scmp.eq.s32.totalorder %s34, 0
      %p294 = por %p292, %p293
      %s296 = sadd.s32 %s295, 1
      %p299 = scmp.eq.s32.totalorder %s28, 1
      %p300 = scmp.ne.s32.totalorder %s295, %s297
      %p301 = scmp.eq.s32.totalorder %s28, 0
      %p302 = por %p300, %p301
      %p303 = scmp.ne.s32.totalorder %s295, %s297
      %p304 = scmp.eq.s32.totalorder %s33, 1
      %p305 = por %p303, %p304
      %p306 = scmp.ne.s32.totalorder %s297, %s298
      %p307 = scmp.eq.s32.totalorder %s33, 0
      %p308 = por %p306, %p307
      %p309 = scmp.ne.s32.totalorder %s297, %s298
      %p310 = scmp.eq.s32.totalorder %s34, 1
      %p311 = por %p309, %p310
      %p313 = scmp.ne.s32.totalorder %s298, %s312
      %p314 = scmp.eq.s32.totalorder %s34, 0
      %p315 = por %p313, %p314
      %s317 = sadd.s32 %s316, 1
      %p320 = scmp.eq.s32.totalorder %s28, 1
      %p321 = scmp.ne.s32.totalorder %s316, %s318
      %p322 = scmp.eq.s32.totalorder %s28, 0
      %p323 = por %p321, %p322
      %p324 = scmp.ne.s32.totalorder %s316, %s318
      %p325 = scmp.eq.s32.totalorder %s33, 1
      %p326 = por %p324, %p325
      %p327 = scmp.ne.s32.totalorder %s318, %s319
      %p328 = scmp.eq.s32.totalorder %s33, 0
      %p329 = por %p327, %p328
      %p330 = scmp.ne.s32.totalorder %s318, %s319
      %p331 = scmp.eq.s32.totalorder %s34, 1
      %p332 = por %p330, %p331
      %p334 = scmp.ne.s32.totalorder %s319, %s333
      %p335 = scmp.eq.s32.totalorder %s34, 0
      %p336 = por %p334, %p335
      %s337 = ssub.s32 %s35, %s47
      %s338 = ssub.s32 %s36, %s43
      %s339 = sor.u32 %s337, %s338
      %p340 = scmp.eq.s32.totalorder %s339, 0
      %s342 = sadd.s32 %s341, 1
      %s343 = scalar_select %p340, %s341, %s342
      %p346 = pneg %p340
      %p347 = scmp.eq.s32.totalorder %s28, 1
      %p348 = por %p346, %p347
      %p349 = scmp.ne.s32.totalorder %s341, %s344
      %p350 = scmp.eq.s32.totalorder %s28, 0
      %p351 = por %p349, %p350
      %p352 = scmp.ne.s32.totalorder %s341, %s344
      %p353 = scmp.eq.s32.totalorder %s33, 1
      %p354 = por %p352, %p353
      %p355 = scmp.ne.s32.totalorder %s344, %s345
      %p356 = scmp.eq.s32.totalorder %s33, 0
      %p357 = por %p355, %p356
      %p358 = scmp.ne.s32.totalorder %s344, %s345
      %p359 = scmp.eq.s32.totalorder %s34, 1
      %p360 = por %p358, %p359
      %p362 = scmp.ne.s32.totalorder %s345, %s361
      %p363 = scmp.eq.s32.totalorder %s34, 0
      %p364 = por %p362, %p363
      %p365 = scmp.le.s32.totalorder 1, %s28
      %p366 = scmp.lt.s32.totalorder %s28, 3
      %p367 = pnand %p365, %p366
      %p368 = pneg %p367
      // Predicated region
      $region9: #{tpu_custom_call.1} parent=5 // pred_check
        _
      $region10: #{tpu_custom_call.1} parent=5 // pred_check_branch
        %370 = sbr.rel (%p367) target = $region12
      $region11: #{tpu_custom_call.1} parent=5 // pred_region
        %s371 = ssub.s32 %s28, 1
        // Predicated region
        $region13: #{tpu_custom_call.1} parent=11 // pred_check
          %p372 = pneg %p161
        $region14: #{tpu_custom_call.1} parent=11 // pred_check_branch
          %374 = sbr.rel (%p372) target = $region16
        $region15: #{tpu_custom_call.1} parent=11 // pred_region
          _
        $region16: #{tpu_custom_call.1} parent=11 // pred_fallthru
          _
        // Predicated region
        $region17: #{tpu_custom_call.1} parent=11 // pred_check
          %p375 = pneg %p182
        $region18: #{tpu_custom_call.1} parent=11 // pred_check_branch
          %377 = sbr.rel (%p375) target = $region20
        $region19: #{tpu_custom_call.1} parent=11 // pred_region
          %379 = vsyncadd [#allocation9], 0
          %s380 = sshll.u32 %s4, 4
          %s381 = int_to_ptr.hbm [resolvable:$true] %s380
          %s382 = sshll.u32 [#allocation8], 4
          %s383 = int_to_ptr.vmem [resolvable:$true] %s382
          %388 = dma.hbm_to_vmem [thread:$0]  %s381, 4608, %s383, [#allocation9], 64, 64, 4
        $region20: #{tpu_custom_call.1} parent=11 // pred_fallthru
          _
        // Predicated region
        $region21: #{tpu_custom_call.1} parent=11 // pred_check
          %p389 = pneg %p203
        $region22: #{tpu_custom_call.1} parent=11 // pred_check_branch
          %391 = sbr.rel (%p389) target = $region24
        $region23: #{tpu_custom_call.1} parent=11 // pred_region
          _
        $region24: #{tpu_custom_call.1} parent=11 // pred_fallthru
          _
        // Predicated region
        $region25: #{tpu_custom_call.1} parent=11 // pred_check
          %p392 = pneg %p224
        $region26: #{tpu_custom_call.1} parent=11 // pred_check_branch
          %394 = sbr.rel (%p392) target = $region28
        $region27: #{tpu_custom_call.1} parent=11 // pred_region
          _
        $region28: #{tpu_custom_call.1} parent=11 // pred_fallthru
          _
        // Predicated region
        $region29: #{tpu_custom_call.1} parent=11 // pred_check
          %p395 = pneg %p245
        $region30: #{tpu_custom_call.1} parent=11 // pred_check_branch
          %397 = sbr.rel (%p395) target = $region32
        $region31: #{tpu_custom_call.1} parent=11 // pred_region
          _
        $region32: #{tpu_custom_call.1} parent=11 // pred_fallthru
          _
        // Predicated region
        $region33: #{tpu_custom_call.1} parent=11 // pred_check
          %p398 = pneg %p266
        $region34: #{tpu_custom_call.1} parent=11 // pred_check_branch
          %400 = sbr.rel (%p398) target = $region36
        $region35: #{tpu_custom_call.1} parent=11 // pred_region
          _
        $region36: #{tpu_custom_call.1} parent=11 // pred_fallthru
          _
        // Predicated region
        $region37: #{tpu_custom_call.1} parent=11 // pred_check
          %p401 = pneg %p287
        $region38: #{tpu_custom_call.1} parent=11 // pred_check_branch
          %403 = sbr.rel (%p401) target = $region40
        $region39: #{tpu_custom_call.1} parent=11 // pred_region
          _
        $region40: #{tpu_custom_call.1} parent=11 // pred_fallthru
          _
        // Predicated region
        $region41: #{tpu_custom_call.1} parent=11 // pred_check
          %p404 = pneg %p308
        $region42: #{tpu_custom_call.1} parent=11 // pred_check_branch
          %406 = sbr.rel (%p404) target = $region44
        $region43: #{tpu_custom_call.1} parent=11 // pred_region
          _
        $region44: #{tpu_custom_call.1} parent=11 // pred_fallthru
          _
        // Predicated region
        $region45: #{tpu_custom_call.1} parent=11 // pred_check
          %p407 = pneg %p329
        $region46: #{tpu_custom_call.1} parent=11 // pred_check_branch
          %409 = sbr.rel (%p407) target = $region48
        $region47: #{tpu_custom_call.1} parent=11 // pred_region
          _
        $region48: #{tpu_custom_call.1} parent=11 // pred_fallthru
          _
      $region12: #{tpu_custom_call.1} parent=5 // pred_fallthru
        _
      %p410 = scmp.lt.s32.totalorder %s28, 2
      // Predicated region
      $region49: #{tpu_custom_call.1} parent=5 // pred_check
        %p411 = pneg %p410
      $region50: #{tpu_custom_call.1} parent=5 // pred_check_branch
        %413 = sbr.rel (%p411) target = $region52
      $region51: #{tpu_custom_call.1} parent=5 // pred_region
        // Predicated region
        $region53: #{tpu_custom_call.1} parent=51 // pred_check
          %p414 = pneg %p70
        $region54: #{tpu_custom_call.1} parent=51 // pred_check_branch
          %416 = sbr.rel (%p414) target = $region56
        $region55: #{tpu_custom_call.1} parent=51 // pred_region
          %s417 = sand.u32 %s60, 1
          %s418 = scalar_lea.sflag [#allocation3], %s417
          %s419 = sand.u32 %s60, 1
          %s420 = smul.addr %s419, 16
          %s421 = scalar_lea.vmem [#allocation2], %s420
          %s422 = smul.u32 %s36, 16
          %s423 = ssub.s32 %s422, 1
          %p424 = scmp.gt.s32.totalorder %s423, 0
          %s425 = scalar_select %p424, %s423, 0
          %427 = vsyncadd %s418, 0
          %s428 = smul.addr %s425, 4
          %s429 = smul.addr %s35, 64
          %s430 = sadd.s32 %s428, %s429
          %s431 = smul.addr %s430, 4
          %s432 = scalar_lea.hbm %s0, %s431
          %s433 = sshll.u32 %s432, 4
          %s434 = int_to_ptr.hbm [resolvable:$true] %s433
          %s435 = sshll.u32 %s421, 4
          %s436 = int_to_ptr.vmem [resolvable:$true] %s435
          %441 = dma.hbm_to_vmem [thread:$0]  %s434, 256, %s436, %s418, 128, 128, 8
        $region56: #{tpu_custom_call.1} parent=51 // pred_fallthru
          _
        // Predicated region
        $region57: #{tpu_custom_call.1} parent=51 // pred_check
          %p442 = pneg %p98
        $region58: #{tpu_custom_call.1} parent=51 // pred_check_branch
          %444 = sbr.rel (%p442) target = $region60
        $region59: #{tpu_custom_call.1} parent=51 // pred_region
          %s445 = sand.u32 %s28, 1
          %s446 = scalar_lea.sflag [#allocation6], %s445
          %s447 = sand.u32 %s88, 1
          %s448 = smul.addr %s447, 256
          %s449 = scalar_lea.vmem [#allocation5], %s448
          %s450 = smul.u32 16, %s36
          %452 = vsyncadd %s446, 0
          %s453 = smul.addr %s450, 4
          %s454 = smul.addr %s35, 64
          %s455 = sadd.s32 %s453, %s454
          %s456 = smul.addr %s455, 4
          %s457 = scalar_lea.hbm %s1, %s456
          %s458 = sshll.u32 %s457, 4
          %s459 = int_to_ptr.hbm [resolvable:$true] %s458
          %s460 = sshll.u32 %s449, 4
          %s461 = int_to_ptr.vmem [resolvable:$true] %s460
          %466 = dma.hbm_to_vmem [thread:$0]  %s459, 4096, %s461, %s446, 128, 128, 8
        $region60: #{tpu_custom_call.1} parent=51 // pred_fallthru
          _
        // Predicated region
        $region61: #{tpu_custom_call.1} parent=51 // pred_check
          %p467 = pneg %p134
        $region62: #{tpu_custom_call.1} parent=51 // pred_check_branch
          %469 = sbr.rel (%p467) target = $region64
        $region63: #{tpu_custom_call.1} parent=51 // pred_region
          %s470 = sand.u32 %s28, 1
          %s471 = scalar_lea.sflag [#allocation6], %s470
          %s472 = sand.u32 %s124, 1
          %s473 = smul.addr %s472, 16
          %s474 = scalar_lea.vmem [#allocation7], %s473
          %s475 = sadd.s32 %s36, 1
          %s476 = smul.u32 %s475, 16
          %p477 = scmp.lt.s32.totalorder %s476, 15
          %s478 = scalar_select %p477, %s476, 15
          %480 = vsyncadd %s471, 0
          %s481 = smul.addr %s478, 4
          %s482 = smul.addr %s35, 64
          %s483 = sadd.s32 %s481, %s482
          %s484 = smul.addr %s483, 4
          %s485 = scalar_lea.hbm %s2, %s484
          %s486 = sshll.u32 %s485, 4
          %s487 = int_to_ptr.hbm [resolvable:$true] %s486
          %s488 = sshll.u32 %s474, 4
          %s489 = int_to_ptr.vmem [resolvable:$true] %s488
          %494 = dma.hbm_to_vmem [thread:$0]  %s487, 256, %s489, %s471, 128, 128, 8
        $region64: #{tpu_custom_call.1} parent=51 // pred_fallthru
          _
      $region52: #{tpu_custom_call.1} parent=5 // pred_fallthru
        _
      %p495 = scmp.le.s32.totalorder 1, %s28
      %p496 = scmp.lt.s32.totalorder %s28, 3
      %p497 = pnand %p495, %p496
      %p498 = pneg %p497
      // Predicated region
      $region65: #{tpu_custom_call.1} parent=5 // pred_check
        _
      $region66: #{tpu_custom_call.1} parent=5 // pred_check_branch
        %500 = sbr.rel (%p497) target = $region68
      $region67: #{tpu_custom_call.1} parent=5 // pred_region
        %s501 = ssub.s32 %s28, 1
        %s502 = sand.u32 %s63, 1
        %s503 = scalar_lea.sflag [#allocation3], %s502
        %s504 = sand.u32 %s63, 1
        %s505 = smul.addr %s504, 16
        %s506 = scalar_lea.vmem [#allocation2], %s505
        // Predicated region
        $region69: #{tpu_custom_call.1} parent=67 // pred_check
          %p507 = pneg %p76
        $region70: #{tpu_custom_call.1} parent=67 // pred_check_branch
          %509 = sbr.rel (%p507) target = $region72
        $region71: #{tpu_custom_call.1} parent=67 // pred_region
          %511 = dma.done %s503, 256
        $region72: #{tpu_custom_call.1} parent=67 // pred_fallthru
          _
        %s512 = sand.u32 %s33, 1
        %s513 = scalar_lea.sflag [#allocation6], %s512
        %s514 = sand.u32 %s91, 1
        %s515 = smul.addr %s514, 256
        %s516 = scalar_lea.vmem [#allocation5], %s515
        // Predicated region
        $region73: #{tpu_custom_call.1} parent=67 // pred_check
          %p517 = pneg %p104
        $region74: #{tpu_custom_call.1} parent=67 // pred_check_branch
          %519 = sbr.rel (%p517) target = $region76
        $region75: #{tpu_custom_call.1} parent=67 // pred_region
          %521 = dma.done %s513, 4096
        $region76: #{tpu_custom_call.1} parent=67 // pred_fallthru
          _
        %s522 = sand.u32 %s33, 1
        %s523 = scalar_lea.sflag [#allocation6], %s522
        %s524 = sand.u32 %s127, 1
        %s525 = smul.addr %s524, 16
        %s526 = scalar_lea.vmem [#allocation7], %s525
        // Predicated region
        $region77: #{tpu_custom_call.1} parent=67 // pred_check
          %p527 = pneg %p140
        $region78: #{tpu_custom_call.1} parent=67 // pred_check_branch
          %529 = sbr.rel (%p527) target = $region80
        $region79: #{tpu_custom_call.1} parent=67 // pred_region
          %531 = dma.done %s523, 256
        $region80: #{tpu_custom_call.1} parent=67 // pred_fallthru
          _
        // Predicated region
        $region81: #{tpu_custom_call.1} parent=67 // pred_check
          %p532 = pneg %p182
        $region82: #{tpu_custom_call.1} parent=67 // pred_check_branch
          %534 = sbr.rel (%p532) target = $region84
        $region83: #{tpu_custom_call.1} parent=67 // pred_region
          %536 = dma.done [#allocation9], 4608
        $region84: #{tpu_custom_call.1} parent=67 // pred_fallthru
          _
        %s537 = sand.u32 %s63, 1
        %s538 = scalar_lea.sflag [#allocation3], %s537
        %s539 = sand.u32 %s63, 1
        %s540 = smul.addr %s539, 16
        %s541 = scalar_lea.vmem [#allocation2], %s540
        %p542 = pneg %p76
        %p543 = pneg %p73
        %s544 = sand.u32 %s33, 1
        %s545 = scalar_lea.sflag [#allocation6], %s544
        %s546 = sand.u32 %s91, 1
        %s547 = smul.addr %s546, 256
        %s548 = scalar_lea.vmem [#allocation5], %s547
        %p549 = pneg %p104
        %p550 = pneg %p101
        %s551 = sand.u32 %s33, 1
        %s552 = scalar_lea.sflag [#allocation6], %s551
        %s553 = sand.u32 %s127, 1
        %s554 = smul.addr %s553, 16
        %s555 = scalar_lea.vmem [#allocation7], %s554
        %p556 = pneg %p140
        %p557 = pneg %p137
        %p558 = pneg %p161
        %p559 = pneg %p158
        %p560 = pneg %p182
        %p561 = pneg %p179
        %p562 = pneg %p203
        %p563 = pneg %p200
        %p564 = pneg %p224
        %p565 = pneg %p221
        %p566 = pneg %p245
        %p567 = pneg %p242
        %p568 = pneg %p266
        %p569 = pneg %p263
        %p570 = pneg %p287
        %p571 = pneg %p284
        %p572 = pneg %p308
        %p573 = pneg %p305
        %p574 = pneg %p329
        %p575 = pneg %p326
        %p576 = pneg %p357
        %p577 = pneg %p354
        %s578 = sand.u32 %s344, 1
        %s579 = scalar_lea.sflag [#allocation4], %s578
        %s580 = sand.u32 %s344, 1
        %s581 = smul.addr %s580, 256
        %s582 = scalar_lea.vmem [#allocation10], %s581
        %s583 = smul.u32 %s38, 16
        %s584 = ssub.s32 %s583, 1
        %p585 = scmp.gt.s32.totalorder %s584, 0
        %s586 = scalar_select %p585, %s584, 0
        %s587 = smul.u32 16, %s38
        %s588 = sadd.s32 %s38, 1
        %s589 = smul.u32 %s588, 16
        %p590 = scmp.lt.s32.totalorder %s589, 15
        %s591 = scalar_select %p590, %s589, 15
        %s592 = smul.u32 16, %s38
        %v596 = vld [vmem:[%s506] sm:$0xff]
        %v597 = vld [vmem:[%s506 + $0x8] sm:$0xff]
        %v598 = vld [vmem:[%s516] sm:$0xff]
        %v599 = vld [vmem:[%s516 + $0x8] sm:$0xff]
        %v600 = vld [vmem:[%s516 + $0x10] sm:$0xff]
        %v601 = vld [vmem:[%s516 + $0x18] sm:$0xff]
        %v602 = vld [vmem:[%s516 + $0x20] sm:$0xff]
        %v603 = vld [vmem:[%s516 + $0x28] sm:$0xff]
        %v604 = vld [vmem:[%s516 + $0x30] sm:$0xff]
        %v605 = vld [vmem:[%s516 + $0x38] sm:$0xff]
        %v606 = vld [vmem:[%s516 + $0x40] sm:$0xff]
        %v607 = vld [vmem:[%s516 + $0x48] sm:$0xff]
        %v608 = vld [vmem:[%s516 + $0x50] sm:$0xff]
        %v609 = vld [vmem:[%s516 + $0x58] sm:$0xff]
        %v610 = vld [vmem:[%s516 + $0x60] sm:$0xff]
        %v611 = vld [vmem:[%s516 + $0x68] sm:$0xff]
        %v612 = vld [vmem:[%s516 + $0x70] sm:$0xff]
        %v613 = vld [vmem:[%s516 + $0x78] sm:$0xff]
        %v614 = vld [vmem:[%s516 + $0x80] sm:$0xff]
        %v615 = vld [vmem:[%s516 + $0x88] sm:$0xff]
        %v616 = vld [vmem:[%s516 + $0x90] sm:$0xff]
        %v617 = vld [vmem:[%s516 + $0x98] sm:$0xff]
        %v618 = vld [vmem:[%s516 + $0xa0] sm:$0xff]
        %v619 = vld [vmem:[%s516 + $0xa8] sm:$0xff]
        %v620 = vld [vmem:[%s516 + $0xb0] sm:$0xff]
        %v621 = vld [vmem:[%s516 + $0xb8] sm:$0xff]
        %v622 = vld [vmem:[%s516 + $0xc0] sm:$0xff]
        %v623 = vld [vmem:[%s516 + $0xc8] sm:$0xff]
        %v624 = vld [vmem:[%s516 + $0xd0] sm:$0xff]
        %v625 = vld [vmem:[%s516 + $0xd8] sm:$0xff]
        %v626 = vld [vmem:[%s516 + $0xe0] sm:$0xff]
        %v627 = vld [vmem:[%s516 + $0xe8] sm:$0xff]
        %v628 = vld [vmem:[%s516 + $0xf0] sm:$0xff]
        %v629 = vld [vmem:[%s516 + $0xf8] sm:$0xff]
        %v630 = vld [vmem:[%s526] sm:$0xff]
        %v631 = vld [vmem:[%s526 + $0x8] sm:$0xff]
        %v632 = vld [vmem:[%s3] sm:$0xf]
        %v633 = vld [vmem:[%s3 + $0x4] sm:$0xf]
        %v634 = vld [vmem:[%s3 + $0x8] sm:$0xf]
        %v635 = vld [vmem:[%s3 + $0xc] sm:$0xf]
        %v636 = vld [vmem:[%s3 + $0x10] sm:$0xf]
        %v637 = vld [vmem:[%s3 + $0x14] sm:$0xf]
        %v638 = vld [vmem:[%s3 + $0x18] sm:$0xf]
        %v639 = vld [vmem:[%s3 + $0x1c] sm:$0xf]
        %v640 = vld [vmem:[%s3 + $0x20] sm:$0xf]
        %v641 = vld [vmem:[%s3 + $0x24] sm:$0xf]
        %v642 = vld [vmem:[%s3 + $0x28] sm:$0xf]
        %v643 = vld [vmem:[%s3 + $0x2c] sm:$0xf]
        %v644 = vld [vmem:[%s3 + $0x30] sm:$0xf]
        %v645 = vld [vmem:[%s3 + $0x34] sm:$0xf]
        %v646 = vld [vmem:[%s3 + $0x38] sm:$0xf]
        %v647 = vld [vmem:[%s3 + $0x3c] sm:$0xf]
        %v648 = vld [vmem:[%s3 + $0x40] sm:$0xf]
        %v649 = vld [vmem:[%s3 + $0x44] sm:$0xf]
        %v650 = vld [vmem:[%s3 + $0x48] sm:$0xf]
        %v651 = vld [vmem:[%s3 + $0x4c] sm:$0xf]
        %v652 = vld [vmem:[%s3 + $0x50] sm:$0xf]
        %v653 = vld [vmem:[%s3 + $0x54] sm:$0xf]
        %v654 = vld [vmem:[%s3 + $0x58] sm:$0xf]
        %v655 = vld [vmem:[%s3 + $0x5c] sm:$0xf]
        %v656 = vld [vmem:[%s3 + $0x60] sm:$0xf]
        %v657 = vld [vmem:[%s3 + $0x64] sm:$0xf]
        %v658 = vld [vmem:[%s3 + $0x68] sm:$0xf]
        %v659 = vld [vmem:[%s3 + $0x6c] sm:$0xf]
        %v660 = vld [vmem:[%s3 + $0x70] sm:$0xf]
        %v661 = vld [vmem:[%s3 + $0x74] sm:$0xf]
        %v662 = vld [vmem:[%s3 + $0x78] sm:$0xf]
        %v663 = vld [vmem:[%s3 + $0x7c] sm:$0xf]
        %v700 = vunpack.c.l.b16 %v596
        %v701 = vunpack.c.h.b16 %v596
        %v702 = vunpack.c.l.b16 %v597
        %v703 = vunpack.c.h.b16 %v597
        %v704 = vunpack.c.l.b16 %v598
        %v705 = vunpack.c.h.b16 %v598
        %v706 = vunpack.c.l.b16 %v599
        %v707 = vunpack.c.h.b16 %v599
        %v708 = vunpack.c.l.b16 %v600
        %v709 = vunpack.c.h.b16 %v600
        %v710 = vunpack.c.l.b16 %v601
        %v711 = vunpack.c.h.b16 %v601
        %v712 = vunpack.c.l.b16 %v602
        %v713 = vunpack.c.h.b16 %v602
        %v714 = vunpack.c.l.b16 %v603
        %v715 = vunpack.c.h.b16 %v603
        %v716 = vunpack.c.l.b16 %v604
        %v717 = vunpack.c.h.b16 %v604
        %v718 = vunpack.c.l.b16 %v605
        %v719 = vunpack.c.h.b16 %v605
        %v720 = vunpack.c.l.b16 %v606
        %v721 = vunpack.c.h.b16 %v606
        %v722 = vunpack.c.l.b16 %v607
        %v723 = vunpack.c.h.b16 %v607
        %v724 = vunpack.c.l.b16 %v608
        %v725 = vunpack.c.h.b16 %v608
        %v726 = vunpack.c.l.b16 %v609
        %v727 = vunpack.c.h.b16 %v609
        %v728 = vunpack.c.l.b16 %v610
        %v729 = vunpack.c.h.b16 %v610
        %v730 = vunpack.c.l.b16 %v611
        %v731 = vunpack.c.h.b16 %v611
        %v732 = vunpack.c.l.b16 %v612
        %v733 = vunpack.c.h.b16 %v612
        %v734 = vunpack.c.l.b16 %v613
        %v735 = vunpack.c.h.b16 %v613
        %v736 = vunpack.c.l.b16 %v614
        %v737 = vunpack.c.h.b16 %v614
        %v738 = vunpack.c.l.b16 %v615
        %v739 = vunpack.c.h.b16 %v615
        %v740 = vunpack.c.l.b16 %v616
        %v741 = vunpack.c.h.b16 %v616
        %v742 = vunpack.c.l.b16 %v617
        %v743 = vunpack.c.h.b16 %v617
        %v744 = vunpack.c.l.b16 %v618
        %v745 = vunpack.c.h.b16 %v618
        %v746 = vunpack.c.l.b16 %v619
        %v747 = vunpack.c.h.b16 %v619
        %v748 = vunpack.c.l.b16 %v620
        %v749 = vunpack.c.h.b16 %v620
        %v750 = vunpack.c.l.b16 %v621
        %v751 = vunpack.c.h.b16 %v621
        %v752 = vunpack.c.l.b16 %v622
        %v753 = vunpack.c.h.b16 %v622
        %v754 = vunpack.c.l.b16 %v623
        %v755 = vunpack.c.h.b16 %v623
        %v756 = vunpack.c.l.b16 %v624
        %v757 = vunpack.c.h.b16 %v624
        %v758 = vunpack.c.l.b16 %v625
        %v759 = vunpack.c.h.b16 %v625
        %v760 = vunpack.c.l.b16 %v626
        %v761 = vunpack.c.h.b16 %v626
        %v762 = vunpack.c.l.b16 %v627
        %v763 = vunpack.c.h.b16 %v627
        %v764 = vunpack.c.l.b16 %v628
        %v765 = vunpack.c.h.b16 %v628
        %v766 = vunpack.c.l.b16 %v629
        %v767 = vunpack.c.h.b16 %v629
        %v768 = vunpack.c.l.b16 %v630
        %v769 = vunpack.c.h.b16 %v630
        %v770 = vunpack.c.l.b16 %v631
        %v771 = vunpack.c.h.b16 %v631
        %v772 = vpack.c.b16 %v702, %v700
        %v773 = vpack.c.b16 %v703, %v701
        %v774 = vpack.c.b16 %v706, %v704
        %v775 = vpack.c.b16 %v707, %v705
        %v776 = vpack.c.b16 %v710, %v708
        %v777 = vpack.c.b16 %v711, %v709
        %v778 = vpack.c.b16 %v714, %v712
        %v779 = vpack.c.b16 %v715, %v713
        %v780 = vpack.c.b16 %v718, %v716
        %v781 = vpack.c.b16 %v719, %v717
        %v782 = vpack.c.b16 %v722, %v720
        %v783 = vpack.c.b16 %v723, %v721
        %v784 = vpack.c.b16 %v726, %v724
        %v785 = vpack.c.b16 %v727, %v725
        %v786 = vpack.c.b16 %v730, %v728
        %v787 = vpack.c.b16 %v731, %v729
        %v788 = vpack.c.b16 %v734, %v732
        %v789 = vpack.c.b16 %v735, %v733
        %v790 = vpack.c.b16 %v738, %v736
        %v791 = vpack.c.b16 %v739, %v737
        %v792 = vpack.c.b16 %v742, %v740
        %v793 = vpack.c.b16 %v743, %v741
        %v794 = vpack.c.b16 %v746, %v744
        %v795 = vpack.c.b16 %v747, %v745
        %v796 = vpack.c.b16 %v750, %v748
        %v797 = vpack.c.b16 %v751, %v749
        %v798 = vpack.c.b16 %v754, %v752
        %v799 = vpack.c.b16 %v755, %v753
        %v800 = vpack.c.b16 %v758, %v756
        %v801 = vpack.c.b16 %v759, %v757
        %v802 = vpack.c.b16 %v762, %v760
        %v803 = vpack.c.b16 %v763, %v761
        %v804 = vpack.c.b16 %v766, %v764
        %v805 = vpack.c.b16 %v767, %v765
        %v806 = vpack.c.b16 %v770, %v768
        %v807 = vpack.c.b16 %v771, %v769
        %v876 = vunpack.c.l.b16 %v632
        %v877 = vunpack.c.l.b16 %v633
        %v878 = vunpack.c.l.b16 %v634
        %v879 = vunpack.c.l.b16 %v635
        %v880 = vunpack.c.l.b16 %v636
        %v881 = vunpack.c.l.b16 %v637
        %v882 = vunpack.c.l.b16 %v638
        %v883 = vunpack.c.l.b16 %v639
        %v884 = vunpack.c.l.b16 %v640
        %v885 = vunpack.c.l.b16 %v641
        %v886 = vunpack.c.l.b16 %v642
        %v887 = vunpack.c.l.b16 %v643
        %v888 = vunpack.c.l.b16 %v644
        %v889 = vunpack.c.l.b16 %v645
        %v890 = vunpack.c.l.b16 %v646
        %v891 = vunpack.c.l.b16 %v647
        %v892 = vunpack.c.l.b16 %v648
        %v893 = vunpack.c.l.b16 %v649
        %v894 = vunpack.c.l.b16 %v650
        %v895 = vunpack.c.l.b16 %v651
        %v896 = vunpack.c.l.b16 %v652
        %v897 = vunpack.c.l.b16 %v653
        %v898 = vunpack.c.l.b16 %v654
        %v899 = vunpack.c.l.b16 %v655
        %v900 = vunpack.c.l.b16 %v656
        %v901 = vunpack.c.l.b16 %v657
        %v902 = vunpack.c.l.b16 %v658
        %v903 = vunpack.c.l.b16 %v659
        %v904 = vunpack.c.l.b16 %v660
        %v905 = vunpack.c.l.b16 %v661
        %v906 = vunpack.c.l.b16 %v662
        %v907 = vunpack.c.l.b16 %v663
        %v908 = vpack.c.b16 %v877, %v876
        %v909 = vpack.c.b16 %v879, %v878
        %v910 = vpack.c.b16 %v881, %v880
        %v911 = vpack.c.b16 %v883, %v882
        %v912 = vpack.c.b16 %v885, %v884
        %v913 = vpack.c.b16 %v887, %v886
        %v914 = vpack.c.b16 %v889, %v888
        %v915 = vpack.c.b16 %v891, %v890
        %v916 = vpack.c.b16 %v893, %v892
        %v917 = vpack.c.b16 %v895, %v894
        %v918 = vpack.c.b16 %v897, %v896
        %v919 = vpack.c.b16 %v899, %v898
        %v920 = vpack.c.b16 %v901, %v900
        %v921 = vpack.c.b16 %v903, %v902
        %v922 = vpack.c.b16 %v905, %v904
        %v923 = vpack.c.b16 %v907, %v906
        %940 = vmatpush.bf16.msra.mxu0 %v915
        %941 = vmatpush.bf16.msra.mxu0 %v914
        %942 = vmatpush.bf16.msra.mxu0 %v913
        %943 = vmatpush.bf16.msra.mxu0 %v912
        %944 = vmatpush.bf16.msra.mxu0 %v911
        %945 = vmatpush.bf16.msra.mxu0 %v910
        %946 = vmatpush.bf16.msra.mxu0 %v909
        %947 = vmatpush.bf16.msra.mxu0 %v908
        %948 = vmatmul.bf16.gmra.mxu0 %v772
        %v949 = vpop.f32.mrf.mxu0
        %v950 = vadd.f32 0.0, %v949
        %v951 = vpop.f32.mrf.mxu0
        %v952 = vadd.f32 0.0, %v951
        %953 = vmatmul.bf16.gmra.mxu0 %v774
        %v954 = vpop.f32.mrf.mxu0
        %v955 = vadd.f32 0.0, %v954
        %v956 = vpop.f32.mrf.mxu0
        %v957 = vadd.f32 0.0, %v956
        %958 = vmatmul.bf16.gmra.mxu0 %v776
        %v959 = vpop.f32.mrf.mxu0
        %v960 = vadd.f32 0.0, %v959
        %v961 = vpop.f32.mrf.mxu0
        %v962 = vadd.f32 0.0, %v961
        %963 = vmatmul.bf16.gmra.mxu0 %v778
        %v964 = vpop.f32.mrf.mxu0
        %v965 = vadd.f32 0.0, %v964
        %v966 = vpop.f32.mrf.mxu0
        %v967 = vadd.f32 0.0, %v966
        %968 = vmatmul.bf16.gmra.mxu0 %v780
        %v969 = vpop.f32.mrf.mxu0
        %v970 = vadd.f32 0.0, %v969
        %v971 = vpop.f32.mrf.mxu0
        %v972 = vadd.f32 0.0, %v971
        %973 = vmatmul.bf16.gmra.mxu0 %v782
        %v974 = vpop.f32.mrf.mxu0
        %v975 = vadd.f32 0.0, %v974
        %v976 = vpop.f32.mrf.mxu0
        %v977 = vadd.f32 0.0, %v976
        %978 = vmatmul.bf16.gmra.mxu0 %v784
        %v979 = vpop.f32.mrf.mxu0
        %v980 = vadd.f32 0.0, %v979
        %v981 = vpop.f32.mrf.mxu0
        %v982 = vadd.f32 0.0, %v981
        %983 = vmatmul.bf16.gmra.mxu0 %v786
        %v984 = vpop.f32.mrf.mxu0
        %v985 = vadd.f32 0.0, %v984
        %v986 = vpop.f32.mrf.mxu0
        %v987 = vadd.f32 0.0, %v986
        %988 = vmatmul.bf16.gmra.mxu0 %v788
        %v989 = vpop.f32.mrf.mxu0
        %v990 = vadd.f32 0.0, %v989
        %v991 = vpop.f32.mrf.mxu0
        %v992 = vadd.f32 0.0, %v991
        %993 = vmatmul.bf16.gmra.mxu0 %v790
        %v994 = vpop.f32.mrf.mxu0
        %v995 = vadd.f32 0.0, %v994
        %v996 = vpop.f32.mrf.mxu0
        %v997 = vadd.f32 0.0, %v996
        %998 = vmatmul.bf16.gmra.mxu0 %v792
        %v999 = vpop.f32.mrf.mxu0
        %v1000 = vadd.f32 0.0, %v999
        %v1001 = vpop.f32.mrf.mxu0
        %v1002 = vadd.f32 0.0, %v1001
        %1003 = vmatmul.bf16.gmra.mxu0 %v794
        %v1004 = vpop.f32.mrf.mxu0
        %v1005 = vadd.f32 0.0, %v1004
        %v1006 = vpop.f32.mrf.mxu0
        %v1007 = vadd.f32 0.0, %v1006
        %1008 = vmatmul.bf16.gmra.mxu0 %v796
        %v1009 = vpop.f32.mrf.mxu0
        %v1010 = vadd.f32 0.0, %v1009
        %v1011 = vpop.f32.mrf.mxu0
        %v1012 = vadd.f32 0.0, %v1011
        %1013 = vmatmul.bf16.gmra.mxu0 %v798
        %v1014 = vpop.f32.mrf.mxu0
        %v1015 = vadd.f32 0.0, %v1014
        %v1016 = vpop.f32.mrf.mxu0
        %v1017 = vadd.f32 0.0, %v1016
        %1018 = vmatmul.bf16.gmra.mxu0 %v800
        %v1019 = vpop.f32.mrf.mxu0
        %v1020 = vadd.f32 0.0, %v1019
        %v1021 = vpop.f32.mrf.mxu0
        %v1022 = vadd.f32 0.0, %v1021
        %1023 = vmatmul.bf16.gmra.mxu0 %v802
        %v1024 = vpop.f32.mrf.mxu0
        %v1025 = vadd.f32 0.0, %v1024
        %v1026 = vpop.f32.mrf.mxu0
        %v1027 = vadd.f32 0.0, %v1026
        %1028 = vmatmul.bf16.gmra.mxu0 %v804
        %v1029 = vpop.f32.mrf.mxu0
        %v1030 = vadd.f32 0.0, %v1029
        %v1031 = vpop.f32.mrf.mxu0
        %v1032 = vadd.f32 0.0, %v1031
        %1033 = vmatmul.bf16.gmra.mxu0 %v806
        %v1034 = vpop.f32.mrf.mxu0
        %v1035 = vadd.f32 0.0, %v1034
        %v1036 = vpop.f32.mrf.mxu0
        %v1037 = vadd.f32 0.0, %v1036
        %1038 = vdwg.mxu0
        %1039 = vmatpush.bf16.msra.mxu0 %v923
        %1040 = vmatpush.bf16.msra.mxu0 %v922
        %1041 = vmatpush.bf16.msra.mxu0 %v921
        %1042 = vmatpush.bf16.msra.mxu0 %v920
        %1043 = vmatpush.bf16.msra.mxu0 %v919
        %1044 = vmatpush.bf16.msra.mxu0 %v918
        %1045 = vmatpush.bf16.msra.mxu0 %v917
        %1046 = vmatpush.bf16.msra.mxu0 %v916
        %1047 = vmatmul.bf16.gmra.mxu0 %v773
        %v1048 = vpop.f32.mrf.mxu0
        %v1049 = vadd.f32 %v950, %v1048
        %v1050 = vpop.f32.mrf.mxu0
        %v1051 = vadd.f32 %v952, %v1050
        %1052 = vmatmul.bf16.gmra.mxu0 %v775
        %v1053 = vpop.f32.mrf.mxu0
        %v1054 = vadd.f32 %v955, %v1053
        %v1055 = vpop.f32.mrf.mxu0
        %v1056 = vadd.f32 %v957, %v1055
        %1057 = vmatmul.bf16.gmra.mxu0 %v777
        %v1058 = vpop.f32.mrf.mxu0
        %v1059 = vadd.f32 %v960, %v1058
        %v1060 = vpop.f32.mrf.mxu0
        %v1061 = vadd.f32 %v962, %v1060
        %1062 = vmatmul.bf16.gmra.mxu0 %v779
        %v1063 = vpop.f32.mrf.mxu0
        %v1064 = vadd.f32 %v965, %v1063
        %v1065 = vpop.f32.mrf.mxu0
        %v1066 = vadd.f32 %v967, %v1065
        %1067 = vmatmul.bf16.gmra.mxu0 %v781
        %v1068 = vpop.f32.mrf.mxu0
        %v1069 = vadd.f32 %v970, %v1068
        %v1070 = vpop.f32.mrf.mxu0
        %v1071 = vadd.f32 %v972, %v1070
        %1072 = vmatmul.bf16.gmra.mxu0 %v783
        %v1073 = vpop.f32.mrf.mxu0
        %v1074 = vadd.f32 %v975, %v1073
        %v1075 = vpop.f32.mrf.mxu0
        %v1076 = vadd.f32 %v977, %v1075
        %1077 = vmatmul.bf16.gmra.mxu0 %v785
        %v1078 = vpop.f32.mrf.mxu0
        %v1079 = vadd.f32 %v980, %v1078
        %v1080 = vpop.f32.mrf.mxu0
        %v1081 = vadd.f32 %v982, %v1080
        %1082 = vmatmul.bf16.gmra.mxu0 %v787
        %v1083 = vpop.f32.mrf.mxu0
        %v1084 = vadd.f32 %v985, %v1083
        %v1085 = vpop.f32.mrf.mxu0
        %v1086 = vadd.f32 %v987, %v1085
        %1087 = vmatmul.bf16.gmra.mxu0 %v789
        %v1088 = vpop.f32.mrf.mxu0
        %v1089 = vadd.f32 %v990, %v1088
        %v1090 = vpop.f32.mrf.mxu0
        %v1091 = vadd.f32 %v992, %v1090
        %1092 = vmatmul.bf16.gmra.mxu0 %v791
        %v1093 = vpop.f32.mrf.mxu0
        %v1094 = vadd.f32 %v995, %v1093
        %v1095 = vpop.f32.mrf.mxu0
        %v1096 = vadd.f32 %v997, %v1095
        %1097 = vmatmul.bf16.gmra.mxu0 %v793
        %v1098 = vpop.f32.mrf.mxu0
        %v1099 = vadd.f32 %v1000, %v1098
        %v1100 = vpop.f32.mrf.mxu0
        %v1101 = vadd.f32 %v1002, %v1100
        %1102 = vmatmul.bf16.gmra.mxu0 %v795
        %v1103 = vpop.f32.mrf.mxu0
        %v1104 = vadd.f32 %v1005, %v1103
        %v1105 = vpop.f32.mrf.mxu0
        %v1106 = vadd.f32 %v1007, %v1105
        %1107 = vmatmul.bf16.gmra.mxu0 %v797
        %v1108 = vpop.f32.mrf.mxu0
        %v1109 = vadd.f32 %v1010, %v1108
        %v1110 = vpop.f32.mrf.mxu0
        %v1111 = vadd.f32 %v1012, %v1110
        %1112 = vmatmul.bf16.gmra.mxu0 %v799
        %v1113 = vpop.f32.mrf.mxu0
        %v1114 = vadd.f32 %v1015, %v1113
        %v1115 = vpop.f32.mrf.mxu0
        %v1116 = vadd.f32 %v1017, %v1115
        %1117 = vmatmul.bf16.gmra.mxu0 %v801
        %v1118 = vpop.f32.mrf.mxu0
        %v1119 = vadd.f32 %v1020, %v1118
        %v1120 = vpop.f32.mrf.mxu0
        %v1121 = vadd.f32 %v1022, %v1120
        %1122 = vmatmul.bf16.gmra.mxu0 %v803
        %v1123 = vpop.f32.mrf.mxu0
        %v1124 = vadd.f32 %v1025, %v1123
        %v1125 = vpop.f32.mrf.mxu0
        %v1126 = vadd.f32 %v1027, %v1125
        %1127 = vmatmul.bf16.gmra.mxu0 %v805
        %v1128 = vpop.f32.mrf.mxu0
        %v1129 = vadd.f32 %v1030, %v1128
        %v1130 = vpop.f32.mrf.mxu0
        %v1131 = vadd.f32 %v1032, %v1130
        %1132 = vmatmul.bf16.gmra.mxu0 %v807
        %v1133 = vpop.f32.mrf.mxu0
        %v1134 = vadd.f32 %v1035, %v1133
        %v1135 = vpop.f32.mrf.mxu0
        %v1136 = vadd.f32 %v1037, %v1135
        %1137 = vdwg.mxu0
        %v1138 = vld [vmem:[%s6] sm:$0x1]
        %v1140 = vperm.slane %v1138, 0
        %v1142 = vmul.f32 %v1049, %v1140
        %v1143 = vmul.f32 %v1051, %v1140
        %v1144 = vmul.f32 %v1054, %v1140
        %v1145 = vmul.f32 %v1056, %v1140
        %v1146 = vmul.f32 %v1059, %v1140
        %v1147 = vmul.f32 %v1061, %v1140
        %v1148 = vmul.f32 %v1064, %v1140
        %v1149 = vmul.f32 %v1066, %v1140
        %v1150 = vmul.f32 %v1069, %v1140
        %v1151 = vmul.f32 %v1071, %v1140
        %v1152 = vmul.f32 %v1074, %v1140
        %v1153 = vmul.f32 %v1076, %v1140
        %v1154 = vmul.f32 %v1079, %v1140
        %v1155 = vmul.f32 %v1081, %v1140
        %v1156 = vmul.f32 %v1084, %v1140
        %v1157 = vmul.f32 %v1086, %v1140
        %v1158 = vmul.f32 %v1089, %v1140
        %v1159 = vmul.f32 %v1091, %v1140
        %v1160 = vmul.f32 %v1094, %v1140
        %v1161 = vmul.f32 %v1096, %v1140
        %v1162 = vmul.f32 %v1099, %v1140
        %v1163 = vmul.f32 %v1101, %v1140
        %v1164 = vmul.f32 %v1104, %v1140
        %v1165 = vmul.f32 %v1106, %v1140
        %v1166 = vmul.f32 %v1109, %v1140
        %v1167 = vmul.f32 %v1111, %v1140
        %v1168 = vmul.f32 %v1114, %v1140
        %v1169 = vmul.f32 %v1116, %v1140
        %v1170 = vmul.f32 %v1119, %v1140
        %v1171 = vmul.f32 %v1121, %v1140
        %v1172 = vmul.f32 %v1124, %v1140
        %v1173 = vmul.f32 %v1126, %v1140
        %v1174 = vmul.f32 %v1129, %v1140
        %v1175 = vmul.f32 %v1131, %v1140
        %v1176 = vmul.f32 %v1134, %v1140
        %v1177 = vmul.f32 %v1136, %v1140
        %v1178 = vld [vmem:[%s7] sm:$0x1]
        %v1180 = vperm.slane %v1178, 0
        %v1182 = vadd.f32 %v1142, %v1180
        %v1183 = vadd.f32 %v1143, %v1180
        %v1184 = vadd.f32 %v1144, %v1180
        %v1185 = vadd.f32 %v1145, %v1180
        %v1186 = vadd.f32 %v1146, %v1180
        %v1187 = vadd.f32 %v1147, %v1180
        %v1188 = vadd.f32 %v1148, %v1180
        %v1189 = vadd.f32 %v1149, %v1180
        %v1190 = vadd.f32 %v1150, %v1180
        %v1191 = vadd.f32 %v1151, %v1180
        %v1192 = vadd.f32 %v1152, %v1180
        %v1193 = vadd.f32 %v1153, %v1180
        %v1194 = vadd.f32 %v1154, %v1180
        %v1195 = vadd.f32 %v1155, %v1180
        %v1196 = vadd.f32 %v1156, %v1180
        %v1197 = vadd.f32 %v1157, %v1180
        %v1198 = vadd.f32 %v1158, %v1180
        %v1199 = vadd.f32 %v1159, %v1180
        %v1200 = vadd.f32 %v1160, %v1180
        %v1201 = vadd.f32 %v1161, %v1180
        %v1202 = vadd.f32 %v1162, %v1180
        %v1203 = vadd.f32 %v1163, %v1180
        %v1204 = vadd.f32 %v1164, %v1180
        %v1205 = vadd.f32 %v1165, %v1180
        %v1206 = vadd.f32 %v1166, %v1180
        %v1207 = vadd.f32 %v1167, %v1180
        %v1208 = vadd.f32 %v1168, %v1180
        %v1209 = vadd.f32 %v1169, %v1180
        %v1210 = vadd.f32 %v1170, %v1180
        %v1211 = vadd.f32 %v1171, %v1180
        %v1212 = vadd.f32 %v1172, %v1180
        %v1213 = vadd.f32 %v1173, %v1180
        %v1214 = vadd.f32 %v1174, %v1180
        %v1215 = vadd.f32 %v1175, %v1180
        %v1216 = vadd.f32 %v1176, %v1180
        %v1217 = vadd.f32 %v1177, %v1180
        %v1218 = vmax.f32 %v1182, 0.0
        %v1219 = vmax.f32 %v1183, 0.0
        %v1220 = vmax.f32 %v1184, 0.0
        %v1221 = vmax.f32 %v1185, 0.0
        %v1222 = vmax.f32 %v1186, 0.0
        %v1223 = vmax.f32 %v1187, 0.0
        %v1224 = vmax.f32 %v1188, 0.0
        %v1225 = vmax.f32 %v1189, 0.0
        %v1226 = vmax.f32 %v1190, 0.0
        %v1227 = vmax.f32 %v1191, 0.0
        %v1228 = vmax.f32 %v1192, 0.0
        %v1229 = vmax.f32 %v1193, 0.0
        %v1230 = vmax.f32 %v1194, 0.0
        %v1231 = vmax.f32 %v1195, 0.0
        %v1232 = vmax.f32 %v1196, 0.0
        %v1233 = vmax.f32 %v1197, 0.0
        %v1234 = vmax.f32 %v1198, 0.0
        %v1235 = vmax.f32 %v1199, 0.0
        %v1236 = vmax.f32 %v1200, 0.0
        %v1237 = vmax.f32 %v1201, 0.0
        %v1238 = vmax.f32 %v1202, 0.0
        %v1239 = vmax.f32 %v1203, 0.0
        %v1240 = vmax.f32 %v1204, 0.0
        %v1241 = vmax.f32 %v1205, 0.0
        %v1242 = vmax.f32 %v1206, 0.0
        %v1243 = vmax.f32 %v1207, 0.0
        %v1244 = vmax.f32 %v1208, 0.0
        %v1245 = vmax.f32 %v1209, 0.0
        %v1246 = vmax.f32 %v1210, 0.0
        %v1247 = vmax.f32 %v1211, 0.0
        %v1248 = vmax.f32 %v1212, 0.0
        %v1249 = vmax.f32 %v1213, 0.0
        %v1250 = vmax.f32 %v1214, 0.0
        %v1251 = vmax.f32 %v1215, 0.0
        %v1252 = vmax.f32 %v1216, 0.0
        %v1253 = vmax.f32 %v1217, 0.0
        %s1254 = smul.u32 %s38, 16
        %v1255 = vstv %s1254
        %v1256 = vadd.s32 %v1255, 2
        %v1257 = vadd.s32 %v1255, 3
        %v1258 = vadd.s32 %v1255, 4
        %v1259 = vadd.s32 %v1255, 5
        %v1260 = vadd.s32 %v1255, 6
        %v1261 = vadd.s32 %v1255, 7
        %v1262 = vadd.s32 %v1255, 8
        %v1263 = vadd.s32 %v1255, 9
        %v1264 = vadd.s32 %v1255, 10
        %v1265 = vadd.s32 %v1255, 11
        %v1266 = vadd.s32 %v1255, 12
        %v1267 = vadd.s32 %v1255, 13
        %v1268 = vadd.s32 %v1255, 14
        %v1269 = vadd.s32 %v1255, 15
        %v1270 = vadd.s32 %v1255, 16
        %v1271 = vadd.s32 %v1255, 17
        %v1272 = vsub.s32 %v1255, 1
        %v1273 = vsub.s32 %v1256, 1
        %v1274 = vsub.s32 %v1257, 1
        %v1275 = vsub.s32 %v1258, 1
        %v1276 = vsub.s32 %v1259, 1
        %v1277 = vsub.s32 %v1260, 1
        %v1278 = vsub.s32 %v1261, 1
        %v1279 = vsub.s32 %v1262, 1
        %v1280 = vsub.s32 %v1263, 1
        %v1281 = vsub.s32 %v1264, 1
        %v1282 = vsub.s32 %v1265, 1
        %v1283 = vsub.s32 %v1266, 1
        %v1284 = vsub.s32 %v1267, 1
        %v1285 = vsub.s32 %v1268, 1
        %v1286 = vsub.s32 %v1269, 1
        %v1287 = vsub.s32 %v1270, 1
        %v1288 = vsub.s32 %v1271, 1
        %vm1289 = vcmp.ge.s32.totalorder %v1272, 0
        %vm1290 = vcmp.ge.s32.totalorder %v1255, 0
        %vm1291 = vcmp.ge.s32.totalorder %v1273, 0
        %vm1292 = vcmp.ge.s32.totalorder %v1274, 0
        %vm1293 = vcmp.ge.s32.totalorder %v1275, 0
        %vm1294 = vcmp.ge.s32.totalorder %v1276, 0
        %vm1295 = vcmp.ge.s32.totalorder %v1277, 0
        %vm1296 = vcmp.ge.s32.totalorder %v1278, 0
        %vm1297 = vcmp.ge.s32.totalorder %v1279, 0
        %vm1298 = vcmp.ge.s32.totalorder %v1280, 0
        %vm1299 = vcmp.ge.s32.totalorder %v1281, 0
        %vm1300 = vcmp.ge.s32.totalorder %v1282, 0
        %vm1301 = vcmp.ge.s32.totalorder %v1283, 0
        %vm1302 = vcmp.ge.s32.totalorder %v1284, 0
        %vm1303 = vcmp.ge.s32.totalorder %v1285, 0
        %vm1304 = vcmp.ge.s32.totalorder %v1286, 0
        %vm1305 = vcmp.ge.s32.totalorder %v1287, 0
        %vm1306 = vcmp.ge.s32.totalorder %v1288, 0
        %vm1307 = vcmp.lt.s32.totalorder %v1272, 16
        %vm1308 = vcmp.lt.s32.totalorder %v1255, 16
        %vm1309 = vcmp.lt.s32.totalorder %v1273, 16
        %vm1310 = vcmp.lt.s32.totalorder %v1274, 16
        %vm1311 = vcmp.lt.s32.totalorder %v1275, 16
        %vm1312 = vcmp.lt.s32.totalorder %v1276, 16
        %vm1313 = vcmp.lt.s32.totalorder %v1277, 16
        %vm1314 = vcmp.lt.s32.totalorder %v1278, 16
        %vm1315 = vcmp.lt.s32.totalorder %v1279, 16
        %vm1316 = vcmp.lt.s32.totalorder %v1280, 16
        %vm1317 = vcmp.lt.s32.totalorder %v1281, 16
        %vm1318 = vcmp.lt.s32.totalorder %v1282, 16
        %vm1319 = vcmp.lt.s32.totalorder %v1283, 16
        %vm1320 = vcmp.lt.s32.totalorder %v1284, 16
        %vm1321 = vcmp.lt.s32.totalorder %v1285, 16
        %vm1322 = vcmp.lt.s32.totalorder %v1286, 16
        %vm1323 = vcmp.lt.s32.totalorder %v1287, 16
        %vm1324 = vcmp.lt.s32.totalorder %v1288, 16
        %vm1325 = vmand %vm1289, %vm1307
        %vm1326 = vmand %vm1290, %vm1308
        %vm1327 = vmand %vm1291, %vm1309
        %vm1328 = vmand %vm1292, %vm1310
        %vm1329 = vmand %vm1293, %vm1311
        %vm1330 = vmand %vm1294, %vm1312
        %vm1331 = vmand %vm1295, %vm1313
        %vm1332 = vmand %vm1296, %vm1314
        %vm1333 = vmand %vm1297, %vm1315
        %vm1334 = vmand %vm1298, %vm1316
        %vm1335 = vmand %vm1299, %vm1317
        %vm1336 = vmand %vm1300, %vm1318
        %vm1337 = vmand %vm1301, %vm1319
        %vm1338 = vmand %vm1302, %vm1320
        %vm1339 = vmand %vm1303, %vm1321
        %vm1340 = vmand %vm1304, %vm1322
        %vm1341 = vmand %vm1305, %vm1323
        %vm1342 = vmand %vm1306, %vm1324
        %v1343 = vsel %vm1325, %v1218, 0.0
        %v1344 = vsel %vm1325, %v1219, 0.0
        %v1345 = vsel %vm1326, %v1220, 0.0
        %v1346 = vsel %vm1326, %v1221, 0.0
        %v1347 = vsel %vm1327, %v1222, 0.0
        %v1348 = vsel %vm1327, %v1223, 0.0
        %v1349 = vsel %vm1328, %v1224, 0.0
        %v1350 = vsel %vm1328, %v1225, 0.0
        %v1351 = vsel %vm1329, %v1226, 0.0
        %v1352 = vsel %vm1329, %v1227, 0.0
        %v1353 = vsel %vm1330, %v1228, 0.0
        %v1354 = vsel %vm1330, %v1229, 0.0
        %v1355 = vsel %vm1331, %v1230, 0.0
        %v1356 = vsel %vm1331, %v1231, 0.0
        %v1357 = vsel %vm1332, %v1232, 0.0
        %v1358 = vsel %vm1332, %v1233, 0.0
        %v1359 = vsel %vm1333, %v1234, 0.0
        %v1360 = vsel %vm1333, %v1235, 0.0
        %v1361 = vsel %vm1334, %v1236, 0.0
        %v1362 = vsel %vm1334, %v1237, 0.0
        %v1363 = vsel %vm1335, %v1238, 0.0
        %v1364 = vsel %vm1335, %v1239, 0.0
        %v1365 = vsel %vm1336, %v1240, 0.0
        %v1366 = vsel %vm1336, %v1241, 0.0
        %v1367 = vsel %vm1337, %v1242, 0.0
        %v1368 = vsel %vm1337, %v1243, 0.0
        %v1369 = vsel %vm1338, %v1244, 0.0
        %v1370 = vsel %vm1338, %v1245, 0.0
        %v1371 = vsel %vm1339, %v1246, 0.0
        %v1372 = vsel %vm1339, %v1247, 0.0
        %v1373 = vsel %vm1340, %v1248, 0.0
        %v1374 = vsel %vm1340, %v1249, 0.0
        %v1375 = vsel %vm1341, %v1250, 0.0
        %v1376 = vsel %vm1341, %v1251, 0.0
        %v1377 = vsel %vm1342, %v1252, 0.0
        %v1378 = vsel %vm1342, %v1253, 0.0
        %v1379 = vpack.c.bf16 %v1343, %v1343
        %v1380 = vpack.c.bf16 %v1344, %v1344
        %v1381 = vpack.c.bf16 %v1345, %v1345
        %v1382 = vpack.c.bf16 %v1346, %v1346
        %v1383 = vpack.c.bf16 %v1347, %v1347
        %v1384 = vpack.c.bf16 %v1348, %v1348
        %v1385 = vpack.c.bf16 %v1349, %v1349
        %v1386 = vpack.c.bf16 %v1350, %v1350
        %v1387 = vpack.c.bf16 %v1351, %v1351
        %v1388 = vpack.c.bf16 %v1352, %v1352
        %v1389 = vpack.c.bf16 %v1353, %v1353
        %v1390 = vpack.c.bf16 %v1354, %v1354
        %v1391 = vpack.c.bf16 %v1355, %v1355
        %v1392 = vpack.c.bf16 %v1356, %v1356
        %v1393 = vpack.c.bf16 %v1357, %v1357
        %v1394 = vpack.c.bf16 %v1358, %v1358
        %v1395 = vpack.c.bf16 %v1359, %v1359
        %v1396 = vpack.c.bf16 %v1360, %v1360
        %v1397 = vpack.c.bf16 %v1361, %v1361
        %v1398 = vpack.c.bf16 %v1362, %v1362
        %v1399 = vpack.c.bf16 %v1363, %v1363
        %v1400 = vpack.c.bf16 %v1364, %v1364
        %v1401 = vpack.c.bf16 %v1365, %v1365
        %v1402 = vpack.c.bf16 %v1366, %v1366
        %v1403 = vpack.c.bf16 %v1367, %v1367
        %v1404 = vpack.c.bf16 %v1368, %v1368
        %v1405 = vpack.c.bf16 %v1369, %v1369
        %v1406 = vpack.c.bf16 %v1370, %v1370
        %v1407 = vpack.c.bf16 %v1371, %v1371
        %v1408 = vpack.c.bf16 %v1372, %v1372
        %v1409 = vpack.c.bf16 %v1373, %v1373
        %v1410 = vpack.c.bf16 %v1374, %v1374
        %v1411 = vpack.c.bf16 %v1375, %v1375
        %v1412 = vpack.c.bf16 %v1376, %v1376
        %v1413 = vpack.c.bf16 %v1377, %v1377
        %v1414 = vpack.c.bf16 %v1378, %v1378
        %v1415 = vlaneseq
        %v1416 = vshrl.u32 %v1415, 7
        %v1417 = vadd.s32 %v1416, 8
        %vm1418 = vcmp.ge.s32.totalorder %v1416, 1
        %vm1419 = vcmp.ge.s32.totalorder %v1417, 1
        %v1438 = vunpack.c.l.b16 %v1380
        %v1439 = vunpack.c.l.b16 %v1382
        %v1440 = vunpack.c.l.b16 %v1384
        %v1441 = vunpack.c.l.b16 %v1386
        %v1442 = vunpack.c.l.b16 %v1388
        %v1443 = vunpack.c.l.b16 %v1390
        %v1444 = vunpack.c.l.b16 %v1392
        %v1445 = vunpack.c.l.b16 %v1394
        %v1446 = vunpack.c.l.b16 %v1396
        %v1447 = vunpack.c.l.b16 %v1398
        %v1448 = vunpack.c.l.b16 %v1400
        %v1449 = vunpack.c.l.b16 %v1402
        %v1450 = vunpack.c.l.b16 %v1404
        %v1451 = vunpack.c.l.b16 %v1406
        %v1452 = vunpack.c.l.b16 %v1408
        %v1453 = vunpack.c.l.b16 %v1410
        %v1454 = vunpack.c.l.b16 %v1412
        %v1455 = vunpack.c.l.b16 %v1414
        %v1456 = vpack.c.b16 %v1438, %v1438
        %v1457 = vpack.c.b16 %v1439, %v1439
        %v1458 = vpack.c.b16 %v1440, %v1440
        %v1459 = vpack.c.b16 %v1441, %v1441
        %v1460 = vpack.c.b16 %v1442, %v1442
        %v1461 = vpack.c.b16 %v1443, %v1443
        %v1462 = vpack.c.b16 %v1444, %v1444
        %v1463 = vpack.c.b16 %v1445, %v1445
        %v1464 = vpack.c.b16 %v1446, %v1446
        %v1465 = vpack.c.b16 %v1447, %v1447
        %v1466 = vpack.c.b16 %v1448, %v1448
        %v1467 = vpack.c.b16 %v1449, %v1449
        %v1468 = vpack.c.b16 %v1450, %v1450
        %v1469 = vpack.c.b16 %v1451, %v1451
        %v1470 = vpack.c.b16 %v1452, %v1452
        %v1471 = vpack.c.b16 %v1453, %v1453
        %v1472 = vpack.c.b16 %v1454, %v1454
        %v1473 = vpack.c.b16 %v1455, %v1455
        %v1475 = vshrl.u32 %v1456, 16
        %v1477 = vrot.slane %v1475, 3
        %v1479 = vshrl.u32 %v1457, 16
        %v1481 = vrot.slane %v1479, 3
        %v1483 = vshrl.u32 %v1458, 16
        %v1485 = vrot.slane %v1483, 3
        %v1487 = vshrl.u32 %v1459, 16
        %v1489 = vrot.slane %v1487, 3
        %v1491 = vshrl.u32 %v1460, 16
        %v1493 = vrot.slane %v1491, 3
        %v1495 = vshrl.u32 %v1461, 16
        %v1497 = vrot.slane %v1495, 3
        %v1499 = vshrl.u32 %v1462, 16
        %v1501 = vrot.slane %v1499, 3
        %v1503 = vshrl.u32 %v1463, 16
        %v1505 = vrot.slane %v1503, 3
        %v1507 = vshrl.u32 %v1464, 16
        %v1509 = vrot.slane %v1507, 3
        %v1511 = vshrl.u32 %v1465, 16
        %v1513 = vrot.slane %v1511, 3
        %v1515 = vshrl.u32 %v1466, 16
        %v1517 = vrot.slane %v1515, 3
        %v1519 = vshrl.u32 %v1467, 16
        %v1521 = vrot.slane %v1519, 3
        %v1523 = vshrl.u32 %v1468, 16
        %v1525 = vrot.slane %v1523, 3
        %v1527 = vshrl.u32 %v1469, 16
        %v1529 = vrot.slane %v1527, 3
        %v1531 = vshrl.u32 %v1470, 16
        %v1533 = vrot.slane %v1531, 3
        %v1535 = vshrl.u32 %v1471, 16
        %v1537 = vrot.slane %v1535, 3
        %v1539 = vshrl.u32 %v1472, 16
        %v1541 = vrot.slane %v1539, 3
        %v1543 = vshrl.u32 %v1473, 16
        %v1545 = vrot.slane %v1543, 3
        %v1582 = vunpack.c.l.b16 %v1379
        %v1583 = vunpack.c.l.b16 %v1381
        %v1584 = vunpack.c.l.b16 %v1383
        %v1585 = vunpack.c.l.b16 %v1385
        %v1586 = vunpack.c.l.b16 %v1387
        %v1587 = vunpack.c.l.b16 %v1389
        %v1588 = vunpack.c.l.b16 %v1391
        %v1589 = vunpack.c.l.b16 %v1393
        %v1590 = vunpack.c.l.b16 %v1395
        %v1591 = vunpack.c.l.b16 %v1397
        %v1592 = vunpack.c.l.b16 %v1399
        %v1593 = vunpack.c.l.b16 %v1401
        %v1594 = vunpack.c.l.b16 %v1403
        %v1595 = vunpack.c.l.b16 %v1405
        %v1596 = vunpack.c.l.b16 %v1407
        %v1597 = vunpack.c.l.b16 %v1409
        %v1598 = vunpack.c.l.b16 %v1411
        %v1599 = vunpack.c.l.b16 %v1413
        %v1600 = vpack.c.b16 %v1438, %v1582
        %v1601 = vpack.c.b16 %v1439, %v1583
        %v1602 = vpack.c.b16 %v1440, %v1584
        %v1603 = vpack.c.b16 %v1441, %v1585
        %v1604 = vpack.c.b16 %v1442, %v1586
        %v1605 = vpack.c.b16 %v1443, %v1587
        %v1606 = vpack.c.b16 %v1444, %v1588
        %v1607 = vpack.c.b16 %v1445, %v1589
        %v1608 = vpack.c.b16 %v1446, %v1590
        %v1609 = vpack.c.b16 %v1447, %v1591
        %v1610 = vpack.c.b16 %v1448, %v1592
        %v1611 = vpack.c.b16 %v1449, %v1593
        %v1612 = vpack.c.b16 %v1450, %v1594
        %v1613 = vpack.c.b16 %v1451, %v1595
        %v1614 = vpack.c.b16 %v1452, %v1596
        %v1615 = vpack.c.b16 %v1453, %v1597
        %v1616 = vpack.c.b16 %v1454, %v1598
        %v1617 = vpack.c.b16 %v1455, %v1599
        %v1619 = vshrl.u32 %v1600, 16
        %v1621 = vrot.slane %v1619, 7
        %v1622 = vshll.u32 %v1600, 16
        %v1624 = vor.u32 %v1621, %v1622
        %v1626 = vshrl.u32 %v1601, 16
        %v1628 = vrot.slane %v1626, 7
        %v1629 = vshll.u32 %v1601, 16
        %v1631 = vor.u32 %v1628, %v1629
        %v1633 = vshrl.u32 %v1602, 16
        %v1635 = vrot.slane %v1633, 7
        %v1636 = vshll.u32 %v1602, 16
        %v1638 = vor.u32 %v1635, %v1636
        %v1640 = vshrl.u32 %v1603, 16
        %v1642 = vrot.slane %v1640, 7
        %v1643 = vshll.u32 %v1603, 16
        %v1645 = vor.u32 %v1642, %v1643
        %v1647 = vshrl.u32 %v1604, 16
        %v1649 = vrot.slane %v1647, 7
        %v1650 = vshll.u32 %v1604, 16
        %v1652 = vor.u32 %v1649, %v1650
        %v1654 = vshrl.u32 %v1605, 16
        %v1656 = vrot.slane %v1654, 7
        %v1657 = vshll.u32 %v1605, 16
        %v1659 = vor.u32 %v1656, %v1657
        %v1661 = vshrl.u32 %v1606, 16
        %v1663 = vrot.slane %v1661, 7
        %v1664 = vshll.u32 %v1606, 16
        %v1666 = vor.u32 %v1663, %v1664
        %v1668 = vshrl.u32 %v1607, 16
        %v1670 = vrot.slane %v1668, 7
        %v1671 = vshll.u32 %v1607, 16
        %v1673 = vor.u32 %v1670, %v1671
        %v1675 = vshrl.u32 %v1608, 16
        %v1677 = vrot.slane %v1675, 7
        %v1678 = vshll.u32 %v1608, 16
        %v1680 = vor.u32 %v1677, %v1678
        %v1682 = vshrl.u32 %v1609, 16
        %v1684 = vrot.slane %v1682, 7
        %v1685 = vshll.u32 %v1609, 16
        %v1687 = vor.u32 %v1684, %v1685
        %v1689 = vshrl.u32 %v1610, 16
        %v1691 = vrot.slane %v1689, 7
        %v1692 = vshll.u32 %v1610, 16
        %v1694 = vor.u32 %v1691, %v1692
        %v1696 = vshrl.u32 %v1611, 16
        %v1698 = vrot.slane %v1696, 7
        %v1699 = vshll.u32 %v1611, 16
        %v1701 = vor.u32 %v1698, %v1699
        %v1703 = vshrl.u32 %v1612, 16
        %v1705 = vrot.slane %v1703, 7
        %v1706 = vshll.u32 %v1612, 16
        %v1708 = vor.u32 %v1705, %v1706
        %v1710 = vshrl.u32 %v1613, 16
        %v1712 = vrot.slane %v1710, 7
        %v1713 = vshll.u32 %v1613, 16
        %v1715 = vor.u32 %v1712, %v1713
        %v1717 = vshrl.u32 %v1614, 16
        %v1719 = vrot.slane %v1717, 7
        %v1720 = vshll.u32 %v1614, 16
        %v1722 = vor.u32 %v1719, %v1720
        %v1724 = vshrl.u32 %v1615, 16
        %v1726 = vrot.slane %v1724, 7
        %v1727 = vshll.u32 %v1615, 16
        %v1729 = vor.u32 %v1726, %v1727
        %v1731 = vshrl.u32 %v1616, 16
        %v1733 = vrot.slane %v1731, 7
        %v1734 = vshll.u32 %v1616, 16
        %v1736 = vor.u32 %v1733, %v1734
        %v1738 = vshrl.u32 %v1617, 16
        %v1740 = vrot.slane %v1738, 7
        %v1741 = vshll.u32 %v1617, 16
        %v1743 = vor.u32 %v1740, %v1741
        %vm1762 = vcmask 1040384
        %vm1763 = vsmask.f32 256
        %vm1764 = vmand %vm1762, %vm1763
        %v1765 = vsel %vm1764, %v1477, %v1624
        %v1766 = vsel %vm1764, %v1481, %v1631
        %v1767 = vsel %vm1764, %v1485, %v1638
        %v1768 = vsel %vm1764, %v1489, %v1645
        %v1769 = vsel %vm1764, %v1493, %v1652
        %v1770 = vsel %vm1764, %v1497, %v1659
        %v1771 = vsel %vm1764, %v1501, %v1666
        %v1772 = vsel %vm1764, %v1505, %v1673
        %v1773 = vsel %vm1764, %v1509, %v1680
        %v1774 = vsel %vm1764, %v1513, %v1687
        %v1775 = vsel %vm1764, %v1517, %v1694
        %v1776 = vsel %vm1764, %v1521, %v1701
        %v1777 = vsel %vm1764, %v1525, %v1708
        %v1778 = vsel %vm1764, %v1529, %v1715
        %v1779 = vsel %vm1764, %v1533, %v1722
        %v1780 = vsel %vm1764, %v1537, %v1729
        %v1781 = vsel %vm1764, %v1541, %v1736
        %v1782 = vsel %vm1764, %v1545, %v1743
        %vm1783 = vmpackc.low %vm1418, %vm1418
        %vm1784 = vmpackc.low %vm1419, %vm1419
        %v1785 = vsel %vm1783, 65537, 0
        %v1786 = vsel %vm1784, 65537, 0
        %v1787 = vunpack.c.l.b16 %v1785
        %v1788 = vunpack.c.l.b16 %v1786
        %v1789 = vpack.c.b16 %v1788, %v1787
        %v1790 = vunpack.c.l.b16 %v1789
        %v1791 = vunpack.c.h.b16 %v1789
        %v1792 = vunpack.c.l.b16 0
        %v1793 = vunpack.c.h.b16 0
        %vm1794 = vcmp.ne.s32.totalorder %v1790, %v1792
        %vm1795 = vcmp.ne.s32.totalorder %v1791, %v1793
        %vm1796 = vmpackc.low %vm1795, %vm1794
        %v1797 = vsel %vm1796, %v1765, 0
        %v1798 = vsel %vm1796, %v1766, 0
        %v1799 = vsel %vm1796, %v1767, 0
        %v1800 = vsel %vm1796, %v1768, 0
        %v1801 = vsel %vm1796, %v1769, 0
        %v1802 = vsel %vm1796, %v1770, 0
        %v1803 = vsel %vm1796, %v1771, 0
        %v1804 = vsel %vm1796, %v1772, 0
        %v1805 = vsel %vm1796, %v1773, 0
        %v1806 = vsel %vm1796, %v1774, 0
        %v1807 = vsel %vm1796, %v1775, 0
        %v1808 = vsel %vm1796, %v1776, 0
        %v1809 = vsel %vm1796, %v1777, 0
        %v1810 = vsel %vm1796, %v1778, 0
        %v1811 = vsel %vm1796, %v1779, 0
        %v1812 = vsel %vm1796, %v1780, 0
        %v1813 = vsel %vm1796, %v1781, 0
        %v1814 = vsel %vm1796, %v1782, 0
        %vm1815 = vcmp.lt.s32.totalorder %v1416, 15
        %vm1816 = vcmp.lt.s32.totalorder %v1417, 15
        %v1817 = vrot.slane %v1622, 1
        %v1818 = vor.u32 %v1619, %v1817
        %v1819 = vrot.slane %v1629, 1
        %v1820 = vor.u32 %v1626, %v1819
        %v1821 = vrot.slane %v1636, 1
        %v1822 = vor.u32 %v1633, %v1821
        %v1823 = vrot.slane %v1643, 1
        %v1824 = vor.u32 %v1640, %v1823
        %v1825 = vrot.slane %v1650, 1
        %v1826 = vor.u32 %v1647, %v1825
        %v1827 = vrot.slane %v1657, 1
        %v1828 = vor.u32 %v1654, %v1827
        %v1829 = vrot.slane %v1664, 1
        %v1830 = vor.u32 %v1661, %v1829
        %v1831 = vrot.slane %v1671, 1
        %v1832 = vor.u32 %v1668, %v1831
        %v1833 = vrot.slane %v1678, 1
        %v1834 = vor.u32 %v1675, %v1833
        %v1835 = vrot.slane %v1685, 1
        %v1836 = vor.u32 %v1682, %v1835
        %v1837 = vrot.slane %v1692, 1
        %v1838 = vor.u32 %v1689, %v1837
        %v1839 = vrot.slane %v1699, 1
        %v1840 = vor.u32 %v1696, %v1839
        %v1841 = vrot.slane %v1706, 1
        %v1842 = vor.u32 %v1703, %v1841
        %v1843 = vrot.slane %v1713, 1
        %v1844 = vor.u32 %v1710, %v1843
        %v1845 = vrot.slane %v1720, 1
        %v1846 = vor.u32 %v1717, %v1845
        %v1847 = vrot.slane %v1727, 1
        %v1848 = vor.u32 %v1724, %v1847
        %v1849 = vrot.slane %v1734, 1
        %v1850 = vor.u32 %v1731, %v1849
        %v1851 = vrot.slane %v1741, 1
        %v1852 = vor.u32 %v1738, %v1851
        %v1871 = vpack.c.b16 %v1582, %v1582
        %v1872 = vpack.c.b16 %v1583, %v1583
        %v1873 = vpack.c.b16 %v1584, %v1584
        %v1874 = vpack.c.b16 %v1585, %v1585
        %v1875 = vpack.c.b16 %v1586, %v1586
        %v1876 = vpack.c.b16 %v1587, %v1587
        %v1877 = vpack.c.b16 %v1588, %v1588
        %v1878 = vpack.c.b16 %v1589, %v1589
        %v1879 = vpack.c.b16 %v1590, %v1590
        %v1880 = vpack.c.b16 %v1591, %v1591
        %v1881 = vpack.c.b16 %v1592, %v1592
        %v1882 = vpack.c.b16 %v1593, %v1593
        %v1883 = vpack.c.b16 %v1594, %v1594
        %v1884 = vpack.c.b16 %v1595, %v1595
        %v1885 = vpack.c.b16 %v1596, %v1596
        %v1886 = vpack.c.b16 %v1597, %v1597
        %v1887 = vpack.c.b16 %v1598, %v1598
        %v1888 = vpack.c.b16 %v1599, %v1599
        %v1890 = vshll.u32 %v1871, 16
        %v1892 = vrot.slane %v1890, 1
        %v1894 = vshll.u32 %v1872, 16
        %v1896 = vrot.slane %v1894, 1
        %v1898 = vshll.u32 %v1873, 16
        %v1900 = vrot.slane %v1898, 1
        %v1902 = vshll.u32 %v1874, 16
        %v1904 = vrot.slane %v1902, 1
        %v1906 = vshll.u32 %v1875, 16
        %v1908 = vrot.slane %v1906, 1
        %v1910 = vshll.u32 %v1876, 16
        %v1912 = vrot.slane %v1910, 1
        %v1914 = vshll.u32 %v1877, 16
        %v1916 = vrot.slane %v1914, 1
        %v1918 = vshll.u32 %v1878, 16
        %v1920 = vrot.slane %v1918, 1
        %v1922 = vshll.u32 %v1879, 16
        %v1924 = vrot.slane %v1922, 1
        %v1926 = vshll.u32 %v1880, 16
        %v1928 = vrot.slane %v1926, 1
        %v1930 = vshll.u32 %v1881, 16
        %v1932 = vrot.slane %v1930, 1
        %v1934 = vshll.u32 %v1882, 16
        %v1936 = vrot.slane %v1934, 1
        %v1938 = vshll.u32 %v1883, 16
        %v1940 = vrot.slane %v1938, 1
        %v1942 = vshll.u32 %v1884, 16
        %v1944 = vrot.slane %v1942, 1
        %v1946 = vshll.u32 %v1885, 16
        %v1948 = vrot.slane %v1946, 1
        %v1950 = vshll.u32 %v1886, 16
        %v1952 = vrot.slane %v1950, 1
        %v1954 = vshll.u32 %v1887, 16
        %v1956 = vrot.slane %v1954, 1
        %v1958 = vshll.u32 %v1888, 16
        %v1960 = vrot.slane %v1958, 1
        %vm1979 = vcmask 1047552
        %vm1980 = vsmask.f32 7424
        %vm1981 = vmand %vm1979, %vm1980
        %v1982 = vsel %vm1981, %v1818, %v1892
        %v1983 = vsel %vm1981, %v1820, %v1896
        %v1984 = vsel %vm1981, %v1822, %v1900
        %v1985 = vsel %vm1981, %v1824, %v1904
        %v1986 = vsel %vm1981, %v1826, %v1908
        %v1987 = vsel %vm1981, %v1828, %v1912
        %v1988 = vsel %vm1981, %v1830, %v1916
        %v1989 = vsel %vm1981, %v1832, %v1920
        %v1990 = vsel %vm1981, %v1834, %v1924
        %v1991 = vsel %vm1981, %v1836, %v1928
        %v1992 = vsel %vm1981, %v1838, %v1932
        %v1993 = vsel %vm1981, %v1840, %v1936
        %v1994 = vsel %vm1981, %v1842, %v1940
        %v1995 = vsel %vm1981, %v1844, %v1944
        %v1996 = vsel %vm1981, %v1846, %v1948
        %v1997 = vsel %vm1981, %v1848, %v1952
        %v1998 = vsel %vm1981, %v1850, %v1956
        %v1999 = vsel %vm1981, %v1852, %v1960
        %vm2000 = vmpackc.low %vm1815, %vm1815
        %vm2001 = vmpackc.low %vm1816, %vm1816
        %v2002 = vsel %vm2000, 65537, 0
        %v2003 = vsel %vm2001, 65537, 0
        %v2004 = vunpack.c.l.b16 %v2002
        %v2005 = vunpack.c.l.b16 %v2003
        %v2006 = vpack.c.b16 %v2005, %v2004
        %v2007 = vunpack.c.l.b16 %v2006
        %v2008 = vunpack.c.h.b16 %v2006
        %v2009 = vunpack.c.l.b16 0
        %v2010 = vunpack.c.h.b16 0
        %vm2011 = vcmp.ne.s32.totalorder %v2007, %v2009
        %vm2012 = vcmp.ne.s32.totalorder %v2008, %v2010
        %vm2013 = vmpackc.low %vm2012, %vm2011
        %v2014 = vsel %vm2013, %v1982, 0
        %v2015 = vsel %vm2013, %v1983, 0
        %v2016 = vsel %vm2013, %v1984, 0
        %v2017 = vsel %vm2013, %v1985, 0
        %v2018 = vsel %vm2013, %v1986, 0
        %v2019 = vsel %vm2013, %v1987, 0
        %v2020 = vsel %vm2013, %v1988, 0
        %v2021 = vsel %vm2013, %v1989, 0
        %v2022 = vsel %vm2013, %v1990, 0
        %v2023 = vsel %vm2013, %v1991, 0
        %v2024 = vsel %vm2013, %v1992, 0
        %v2025 = vsel %vm2013, %v1993, 0
        %v2026 = vsel %vm2013, %v1994, 0
        %v2027 = vsel %vm2013, %v1995, 0
        %v2028 = vsel %vm2013, %v1996, 0
        %v2029 = vsel %vm2013, %v1997, 0
        %v2030 = vsel %vm2013, %v1998, 0
        %v2031 = vsel %vm2013, %v1999, 0
        %v2032 = vld [vmem:[#allocation8] sm:$0xf]
        %v2033 = vld [vmem:[#allocation8 + $0x4] sm:$0xf]
        %v2034 = vld [vmem:[#allocation8 + $0x8] sm:$0xf]
        %v2035 = vld [vmem:[#allocation8 + $0xc] sm:$0xf]
        %v2036 = vld [vmem:[#allocation8 + $0x10] sm:$0xf]
        %v2037 = vld [vmem:[#allocation8 + $0x14] sm:$0xf]
        %v2038 = vld [vmem:[#allocation8 + $0x18] sm:$0xf]
        %v2039 = vld [vmem:[#allocation8 + $0x1c] sm:$0xf]
        %s2040 = scalar_lea.vmem [#allocation8], 32
        %v2041 = vld [vmem:[%s2040] sm:$0xf]
        %v2042 = vld [vmem:[%s2040 + $0x4] sm:$0xf]
        %v2043 = vld [vmem:[%s2040 + $0x8] sm:$0xf]
        %v2044 = vld [vmem:[%s2040 + $0xc] sm:$0xf]
        %v2045 = vld [vmem:[%s2040 + $0x10] sm:$0xf]
        %v2046 = vld [vmem:[%s2040 + $0x14] sm:$0xf]
        %v2047 = vld [vmem:[%s2040 + $0x18] sm:$0xf]
        %v2048 = vld [vmem:[%s2040 + $0x1c] sm:$0xf]
        %v2057 = vunpack.c.l.b16 %v2041
        %v2058 = vunpack.c.l.b16 %v2042
        %v2059 = vunpack.c.l.b16 %v2043
        %v2060 = vunpack.c.l.b16 %v2044
        %v2061 = vunpack.c.l.b16 %v2045
        %v2062 = vunpack.c.l.b16 %v2046
        %v2063 = vunpack.c.l.b16 %v2047
        %v2064 = vunpack.c.l.b16 %v2048
        %v2065 = vpack.c.b16 %v2058, %v2057
        %v2066 = vpack.c.b16 %v2060, %v2059
        %v2067 = vpack.c.b16 %v2062, %v2061
        %v2068 = vpack.c.b16 %v2064, %v2063
        %vm2073 = vcmask 523264
        %v2074 = vsel %vm2073, %v1600, 0
        %v2076 = vsel %vm2073, %v1601, 0
        %v2078 = vsel %vm2073, %v1602, 0
        %v2080 = vsel %vm2073, %v1603, 0
        %v2082 = vsel %vm2073, %v1604, 0
        %v2084 = vsel %vm2073, %v1605, 0
        %v2086 = vsel %vm2073, %v1606, 0
        %v2088 = vsel %vm2073, %v1607, 0
        %v2090 = vsel %vm2073, %v1608, 0
        %v2092 = vsel %vm2073, %v1609, 0
        %v2094 = vsel %vm2073, %v1610, 0
        %v2096 = vsel %vm2073, %v1611, 0
        %v2098 = vsel %vm2073, %v1612, 0
        %v2100 = vsel %vm2073, %v1613, 0
        %v2102 = vsel %vm2073, %v1614, 0
        %v2104 = vsel %vm2073, %v1615, 0
        %2106 = vmatpush.bf16.msra.mxu0 0
        %2107 = vmatpush.bf16.msra.mxu0 0
        %2108 = vmatpush.bf16.msra.mxu0 0
        %2109 = vmatpush.bf16.msra.mxu0 0
        %2110 = vmatpush.bf16.msra.mxu0 %v2068
        %2111 = vmatpush.bf16.msra.mxu0 %v2067
        %2112 = vmatpush.bf16.msra.mxu0 %v2066
        %2113 = vmatpush.bf16.msra.mxu0 %v2065
        %2114 = vmatmul.bf16.gmra.mxu0 %v2074
        %v2115 = vpop.f32.mrf.mxu0
        %v2116 = vadd.f32 0.0, %v2115
        %v2117 = vpop.f32.mrf.mxu0
        %v2118 = vadd.f32 0.0, %v2117
        %2119 = vmatmul.bf16.gmra.mxu0 %v2076
        %v2120 = vpop.f32.mrf.mxu0
        %v2121 = vadd.f32 0.0, %v2120
        %v2122 = vpop.f32.mrf.mxu0
        %v2123 = vadd.f32 0.0, %v2122
        %2124 = vmatmul.bf16.gmra.mxu0 %v2078
        %v2125 = vpop.f32.mrf.mxu0
        %v2126 = vadd.f32 0.0, %v2125
        %v2127 = vpop.f32.mrf.mxu0
        %v2128 = vadd.f32 0.0, %v2127
        %2129 = vmatmul.bf16.gmra.mxu0 %v2080
        %v2130 = vpop.f32.mrf.mxu0
        %v2131 = vadd.f32 0.0, %v2130
        %v2132 = vpop.f32.mrf.mxu0
        %v2133 = vadd.f32 0.0, %v2132
        %2134 = vmatmul.bf16.gmra.mxu0 %v2082
        %v2135 = vpop.f32.mrf.mxu0
        %v2136 = vadd.f32 0.0, %v2135
        %v2137 = vpop.f32.mrf.mxu0
        %v2138 = vadd.f32 0.0, %v2137
        %2139 = vmatmul.bf16.gmra.mxu0 %v2084
        %v2140 = vpop.f32.mrf.mxu0
        %v2141 = vadd.f32 0.0, %v2140
        %v2142 = vpop.f32.mrf.mxu0
        %v2143 = vadd.f32 0.0, %v2142
        %2144 = vmatmul.bf16.gmra.mxu0 %v2086
        %v2145 = vpop.f32.mrf.mxu0
        %v2146 = vadd.f32 0.0, %v2145
        %v2147 = vpop.f32.mrf.mxu0
        %v2148 = vadd.f32 0.0, %v2147
        %2149 = vmatmul.bf16.gmra.mxu0 %v2088
        %v2150 = vpop.f32.mrf.mxu0
        %v2151 = vadd.f32 0.0, %v2150
        %v2152 = vpop.f32.mrf.mxu0
        %v2153 = vadd.f32 0.0, %v2152
        %2154 = vmatmul.bf16.gmra.mxu0 %v2090
        %v2155 = vpop.f32.mrf.mxu0
        %v2156 = vadd.f32 0.0, %v2155
        %v2157 = vpop.f32.mrf.mxu0
        %v2158 = vadd.f32 0.0, %v2157
        %2159 = vmatmul.bf16.gmra.mxu0 %v2092
        %v2160 = vpop.f32.mrf.mxu0
        %v2161 = vadd.f32 0.0, %v2160
        %v2162 = vpop.f32.mrf.mxu0
        %v2163 = vadd.f32 0.0, %v2162
        %2164 = vmatmul.bf16.gmra.mxu0 %v2094
        %v2165 = vpop.f32.mrf.mxu0
        %v2166 = vadd.f32 0.0, %v2165
        %v2167 = vpop.f32.mrf.mxu0
        %v2168 = vadd.f32 0.0, %v2167
        %2169 = vmatmul.bf16.gmra.mxu0 %v2096
        %v2170 = vpop.f32.mrf.mxu0
        %v2171 = vadd.f32 0.0, %v2170
        %v2172 = vpop.f32.mrf.mxu0
        %v2173 = vadd.f32 0.0, %v2172
        %2174 = vmatmul.bf16.gmra.mxu0 %v2098
        %v2175 = vpop.f32.mrf.mxu0
        %v2176 = vadd.f32 0.0, %v2175
        %v2177 = vpop.f32.mrf.mxu0
        %v2178 = vadd.f32 0.0, %v2177
        %2179 = vmatmul.bf16.gmra.mxu0 %v2100
        %v2180 = vpop.f32.mrf.mxu0
        %v2181 = vadd.f32 0.0, %v2180
        %v2182 = vpop.f32.mrf.mxu0
        %v2183 = vadd.f32 0.0, %v2182
        %2184 = vmatmul.bf16.gmra.mxu0 %v2102
        %v2185 = vpop.f32.mrf.mxu0
        %v2186 = vadd.f32 0.0, %v2185
        %v2187 = vpop.f32.mrf.mxu0
        %v2188 = vadd.f32 0.0, %v2187
        %2189 = vmatmul.bf16.gmra.mxu0 %v2104
        %v2190 = vpop.f32.mrf.mxu0
        %v2191 = vadd.f32 0.0, %v2190
        %v2192 = vpop.f32.mrf.mxu0
        %v2193 = vadd.f32 0.0, %v2192
        %2194 = vdwg.mxu0
        %v2203 = vunpack.c.l.b16 %v2032
        %v2204 = vunpack.c.l.b16 %v2033
        %v2205 = vunpack.c.l.b16 %v2034
        %v2206 = vunpack.c.l.b16 %v2035
        %v2207 = vunpack.c.l.b16 %v2036
        %v2208 = vunpack.c.l.b16 %v2037
        %v2209 = vunpack.c.l.b16 %v2038
        %v2210 = vunpack.c.l.b16 %v2039
        %v2211 = vpack.c.b16 %v2204, %v2203
        %v2212 = vpack.c.b16 %v2206, %v2205
        %v2213 = vpack.c.b16 %v2208, %v2207
        %v2214 = vpack.c.b16 %v2210, %v2209
        %v2220 = vsel %vm2073, %v1797, 0
        %v2223 = vsel %vm2073, %v1798, 0
        %v2226 = vsel %vm2073, %v1799, 0
        %v2229 = vsel %vm2073, %v1800, 0
        %v2232 = vsel %vm2073, %v1801, 0
        %v2235 = vsel %vm2073, %v1802, 0
        %v2238 = vsel %vm2073, %v1803, 0
        %v2241 = vsel %vm2073, %v1804, 0
        %v2244 = vsel %vm2073, %v1805, 0
        %v2247 = vsel %vm2073, %v1806, 0
        %v2250 = vsel %vm2073, %v1807, 0
        %v2253 = vsel %vm2073, %v1808, 0
        %v2256 = vsel %vm2073, %v1809, 0
        %v2259 = vsel %vm2073, %v1810, 0
        %v2262 = vsel %vm2073, %v1811, 0
        %v2265 = vsel %vm2073, %v1812, 0
        %2267 = vmatpush.bf16.msra.mxu0 0
        %2268 = vmatpush.bf16.msra.mxu0 0
        %2269 = vmatpush.bf16.msra.mxu0 0
        %2270 = vmatpush.bf16.msra.mxu0 0
        %2271 = vmatpush.bf16.msra.mxu0 %v2214
        %2272 = vmatpush.bf16.msra.mxu0 %v2213
        %2273 = vmatpush.bf16.msra.mxu0 %v2212
        %2274 = vmatpush.bf16.msra.mxu0 %v2211
        %2275 = vmatmul.bf16.gmra.mxu0 %v2220
        %v2276 = vpop.f32.mrf.mxu0
        %v2277 = vadd.f32 %v2116, %v2276
        %v2278 = vpop.f32.mrf.mxu0
        %v2279 = vadd.f32 %v2118, %v2278
        %2280 = vmatmul.bf16.gmra.mxu0 %v2223
        %v2281 = vpop.f32.mrf.mxu0
        %v2282 = vadd.f32 %v2121, %v2281
        %v2283 = vpop.f32.mrf.mxu0
        %v2284 = vadd.f32 %v2123, %v2283
        %2285 = vmatmul.bf16.gmra.mxu0 %v2226
        %v2286 = vpop.f32.mrf.mxu0
        %v2287 = vadd.f32 %v2126, %v2286
        %v2288 = vpop.f32.mrf.mxu0
        %v2289 = vadd.f32 %v2128, %v2288
        %2290 = vmatmul.bf16.gmra.mxu0 %v2229
        %v2291 = vpop.f32.mrf.mxu0
        %v2292 = vadd.f32 %v2131, %v2291
        %v2293 = vpop.f32.mrf.mxu0
        %v2294 = vadd.f32 %v2133, %v2293
        %2295 = vmatmul.bf16.gmra.mxu0 %v2232
        %v2296 = vpop.f32.mrf.mxu0
        %v2297 = vadd.f32 %v2136, %v2296
        %v2298 = vpop.f32.mrf.mxu0
        %v2299 = vadd.f32 %v2138, %v2298
        %2300 = vmatmul.bf16.gmra.mxu0 %v2235
        %v2301 = vpop.f32.mrf.mxu0
        %v2302 = vadd.f32 %v2141, %v2301
        %v2303 = vpop.f32.mrf.mxu0
        %v2304 = vadd.f32 %v2143, %v2303
        %2305 = vmatmul.bf16.gmra.mxu0 %v2238
        %v2306 = vpop.f32.mrf.mxu0
        %v2307 = vadd.f32 %v2146, %v2306
        %v2308 = vpop.f32.mrf.mxu0
        %v2309 = vadd.f32 %v2148, %v2308
        %2310 = vmatmul.bf16.gmra.mxu0 %v2241
        %v2311 = vpop.f32.mrf.mxu0
        %v2312 = vadd.f32 %v2151, %v2311
        %v2313 = vpop.f32.mrf.mxu0
        %v2314 = vadd.f32 %v2153, %v2313
        %2315 = vmatmul.bf16.gmra.mxu0 %v2244
        %v2316 = vpop.f32.mrf.mxu0
        %v2317 = vadd.f32 %v2156, %v2316
        %v2318 = vpop.f32.mrf.mxu0
        %v2319 = vadd.f32 %v2158, %v2318
        %2320 = vmatmul.bf16.gmra.mxu0 %v2247
        %v2321 = vpop.f32.mrf.mxu0
        %v2322 = vadd.f32 %v2161, %v2321
        %v2323 = vpop.f32.mrf.mxu0
        %v2324 = vadd.f32 %v2163, %v2323
        %2325 = vmatmul.bf16.gmra.mxu0 %v2250
        %v2326 = vpop.f32.mrf.mxu0
        %v2327 = vadd.f32 %v2166, %v2326
        %v2328 = vpop.f32.mrf.mxu0
        %v2329 = vadd.f32 %v2168, %v2328
        %2330 = vmatmul.bf16.gmra.mxu0 %v2253
        %v2331 = vpop.f32.mrf.mxu0
        %v2332 = vadd.f32 %v2171, %v2331
        %v2333 = vpop.f32.mrf.mxu0
        %v2334 = vadd.f32 %v2173, %v2333
        %2335 = vmatmul.bf16.gmra.mxu0 %v2256
        %v2336 = vpop.f32.mrf.mxu0
        %v2337 = vadd.f32 %v2176, %v2336
        %v2338 = vpop.f32.mrf.mxu0
        %v2339 = vadd.f32 %v2178, %v2338
        %2340 = vmatmul.bf16.gmra.mxu0 %v2259
        %v2341 = vpop.f32.mrf.mxu0
        %v2342 = vadd.f32 %v2181, %v2341
        %v2343 = vpop.f32.mrf.mxu0
        %v2344 = vadd.f32 %v2183, %v2343
        %2345 = vmatmul.bf16.gmra.mxu0 %v2262
        %v2346 = vpop.f32.mrf.mxu0
        %v2347 = vadd.f32 %v2186, %v2346
        %v2348 = vpop.f32.mrf.mxu0
        %v2349 = vadd.f32 %v2188, %v2348
        %2350 = vmatmul.bf16.gmra.mxu0 %v2265
        %v2351 = vpop.f32.mrf.mxu0
        %v2352 = vadd.f32 %v2191, %v2351
        %v2353 = vpop.f32.mrf.mxu0
        %v2354 = vadd.f32 %v2193, %v2353
        %2355 = vdwg.mxu0
        %s2356 = scalar_lea.vmem [#allocation8], 64
        %v2357 = vld [vmem:[%s2356] sm:$0xf]
        %v2358 = vld [vmem:[%s2356 + $0x4] sm:$0xf]
        %v2359 = vld [vmem:[%s2356 + $0x8] sm:$0xf]
        %v2360 = vld [vmem:[%s2356 + $0xc] sm:$0xf]
        %v2361 = vld [vmem:[%s2356 + $0x10] sm:$0xf]
        %v2362 = vld [vmem:[%s2356 + $0x14] sm:$0xf]
        %v2363 = vld [vmem:[%s2356 + $0x18] sm:$0xf]
        %v2364 = vld [vmem:[%s2356 + $0x1c] sm:$0xf]
        %v2373 = vunpack.c.l.b16 %v2357
        %v2374 = vunpack.c.l.b16 %v2358
        %v2375 = vunpack.c.l.b16 %v2359
        %v2376 = vunpack.c.l.b16 %v2360
        %v2377 = vunpack.c.l.b16 %v2361
        %v2378 = vunpack.c.l.b16 %v2362
        %v2379 = vunpack.c.l.b16 %v2363
        %v2380 = vunpack.c.l.b16 %v2364
        %v2381 = vpack.c.b16 %v2374, %v2373
        %v2382 = vpack.c.b16 %v2376, %v2375
        %v2383 = vpack.c.b16 %v2378, %v2377
        %v2384 = vpack.c.b16 %v2380, %v2379
        %v2390 = vsel %vm2073, %v2014, 0
        %v2393 = vsel %vm2073, %v2015, 0
        %v2396 = vsel %vm2073, %v2016, 0
        %v2399 = vsel %vm2073, %v2017, 0
        %v2402 = vsel %vm2073, %v2018, 0
        %v2405 = vsel %vm2073, %v2019, 0
        %v2408 = vsel %vm2073, %v2020, 0
        %v2411 = vsel %vm2073, %v2021, 0
        %v2414 = vsel %vm2073, %v2022, 0
        %v2417 = vsel %vm2073, %v2023, 0
        %v2420 = vsel %vm2073, %v2024, 0
        %v2423 = vsel %vm2073, %v2025, 0
        %v2426 = vsel %vm2073, %v2026, 0
        %v2429 = vsel %vm2073, %v2027, 0
        %v2432 = vsel %vm2073, %v2028, 0
        %v2435 = vsel %vm2073, %v2029, 0
        %2437 = vmatpush.bf16.msra.mxu0 0
        %2438 = vmatpush.bf16.msra.mxu0 0
        %2439 = vmatpush.bf16.msra.mxu0 0
        %2440 = vmatpush.bf16.msra.mxu0 0
        %2441 = vmatpush.bf16.msra.mxu0 %v2384
        %2442 = vmatpush.bf16.msra.mxu0 %v2383
        %2443 = vmatpush.bf16.msra.mxu0 %v2382
        %2444 = vmatpush.bf16.msra.mxu0 %v2381
        %2445 = vmatmul.bf16.gmra.mxu0 %v2390
        %v2446 = vpop.f32.mrf.mxu0
        %v2447 = vadd.f32 0.0, %v2446
        %v2448 = vpop.f32.mrf.mxu0
        %v2449 = vadd.f32 0.0, %v2448
        %2450 = vmatmul.bf16.gmra.mxu0 %v2393
        %v2451 = vpop.f32.mrf.mxu0
        %v2452 = vadd.f32 0.0, %v2451
        %v2453 = vpop.f32.mrf.mxu0
        %v2454 = vadd.f32 0.0, %v2453
        %2455 = vmatmul.bf16.gmra.mxu0 %v2396
        %v2456 = vpop.f32.mrf.mxu0
        %v2457 = vadd.f32 0.0, %v2456
        %v2458 = vpop.f32.mrf.mxu0
        %v2459 = vadd.f32 0.0, %v2458
        %2460 = vmatmul.bf16.gmra.mxu0 %v2399
        %v2461 = vpop.f32.mrf.mxu0
        %v2462 = vadd.f32 0.0, %v2461
        %v2463 = vpop.f32.mrf.mxu0
        %v2464 = vadd.f32 0.0, %v2463
        %2465 = vmatmul.bf16.gmra.mxu0 %v2402
        %v2466 = vpop.f32.mrf.mxu0
        %v2467 = vadd.f32 0.0, %v2466
        %v2468 = vpop.f32.mrf.mxu0
        %v2469 = vadd.f32 0.0, %v2468
        %2470 = vmatmul.bf16.gmra.mxu0 %v2405
        %v2471 = vpop.f32.mrf.mxu0
        %v2472 = vadd.f32 0.0, %v2471
        %v2473 = vpop.f32.mrf.mxu0
        %v2474 = vadd.f32 0.0, %v2473
        %2475 = vmatmul.bf16.gmra.mxu0 %v2408
        %v2476 = vpop.f32.mrf.mxu0
        %v2477 = vadd.f32 0.0, %v2476
        %v2478 = vpop.f32.mrf.mxu0
        %v2479 = vadd.f32 0.0, %v2478
        %2480 = vmatmul.bf16.gmra.mxu0 %v2411
        %v2481 = vpop.f32.mrf.mxu0
        %v2482 = vadd.f32 0.0, %v2481
        %v2483 = vpop.f32.mrf.mxu0
        %v2484 = vadd.f32 0.0, %v2483
        %2485 = vmatmul.bf16.gmra.mxu0 %v2414
        %v2486 = vpop.f32.mrf.mxu0
        %v2487 = vadd.f32 0.0, %v2486
        %v2488 = vpop.f32.mrf.mxu0
        %v2489 = vadd.f32 0.0, %v2488
        %2490 = vmatmul.bf16.gmra.mxu0 %v2417
        %v2491 = vpop.f32.mrf.mxu0
        %v2492 = vadd.f32 0.0, %v2491
        %v2493 = vpop.f32.mrf.mxu0
        %v2494 = vadd.f32 0.0, %v2493
        %2495 = vmatmul.bf16.gmra.mxu0 %v2420
        %v2496 = vpop.f32.mrf.mxu0
        %v2497 = vadd.f32 0.0, %v2496
        %v2498 = vpop.f32.mrf.mxu0
        %v2499 = vadd.f32 0.0, %v2498
        %2500 = vmatmul.bf16.gmra.mxu0 %v2423
        %v2501 = vpop.f32.mrf.mxu0
        %v2502 = vadd.f32 0.0, %v2501
        %v2503 = vpop.f32.mrf.mxu0
        %v2504 = vadd.f32 0.0, %v2503
        %2505 = vmatmul.bf16.gmra.mxu0 %v2426
        %v2506 = vpop.f32.mrf.mxu0
        %v2507 = vadd.f32 0.0, %v2506
        %v2508 = vpop.f32.mrf.mxu0
        %v2509 = vadd.f32 0.0, %v2508
        %2510 = vmatmul.bf16.gmra.mxu0 %v2429
        %v2511 = vpop.f32.mrf.mxu0
        %v2512 = vadd.f32 0.0, %v2511
        %v2513 = vpop.f32.mrf.mxu0
        %v2514 = vadd.f32 0.0, %v2513
        %2515 = vmatmul.bf16.gmra.mxu0 %v2432
        %v2516 = vpop.f32.mrf.mxu0
        %v2517 = vadd.f32 0.0, %v2516
        %v2518 = vpop.f32.mrf.mxu0
        %v2519 = vadd.f32 0.0, %v2518
        %2520 = vmatmul.bf16.gmra.mxu0 %v2435
        %v2521 = vpop.f32.mrf.mxu0
        %v2522 = vadd.f32 0.0, %v2521
        %v2523 = vpop.f32.mrf.mxu0
        %v2524 = vadd.f32 0.0, %v2523
        %2525 = vdwg.mxu0
        %v2526 = vadd.f32 %v2277, %v2447
        %v2527 = vadd.f32 %v2279, %v2449
        %v2528 = vadd.f32 %v2282, %v2452
        %v2529 = vadd.f32 %v2284, %v2454
        %v2530 = vadd.f32 %v2287, %v2457
        %v2531 = vadd.f32 %v2289, %v2459
        %v2532 = vadd.f32 %v2292, %v2462
        %v2533 = vadd.f32 %v2294, %v2464
        %v2534 = vadd.f32 %v2297, %v2467
        %v2535 = vadd.f32 %v2299, %v2469
        %v2536 = vadd.f32 %v2302, %v2472
        %v2537 = vadd.f32 %v2304, %v2474
        %v2538 = vadd.f32 %v2307, %v2477
        %v2539 = vadd.f32 %v2309, %v2479
        %v2540 = vadd.f32 %v2312, %v2482
        %v2541 = vadd.f32 %v2314, %v2484
        %v2542 = vadd.f32 %v2317, %v2487
        %v2543 = vadd.f32 %v2319, %v2489
        %v2544 = vadd.f32 %v2322, %v2492
        %v2545 = vadd.f32 %v2324, %v2494
        %v2546 = vadd.f32 %v2327, %v2497
        %v2547 = vadd.f32 %v2329, %v2499
        %v2548 = vadd.f32 %v2332, %v2502
        %v2549 = vadd.f32 %v2334, %v2504
        %v2550 = vadd.f32 %v2337, %v2507
        %v2551 = vadd.f32 %v2339, %v2509
        %v2552 = vadd.f32 %v2342, %v2512
        %v2553 = vadd.f32 %v2344, %v2514
        %v2554 = vadd.f32 %v2347, %v2517
        %v2555 = vadd.f32 %v2349, %v2519
        %v2556 = vadd.f32 %v2352, %v2522
        %v2557 = vadd.f32 %v2354, %v2524
        %s2558 = scalar_lea.vmem [#allocation8], 96
        %v2559 = vld [vmem:[%s2558] sm:$0xf]
        %v2560 = vld [vmem:[%s2558 + $0x4] sm:$0xf]
        %v2561 = vld [vmem:[%s2558 + $0x8] sm:$0xf]
        %v2562 = vld [vmem:[%s2558 + $0xc] sm:$0xf]
        %v2563 = vld [vmem:[%s2558 + $0x10] sm:$0xf]
        %v2564 = vld [vmem:[%s2558 + $0x14] sm:$0xf]
        %v2565 = vld [vmem:[%s2558 + $0x18] sm:$0xf]
        %v2566 = vld [vmem:[%s2558 + $0x1c] sm:$0xf]
        %v2575 = vunpack.c.l.b16 %v2559
        %v2576 = vunpack.c.l.b16 %v2560
        %v2577 = vunpack.c.l.b16 %v2561
        %v2578 = vunpack.c.l.b16 %v2562
        %v2579 = vunpack.c.l.b16 %v2563
        %v2580 = vunpack.c.l.b16 %v2564
        %v2581 = vunpack.c.l.b16 %v2565
        %v2582 = vunpack.c.l.b16 %v2566
        %v2583 = vpack.c.b16 %v2576, %v2575
        %v2584 = vpack.c.b16 %v2578, %v2577
        %v2585 = vpack.c.b16 %v2580, %v2579
        %v2586 = vpack.c.b16 %v2582, %v2581
        %v2592 = vsel %vm2073, %v1813, 0
        %2594 = vmatpush.bf16.msra.mxu0 0
        %2595 = vmatpush.bf16.msra.mxu0 0
        %2596 = vmatpush.bf16.msra.mxu0 0
        %2597 = vmatpush.bf16.msra.mxu0 0
        %2598 = vmatpush.bf16.msra.mxu0 %v2586
        %2599 = vmatpush.bf16.msra.mxu0 %v2585
        %2600 = vmatpush.bf16.msra.mxu0 %v2584
        %2601 = vmatpush.bf16.msra.mxu0 %v2583
        %2602 = vmatmul.bf16.gmra.mxu0 %v2223
        %v2603 = vpop.f32.mrf.mxu0
        %v2604 = vadd.f32 0.0, %v2603
        %v2605 = vpop.f32.mrf.mxu0
        %v2606 = vadd.f32 0.0, %v2605
        %2607 = vmatmul.bf16.gmra.mxu0 %v2226
        %v2608 = vpop.f32.mrf.mxu0
        %v2609 = vadd.f32 0.0, %v2608
        %v2610 = vpop.f32.mrf.mxu0
        %v2611 = vadd.f32 0.0, %v2610
        %2612 = vmatmul.bf16.gmra.mxu0 %v2229
        %v2613 = vpop.f32.mrf.mxu0
        %v2614 = vadd.f32 0.0, %v2613
        %v2615 = vpop.f32.mrf.mxu0
        %v2616 = vadd.f32 0.0, %v2615
        %2617 = vmatmul.bf16.gmra.mxu0 %v2232
        %v2618 = vpop.f32.mrf.mxu0
        %v2619 = vadd.f32 0.0, %v2618
        %v2620 = vpop.f32.mrf.mxu0
        %v2621 = vadd.f32 0.0, %v2620
        %2622 = vmatmul.bf16.gmra.mxu0 %v2235
        %v2623 = vpop.f32.mrf.mxu0
        %v2624 = vadd.f32 0.0, %v2623
        %v2625 = vpop.f32.mrf.mxu0
        %v2626 = vadd.f32 0.0, %v2625
        %2627 = vmatmul.bf16.gmra.mxu0 %v2238
        %v2628 = vpop.f32.mrf.mxu0
        %v2629 = vadd.f32 0.0, %v2628
        %v2630 = vpop.f32.mrf.mxu0
        %v2631 = vadd.f32 0.0, %v2630
        %2632 = vmatmul.bf16.gmra.mxu0 %v2241
        %v2633 = vpop.f32.mrf.mxu0
        %v2634 = vadd.f32 0.0, %v2633
        %v2635 = vpop.f32.mrf.mxu0
        %v2636 = vadd.f32 0.0, %v2635
        %2637 = vmatmul.bf16.gmra.mxu0 %v2244
        %v2638 = vpop.f32.mrf.mxu0
        %v2639 = vadd.f32 0.0, %v2638
        %v2640 = vpop.f32.mrf.mxu0
        %v2641 = vadd.f32 0.0, %v2640
        %2642 = vmatmul.bf16.gmra.mxu0 %v2247
        %v2643 = vpop.f32.mrf.mxu0
        %v2644 = vadd.f32 0.0, %v2643
        %v2645 = vpop.f32.mrf.mxu0
        %v2646 = vadd.f32 0.0, %v2645
        %2647 = vmatmul.bf16.gmra.mxu0 %v2250
        %v2648 = vpop.f32.mrf.mxu0
        %v2649 = vadd.f32 0.0, %v2648
        %v2650 = vpop.f32.mrf.mxu0
        %v2651 = vadd.f32 0.0, %v2650
        %2652 = vmatmul.bf16.gmra.mxu0 %v2253
        %v2653 = vpop.f32.mrf.mxu0
        %v2654 = vadd.f32 0.0, %v2653
        %v2655 = vpop.f32.mrf.mxu0
        %v2656 = vadd.f32 0.0, %v2655
        %2657 = vmatmul.bf16.gmra.mxu0 %v2256
        %v2658 = vpop.f32.mrf.mxu0
        %v2659 = vadd.f32 0.0, %v2658
        %v2660 = vpop.f32.mrf.mxu0
        %v2661 = vadd.f32 0.0, %v2660
        %2662 = vmatmul.bf16.gmra.mxu0 %v2259
        %v2663 = vpop.f32.mrf.mxu0
        %v2664 = vadd.f32 0.0, %v2663
        %v2665 = vpop.f32.mrf.mxu0
        %v2666 = vadd.f32 0.0, %v2665
        %2667 = vmatmul.bf16.gmra.mxu0 %v2262
        %v2668 = vpop.f32.mrf.mxu0
        %v2669 = vadd.f32 0.0, %v2668
        %v2670 = vpop.f32.mrf.mxu0
        %v2671 = vadd.f32 0.0, %v2670
        %2672 = vmatmul.bf16.gmra.mxu0 %v2265
        %v2673 = vpop.f32.mrf.mxu0
        %v2674 = vadd.f32 0.0, %v2673
        %v2675 = vpop.f32.mrf.mxu0
        %v2676 = vadd.f32 0.0, %v2675
        %2677 = vmatmul.bf16.gmra.mxu0 %v2592
        %v2678 = vpop.f32.mrf.mxu0
        %v2679 = vadd.f32 0.0, %v2678
        %v2680 = vpop.f32.mrf.mxu0
        %v2681 = vadd.f32 0.0, %v2680
        %2682 = vdwg.mxu0
        %v2683 = vadd.f32 %v2526, %v2604
        %v2684 = vadd.f32 %v2527, %v2606
        %v2685 = vadd.f32 %v2528, %v2609
        %v2686 = vadd.f32 %v2529, %v2611
        %v2687 = vadd.f32 %v2530, %v2614
        %v2688 = vadd.f32 %v2531, %v2616
        %v2689 = vadd.f32 %v2532, %v2619
        %v2690 = vadd.f32 %v2533, %v2621
        %v2691 = vadd.f32 %v2534, %v2624
        %v2692 = vadd.f32 %v2535, %v2626
        %v2693 = vadd.f32 %v2536, %v2629
        %v2694 = vadd.f32 %v2537, %v2631
        %v2695 = vadd.f32 %v2538, %v2634
        %v2696 = vadd.f32 %v2539, %v2636
        %v2697 = vadd.f32 %v2540, %v2639
        %v2698 = vadd.f32 %v2541, %v2641
        %v2699 = vadd.f32 %v2542, %v2644
        %v2700 = vadd.f32 %v2543, %v2646
        %v2701 = vadd.f32 %v2544, %v2649
        %v2702 = vadd.f32 %v2545, %v2651
        %v2703 = vadd.f32 %v2546, %v2654
        %v2704 = vadd.f32 %v2547, %v2656
        %v2705 = vadd.f32 %v2548, %v2659
        %v2706 = vadd.f32 %v2549, %v2661
        %v2707 = vadd.f32 %v2550, %v2664
        %v2708 = vadd.f32 %v2551, %v2666
        %v2709 = vadd.f32 %v2552, %v2669
        %v2710 = vadd.f32 %v2553, %v2671
        %v2711 = vadd.f32 %v2554, %v2674
        %v2712 = vadd.f32 %v2555, %v2676
        %v2713 = vadd.f32 %v2556, %v2679
        %v2714 = vadd.f32 %v2557, %v2681
        %s2715 = scalar_lea.vmem [#allocation8], 128
        %v2716 = vld [vmem:[%s2715] sm:$0xf]
        %v2717 = vld [vmem:[%s2715 + $0x4] sm:$0xf]
        %v2718 = vld [vmem:[%s2715 + $0x8] sm:$0xf]
        %v2719 = vld [vmem:[%s2715 + $0xc] sm:$0xf]
        %v2720 = vld [vmem:[%s2715 + $0x10] sm:$0xf]
        %v2721 = vld [vmem:[%s2715 + $0x14] sm:$0xf]
        %v2722 = vld [vmem:[%s2715 + $0x18] sm:$0xf]
        %v2723 = vld [vmem:[%s2715 + $0x1c] sm:$0xf]
        %v2732 = vunpack.c.l.b16 %v2716
        %v2733 = vunpack.c.l.b16 %v2717
        %v2734 = vunpack.c.l.b16 %v2718
        %v2735 = vunpack.c.l.b16 %v2719
        %v2736 = vunpack.c.l.b16 %v2720
        %v2737 = vunpack.c.l.b16 %v2721
        %v2738 = vunpack.c.l.b16 %v2722
        %v2739 = vunpack.c.l.b16 %v2723
        %v2740 = vpack.c.b16 %v2733, %v2732
        %v2741 = vpack.c.b16 %v2735, %v2734
        %v2742 = vpack.c.b16 %v2737, %v2736
        %v2743 = vpack.c.b16 %v2739, %v2738
        %v2748 = vsel %vm2073, %v1616, 0
        %2750 = vmatpush.bf16.msra.mxu0 0
        %2751 = vmatpush.bf16.msra.mxu0 0
        %2752 = vmatpush.bf16.msra.mxu0 0
        %2753 = vmatpush.bf16.msra.mxu0 0
        %2754 = vmatpush.bf16.msra.mxu0 %v2743
        %2755 = vmatpush.bf16.msra.mxu0 %v2742
        %2756 = vmatpush.bf16.msra.mxu0 %v2741
        %2757 = vmatpush.bf16.msra.mxu0 %v2740
        %2758 = vmatmul.bf16.gmra.mxu0 %v2076
        %v2759 = vpop.f32.mrf.mxu0
        %v2760 = vadd.f32 0.0, %v2759
        %v2761 = vpop.f32.mrf.mxu0
        %v2762 = vadd.f32 0.0, %v2761
        %2763 = vmatmul.bf16.gmra.mxu0 %v2078
        %v2764 = vpop.f32.mrf.mxu0
        %v2765 = vadd.f32 0.0, %v2764
        %v2766 = vpop.f32.mrf.mxu0
        %v2767 = vadd.f32 0.0, %v2766
        %2768 = vmatmul.bf16.gmra.mxu0 %v2080
        %v2769 = vpop.f32.mrf.mxu0
        %v2770 = vadd.f32 0.0, %v2769
        %v2771 = vpop.f32.mrf.mxu0
        %v2772 = vadd.f32 0.0, %v2771
        %2773 = vmatmul.bf16.gmra.mxu0 %v2082
        %v2774 = vpop.f32.mrf.mxu0
        %v2775 = vadd.f32 0.0, %v2774
        %v2776 = vpop.f32.mrf.mxu0
        %v2777 = vadd.f32 0.0, %v2776
        %2778 = vmatmul.bf16.gmra.mxu0 %v2084
        %v2779 = vpop.f32.mrf.mxu0
        %v2780 = vadd.f32 0.0, %v2779
        %v2781 = vpop.f32.mrf.mxu0
        %v2782 = vadd.f32 0.0, %v2781
        %2783 = vmatmul.bf16.gmra.mxu0 %v2086
        %v2784 = vpop.f32.mrf.mxu0
        %v2785 = vadd.f32 0.0, %v2784
        %v2786 = vpop.f32.mrf.mxu0
        %v2787 = vadd.f32 0.0, %v2786
        %2788 = vmatmul.bf16.gmra.mxu0 %v2088
        %v2789 = vpop.f32.mrf.mxu0
        %v2790 = vadd.f32 0.0, %v2789
        %v2791 = vpop.f32.mrf.mxu0
        %v2792 = vadd.f32 0.0, %v2791
        %2793 = vmatmul.bf16.gmra.mxu0 %v2090
        %v2794 = vpop.f32.mrf.mxu0
        %v2795 = vadd.f32 0.0, %v2794
        %v2796 = vpop.f32.mrf.mxu0
        %v2797 = vadd.f32 0.0, %v2796
        %2798 = vmatmul.bf16.gmra.mxu0 %v2092
        %v2799 = vpop.f32.mrf.mxu0
        %v2800 = vadd.f32 0.0, %v2799
        %v2801 = vpop.f32.mrf.mxu0
        %v2802 = vadd.f32 0.0, %v2801
        %2803 = vmatmul.bf16.gmra.mxu0 %v2094
        %v2804 = vpop.f32.mrf.mxu0
        %v2805 = vadd.f32 0.0, %v2804
        %v2806 = vpop.f32.mrf.mxu0
        %v2807 = vadd.f32 0.0, %v2806
        %2808 = vmatmul.bf16.gmra.mxu0 %v2096
        %v2809 = vpop.f32.mrf.mxu0
        %v2810 = vadd.f32 0.0, %v2809
        %v2811 = vpop.f32.mrf.mxu0
        %v2812 = vadd.f32 0.0, %v2811
        %2813 = vmatmul.bf16.gmra.mxu0 %v2098
        %v2814 = vpop.f32.mrf.mxu0
        %v2815 = vadd.f32 0.0, %v2814
        %v2816 = vpop.f32.mrf.mxu0
        %v2817 = vadd.f32 0.0, %v2816
        %2818 = vmatmul.bf16.gmra.mxu0 %v2100
        %v2819 = vpop.f32.mrf.mxu0
        %v2820 = vadd.f32 0.0, %v2819
        %v2821 = vpop.f32.mrf.mxu0
        %v2822 = vadd.f32 0.0, %v2821
        %2823 = vmatmul.bf16.gmra.mxu0 %v2102
        %v2824 = vpop.f32.mrf.mxu0
        %v2825 = vadd.f32 0.0, %v2824
        %v2826 = vpop.f32.mrf.mxu0
        %v2827 = vadd.f32 0.0, %v2826
        %2828 = vmatmul.bf16.gmra.mxu0 %v2104
        %v2829 = vpop.f32.mrf.mxu0
        %v2830 = vadd.f32 0.0, %v2829
        %v2831 = vpop.f32.mrf.mxu0
        %v2832 = vadd.f32 0.0, %v2831
        %2833 = vmatmul.bf16.gmra.mxu0 %v2748
        %v2834 = vpop.f32.mrf.mxu0
        %v2835 = vadd.f32 0.0, %v2834
        %v2836 = vpop.f32.mrf.mxu0
        %v2837 = vadd.f32 0.0, %v2836
        %2838 = vdwg.mxu0
        %v2839 = vadd.f32 %v2683, %v2760
        %v2840 = vadd.f32 %v2684, %v2762
        %v2841 = vadd.f32 %v2685, %v2765
        %v2842 = vadd.f32 %v2686, %v2767
        %v2843 = vadd.f32 %v2687, %v2770
        %v2844 = vadd.f32 %v2688, %v2772
        %v2845 = vadd.f32 %v2689, %v2775
        %v2846 = vadd.f32 %v2690, %v2777
        %v2847 = vadd.f32 %v2691, %v2780
        %v2848 = vadd.f32 %v2692, %v2782
        %v2849 = vadd.f32 %v2693, %v2785
        %v2850 = vadd.f32 %v2694, %v2787
        %v2851 = vadd.f32 %v2695, %v2790
        %v2852 = vadd.f32 %v2696, %v2792
        %v2853 = vadd.f32 %v2697, %v2795
        %v2854 = vadd.f32 %v2698, %v2797
        %v2855 = vadd.f32 %v2699, %v2800
        %v2856 = vadd.f32 %v2700, %v2802
        %v2857 = vadd.f32 %v2701, %v2805
        %v2858 = vadd.f32 %v2702, %v2807
        %v2859 = vadd.f32 %v2703, %v2810
        %v2860 = vadd.f32 %v2704, %v2812
        %v2861 = vadd.f32 %v2705, %v2815
        %v2862 = vadd.f32 %v2706, %v2817
        %v2863 = vadd.f32 %v2707, %v2820
        %v2864 = vadd.f32 %v2708, %v2822
        %v2865 = vadd.f32 %v2709, %v2825
        %v2866 = vadd.f32 %v2710, %v2827
        %v2867 = vadd.f32 %v2711, %v2830
        %v2868 = vadd.f32 %v2712, %v2832
        %v2869 = vadd.f32 %v2713, %v2835
        %v2870 = vadd.f32 %v2714, %v2837
        %s2871 = scalar_lea.vmem [#allocation8], 160
        %v2872 = vld [vmem:[%s2871] sm:$0xf]
        %v2873 = vld [vmem:[%s2871 + $0x4] sm:$0xf]
        %v2874 = vld [vmem:[%s2871 + $0x8] sm:$0xf]
        %v2875 = vld [vmem:[%s2871 + $0xc] sm:$0xf]
        %v2876 = vld [vmem:[%s2871 + $0x10] sm:$0xf]
        %v2877 = vld [vmem:[%s2871 + $0x14] sm:$0xf]
        %v2878 = vld [vmem:[%s2871 + $0x18] sm:$0xf]
        %v2879 = vld [vmem:[%s2871 + $0x1c] sm:$0xf]
        %v2888 = vunpack.c.l.b16 %v2872
        %v2889 = vunpack.c.l.b16 %v2873
        %v2890 = vunpack.c.l.b16 %v2874
        %v2891 = vunpack.c.l.b16 %v2875
        %v2892 = vunpack.c.l.b16 %v2876
        %v2893 = vunpack.c.l.b16 %v2877
        %v2894 = vunpack.c.l.b16 %v2878
        %v2895 = vunpack.c.l.b16 %v2879
        %v2896 = vpack.c.b16 %v2889, %v2888
        %v2897 = vpack.c.b16 %v2891, %v2890
        %v2898 = vpack.c.b16 %v2893, %v2892
        %v2899 = vpack.c.b16 %v2895, %v2894
        %v2905 = vsel %vm2073, %v2030, 0
        %2907 = vmatpush.bf16.msra.mxu0 0
        %2908 = vmatpush.bf16.msra.mxu0 0
        %2909 = vmatpush.bf16.msra.mxu0 0
        %2910 = vmatpush.bf16.msra.mxu0 0
        %2911 = vmatpush.bf16.msra.mxu0 %v2899
        %2912 = vmatpush.bf16.msra.mxu0 %v2898
        %2913 = vmatpush.bf16.msra.mxu0 %v2897
        %2914 = vmatpush.bf16.msra.mxu0 %v2896
        %2915 = vmatmul.bf16.gmra.mxu0 %v2393
        %v2916 = vpop.f32.mrf.mxu0
        %v2917 = vadd.f32 0.0, %v2916
        %v2918 = vpop.f32.mrf.mxu0
        %v2919 = vadd.f32 0.0, %v2918
        %2920 = vmatmul.bf16.gmra.mxu0 %v2396
        %v2921 = vpop.f32.mrf.mxu0
        %v2922 = vadd.f32 0.0, %v2921
        %v2923 = vpop.f32.mrf.mxu0
        %v2924 = vadd.f32 0.0, %v2923
        %2925 = vmatmul.bf16.gmra.mxu0 %v2399
        %v2926 = vpop.f32.mrf.mxu0
        %v2927 = vadd.f32 0.0, %v2926
        %v2928 = vpop.f32.mrf.mxu0
        %v2929 = vadd.f32 0.0, %v2928
        %2930 = vmatmul.bf16.gmra.mxu0 %v2402
        %v2931 = vpop.f32.mrf.mxu0
        %v2932 = vadd.f32 0.0, %v2931
        %v2933 = vpop.f32.mrf.mxu0
        %v2934 = vadd.f32 0.0, %v2933
        %2935 = vmatmul.bf16.gmra.mxu0 %v2405
        %v2936 = vpop.f32.mrf.mxu0
        %v2937 = vadd.f32 0.0, %v2936
        %v2938 = vpop.f32.mrf.mxu0
        %v2939 = vadd.f32 0.0, %v2938
        %2940 = vmatmul.bf16.gmra.mxu0 %v2408
        %v2941 = vpop.f32.mrf.mxu0
        %v2942 = vadd.f32 0.0, %v2941
        %v2943 = vpop.f32.mrf.mxu0
        %v2944 = vadd.f32 0.0, %v2943
        %2945 = vmatmul.bf16.gmra.mxu0 %v2411
        %v2946 = vpop.f32.mrf.mxu0
        %v2947 = vadd.f32 0.0, %v2946
        %v2948 = vpop.f32.mrf.mxu0
        %v2949 = vadd.f32 0.0, %v2948
        %2950 = vmatmul.bf16.gmra.mxu0 %v2414
        %v2951 = vpop.f32.mrf.mxu0
        %v2952 = vadd.f32 0.0, %v2951
        %v2953 = vpop.f32.mrf.mxu0
        %v2954 = vadd.f32 0.0, %v2953
        %2955 = vmatmul.bf16.gmra.mxu0 %v2417
        %v2956 = vpop.f32.mrf.mxu0
        %v2957 = vadd.f32 0.0, %v2956
        %v2958 = vpop.f32.mrf.mxu0
        %v2959 = vadd.f32 0.0, %v2958
        %2960 = vmatmul.bf16.gmra.mxu0 %v2420
        %v2961 = vpop.f32.mrf.mxu0
        %v2962 = vadd.f32 0.0, %v2961
        %v2963 = vpop.f32.mrf.mxu0
        %v2964 = vadd.f32 0.0, %v2963
        %2965 = vmatmul.bf16.gmra.mxu0 %v2423
        %v2966 = vpop.f32.mrf.mxu0
        %v2967 = vadd.f32 0.0, %v2966
        %v2968 = vpop.f32.mrf.mxu0
        %v2969 = vadd.f32 0.0, %v2968
        %2970 = vmatmul.bf16.gmra.mxu0 %v2426
        %v2971 = vpop.f32.mrf.mxu0
        %v2972 = vadd.f32 0.0, %v2971
        %v2973 = vpop.f32.mrf.mxu0
        %v2974 = vadd.f32 0.0, %v2973
        %2975 = vmatmul.bf16.gmra.mxu0 %v2429
        %v2976 = vpop.f32.mrf.mxu0
        %v2977 = vadd.f32 0.0, %v2976
        %v2978 = vpop.f32.mrf.mxu0
        %v2979 = vadd.f32 0.0, %v2978
        %2980 = vmatmul.bf16.gmra.mxu0 %v2432
        %v2981 = vpop.f32.mrf.mxu0
        %v2982 = vadd.f32 0.0, %v2981
        %v2983 = vpop.f32.mrf.mxu0
        %v2984 = vadd.f32 0.0, %v2983
        %2985 = vmatmul.bf16.gmra.mxu0 %v2435
        %v2986 = vpop.f32.mrf.mxu0
        %v2987 = vadd.f32 0.0, %v2986
        %v2988 = vpop.f32.mrf.mxu0
        %v2989 = vadd.f32 0.0, %v2988
        %2990 = vmatmul.bf16.gmra.mxu0 %v2905
        %v2991 = vpop.f32.mrf.mxu0
        %v2992 = vadd.f32 0.0, %v2991
        %v2993 = vpop.f32.mrf.mxu0
        %v2994 = vadd.f32 0.0, %v2993
        %2995 = vdwg.mxu0
        %v2996 = vadd.f32 %v2839, %v2917
        %v2997 = vadd.f32 %v2840, %v2919
        %v2998 = vadd.f32 %v2841, %v2922
        %v2999 = vadd.f32 %v2842, %v2924
        %v3000 = vadd.f32 %v2843, %v2927
        %v3001 = vadd.f32 %v2844, %v2929
        %v3002 = vadd.f32 %v2845, %v2932
        %v3003 = vadd.f32 %v2846, %v2934
        %v3004 = vadd.f32 %v2847, %v2937
        %v3005 = vadd.f32 %v2848, %v2939
        %v3006 = vadd.f32 %v2849, %v2942
        %v3007 = vadd.f32 %v2850, %v2944
        %v3008 = vadd.f32 %v2851, %v2947
        %v3009 = vadd.f32 %v2852, %v2949
        %v3010 = vadd.f32 %v2853, %v2952
        %v3011 = vadd.f32 %v2854, %v2954
        %v3012 = vadd.f32 %v2855, %v2957
        %v3013 = vadd.f32 %v2856, %v2959
        %v3014 = vadd.f32 %v2857, %v2962
        %v3015 = vadd.f32 %v2858, %v2964
        %v3016 = vadd.f32 %v2859, %v2967
        %v3017 = vadd.f32 %v2860, %v2969
        %v3018 = vadd.f32 %v2861, %v2972
        %v3019 = vadd.f32 %v2862, %v2974
        %v3020 = vadd.f32 %v2863, %v2977
        %v3021 = vadd.f32 %v2864, %v2979
        %v3022 = vadd.f32 %v2865, %v2982
        %v3023 = vadd.f32 %v2866, %v2984
        %v3024 = vadd.f32 %v2867, %v2987
        %v3025 = vadd.f32 %v2868, %v2989
        %v3026 = vadd.f32 %v2869, %v2992
        %v3027 = vadd.f32 %v2870, %v2994
        %s3028 = scalar_lea.vmem [#allocation8], 192
        %v3029 = vld [vmem:[%s3028] sm:$0xf]
        %v3030 = vld [vmem:[%s3028 + $0x4] sm:$0xf]
        %v3031 = vld [vmem:[%s3028 + $0x8] sm:$0xf]
        %v3032 = vld [vmem:[%s3028 + $0xc] sm:$0xf]
        %v3033 = vld [vmem:[%s3028 + $0x10] sm:$0xf]
        %v3034 = vld [vmem:[%s3028 + $0x14] sm:$0xf]
        %v3035 = vld [vmem:[%s3028 + $0x18] sm:$0xf]
        %v3036 = vld [vmem:[%s3028 + $0x1c] sm:$0xf]
        %v3045 = vunpack.c.l.b16 %v3029
        %v3046 = vunpack.c.l.b16 %v3030
        %v3047 = vunpack.c.l.b16 %v3031
        %v3048 = vunpack.c.l.b16 %v3032
        %v3049 = vunpack.c.l.b16 %v3033
        %v3050 = vunpack.c.l.b16 %v3034
        %v3051 = vunpack.c.l.b16 %v3035
        %v3052 = vunpack.c.l.b16 %v3036
        %v3053 = vpack.c.b16 %v3046, %v3045
        %v3054 = vpack.c.b16 %v3048, %v3047
        %v3055 = vpack.c.b16 %v3050, %v3049
        %v3056 = vpack.c.b16 %v3052, %v3051
        %v3062 = vsel %vm2073, %v1814, 0
        %3064 = vmatpush.bf16.msra.mxu0 0
        %3065 = vmatpush.bf16.msra.mxu0 0
        %3066 = vmatpush.bf16.msra.mxu0 0
        %3067 = vmatpush.bf16.msra.mxu0 0
        %3068 = vmatpush.bf16.msra.mxu0 %v3056
        %3069 = vmatpush.bf16.msra.mxu0 %v3055
        %3070 = vmatpush.bf16.msra.mxu0 %v3054
        %3071 = vmatpush.bf16.msra.mxu0 %v3053
        %3072 = vmatmul.bf16.gmra.mxu0 %v2226
        %v3073 = vpop.f32.mrf.mxu0
        %v3074 = vadd.f32 0.0, %v3073
        %v3075 = vpop.f32.mrf.mxu0
        %v3076 = vadd.f32 0.0, %v3075
        %3077 = vmatmul.bf16.gmra.mxu0 %v2229
        %v3078 = vpop.f32.mrf.mxu0
        %v3079 = vadd.f32 0.0, %v3078
        %v3080 = vpop.f32.mrf.mxu0
        %v3081 = vadd.f32 0.0, %v3080
        %3082 = vmatmul.bf16.gmra.mxu0 %v2232
        %v3083 = vpop.f32.mrf.mxu0
        %v3084 = vadd.f32 0.0, %v3083
        %v3085 = vpop.f32.mrf.mxu0
        %v3086 = vadd.f32 0.0, %v3085
        %3087 = vmatmul.bf16.gmra.mxu0 %v2235
        %v3088 = vpop.f32.mrf.mxu0
        %v3089 = vadd.f32 0.0, %v3088
        %v3090 = vpop.f32.mrf.mxu0
        %v3091 = vadd.f32 0.0, %v3090
        %3092 = vmatmul.bf16.gmra.mxu0 %v2238
        %v3093 = vpop.f32.mrf.mxu0
        %v3094 = vadd.f32 0.0, %v3093
        %v3095 = vpop.f32.mrf.mxu0
        %v3096 = vadd.f32 0.0, %v3095
        %3097 = vmatmul.bf16.gmra.mxu0 %v2241
        %v3098 = vpop.f32.mrf.mxu0
        %v3099 = vadd.f32 0.0, %v3098
        %v3100 = vpop.f32.mrf.mxu0
        %v3101 = vadd.f32 0.0, %v3100
        %3102 = vmatmul.bf16.gmra.mxu0 %v2244
        %v3103 = vpop.f32.mrf.mxu0
        %v3104 = vadd.f32 0.0, %v3103
        %v3105 = vpop.f32.mrf.mxu0
        %v3106 = vadd.f32 0.0, %v3105
        %3107 = vmatmul.bf16.gmra.mxu0 %v2247
        %v3108 = vpop.f32.mrf.mxu0
        %v3109 = vadd.f32 0.0, %v3108
        %v3110 = vpop.f32.mrf.mxu0
        %v3111 = vadd.f32 0.0, %v3110
        %3112 = vmatmul.bf16.gmra.mxu0 %v2250
        %v3113 = vpop.f32.mrf.mxu0
        %v3114 = vadd.f32 0.0, %v3113
        %v3115 = vpop.f32.mrf.mxu0
        %v3116 = vadd.f32 0.0, %v3115
        %3117 = vmatmul.bf16.gmra.mxu0 %v2253
        %v3118 = vpop.f32.mrf.mxu0
        %v3119 = vadd.f32 0.0, %v3118
        %v3120 = vpop.f32.mrf.mxu0
        %v3121 = vadd.f32 0.0, %v3120
        %3122 = vmatmul.bf16.gmra.mxu0 %v2256
        %v3123 = vpop.f32.mrf.mxu0
        %v3124 = vadd.f32 0.0, %v3123
        %v3125 = vpop.f32.mrf.mxu0
        %v3126 = vadd.f32 0.0, %v3125
        %3127 = vmatmul.bf16.gmra.mxu0 %v2259
        %v3128 = vpop.f32.mrf.mxu0
        %v3129 = vadd.f32 0.0, %v3128
        %v3130 = vpop.f32.mrf.mxu0
        %v3131 = vadd.f32 0.0, %v3130
        %3132 = vmatmul.bf16.gmra.mxu0 %v2262
        %v3133 = vpop.f32.mrf.mxu0
        %v3134 = vadd.f32 0.0, %v3133
        %v3135 = vpop.f32.mrf.mxu0
        %v3136 = vadd.f32 0.0, %v3135
        %3137 = vmatmul.bf16.gmra.mxu0 %v2265
        %v3138 = vpop.f32.mrf.mxu0
        %v3139 = vadd.f32 0.0, %v3138
        %v3140 = vpop.f32.mrf.mxu0
        %v3141 = vadd.f32 0.0, %v3140
        %3142 = vmatmul.bf16.gmra.mxu0 %v2592
        %v3143 = vpop.f32.mrf.mxu0
        %v3144 = vadd.f32 0.0, %v3143
        %v3145 = vpop.f32.mrf.mxu0
        %v3146 = vadd.f32 0.0, %v3145
        %3147 = vmatmul.bf16.gmra.mxu0 %v3062
        %v3148 = vpop.f32.mrf.mxu0
        %v3149 = vadd.f32 0.0, %v3148
        %v3150 = vpop.f32.mrf.mxu0
        %v3151 = vadd.f32 0.0, %v3150
        %3152 = vdwg.mxu0
        %v3153 = vadd.f32 %v2996, %v3074
        %v3154 = vadd.f32 %v2997, %v3076
        %v3155 = vadd.f32 %v2998, %v3079
        %v3156 = vadd.f32 %v2999, %v3081
        %v3157 = vadd.f32 %v3000, %v3084
        %v3158 = vadd.f32 %v3001, %v3086
        %v3159 = vadd.f32 %v3002, %v3089
        %v3160 = vadd.f32 %v3003, %v3091
        %v3161 = vadd.f32 %v3004, %v3094
        %v3162 = vadd.f32 %v3005, %v3096
        %v3163 = vadd.f32 %v3006, %v3099
        %v3164 = vadd.f32 %v3007, %v3101
        %v3165 = vadd.f32 %v3008, %v3104
        %v3166 = vadd.f32 %v3009, %v3106
        %v3167 = vadd.f32 %v3010, %v3109
        %v3168 = vadd.f32 %v3011, %v3111
        %v3169 = vadd.f32 %v3012, %v3114
        %v3170 = vadd.f32 %v3013, %v3116
        %v3171 = vadd.f32 %v3014, %v3119
        %v3172 = vadd.f32 %v3015, %v3121
        %v3173 = vadd.f32 %v3016, %v3124
        %v3174 = vadd.f32 %v3017, %v3126
        %v3175 = vadd.f32 %v3018, %v3129
        %v3176 = vadd.f32 %v3019, %v3131
        %v3177 = vadd.f32 %v3020, %v3134
        %v3178 = vadd.f32 %v3021, %v3136
        %v3179 = vadd.f32 %v3022, %v3139
        %v3180 = vadd.f32 %v3023, %v3141
        %v3181 = vadd.f32 %v3024, %v3144
        %v3182 = vadd.f32 %v3025, %v3146
        %v3183 = vadd.f32 %v3026, %v3149
        %v3184 = vadd.f32 %v3027, %v3151
        %s3185 = scalar_lea.vmem [#allocation8], 224
        %v3186 = vld [vmem:[%s3185] sm:$0xf]
        %v3187 = vld [vmem:[%s3185 + $0x4] sm:$0xf]
        %v3188 = vld [vmem:[%s3185 + $0x8] sm:$0xf]
        %v3189 = vld [vmem:[%s3185 + $0xc] sm:$0xf]
        %v3190 = vld [vmem:[%s3185 + $0x10] sm:$0xf]
        %v3191 = vld [vmem:[%s3185 + $0x14] sm:$0xf]
        %v3192 = vld [vmem:[%s3185 + $0x18] sm:$0xf]
        %v3193 = vld [vmem:[%s3185 + $0x1c] sm:$0xf]
        %v3202 = vunpack.c.l.b16 %v3186
        %v3203 = vunpack.c.l.b16 %v3187
        %v3204 = vunpack.c.l.b16 %v3188
        %v3205 = vunpack.c.l.b16 %v3189
        %v3206 = vunpack.c.l.b16 %v3190
        %v3207 = vunpack.c.l.b16 %v3191
        %v3208 = vunpack.c.l.b16 %v3192
        %v3209 = vunpack.c.l.b16 %v3193
        %v3210 = vpack.c.b16 %v3203, %v3202
        %v3211 = vpack.c.b16 %v3205, %v3204
        %v3212 = vpack.c.b16 %v3207, %v3206
        %v3213 = vpack.c.b16 %v3209, %v3208
        %v3218 = vsel %vm2073, %v1617, 0
        %3220 = vmatpush.bf16.msra.mxu0 0
        %3221 = vmatpush.bf16.msra.mxu0 0
        %3222 = vmatpush.bf16.msra.mxu0 0
        %3223 = vmatpush.bf16.msra.mxu0 0
        %3224 = vmatpush.bf16.msra.mxu0 %v3213
        %3225 = vmatpush.bf16.msra.mxu0 %v3212
        %3226 = vmatpush.bf16.msra.mxu0 %v3211
        %3227 = vmatpush.bf16.msra.mxu0 %v3210
        %3228 = vmatmul.bf16.gmra.mxu0 %v2078
        %v3229 = vpop.f32.mrf.mxu0
        %v3230 = vadd.f32 0.0, %v3229
        %v3231 = vpop.f32.mrf.mxu0
        %v3232 = vadd.f32 0.0, %v3231
        %3233 = vmatmul.bf16.gmra.mxu0 %v2080
        %v3234 = vpop.f32.mrf.mxu0
        %v3235 = vadd.f32 0.0, %v3234
        %v3236 = vpop.f32.mrf.mxu0
        %v3237 = vadd.f32 0.0, %v3236
        %3238 = vmatmul.bf16.gmra.mxu0 %v2082
        %v3239 = vpop.f32.mrf.mxu0
        %v3240 = vadd.f32 0.0, %v3239
        %v3241 = vpop.f32.mrf.mxu0
        %v3242 = vadd.f32 0.0, %v3241
        %3243 = vmatmul.bf16.gmra.mxu0 %v2084
        %v3244 = vpop.f32.mrf.mxu0
        %v3245 = vadd.f32 0.0, %v3244
        %v3246 = vpop.f32.mrf.mxu0
        %v3247 = vadd.f32 0.0, %v3246
        %3248 = vmatmul.bf16.gmra.mxu0 %v2086
        %v3249 = vpop.f32.mrf.mxu0
        %v3250 = vadd.f32 0.0, %v3249
        %v3251 = vpop.f32.mrf.mxu0
        %v3252 = vadd.f32 0.0, %v3251
        %3253 = vmatmul.bf16.gmra.mxu0 %v2088
        %v3254 = vpop.f32.mrf.mxu0
        %v3255 = vadd.f32 0.0, %v3254
        %v3256 = vpop.f32.mrf.mxu0
        %v3257 = vadd.f32 0.0, %v3256
        %3258 = vmatmul.bf16.gmra.mxu0 %v2090
        %v3259 = vpop.f32.mrf.mxu0
        %v3260 = vadd.f32 0.0, %v3259
        %v3261 = vpop.f32.mrf.mxu0
        %v3262 = vadd.f32 0.0, %v3261
        %3263 = vmatmul.bf16.gmra.mxu0 %v2092
        %v3264 = vpop.f32.mrf.mxu0
        %v3265 = vadd.f32 0.0, %v3264
        %v3266 = vpop.f32.mrf.mxu0
        %v3267 = vadd.f32 0.0, %v3266
        %3268 = vmatmul.bf16.gmra.mxu0 %v2094
        %v3269 = vpop.f32.mrf.mxu0
        %v3270 = vadd.f32 0.0, %v3269
        %v3271 = vpop.f32.mrf.mxu0
        %v3272 = vadd.f32 0.0, %v3271
        %3273 = vmatmul.bf16.gmra.mxu0 %v2096
        %v3274 = vpop.f32.mrf.mxu0
        %v3275 = vadd.f32 0.0, %v3274
        %v3276 = vpop.f32.mrf.mxu0
        %v3277 = vadd.f32 0.0, %v3276
        %3278 = vmatmul.bf16.gmra.mxu0 %v2098
        %v3279 = vpop.f32.mrf.mxu0
        %v3280 = vadd.f32 0.0, %v3279
        %v3281 = vpop.f32.mrf.mxu0
        %v3282 = vadd.f32 0.0, %v3281
        %3283 = vmatmul.bf16.gmra.mxu0 %v2100
        %v3284 = vpop.f32.mrf.mxu0
        %v3285 = vadd.f32 0.0, %v3284
        %v3286 = vpop.f32.mrf.mxu0
        %v3287 = vadd.f32 0.0, %v3286
        %3288 = vmatmul.bf16.gmra.mxu0 %v2102
        %v3289 = vpop.f32.mrf.mxu0
        %v3290 = vadd.f32 0.0, %v3289
        %v3291 = vpop.f32.mrf.mxu0
        %v3292 = vadd.f32 0.0, %v3291
        %3293 = vmatmul.bf16.gmra.mxu0 %v2104
        %v3294 = vpop.f32.mrf.mxu0
        %v3295 = vadd.f32 0.0, %v3294
        %v3296 = vpop.f32.mrf.mxu0
        %v3297 = vadd.f32 0.0, %v3296
        %3298 = vmatmul.bf16.gmra.mxu0 %v2748
        %v3299 = vpop.f32.mrf.mxu0
        %v3300 = vadd.f32 0.0, %v3299
        %v3301 = vpop.f32.mrf.mxu0
        %v3302 = vadd.f32 0.0, %v3301
        %3303 = vmatmul.bf16.gmra.mxu0 %v3218
        %v3304 = vpop.f32.mrf.mxu0
        %v3305 = vadd.f32 0.0, %v3304
        %v3306 = vpop.f32.mrf.mxu0
        %v3307 = vadd.f32 0.0, %v3306
        %3308 = vdwg.mxu0
        %v3309 = vadd.f32 %v3153, %v3230
        %v3310 = vadd.f32 %v3154, %v3232
        %v3311 = vadd.f32 %v3155, %v3235
        %v3312 = vadd.f32 %v3156, %v3237
        %v3313 = vadd.f32 %v3157, %v3240
        %v3314 = vadd.f32 %v3158, %v3242
        %v3315 = vadd.f32 %v3159, %v3245
        %v3316 = vadd.f32 %v3160, %v3247
        %v3317 = vadd.f32 %v3161, %v3250
        %v3318 = vadd.f32 %v3162, %v3252
        %v3319 = vadd.f32 %v3163, %v3255
        %v3320 = vadd.f32 %v3164, %v3257
        %v3321 = vadd.f32 %v3165, %v3260
        %v3322 = vadd.f32 %v3166, %v3262
        %v3323 = vadd.f32 %v3167, %v3265
        %v3324 = vadd.f32 %v3168, %v3267
        %v3325 = vadd.f32 %v3169, %v3270
        %v3326 = vadd.f32 %v3170, %v3272
        %v3327 = vadd.f32 %v3171, %v3275
        %v3328 = vadd.f32 %v3172, %v3277
        %v3329 = vadd.f32 %v3173, %v3280
        %v3330 = vadd.f32 %v3174, %v3282
        %v3331 = vadd.f32 %v3175, %v3285
        %v3332 = vadd.f32 %v3176, %v3287
        %v3333 = vadd.f32 %v3177, %v3290
        %v3334 = vadd.f32 %v3178, %v3292
        %v3335 = vadd.f32 %v3179, %v3295
        %v3336 = vadd.f32 %v3180, %v3297
        %v3337 = vadd.f32 %v3181, %v3300
        %v3338 = vadd.f32 %v3182, %v3302
        %v3339 = vadd.f32 %v3183, %v3305
        %v3340 = vadd.f32 %v3184, %v3307
        %s3341 = scalar_lea.vmem [#allocation8], 256
        %v3342 = vld [vmem:[%s3341] sm:$0xf]
        %v3343 = vld [vmem:[%s3341 + $0x4] sm:$0xf]
        %v3344 = vld [vmem:[%s3341 + $0x8] sm:$0xf]
        %v3345 = vld [vmem:[%s3341 + $0xc] sm:$0xf]
        %v3346 = vld [vmem:[%s3341 + $0x10] sm:$0xf]
        %v3347 = vld [vmem:[%s3341 + $0x14] sm:$0xf]
        %v3348 = vld [vmem:[%s3341 + $0x18] sm:$0xf]
        %v3349 = vld [vmem:[%s3341 + $0x1c] sm:$0xf]
        %v3358 = vunpack.c.l.b16 %v3342
        %v3359 = vunpack.c.l.b16 %v3343
        %v3360 = vunpack.c.l.b16 %v3344
        %v3361 = vunpack.c.l.b16 %v3345
        %v3362 = vunpack.c.l.b16 %v3346
        %v3363 = vunpack.c.l.b16 %v3347
        %v3364 = vunpack.c.l.b16 %v3348
        %v3365 = vunpack.c.l.b16 %v3349
        %v3366 = vpack.c.b16 %v3359, %v3358
        %v3367 = vpack.c.b16 %v3361, %v3360
        %v3368 = vpack.c.b16 %v3363, %v3362
        %v3369 = vpack.c.b16 %v3365, %v3364
        %v3375 = vsel %vm2073, %v2031, 0
        %3377 = vmatpush.bf16.msra.mxu0 0
        %3378 = vmatpush.bf16.msra.mxu0 0
        %3379 = vmatpush.bf16.msra.mxu0 0
        %3380 = vmatpush.bf16.msra.mxu0 0
        %3381 = vmatpush.bf16.msra.mxu0 %v3369
        %3382 = vmatpush.bf16.msra.mxu0 %v3368
        %3383 = vmatpush.bf16.msra.mxu0 %v3367
        %3384 = vmatpush.bf16.msra.mxu0 %v3366
        %3385 = vmatmul.bf16.gmra.mxu0 %v2396
        %v3386 = vpop.f32.mrf.mxu0
        %v3387 = vadd.f32 0.0, %v3386
        %v3388 = vpop.f32.mrf.mxu0
        %v3389 = vadd.f32 0.0, %v3388
        %3390 = vmatmul.bf16.gmra.mxu0 %v2399
        %v3391 = vpop.f32.mrf.mxu0
        %v3392 = vadd.f32 0.0, %v3391
        %v3393 = vpop.f32.mrf.mxu0
        %v3394 = vadd.f32 0.0, %v3393
        %3395 = vmatmul.bf16.gmra.mxu0 %v2402
        %v3396 = vpop.f32.mrf.mxu0
        %v3397 = vadd.f32 0.0, %v3396
        %v3398 = vpop.f32.mrf.mxu0
        %v3399 = vadd.f32 0.0, %v3398
        %3400 = vmatmul.bf16.gmra.mxu0 %v2405
        %v3401 = vpop.f32.mrf.mxu0
        %v3402 = vadd.f32 0.0, %v3401
        %v3403 = vpop.f32.mrf.mxu0
        %v3404 = vadd.f32 0.0, %v3403
        %3405 = vmatmul.bf16.gmra.mxu0 %v2408
        %v3406 = vpop.f32.mrf.mxu0
        %v3407 = vadd.f32 0.0, %v3406
        %v3408 = vpop.f32.mrf.mxu0
        %v3409 = vadd.f32 0.0, %v3408
        %3410 = vmatmul.bf16.gmra.mxu0 %v2411
        %v3411 = vpop.f32.mrf.mxu0
        %v3412 = vadd.f32 0.0, %v3411
        %v3413 = vpop.f32.mrf.mxu0
        %v3414 = vadd.f32 0.0, %v3413
        %3415 = vmatmul.bf16.gmra.mxu0 %v2414
        %v3416 = vpop.f32.mrf.mxu0
        %v3417 = vadd.f32 0.0, %v3416
        %v3418 = vpop.f32.mrf.mxu0
        %v3419 = vadd.f32 0.0, %v3418
        %3420 = vmatmul.bf16.gmra.mxu0 %v2417
        %v3421 = vpop.f32.mrf.mxu0
        %v3422 = vadd.f32 0.0, %v3421
        %v3423 = vpop.f32.mrf.mxu0
        %v3424 = vadd.f32 0.0, %v3423
        %3425 = vmatmul.bf16.gmra.mxu0 %v2420
        %v3426 = vpop.f32.mrf.mxu0
        %v3427 = vadd.f32 0.0, %v3426
        %v3428 = vpop.f32.mrf.mxu0
        %v3429 = vadd.f32 0.0, %v3428
        %3430 = vmatmul.bf16.gmra.mxu0 %v2423
        %v3431 = vpop.f32.mrf.mxu0
        %v3432 = vadd.f32 0.0, %v3431
        %v3433 = vpop.f32.mrf.mxu0
        %v3434 = vadd.f32 0.0, %v3433
        %3435 = vmatmul.bf16.gmra.mxu0 %v2426
        %v3436 = vpop.f32.mrf.mxu0
        %v3437 = vadd.f32 0.0, %v3436
        %v3438 = vpop.f32.mrf.mxu0
        %v3439 = vadd.f32 0.0, %v3438
        %3440 = vmatmul.bf16.gmra.mxu0 %v2429
        %v3441 = vpop.f32.mrf.mxu0
        %v3442 = vadd.f32 0.0, %v3441
        %v3443 = vpop.f32.mrf.mxu0
        %v3444 = vadd.f32 0.0, %v3443
        %3445 = vmatmul.bf16.gmra.mxu0 %v2432
        %v3446 = vpop.f32.mrf.mxu0
        %v3447 = vadd.f32 0.0, %v3446
        %v3448 = vpop.f32.mrf.mxu0
        %v3449 = vadd.f32 0.0, %v3448
        %3450 = vmatmul.bf16.gmra.mxu0 %v2435
        %v3451 = vpop.f32.mrf.mxu0
        %v3452 = vadd.f32 0.0, %v3451
        %v3453 = vpop.f32.mrf.mxu0
        %v3454 = vadd.f32 0.0, %v3453
        %3455 = vmatmul.bf16.gmra.mxu0 %v2905
        %v3456 = vpop.f32.mrf.mxu0
        %v3457 = vadd.f32 0.0, %v3456
        %v3458 = vpop.f32.mrf.mxu0
        %v3459 = vadd.f32 0.0, %v3458
        %3460 = vmatmul.bf16.gmra.mxu0 %v3375
        %v3461 = vpop.f32.mrf.mxu0
        %v3462 = vadd.f32 0.0, %v3461
        %v3463 = vpop.f32.mrf.mxu0
        %v3464 = vadd.f32 0.0, %v3463
        %3465 = vdwg.mxu0
        %v3466 = vadd.f32 %v3309, %v3387
        %v3467 = vadd.f32 %v3310, %v3389
        %v3468 = vadd.f32 %v3311, %v3392
        %v3469 = vadd.f32 %v3312, %v3394
        %v3470 = vadd.f32 %v3313, %v3397
        %v3471 = vadd.f32 %v3314, %v3399
        %v3472 = vadd.f32 %v3315, %v3402
        %v3473 = vadd.f32 %v3316, %v3404
        %v3474 = vadd.f32 %v3317, %v3407
        %v3475 = vadd.f32 %v3318, %v3409
        %v3476 = vadd.f32 %v3319, %v3412
        %v3477 = vadd.f32 %v3320, %v3414
        %v3478 = vadd.f32 %v3321, %v3417
        %v3479 = vadd.f32 %v3322, %v3419
        %v3480 = vadd.f32 %v3323, %v3422
        %v3481 = vadd.f32 %v3324, %v3424
        %v3482 = vadd.f32 %v3325, %v3427
        %v3483 = vadd.f32 %v3326, %v3429
        %v3484 = vadd.f32 %v3327, %v3432
        %v3485 = vadd.f32 %v3328, %v3434
        %v3486 = vadd.f32 %v3329, %v3437
        %v3487 = vadd.f32 %v3330, %v3439
        %v3488 = vadd.f32 %v3331, %v3442
        %v3489 = vadd.f32 %v3332, %v3444
        %v3490 = vadd.f32 %v3333, %v3447
        %v3491 = vadd.f32 %v3334, %v3449
        %v3492 = vadd.f32 %v3335, %v3452
        %v3493 = vadd.f32 %v3336, %v3454
        %v3494 = vadd.f32 %v3337, %v3457
        %v3495 = vadd.f32 %v3338, %v3459
        %v3496 = vadd.f32 %v3339, %v3462
        %v3497 = vadd.f32 %v3340, %v3464
        %v3498 = vld [vmem:[%s8] sm:$0x1]
        %v3500 = vperm.slane %v3498, 0
        %v3502 = vmul.f32 %v3466, %v3500
        %v3503 = vmul.f32 %v3467, %v3500
        %v3504 = vmul.f32 %v3468, %v3500
        %v3505 = vmul.f32 %v3469, %v3500
        %v3506 = vmul.f32 %v3470, %v3500
        %v3507 = vmul.f32 %v3471, %v3500
        %v3508 = vmul.f32 %v3472, %v3500
        %v3509 = vmul.f32 %v3473, %v3500
        %v3510 = vmul.f32 %v3474, %v3500
        %v3511 = vmul.f32 %v3475, %v3500
        %v3512 = vmul.f32 %v3476, %v3500
        %v3513 = vmul.f32 %v3477, %v3500
        %v3514 = vmul.f32 %v3478, %v3500
        %v3515 = vmul.f32 %v3479, %v3500
        %v3516 = vmul.f32 %v3480, %v3500
        %v3517 = vmul.f32 %v3481, %v3500
        %v3518 = vmul.f32 %v3482, %v3500
        %v3519 = vmul.f32 %v3483, %v3500
        %v3520 = vmul.f32 %v3484, %v3500
        %v3521 = vmul.f32 %v3485, %v3500
        %v3522 = vmul.f32 %v3486, %v3500
        %v3523 = vmul.f32 %v3487, %v3500
        %v3524 = vmul.f32 %v3488, %v3500
        %v3525 = vmul.f32 %v3489, %v3500
        %v3526 = vmul.f32 %v3490, %v3500
        %v3527 = vmul.f32 %v3491, %v3500
        %v3528 = vmul.f32 %v3492, %v3500
        %v3529 = vmul.f32 %v3493, %v3500
        %v3530 = vmul.f32 %v3494, %v3500
        %v3531 = vmul.f32 %v3495, %v3500
        %v3532 = vmul.f32 %v3496, %v3500
        %v3533 = vmul.f32 %v3497, %v3500
        %v3534 = vld [vmem:[%s9] sm:$0x1]
        %v3536 = vperm.slane %v3534, 0
        %v3538 = vadd.f32 %v3502, %v3536
        %v3539 = vadd.f32 %v3503, %v3536
        %v3540 = vadd.f32 %v3504, %v3536
        %v3541 = vadd.f32 %v3505, %v3536
        %v3542 = vadd.f32 %v3506, %v3536
        %v3543 = vadd.f32 %v3507, %v3536
        %v3544 = vadd.f32 %v3508, %v3536
        %v3545 = vadd.f32 %v3509, %v3536
        %v3546 = vadd.f32 %v3510, %v3536
        %v3547 = vadd.f32 %v3511, %v3536
        %v3548 = vadd.f32 %v3512, %v3536
        %v3549 = vadd.f32 %v3513, %v3536
        %v3550 = vadd.f32 %v3514, %v3536
        %v3551 = vadd.f32 %v3515, %v3536
        %v3552 = vadd.f32 %v3516, %v3536
        %v3553 = vadd.f32 %v3517, %v3536
        %v3554 = vadd.f32 %v3518, %v3536
        %v3555 = vadd.f32 %v3519, %v3536
        %v3556 = vadd.f32 %v3520, %v3536
        %v3557 = vadd.f32 %v3521, %v3536
        %v3558 = vadd.f32 %v3522, %v3536
        %v3559 = vadd.f32 %v3523, %v3536
        %v3560 = vadd.f32 %v3524, %v3536
        %v3561 = vadd.f32 %v3525, %v3536
        %v3562 = vadd.f32 %v3526, %v3536
        %v3563 = vadd.f32 %v3527, %v3536
        %v3564 = vadd.f32 %v3528, %v3536
        %v3565 = vadd.f32 %v3529, %v3536
        %v3566 = vadd.f32 %v3530, %v3536
        %v3567 = vadd.f32 %v3531, %v3536
        %v3568 = vadd.f32 %v3532, %v3536
        %v3569 = vadd.f32 %v3533, %v3536
        %v3570 = vmax.f32 %v3538, 0.0
        %v3571 = vmax.f32 %v3539, 0.0
        %v3572 = vmax.f32 %v3540, 0.0
        %v3573 = vmax.f32 %v3541, 0.0
        %v3574 = vmax.f32 %v3542, 0.0
        %v3575 = vmax.f32 %v3543, 0.0
        %v3576 = vmax.f32 %v3544, 0.0
        %v3577 = vmax.f32 %v3545, 0.0
        %v3578 = vmax.f32 %v3546, 0.0
        %v3579 = vmax.f32 %v3547, 0.0
        %v3580 = vmax.f32 %v3548, 0.0
        %v3581 = vmax.f32 %v3549, 0.0
        %v3582 = vmax.f32 %v3550, 0.0
        %v3583 = vmax.f32 %v3551, 0.0
        %v3584 = vmax.f32 %v3552, 0.0
        %v3585 = vmax.f32 %v3553, 0.0
        %v3586 = vmax.f32 %v3554, 0.0
        %v3587 = vmax.f32 %v3555, 0.0
        %v3588 = vmax.f32 %v3556, 0.0
        %v3589 = vmax.f32 %v3557, 0.0
        %v3590 = vmax.f32 %v3558, 0.0
        %v3591 = vmax.f32 %v3559, 0.0
        %v3592 = vmax.f32 %v3560, 0.0
        %v3593 = vmax.f32 %v3561, 0.0
        %v3594 = vmax.f32 %v3562, 0.0
        %v3595 = vmax.f32 %v3563, 0.0
        %v3596 = vmax.f32 %v3564, 0.0
        %v3597 = vmax.f32 %v3565, 0.0
        %v3598 = vmax.f32 %v3566, 0.0
        %v3599 = vmax.f32 %v3567, 0.0
        %v3600 = vmax.f32 %v3568, 0.0
        %v3601 = vmax.f32 %v3569, 0.0
        %v3602 = vpack.c.bf16 %v3571, %v3570
        %v3603 = vpack.c.bf16 %v3573, %v3572
        %v3604 = vpack.c.bf16 %v3575, %v3574
        %v3605 = vpack.c.bf16 %v3577, %v3576
        %v3606 = vpack.c.bf16 %v3579, %v3578
        %v3607 = vpack.c.bf16 %v3581, %v3580
        %v3608 = vpack.c.bf16 %v3583, %v3582
        %v3609 = vpack.c.bf16 %v3585, %v3584
        %v3610 = vpack.c.bf16 %v3587, %v3586
        %v3611 = vpack.c.bf16 %v3589, %v3588
        %v3612 = vpack.c.bf16 %v3591, %v3590
        %v3613 = vpack.c.bf16 %v3593, %v3592
        %v3614 = vpack.c.bf16 %v3595, %v3594
        %v3615 = vpack.c.bf16 %v3597, %v3596
        %v3616 = vpack.c.bf16 %v3599, %v3598
        %v3617 = vpack.c.bf16 %v3601, %v3600
        %v3618 = vld [vmem:[%s5] sm:$0xff]
        %v3619 = vld [vmem:[%s5 + $0x8] sm:$0xff]
        %v3620 = vld [vmem:[%s5 + $0x10] sm:$0xff]
        %v3621 = vld [vmem:[%s5 + $0x18] sm:$0xff]
        %v3622 = vld [vmem:[%s5 + $0x20] sm:$0xff]
        %v3623 = vld [vmem:[%s5 + $0x28] sm:$0xff]
        %v3624 = vld [vmem:[%s5 + $0x30] sm:$0xff]
        %v3625 = vld [vmem:[%s5 + $0x38] sm:$0xff]
        %v3634 = vunpack.c.l.b16 %v3618
        %v3635 = vunpack.c.h.b16 %v3618
        %v3636 = vunpack.c.l.b16 %v3619
        %v3637 = vunpack.c.h.b16 %v3619
        %v3638 = vunpack.c.l.b16 %v3620
        %v3639 = vunpack.c.h.b16 %v3620
        %v3640 = vunpack.c.l.b16 %v3621
        %v3641 = vunpack.c.h.b16 %v3621
        %v3642 = vunpack.c.l.b16 %v3622
        %v3643 = vunpack.c.h.b16 %v3622
        %v3644 = vunpack.c.l.b16 %v3623
        %v3645 = vunpack.c.h.b16 %v3623
        %v3646 = vunpack.c.l.b16 %v3624
        %v3647 = vunpack.c.h.b16 %v3624
        %v3648 = vunpack.c.l.b16 %v3625
        %v3649 = vunpack.c.h.b16 %v3625
        %v3650 = vpack.c.b16 %v3636, %v3634
        %v3651 = vpack.c.b16 %v3637, %v3635
        %v3652 = vpack.c.b16 %v3640, %v3638
        %v3653 = vpack.c.b16 %v3641, %v3639
        %v3654 = vpack.c.b16 %v3644, %v3642
        %v3655 = vpack.c.b16 %v3645, %v3643
        %v3656 = vpack.c.b16 %v3648, %v3646
        %v3657 = vpack.c.b16 %v3649, %v3647
        %v3667 = vsel %vm2073, %v3602, 0
        %v3670 = vsel %vm2073, %v3603, 0
        %v3673 = vsel %vm2073, %v3604, 0
        %v3676 = vsel %vm2073, %v3605, 0
        %v3679 = vsel %vm2073, %v3606, 0
        %v3682 = vsel %vm2073, %v3607, 0
        %v3685 = vsel %vm2073, %v3608, 0
        %v3688 = vsel %vm2073, %v3609, 0
        %v3691 = vsel %vm2073, %v3610, 0
        %v3694 = vsel %vm2073, %v3611, 0
        %v3697 = vsel %vm2073, %v3612, 0
        %v3700 = vsel %vm2073, %v3613, 0
        %v3703 = vsel %vm2073, %v3614, 0
        %v3706 = vsel %vm2073, %v3615, 0
        %v3709 = vsel %vm2073, %v3616, 0
        %v3712 = vsel %vm2073, %v3617, 0
        %3714 = vmatpush.bf16.msra.mxu0 0
        %3715 = vmatpush.bf16.msra.mxu0 0
        %3716 = vmatpush.bf16.msra.mxu0 0
        %3717 = vmatpush.bf16.msra.mxu0 0
        %3718 = vmatpush.bf16.msra.mxu0 %v3656
        %3719 = vmatpush.bf16.msra.mxu0 %v3654
        %3720 = vmatpush.bf16.msra.mxu0 %v3652
        %3721 = vmatpush.bf16.msra.mxu0 %v3650
        %3722 = vmatmul.bf16.gmra.mxu0 %v3667
        %v3723 = vpop.f32.mrf.mxu0
        %v3724 = vadd.f32 0.0, %v3723
        %v3725 = vpop.f32.mrf.mxu0
        %v3726 = vadd.f32 0.0, %v3725
        %3727 = vmatmul.bf16.gmra.mxu0 %v3670
        %v3728 = vpop.f32.mrf.mxu0
        %v3729 = vadd.f32 0.0, %v3728
        %v3730 = vpop.f32.mrf.mxu0
        %v3731 = vadd.f32 0.0, %v3730
        %3732 = vmatmul.bf16.gmra.mxu0 %v3673
        %v3733 = vpop.f32.mrf.mxu0
        %v3734 = vadd.f32 0.0, %v3733
        %v3735 = vpop.f32.mrf.mxu0
        %v3736 = vadd.f32 0.0, %v3735
        %3737 = vmatmul.bf16.gmra.mxu0 %v3676
        %v3738 = vpop.f32.mrf.mxu0
        %v3739 = vadd.f32 0.0, %v3738
        %v3740 = vpop.f32.mrf.mxu0
        %v3741 = vadd.f32 0.0, %v3740
        %3742 = vmatmul.bf16.gmra.mxu0 %v3679
        %v3743 = vpop.f32.mrf.mxu0
        %v3744 = vadd.f32 0.0, %v3743
        %v3745 = vpop.f32.mrf.mxu0
        %v3746 = vadd.f32 0.0, %v3745
        %3747 = vmatmul.bf16.gmra.mxu0 %v3682
        %v3748 = vpop.f32.mrf.mxu0
        %v3749 = vadd.f32 0.0, %v3748
        %v3750 = vpop.f32.mrf.mxu0
        %v3751 = vadd.f32 0.0, %v3750
        %3752 = vmatmul.bf16.gmra.mxu0 %v3685
        %v3753 = vpop.f32.mrf.mxu0
        %v3754 = vadd.f32 0.0, %v3753
        %v3755 = vpop.f32.mrf.mxu0
        %v3756 = vadd.f32 0.0, %v3755
        %3757 = vmatmul.bf16.gmra.mxu0 %v3688
        %v3758 = vpop.f32.mrf.mxu0
        %v3759 = vadd.f32 0.0, %v3758
        %v3760 = vpop.f32.mrf.mxu0
        %v3761 = vadd.f32 0.0, %v3760
        %3762 = vmatmul.bf16.gmra.mxu0 %v3691
        %v3763 = vpop.f32.mrf.mxu0
        %v3764 = vadd.f32 0.0, %v3763
        %v3765 = vpop.f32.mrf.mxu0
        %v3766 = vadd.f32 0.0, %v3765
        %3767 = vmatmul.bf16.gmra.mxu0 %v3694
        %v3768 = vpop.f32.mrf.mxu0
        %v3769 = vadd.f32 0.0, %v3768
        %v3770 = vpop.f32.mrf.mxu0
        %v3771 = vadd.f32 0.0, %v3770
        %3772 = vmatmul.bf16.gmra.mxu0 %v3697
        %v3773 = vpop.f32.mrf.mxu0
        %v3774 = vadd.f32 0.0, %v3773
        %v3775 = vpop.f32.mrf.mxu0
        %v3776 = vadd.f32 0.0, %v3775
        %3777 = vmatmul.bf16.gmra.mxu0 %v3700
        %v3778 = vpop.f32.mrf.mxu0
        %v3779 = vadd.f32 0.0, %v3778
        %v3780 = vpop.f32.mrf.mxu0
        %v3781 = vadd.f32 0.0, %v3780
        %3782 = vmatmul.bf16.gmra.mxu0 %v3703
        %v3783 = vpop.f32.mrf.mxu0
        %v3784 = vadd.f32 0.0, %v3783
        %v3785 = vpop.f32.mrf.mxu0
        %v3786 = vadd.f32 0.0, %v3785
        %3787 = vmatmul.bf16.gmra.mxu0 %v3706
        %v3788 = vpop.f32.mrf.mxu0
        %v3789 = vadd.f32 0.0, %v3788
        %v3790 = vpop.f32.mrf.mxu0
        %v3791 = vadd.f32 0.0, %v3790
        %3792 = vmatmul.bf16.gmra.mxu0 %v3709
        %v3793 = vpop.f32.mrf.mxu0
        %v3794 = vadd.f32 0.0, %v3793
        %v3795 = vpop.f32.mrf.mxu0
        %v3796 = vadd.f32 0.0, %v3795
        %3797 = vmatmul.bf16.gmra.mxu0 %v3712
        %v3798 = vpop.f32.mrf.mxu0
        %v3799 = vadd.f32 0.0, %v3798
        %v3800 = vpop.f32.mrf.mxu0
        %v3801 = vadd.f32 0.0, %v3800
        %3802 = vdwg.mxu0
        %3803 = vmatpush.bf16.msra.mxu0 0
        %3804 = vmatpush.bf16.msra.mxu0 0
        %3805 = vmatpush.bf16.msra.mxu0 0
        %3806 = vmatpush.bf16.msra.mxu0 0
        %3807 = vmatpush.bf16.msra.mxu0 %v3657
        %3808 = vmatpush.bf16.msra.mxu0 %v3655
        %3809 = vmatpush.bf16.msra.mxu0 %v3653
        %3810 = vmatpush.bf16.msra.mxu0 %v3651
        %3811 = vmatmul.bf16.gmra.mxu0 %v3667
        %v3812 = vpop.f32.mrf.mxu0
        %v3813 = vadd.f32 0.0, %v3812
        %v3814 = vpop.f32.mrf.mxu0
        %v3815 = vadd.f32 0.0, %v3814
        %3816 = vmatmul.bf16.gmra.mxu0 %v3670
        %v3817 = vpop.f32.mrf.mxu0
        %v3818 = vadd.f32 0.0, %v3817
        %v3819 = vpop.f32.mrf.mxu0
        %v3820 = vadd.f32 0.0, %v3819
        %3821 = vmatmul.bf16.gmra.mxu0 %v3673
        %v3822 = vpop.f32.mrf.mxu0
        %v3823 = vadd.f32 0.0, %v3822
        %v3824 = vpop.f32.mrf.mxu0
        %v3825 = vadd.f32 0.0, %v3824
        %3826 = vmatmul.bf16.gmra.mxu0 %v3676
        %v3827 = vpop.f32.mrf.mxu0
        %v3828 = vadd.f32 0.0, %v3827
        %v3829 = vpop.f32.mrf.mxu0
        %v3830 = vadd.f32 0.0, %v3829
        %3831 = vmatmul.bf16.gmra.mxu0 %v3679
        %v3832 = vpop.f32.mrf.mxu0
        %v3833 = vadd.f32 0.0, %v3832
        %v3834 = vpop.f32.mrf.mxu0
        %v3835 = vadd.f32 0.0, %v3834
        %3836 = vmatmul.bf16.gmra.mxu0 %v3682
        %v3837 = vpop.f32.mrf.mxu0
        %v3838 = vadd.f32 0.0, %v3837
        %v3839 = vpop.f32.mrf.mxu0
        %v3840 = vadd.f32 0.0, %v3839
        %3841 = vmatmul.bf16.gmra.mxu0 %v3685
        %v3842 = vpop.f32.mrf.mxu0
        %v3843 = vadd.f32 0.0, %v3842
        %v3844 = vpop.f32.mrf.mxu0
        %v3845 = vadd.f32 0.0, %v3844
        %3846 = vmatmul.bf16.gmra.mxu0 %v3688
        %v3847 = vpop.f32.mrf.mxu0
        %v3848 = vadd.f32 0.0, %v3847
        %v3849 = vpop.f32.mrf.mxu0
        %v3850 = vadd.f32 0.0, %v3849
        %3851 = vmatmul.bf16.gmra.mxu0 %v3691
        %v3852 = vpop.f32.mrf.mxu0
        %v3853 = vadd.f32 0.0, %v3852
        %v3854 = vpop.f32.mrf.mxu0
        %v3855 = vadd.f32 0.0, %v3854
        %3856 = vmatmul.bf16.gmra.mxu0 %v3694
        %v3857 = vpop.f32.mrf.mxu0
        %v3858 = vadd.f32 0.0, %v3857
        %v3859 = vpop.f32.mrf.mxu0
        %v3860 = vadd.f32 0.0, %v3859
        %3861 = vmatmul.bf16.gmra.mxu0 %v3697
        %v3862 = vpop.f32.mrf.mxu0
        %v3863 = vadd.f32 0.0, %v3862
        %v3864 = vpop.f32.mrf.mxu0
        %v3865 = vadd.f32 0.0, %v3864
        %3866 = vmatmul.bf16.gmra.mxu0 %v3700
        %v3867 = vpop.f32.mrf.mxu0
        %v3868 = vadd.f32 0.0, %v3867
        %v3869 = vpop.f32.mrf.mxu0
        %v3870 = vadd.f32 0.0, %v3869
        %3871 = vmatmul.bf16.gmra.mxu0 %v3703
        %v3872 = vpop.f32.mrf.mxu0
        %v3873 = vadd.f32 0.0, %v3872
        %v3874 = vpop.f32.mrf.mxu0
        %v3875 = vadd.f32 0.0, %v3874
        %3876 = vmatmul.bf16.gmra.mxu0 %v3706
        %v3877 = vpop.f32.mrf.mxu0
        %v3878 = vadd.f32 0.0, %v3877
        %v3879 = vpop.f32.mrf.mxu0
        %v3880 = vadd.f32 0.0, %v3879
        %3881 = vmatmul.bf16.gmra.mxu0 %v3709
        %v3882 = vpop.f32.mrf.mxu0
        %v3883 = vadd.f32 0.0, %v3882
        %v3884 = vpop.f32.mrf.mxu0
        %v3885 = vadd.f32 0.0, %v3884
        %3886 = vmatmul.bf16.gmra.mxu0 %v3712
        %v3887 = vpop.f32.mrf.mxu0
        %v3888 = vadd.f32 0.0, %v3887
        %v3889 = vpop.f32.mrf.mxu0
        %v3890 = vadd.f32 0.0, %v3889
        %3891 = vdwg.mxu0
        %v3892 = vld [vmem:[%s10] sm:$0x3]
        %v3894 = vperm.slane %v3892, 0
        %v3895 = vperm.slane %v3892, 1
        %v3898 = vmul.f32 %v3724, %v3894
        %v3899 = vmul.f32 %v3813, %v3895
        %v3900 = vmul.f32 %v3726, %v3894
        %v3901 = vmul.f32 %v3815, %v3895
        %v3902 = vmul.f32 %v3729, %v3894
        %v3903 = vmul.f32 %v3818, %v3895
        %v3904 = vmul.f32 %v3731, %v3894
        %v3905 = vmul.f32 %v3820, %v3895
        %v3906 = vmul.f32 %v3734, %v3894
        %v3907 = vmul.f32 %v3823, %v3895
        %v3908 = vmul.f32 %v3736, %v3894
        %v3909 = vmul.f32 %v3825, %v3895
        %v3910 = vmul.f32 %v3739, %v3894
        %v3911 = vmul.f32 %v3828, %v3895
        %v3912 = vmul.f32 %v3741, %v3894
        %v3913 = vmul.f32 %v3830, %v3895
        %v3914 = vmul.f32 %v3744, %v3894
        %v3915 = vmul.f32 %v3833, %v3895
        %v3916 = vmul.f32 %v3746, %v3894
        %v3917 = vmul.f32 %v3835, %v3895
        %v3918 = vmul.f32 %v3749, %v3894
        %v3919 = vmul.f32 %v3838, %v3895
        %v3920 = vmul.f32 %v3751, %v3894
        %v3921 = vmul.f32 %v3840, %v3895
        %v3922 = vmul.f32 %v3754, %v3894
        %v3923 = vmul.f32 %v3843, %v3895
        %v3924 = vmul.f32 %v3756, %v3894
        %v3925 = vmul.f32 %v3845, %v3895
        %v3926 = vmul.f32 %v3759, %v3894
        %v3927 = vmul.f32 %v3848, %v3895
        %v3928 = vmul.f32 %v3761, %v3894
        %v3929 = vmul.f32 %v3850, %v3895
        %v3930 = vmul.f32 %v3764, %v3894
        %v3931 = vmul.f32 %v3853, %v3895
        %v3932 = vmul.f32 %v3766, %v3894
        %v3933 = vmul.f32 %v3855, %v3895
        %v3934 = vmul.f32 %v3769, %v3894
        %v3935 = vmul.f32 %v3858, %v3895
        %v3936 = vmul.f32 %v3771, %v3894
        %v3937 = vmul.f32 %v3860, %v3895
        %v3938 = vmul.f32 %v3774, %v3894
        %v3939 = vmul.f32 %v3863, %v3895
        %v3940 = vmul.f32 %v3776, %v3894
        %v3941 = vmul.f32 %v3865, %v3895
        %v3942 = vmul.f32 %v3779, %v3894
        %v3943 = vmul.f32 %v3868, %v3895
        %v3944 = vmul.f32 %v3781, %v3894
        %v3945 = vmul.f32 %v3870, %v3895
        %v3946 = vmul.f32 %v3784, %v3894
        %v3947 = vmul.f32 %v3873, %v3895
        %v3948 = vmul.f32 %v3786, %v3894
        %v3949 = vmul.f32 %v3875, %v3895
        %v3950 = vmul.f32 %v3789, %v3894
        %v3951 = vmul.f32 %v3878, %v3895
        %v3952 = vmul.f32 %v3791, %v3894
        %v3953 = vmul.f32 %v3880, %v3895
        %v3954 = vmul.f32 %v3794, %v3894
        %v3955 = vmul.f32 %v3883, %v3895
        %v3956 = vmul.f32 %v3796, %v3894
        %v3957 = vmul.f32 %v3885, %v3895
        %v3958 = vmul.f32 %v3799, %v3894
        %v3959 = vmul.f32 %v3888, %v3895
        %v3960 = vmul.f32 %v3801, %v3894
        %v3961 = vmul.f32 %v3890, %v3895
        %v3962 = vld [vmem:[%s11] sm:$0x3]
        %v3964 = vperm.slane %v3962, 0
        %v3965 = vperm.slane %v3962, 1
        %v3968 = vadd.f32 %v3898, %v3964
        %v3969 = vadd.f32 %v3899, %v3965
        %v3970 = vadd.f32 %v3900, %v3964
        %v3971 = vadd.f32 %v3901, %v3965
        %v3972 = vadd.f32 %v3902, %v3964
        %v3973 = vadd.f32 %v3903, %v3965
        %v3974 = vadd.f32 %v3904, %v3964
        %v3975 = vadd.f32 %v3905, %v3965
        %v3976 = vadd.f32 %v3906, %v3964
        %v3977 = vadd.f32 %v3907, %v3965
        %v3978 = vadd.f32 %v3908, %v3964
        %v3979 = vadd.f32 %v3909, %v3965
        %v3980 = vadd.f32 %v3910, %v3964
        %v3981 = vadd.f32 %v3911, %v3965
        %v3982 = vadd.f32 %v3912, %v3964
        %v3983 = vadd.f32 %v3913, %v3965
        %v3984 = vadd.f32 %v3914, %v3964
        %v3985 = vadd.f32 %v3915, %v3965
        %v3986 = vadd.f32 %v3916, %v3964
        %v3987 = vadd.f32 %v3917, %v3965
        %v3988 = vadd.f32 %v3918, %v3964
        %v3989 = vadd.f32 %v3919, %v3965
        %v3990 = vadd.f32 %v3920, %v3964
        %v3991 = vadd.f32 %v3921, %v3965
        %v3992 = vadd.f32 %v3922, %v3964
        %v3993 = vadd.f32 %v3923, %v3965
        %v3994 = vadd.f32 %v3924, %v3964
        %v3995 = vadd.f32 %v3925, %v3965
        %v3996 = vadd.f32 %v3926, %v3964
        %v3997 = vadd.f32 %v3927, %v3965
        %v3998 = vadd.f32 %v3928, %v3964
        %v3999 = vadd.f32 %v3929, %v3965
        %v4000 = vadd.f32 %v3930, %v3964
        %v4001 = vadd.f32 %v3931, %v3965
        %v4002 = vadd.f32 %v3932, %v3964
        %v4003 = vadd.f32 %v3933, %v3965
        %v4004 = vadd.f32 %v3934, %v3964
        %v4005 = vadd.f32 %v3935, %v3965
        %v4006 = vadd.f32 %v3936, %v3964
        %v4007 = vadd.f32 %v3937, %v3965
        %v4008 = vadd.f32 %v3938, %v3964
        %v4009 = vadd.f32 %v3939, %v3965
        %v4010 = vadd.f32 %v3940, %v3964
        %v4011 = vadd.f32 %v3941, %v3965
        %v4012 = vadd.f32 %v3942, %v3964
        %v4013 = vadd.f32 %v3943, %v3965
        %v4014 = vadd.f32 %v3944, %v3964
        %v4015 = vadd.f32 %v3945, %v3965
        %v4016 = vadd.f32 %v3946, %v3964
        %v4017 = vadd.f32 %v3947, %v3965
        %v4018 = vadd.f32 %v3948, %v3964
        %v4019 = vadd.f32 %v3949, %v3965
        %v4020 = vadd.f32 %v3950, %v3964
        %v4021 = vadd.f32 %v3951, %v3965
        %v4022 = vadd.f32 %v3952, %v3964
        %v4023 = vadd.f32 %v3953, %v3965
        %v4024 = vadd.f32 %v3954, %v3964
        %v4025 = vadd.f32 %v3955, %v3965
        %v4026 = vadd.f32 %v3956, %v3964
        %v4027 = vadd.f32 %v3957, %v3965
        %v4028 = vadd.f32 %v3958, %v3964
        %v4029 = vadd.f32 %v3959, %v3965
        %v4030 = vadd.f32 %v3960, %v3964
        %v4031 = vadd.f32 %v3961, %v3965
        %v4032 = vunpack.c.l.bf16 %v598
        %v4033 = vunpack.c.h.bf16 %v598
        %v4034 = vunpack.c.l.bf16 %v599
        %v4035 = vunpack.c.h.bf16 %v599
        %v4036 = vunpack.c.l.bf16 %v600
        %v4037 = vunpack.c.h.bf16 %v600
        %v4038 = vunpack.c.l.bf16 %v601
        %v4039 = vunpack.c.h.bf16 %v601
        %v4040 = vunpack.c.l.bf16 %v602
        %v4041 = vunpack.c.h.bf16 %v602
        %v4042 = vunpack.c.l.bf16 %v603
        %v4043 = vunpack.c.h.bf16 %v603
        %v4044 = vunpack.c.l.bf16 %v604
        %v4045 = vunpack.c.h.bf16 %v604
        %v4046 = vunpack.c.l.bf16 %v605
        %v4047 = vunpack.c.h.bf16 %v605
        %v4048 = vunpack.c.l.bf16 %v606
        %v4049 = vunpack.c.h.bf16 %v606
        %v4050 = vunpack.c.l.bf16 %v607
        %v4051 = vunpack.c.h.bf16 %v607
        %v4052 = vunpack.c.l.bf16 %v608
        %v4053 = vunpack.c.h.bf16 %v608
        %v4054 = vunpack.c.l.bf16 %v609
        %v4055 = vunpack.c.h.bf16 %v609
        %v4056 = vunpack.c.l.bf16 %v610
        %v4057 = vunpack.c.h.bf16 %v610
        %v4058 = vunpack.c.l.bf16 %v611
        %v4059 = vunpack.c.h.bf16 %v611
        %v4060 = vunpack.c.l.bf16 %v612
        %v4061 = vunpack.c.h.bf16 %v612
        %v4062 = vunpack.c.l.bf16 %v613
        %v4063 = vunpack.c.h.bf16 %v613
        %v4064 = vunpack.c.l.bf16 %v614
        %v4065 = vunpack.c.h.bf16 %v614
        %v4066 = vunpack.c.l.bf16 %v615
        %v4067 = vunpack.c.h.bf16 %v615
        %v4068 = vunpack.c.l.bf16 %v616
        %v4069 = vunpack.c.h.bf16 %v616
        %v4070 = vunpack.c.l.bf16 %v617
        %v4071 = vunpack.c.h.bf16 %v617
        %v4072 = vunpack.c.l.bf16 %v618
        %v4073 = vunpack.c.h.bf16 %v618
        %v4074 = vunpack.c.l.bf16 %v619
        %v4075 = vunpack.c.h.bf16 %v619
        %v4076 = vunpack.c.l.bf16 %v620
        %v4077 = vunpack.c.h.bf16 %v620
        %v4078 = vunpack.c.l.bf16 %v621
        %v4079 = vunpack.c.h.bf16 %v621
        %v4080 = vunpack.c.l.bf16 %v622
        %v4081 = vunpack.c.h.bf16 %v622
        %v4082 = vunpack.c.l.bf16 %v623
        %v4083 = vunpack.c.h.bf16 %v623
        %v4084 = vunpack.c.l.bf16 %v624
        %v4085 = vunpack.c.h.bf16 %v624
        %v4086 = vunpack.c.l.bf16 %v625
        %v4087 = vunpack.c.h.bf16 %v625
        %v4088 = vunpack.c.l.bf16 %v626
        %v4089 = vunpack.c.h.bf16 %v626
        %v4090 = vunpack.c.l.bf16 %v627
        %v4091 = vunpack.c.h.bf16 %v627
        %v4092 = vunpack.c.l.bf16 %v628
        %v4093 = vunpack.c.h.bf16 %v628
        %v4094 = vunpack.c.l.bf16 %v629
        %v4095 = vunpack.c.h.bf16 %v629
        %v4096 = vadd.f32 %v3968, %v4032
        %v4097 = vadd.f32 %v3969, %v4033
        %v4098 = vadd.f32 %v3970, %v4034
        %v4099 = vadd.f32 %v3971, %v4035
        %v4100 = vadd.f32 %v3972, %v4036
        %v4101 = vadd.f32 %v3973, %v4037
        %v4102 = vadd.f32 %v3974, %v4038
        %v4103 = vadd.f32 %v3975, %v4039
        %v4104 = vadd.f32 %v3976, %v4040
        %v4105 = vadd.f32 %v3977, %v4041
        %v4106 = vadd.f32 %v3978, %v4042
        %v4107 = vadd.f32 %v3979, %v4043
        %v4108 = vadd.f32 %v3980, %v4044
        %v4109 = vadd.f32 %v3981, %v4045
        %v4110 = vadd.f32 %v3982, %v4046
        %v4111 = vadd.f32 %v3983, %v4047
        %v4112 = vadd.f32 %v3984, %v4048
        %v4113 = vadd.f32 %v3985, %v4049
        %v4114 = vadd.f32 %v3986, %v4050
        %v4115 = vadd.f32 %v3987, %v4051
        %v4116 = vadd.f32 %v3988, %v4052
        %v4117 = vadd.f32 %v3989, %v4053
        %v4118 = vadd.f32 %v3990, %v4054
        %v4119 = vadd.f32 %v3991, %v4055
        %v4120 = vadd.f32 %v3992, %v4056
        %v4121 = vadd.f32 %v3993, %v4057
        %v4122 = vadd.f32 %v3994, %v4058
        %v4123 = vadd.f32 %v3995, %v4059
        %v4124 = vadd.f32 %v3996, %v4060
        %v4125 = vadd.f32 %v3997, %v4061
        %v4126 = vadd.f32 %v3998, %v4062
        %v4127 = vadd.f32 %v3999, %v4063
        %v4128 = vadd.f32 %v4000, %v4064
        %v4129 = vadd.f32 %v4001, %v4065
        %v4130 = vadd.f32 %v4002, %v4066
        %v4131 = vadd.f32 %v4003, %v4067
        %v4132 = vadd.f32 %v4004, %v4068
        %v4133 = vadd.f32 %v4005, %v4069
        %v4134 = vadd.f32 %v4006, %v4070
        %v4135 = vadd.f32 %v4007, %v4071
        %v4136 = vadd.f32 %v4008, %v4072
        %v4137 = vadd.f32 %v4009, %v4073
        %v4138 = vadd.f32 %v4010, %v4074
        %v4139 = vadd.f32 %v4011, %v4075
        %v4140 = vadd.f32 %v4012, %v4076
        %v4141 = vadd.f32 %v4013, %v4077
        %v4142 = vadd.f32 %v4014, %v4078
        %v4143 = vadd.f32 %v4015, %v4079
        %v4144 = vadd.f32 %v4016, %v4080
        %v4145 = vadd.f32 %v4017, %v4081
        %v4146 = vadd.f32 %v4018, %v4082
        %v4147 = vadd.f32 %v4019, %v4083
        %v4148 = vadd.f32 %v4020, %v4084
        %v4149 = vadd.f32 %v4021, %v4085
        %v4150 = vadd.f32 %v4022, %v4086
        %v4151 = vadd.f32 %v4023, %v4087
        %v4152 = vadd.f32 %v4024, %v4088
        %v4153 = vadd.f32 %v4025, %v4089
        %v4154 = vadd.f32 %v4026, %v4090
        %v4155 = vadd.f32 %v4027, %v4091
        %v4156 = vadd.f32 %v4028, %v4092
        %v4157 = vadd.f32 %v4029, %v4093
        %v4158 = vadd.f32 %v4030, %v4094
        %v4159 = vadd.f32 %v4031, %v4095
        %v4160 = vmax.f32 %v4096, 0.0
        %v4161 = vmax.f32 %v4097, 0.0
        %v4162 = vmax.f32 %v4098, 0.0
        %v4163 = vmax.f32 %v4099, 0.0
        %v4164 = vmax.f32 %v4100, 0.0
        %v4165 = vmax.f32 %v4101, 0.0
        %v4166 = vmax.f32 %v4102, 0.0
        %v4167 = vmax.f32 %v4103, 0.0
        %v4168 = vmax.f32 %v4104, 0.0
        %v4169 = vmax.f32 %v4105, 0.0
        %v4170 = vmax.f32 %v4106, 0.0
        %v4171 = vmax.f32 %v4107, 0.0
        %v4172 = vmax.f32 %v4108, 0.0
        %v4173 = vmax.f32 %v4109, 0.0
        %v4174 = vmax.f32 %v4110, 0.0
        %v4175 = vmax.f32 %v4111, 0.0
        %v4176 = vmax.f32 %v4112, 0.0
        %v4177 = vmax.f32 %v4113, 0.0
        %v4178 = vmax.f32 %v4114, 0.0
        %v4179 = vmax.f32 %v4115, 0.0
        %v4180 = vmax.f32 %v4116, 0.0
        %v4181 = vmax.f32 %v4117, 0.0
        %v4182 = vmax.f32 %v4118, 0.0
        %v4183 = vmax.f32 %v4119, 0.0
        %v4184 = vmax.f32 %v4120, 0.0
        %v4185 = vmax.f32 %v4121, 0.0
        %v4186 = vmax.f32 %v4122, 0.0
        %v4187 = vmax.f32 %v4123, 0.0
        %v4188 = vmax.f32 %v4124, 0.0
        %v4189 = vmax.f32 %v4125, 0.0
        %v4190 = vmax.f32 %v4126, 0.0
        %v4191 = vmax.f32 %v4127, 0.0
        %v4192 = vmax.f32 %v4128, 0.0
        %v4193 = vmax.f32 %v4129, 0.0
        %v4194 = vmax.f32 %v4130, 0.0
        %v4195 = vmax.f32 %v4131, 0.0
        %v4196 = vmax.f32 %v4132, 0.0
        %v4197 = vmax.f32 %v4133, 0.0
        %v4198 = vmax.f32 %v4134, 0.0
        %v4199 = vmax.f32 %v4135, 0.0
        %v4200 = vmax.f32 %v4136, 0.0
        %v4201 = vmax.f32 %v4137, 0.0
        %v4202 = vmax.f32 %v4138, 0.0
        %v4203 = vmax.f32 %v4139, 0.0
        %v4204 = vmax.f32 %v4140, 0.0
        %v4205 = vmax.f32 %v4141, 0.0
        %v4206 = vmax.f32 %v4142, 0.0
        %v4207 = vmax.f32 %v4143, 0.0
        %v4208 = vmax.f32 %v4144, 0.0
        %v4209 = vmax.f32 %v4145, 0.0
        %v4210 = vmax.f32 %v4146, 0.0
        %v4211 = vmax.f32 %v4147, 0.0
        %v4212 = vmax.f32 %v4148, 0.0
        %v4213 = vmax.f32 %v4149, 0.0
        %v4214 = vmax.f32 %v4150, 0.0
        %v4215 = vmax.f32 %v4151, 0.0
        %v4216 = vmax.f32 %v4152, 0.0
        %v4217 = vmax.f32 %v4153, 0.0
        %v4218 = vmax.f32 %v4154, 0.0
        %v4219 = vmax.f32 %v4155, 0.0
        %v4220 = vmax.f32 %v4156, 0.0
        %v4221 = vmax.f32 %v4157, 0.0
        %v4222 = vmax.f32 %v4158, 0.0
        %v4223 = vmax.f32 %v4159, 0.0
        %v4224 = vpack.c.bf16 %v4161, %v4160
        %v4225 = vpack.c.bf16 %v4163, %v4162
        %v4226 = vpack.c.bf16 %v4165, %v4164
        %v4227 = vpack.c.bf16 %v4167, %v4166
        %v4228 = vpack.c.bf16 %v4169, %v4168
        %v4229 = vpack.c.bf16 %v4171, %v4170
        %v4230 = vpack.c.bf16 %v4173, %v4172
        %v4231 = vpack.c.bf16 %v4175, %v4174
        %v4232 = vpack.c.bf16 %v4177, %v4176
        %v4233 = vpack.c.bf16 %v4179, %v4178
        %v4234 = vpack.c.bf16 %v4181, %v4180
        %v4235 = vpack.c.bf16 %v4183, %v4182
        %v4236 = vpack.c.bf16 %v4185, %v4184
        %v4237 = vpack.c.bf16 %v4187, %v4186
        %v4238 = vpack.c.bf16 %v4189, %v4188
        %v4239 = vpack.c.bf16 %v4191, %v4190
        %v4240 = vpack.c.bf16 %v4193, %v4192
        %v4241 = vpack.c.bf16 %v4195, %v4194
        %v4242 = vpack.c.bf16 %v4197, %v4196
        %v4243 = vpack.c.bf16 %v4199, %v4198
        %v4244 = vpack.c.bf16 %v4201, %v4200
        %v4245 = vpack.c.bf16 %v4203, %v4202
        %v4246 = vpack.c.bf16 %v4205, %v4204
        %v4247 = vpack.c.bf16 %v4207, %v4206
        %v4248 = vpack.c.bf16 %v4209, %v4208
        %v4249 = vpack.c.bf16 %v4211, %v4210
        %v4250 = vpack.c.bf16 %v4213, %v4212
        %v4251 = vpack.c.bf16 %v4215, %v4214
        %v4252 = vpack.c.bf16 %v4217, %v4216
        %v4253 = vpack.c.bf16 %v4219, %v4218
        %v4254 = vpack.c.bf16 %v4221, %v4220
        %v4255 = vpack.c.bf16 %v4223, %v4222
        %4256 = vst [vmem:[%s582] sm:$0xff] %v4224
        %4257 = vst [vmem:[%s582 + $0x8] sm:$0xff] %v4225
        %4258 = vst [vmem:[%s582 + $0x10] sm:$0xff] %v4226
        %4259 = vst [vmem:[%s582 + $0x18] sm:$0xff] %v4227
        %4260 = vst [vmem:[%s582 + $0x20] sm:$0xff] %v4228
        %4261 = vst [vmem:[%s582 + $0x28] sm:$0xff] %v4229
        %4262 = vst [vmem:[%s582 + $0x30] sm:$0xff] %v4230
        %4263 = vst [vmem:[%s582 + $0x38] sm:$0xff] %v4231
        %4264 = vst [vmem:[%s582 + $0x40] sm:$0xff] %v4232
        %4265 = vst [vmem:[%s582 + $0x48] sm:$0xff] %v4233
        %4266 = vst [vmem:[%s582 + $0x50] sm:$0xff] %v4234
        %4267 = vst [vmem:[%s582 + $0x58] sm:$0xff] %v4235
        %4268 = vst [vmem:[%s582 + $0x60] sm:$0xff] %v4236
        %4269 = vst [vmem:[%s582 + $0x68] sm:$0xff] %v4237
        %4270 = vst [vmem:[%s582 + $0x70] sm:$0xff] %v4238
        %4271 = vst [vmem:[%s582 + $0x78] sm:$0xff] %v4239
        %4272 = vst [vmem:[%s582 + $0x80] sm:$0xff] %v4240
        %4273 = vst [vmem:[%s582 + $0x88] sm:$0xff] %v4241
        %4274 = vst [vmem:[%s582 + $0x90] sm:$0xff] %v4242
        %4275 = vst [vmem:[%s582 + $0x98] sm:$0xff] %v4243
        %4276 = vst [vmem:[%s582 + $0xa0] sm:$0xff] %v4244
        %4277 = vst [vmem:[%s582 + $0xa8] sm:$0xff] %v4245
        %4278 = vst [vmem:[%s582 + $0xb0] sm:$0xff] %v4246
        %4279 = vst [vmem:[%s582 + $0xb8] sm:$0xff] %v4247
        %4280 = vst [vmem:[%s582 + $0xc0] sm:$0xff] %v4248
        %4281 = vst [vmem:[%s582 + $0xc8] sm:$0xff] %v4249
        %4282 = vst [vmem:[%s582 + $0xd0] sm:$0xff] %v4250
        %4283 = vst [vmem:[%s582 + $0xd8] sm:$0xff] %v4251
        %4284 = vst [vmem:[%s582 + $0xe0] sm:$0xff] %v4252
        %4285 = vst [vmem:[%s582 + $0xe8] sm:$0xff] %v4253
        %4286 = vst [vmem:[%s582 + $0xf0] sm:$0xff] %v4254
        %4287 = vst [vmem:[%s582 + $0xf8] sm:$0xff] %v4255
        %s4288 = sand.u32 %s344, 1
        %s4289 = scalar_lea.sflag [#allocation4], %s4288
        %s4290 = sand.u32 %s344, 1
        %s4291 = smul.addr %s4290, 256
        %s4292 = scalar_lea.vmem [#allocation10], %s4291
        // Predicated region
        $region85: #{tpu_custom_call.1} parent=67 // pred_check
          %p4293 = pneg %p354
        $region86: #{tpu_custom_call.1} parent=67 // pred_check_branch
          %4295 = sbr.rel (%p4293) target = $region88
        $region87: #{tpu_custom_call.1} parent=67 // pred_region
          %s4296 = smul.u32 16, %s38
          %4298 = vsyncadd %s4289, 0
          %s4299 = smul.addr %s4296, 4
          %s4300 = smul.addr %s37, 64
          %s4301 = sadd.s32 %s4299, %s4300
          %s4302 = smul.addr %s4301, 4
          %s4303 = scalar_lea.hbm %s12, %s4302
          %s4304 = sshll.u32 %s4292, 4
          %s4305 = int_to_ptr.vmem [resolvable:$true] %s4304
          %s4306 = sshll.u32 %s4303, 4
          %s4307 = int_to_ptr.hbm [resolvable:$true] %s4306
          %4312 = dma.vmem_to_hbm [thread:$0]  %s4305, 4096, %s4307, %s4289, 128, 128, 8
        $region88: #{tpu_custom_call.1} parent=67 // pred_fallthru
          _
      $region68: #{tpu_custom_call.1} parent=5 // pred_fallthru
        _
      %p4313 = scmp.le.s32.totalorder 2, %s28
      // Predicated region
      $region89: #{tpu_custom_call.1} parent=5 // pred_check
        %p4314 = pneg %p4313
      $region90: #{tpu_custom_call.1} parent=5 // pred_check_branch
        %4316 = sbr.rel (%p4314) target = $region92
      $region91: #{tpu_custom_call.1} parent=5 // pred_region
        %s4317 = ssub.s32 %s28, 2
        // Predicated region
        $region93: #{tpu_custom_call.1} parent=91 // pred_check
          %p4318 = pneg %p360
        $region94: #{tpu_custom_call.1} parent=91 // pred_check_branch
          %4320 = sbr.rel (%p4318) target = $region96
        $region95: #{tpu_custom_call.1} parent=91 // pred_region
          %s4321 = sand.u32 %s345, 1
          %s4322 = scalar_lea.sflag [#allocation4], %s4321
          %s4323 = sand.u32 %s345, 1
          %s4324 = smul.addr %s4323, 256
          %s4325 = scalar_lea.vmem [#allocation10], %s4324
          %4327 = dma.done %s4322, 4096
        $region96: #{tpu_custom_call.1} parent=91 // pred_fallthru
          _
      $region92: #{tpu_custom_call.1} parent=5 // pred_fallthru
        _
    $region6: #{tpu_custom_call.1} parent=1 // loop_footer
      %s32 = sadd.s32 1, %s28
    $region7: #{tpu_custom_call.1} parent=1 // loop_footer_branch
      %27 = sbr.rel target = $region3
    $region8: #{tpu_custom_call.1} parent=1 // loop_exit
      _
    %4328 = vsyncpa [#allocation3], 1
    %s4329 = scalar_lea.sflag [#allocation3], 1
    %4330 = vsyncpa %s4329, 1
    %4331 = vsyncpa [#allocation6], 1
    %s4332 = scalar_lea.sflag [#allocation6], 1
    %4333 = vsyncpa %s4332, 1
    %4334 = vsyncpa [#allocation9], 1
    %4335 = vsyncpa [#allocation4], 1
    %s4336 = scalar_lea.sflag [#allocation4], 1
    %4337 = vsyncpa %s4336, 1

</llo_original>
